<compile_context>
chip_gen: v7x
topology: tpu7x:2x2x1
jax: 0.10.0
libtpu: 0.0.40
codegen_flags: <defaults>
</compile_context>

<pallas_src>
import functools

import jax
import jax.numpy as jnp
from jax.experimental import pallas as pl
from jax.experimental.pallas import tpu as pltpu

_BN_EPS = 1e-5
_LANE = 128  # lane width of the lane-dense kernel output (padded C_out axis)


def _round_up(v, mult):
    return (v + mult - 1) // mult * mult


# ----------------------------- Pallas kernel ---------------------------------
def _make_basic_block_kernel(n, h, w, cin, mid, stride, k1_pad, k2_pad):
    """Fused BasicBlock kernel for an (n, h+2, w+2, cin) NHWC bf16 input (1px zero halo
    added by the wrapper).  Output: (n*ho*wo, 128) f32, real channels in lanes [0, out)."""
    ho = (h - 1) // stride + 1
    wo = (w - 1) // stride + 1
    m = n * ho * wo
    inv_m = 1.0 / m

    def packed_patch(ref, c, s, k_pad):
        """Tap-packed bf16 im2col operand (m, k_pad); column (dy*3+dx)*c + cc holds
        ref[n, dy + s*y, dx + s*x, cc].  One MXU matmul per conv instead of nine."""
        parts = []
        for dy in range(3):
            for dx in range(3):
                if s == 1:
                    p = ref[:, pl.ds(dy, ho), pl.ds(dx, wo), :]
                else:
                    p = ref[:, pl.ds(dy, ho, s), pl.ds(dx, wo, s), :]
                parts.append(p.reshape(m, c).astype(jnp.bfloat16))
        if k_pad > 9 * c:
            parts.append(jnp.zeros((m, k_pad - 9 * c), jnp.bfloat16))
        return jnp.concatenate(parts, axis=-1)

    def bn_scale_shift(acc, gamma, beta, ones_row):
        """Train-mode BatchNorm folded into one scale/shift FMA.  Stats stay in f32
        (E[x^2]-E[x]^2, clamped at 0); padded channels have gamma=beta=0 so they stay 0.
        # TODO(synk): BatchNorm running_mean/var buffer updates (training side effect)
        # are not emitted by this forward.
        """
        ssum = jnp.dot(ones_row, acc, preferred_element_type=jnp.float32)        # (1, C)
        ssq = jnp.dot(ones_row, acc * acc, preferred_element_type=jnp.float32)   # (1, C)
        mean = ssum * inv_m                               # 1/m folded as a scalar
        var = jnp.maximum(ssq * inv_m - mean * mean, 0.0)
        scale = gamma * jax.lax.rsqrt(var + _BN_EPS)
        shift = beta - mean * scale
        return scale, shift

    def kernel(x_ref, w1_ref, w2_ref, wd_ref,
               g1_ref, b1_ref, g2_ref, b2_ref, gd_ref, bd_ref,
               out_ref, y1p_ref):
        ones_row = jnp.ones((1, m), jnp.float32)   # hoisted; shared by all three BNs

        # ---- conv1 (3x3/stride/pad1) and downsample (1x1/stride/pad0) share ONE packed
        #      bf16 patch; the 1x1 weight lives in the center-tap rows of wd_ref. ----
        patch1 = packed_patch(x_ref, cin, stride, k1_pad)                          # bf16
        acc1 = jnp.dot(patch1, w1_ref[...], preferred_element_type=jnp.float32)    # (m, mid) f32
        s1, t1 = bn_scale_shift(acc1, g1_ref[...], b1_ref[...], ones_row)
        y1 = jnp.maximum(acc1 * s1 + t1, 0.0)                                      # f32

        accd = jnp.dot(patch1, wd_ref[...], preferred_element_type=jnp.float32)    # (m, 128) f32
        sd, td = bn_scale_shift(accd, gd_ref[...], bd_ref[...], ones_row)
        residual = accd * sd + td                  # padded lanes stay exactly 0

        # ---- stage y1 in VMEM with a 1px zero halo for conv2 (halo-only zeroing; only the
        #      real `mid` channels are stored -- never leaves VMEM). ----
        zrow = jnp.zeros((n, 1, wo + 2, mid), jnp.float32)
        zcol = jnp.zeros((n, ho + 2, 1, mid), jnp.float32)
        y1p_ref[:, 0:1, :, :] = zrow
        y1p_ref[:, ho + 1:ho + 2, :, :] = zrow
        y1p_ref[:, :, 0:1, :] = zcol
        y1p_ref[:, :, wo + 1:wo + 2, :] = zcol
        y1p_ref[:, 1:ho + 1, 1:wo + 1, :] = y1.reshape(n, ho, wo, mid)

        # ---- conv2: 3x3 / stride=1 / pad=1 over the VMEM-resident y1, one matmul ----
        patch2 = packed_patch(y1p_ref, mid, 1, k2_pad)                             # bf16
        acc2 = jnp.dot(patch2, w2_ref[...], preferred_element_type=jnp.float32)    # (m, 128) f32
        s2, t2 = bn_scale_shift(acc2, g2_ref[...], b2_ref[...], ones_row)

        # BN2 + residual add + final ReLU, stored lane-dense (m, 128) -> unmasked vst.
        out_ref[...] = jnp.maximum(acc2 * s2 + t2 + residual, 0.0)

    return kernel


# ------------------------- one-time parameter packing --------------------------
def pack_block_params(params, bn_params, in_channel, mid_channel, out_channel):
    """Slimmable-slice + tap-pack the conv weights into MXU-ready bf16 matrices and pad the
    BN affine params.  Done ONCE per (in, mid, out) configuration, outside the per-forward
    path."""
    cin, mid, out = in_channel, mid_channel, out_channel
    k1 = _round_up(9 * cin, _LANE)   # packed contraction length of conv1 / downsample
    k2 = _round_up(9 * mid, _LANE)   # packed contraction length of conv2

    # conv1: OIHW (mid, cin, 3, 3) -> row (dy*3+dx)*cin + c, cols = mid (unpadded).
    w1 = params["w1"][:mid, :cin]
    w1p = jnp.transpose(w1, (2, 3, 1, 0)).reshape(9 * cin, mid)
    w1p = jnp.pad(w1p, ((0, k1 - 9 * cin), (0, 0))).astype(jnp.bfloat16)

    # conv2: OIHW (out, mid, 3, 3) -> row (dy*3+dx)*mid + c, cols zero-padded to 128 lanes.
    w2 = params["w2"][:out, :mid]
    w2p = jnp.transpose(w2, (2, 3, 1, 0)).reshape(9 * mid, out)
    w2p = jnp.pad(w2p, ((0, k2 - 9 * mid), (0, _LANE - out))).astype(jnp.bfloat16)

    # downsample 1x1: placed in the center-tap rows so it reuses conv1's packed patch.
    wd = params["wd"][:out, :cin, 0, 0]                                # (out, cin)
    wdp = jnp.zeros((k1, _LANE), jnp.float32)
    wdp = wdp.at[4 * cin:5 * cin, :out].set(wd.T).astype(jnp.bfloat16)

    def pad_bn(gamma, beta, width):
        # zero-padded gamma/beta keep padded channels exactly 0 through BN/residual/ReLU
        return (jnp.pad(gamma.astype(jnp.float32), (0, width - gamma.shape[0])).reshape(1, width),
                jnp.pad(beta.astype(jnp.float32), (0, width - beta.shape[0])).reshape(1, width))

    g1, b1 = pad_bn(*bn_params["conv1"][mid], mid)
    g2, b2 = pad_bn(*bn_params["conv2"][out], _LANE)
    gd, bd = pad_bn(*bn_params["down"][out], _LANE)
    return dict(w1=w1p, w2=w2p, wd=wdp, g1=g1, b1=b1, g2=g2, b2=b2, gd=gd, bd=bd)


# ------------------------------ forward wrapper ---------------------------------
@functools.partial(jax.jit, static_argnames=("stride",))
def basic_block_forward(x_nchw, packed, stride=1):
    """Fused BasicBlock forward.

    Returns the lane-dense activation (n, ho, wo, 128) f32 (NHWC, real channels in lanes
    [0, out_channel), exact zeros above).  Keep this layout flowing between blocks; the
    NCHW + channel-slice conversion should only happen at a real consumer boundary."""
    n, cin, h, w = x_nchw.shape
    ho = (h - 1) // stride + 1
    wo = (w - 1) // stride + 1
    m = n * ho * wo
    mid = packed["w1"].shape[-1]
    k1_pad = packed["w1"].shape[0]
    k2_pad = packed["w2"].shape[0]

    # NCHW -> NHWC + 1px zero halo, cast the MXU operand to bf16.  Channels are NOT
    # lane-padded to 128 anymore (the explicit 32x HBM pad round-trip is gone).
    x = jnp.transpose(x_nchw, (0, 2, 3, 1)).astype(jnp.bfloat16)
    xp = jnp.pad(x, ((0, 0), (1, 1), (1, 1), (0, 0)))

    kernel = _make_basic_block_kernel(n, h, w, cin, mid, stride, k1_pad, k2_pad)
    vmem = pl.BlockSpec(memory_space=pltpu.MemorySpace.VMEM)
    out = pl.pallas_call(
        kernel,
        out_shape=jax.ShapeDtypeStruct((m, _LANE), jnp.float32),
        in_specs=[vmem] * 10,
        out_specs=vmem,
        # conv1 activation (+1px halo), real `mid` channels only, staged in VMEM.
        scratch_shapes=[pltpu.VMEM((n, ho + 2, wo + 2, mid), jnp.float32)],
    )(xp, packed["w1"], packed["w2"], packed["wd"],
      packed["g1"], packed["b1"], packed["g2"], packed["b2"],
      packed["gd"], packed["bd"])
    return out.reshape(n, ho, wo, _LANE)


# ----------------------------- pure-JAX reference ------------------------------
def _ref_forward(x, params, bn_params, mid_channel, out_channel, stride=1):
    def conv(x, w, s, p):
        return jax.lax.conv_general_dilated(
            x, w, (s, s), [(p, p), (p, p)], dimension_numbers=("NCHW", "OIHW", "NCHW")
        )

    def bn(x, gamma, beta):
        mean = jnp.mean(x, axis=(0, 2, 3), keepdims=True)
        var = jnp.mean((x - mean) ** 2, axis=(0, 2, 3), keepdims=True)
        xn = (x - mean) * jax.lax.rsqrt(var + _BN_EPS)
        return xn * gamma[None, :, None, None] + beta[None, :, None, None]

    inc = x.shape[1]
    y = conv(x, params["w1"][:mid_channel, :inc], stride, 1)
    y = jax.nn.relu(bn(y, *bn_params["conv1"][mid_channel]))
    y2 = conv(y, params["w2"][:out_channel, :mid_channel], 1, 1)
    y2 = bn(y2, *bn_params["conv2"][out_channel])
    r = conv(x, params["wd"][:out_channel, :inc], stride, 0)
    r = bn(r, *bn_params["down"][out_channel])
    return jax.nn.relu(y2 + r)


# ----------------------------------- main ---------------------------------------
if __name__ == "__main__":
    in_choices = [2, 4]
    mid_choices = [4, 8]
    out_choices = [8, 16]
    max_in, max_mid, max_out = max(in_choices), max(mid_choices), max(out_choices)

    key = jax.random.PRNGKey(0)
    kw1, kw2, kw3, kx = jax.random.split(key, 4)

    # Conv weights in PyTorch OIHW layout (bias=False throughout).
    params = {
        "w1": 0.1 * jax.random.normal(kw1, (max_mid, max_in, 3, 3), jnp.float32),
        "w2": 0.1 * jax.random.normal(kw2, (max_out, max_mid, 3, 3), jnp.float32),
        "wd": 0.1 * jax.random.normal(kw3, (max_out, max_in, 1, 1), jnp.float32),
    }
    # BatchNorm2d params per channel-choice (PyTorch init: weight=1, bias=0).
    bn_params = {
        "conv1": {c: (jnp.ones((c,), jnp.float32), jnp.zeros((c,), jnp.float32)) for c in mid_choices},
        "conv2": {c: (jnp.ones((c,), jnp.float32), jnp.zeros((c,), jnp.float32)) for c in out_choices},
        "down": {c: (jnp.ones((c,), jnp.float32), jnp.zeros((c,), jnp.float32)) for c in out_choices},
    }

    x = jax.random.normal(kx, (2, 4, 16, 16), jnp.float32)  # NCHW, in_channel=4
    mid_channel, out_channel = 4, 8

    # One-time weight tap-packing (outside the per-forward path).
    packed = pack_block_params(params, bn_params, x.shape[1], mid_channel, out_channel)

    out_padded = basic_block_forward(x, packed, stride=1)          # (2, 16, 16, 128) f32
    out_padded = jax.block_until_ready(out_padded)
    assert out_padded.shape == (2, 16, 16, 128), out_padded.shape

    # NCHW / channel-sliced view ONLY for checking against the PyTorch-layout reference.
    out = jnp.transpose(out_padded[..., :out_channel], (0, 3, 1, 2))
    assert out.shape == (2, out_channel, 16, 16), out.shape

    ref = _ref_forward(x, params, bn_params, mid_channel, out_channel, stride=1)
    max_err = float(jnp.max(jnp.abs(out - ref)))
    # bf16 MXU operands (f32 accumulation / BN math) -> bf16-level tolerance.
    assert jnp.allclose(out, ref, rtol=2e-2, atol=2e-2), max_err
    # Padded output lanes must stay (numerically) zero.
    assert float(jnp.max(jnp.abs(out_padded[..., out_channel:]))) < 1e-6

    print("KERNEL_OK")
</pallas_src>

<mosaic_0001>
module attributes {stable_mosaic.version = 11 : i64} {
  func.func @kernel(%arg0: memref<2x18x18x4xbf16, #tpu.memory_space<vmem>>, %arg1: memref<128x4xbf16, #tpu.memory_space<vmem>>, %arg2: memref<128x128xbf16, #tpu.memory_space<vmem>>, %arg3: memref<128x128xbf16, #tpu.memory_space<vmem>>, %arg4: memref<1x4xf32, #tpu.memory_space<vmem>>, %arg5: memref<1x4xf32, #tpu.memory_space<vmem>>, %arg6: memref<1x128xf32, #tpu.memory_space<vmem>>, %arg7: memref<1x128xf32, #tpu.memory_space<vmem>>, %arg8: memref<1x128xf32, #tpu.memory_space<vmem>>, %arg9: memref<1x128xf32, #tpu.memory_space<vmem>>, %arg10: memref<512x128xf32, #tpu.memory_space<vmem>>, %arg11: memref<2x18x18x4xf32, #tpu.memory_space<vmem>>) attributes {dimension_semantics = [], scalar_prefetch = 0 : i64, scratch_operands = 1 : i64, tpu.core_type = #tpu.core_type<tc>} {
    %cst = arith.constant 1.000000e+00 : f32
    %0 = vector.broadcast %cst : f32 to vector<1x512xf32>
    %c0 = arith.constant 0 : index
    %c0_0 = arith.constant 0 : index
    %c0_1 = arith.constant 0 : index
    %c0_2 = arith.constant 0 : index
    %1 = vector.load %arg0[%c0, %c0_0, %c0_1, %c0_2] : memref<2x18x18x4xbf16, #tpu.memory_space<vmem>>, vector<2x16x16x4xbf16>
    %2 = vector.shape_cast %1 : vector<2x16x16x4xbf16> to vector<512x4xbf16>
    %c0_3 = arith.constant 0 : index
    %c0_4 = arith.constant 0 : index
    %c1 = arith.constant 1 : index
    %c0_5 = arith.constant 0 : index
    %3 = vector.load %arg0[%c0_3, %c0_4, %c1, %c0_5] : memref<2x18x18x4xbf16, #tpu.memory_space<vmem>>, vector<2x16x16x4xbf16>
    %4 = vector.shape_cast %3 : vector<2x16x16x4xbf16> to vector<512x4xbf16>
    %c0_6 = arith.constant 0 : index
    %c0_7 = arith.constant 0 : index
    %c2 = arith.constant 2 : index
    %c0_8 = arith.constant 0 : index
    %5 = vector.load %arg0[%c0_6, %c0_7, %c2, %c0_8] : memref<2x18x18x4xbf16, #tpu.memory_space<vmem>>, vector<2x16x16x4xbf16>
    %6 = vector.shape_cast %5 : vector<2x16x16x4xbf16> to vector<512x4xbf16>
    %c0_9 = arith.constant 0 : index
    %c1_10 = arith.constant 1 : index
    %c0_11 = arith.constant 0 : index
    %c0_12 = arith.constant 0 : index
    %7 = vector.load %arg0[%c0_9, %c1_10, %c0_11, %c0_12] : memref<2x18x18x4xbf16, #tpu.memory_space<vmem>>, vector<2x16x16x4xbf16>
    %8 = vector.shape_cast %7 : vector<2x16x16x4xbf16> to vector<512x4xbf16>
    %c0_13 = arith.constant 0 : index
    %c1_14 = arith.constant 1 : index
    %c1_15 = arith.constant 1 : index
    %c0_16 = arith.constant 0 : index
    %9 = vector.load %arg0[%c0_13, %c1_14, %c1_15, %c0_16] : memref<2x18x18x4xbf16, #tpu.memory_space<vmem>>, vector<2x16x16x4xbf16>
    %10 = vector.shape_cast %9 : vector<2x16x16x4xbf16> to vector<512x4xbf16>
    %c0_17 = arith.constant 0 : index
    %c1_18 = arith.constant 1 : index
    %c2_19 = arith.constant 2 : index
    %c0_20 = arith.constant 0 : index
    %11 = vector.load %arg0[%c0_17, %c1_18, %c2_19, %c0_20] : memref<2x18x18x4xbf16, #tpu.memory_space<vmem>>, vector<2x16x16x4xbf16>
    %12 = vector.shape_cast %11 : vector<2x16x16x4xbf16> to vector<512x4xbf16>
    %c0_21 = arith.constant 0 : index
    %c2_22 = arith.constant 2 : index
    %c0_23 = arith.constant 0 : index
    %c0_24 = arith.constant 0 : index
    %13 = vector.load %arg0[%c0_21, %c2_22, %c0_23, %c0_24] : memref<2x18x18x4xbf16, #tpu.memory_space<vmem>>, vector<2x16x16x4xbf16>
    %14 = vector.shape_cast %13 : vector<2x16x16x4xbf16> to vector<512x4xbf16>
    %c0_25 = arith.constant 0 : index
    %c2_26 = arith.constant 2 : index
    %c1_27 = arith.constant 1 : index
    %c0_28 = arith.constant 0 : index
    %15 = vector.load %arg0[%c0_25, %c2_26, %c1_27, %c0_28] : memref<2x18x18x4xbf16, #tpu.memory_space<vmem>>, vector<2x16x16x4xbf16>
    %16 = vector.shape_cast %15 : vector<2x16x16x4xbf16> to vector<512x4xbf16>
    %c0_29 = arith.constant 0 : index
    %c2_30 = arith.constant 2 : index
    %c2_31 = arith.constant 2 : index
    %c0_32 = arith.constant 0 : index
    %17 = vector.load %arg0[%c0_29, %c2_30, %c2_31, %c0_32] : memref<2x18x18x4xbf16, #tpu.memory_space<vmem>>, vector<2x16x16x4xbf16>
    %18 = vector.shape_cast %17 : vector<2x16x16x4xbf16> to vector<512x4xbf16>
    %cst_33 = arith.constant 0.000000e+00 : bf16
    %19 = vector.broadcast %cst_33 : bf16 to vector<512x92xbf16>
    %20 = tpu.concatenate %2, %4, %6, %8, %10, %12, %14, %16, %18, %19 in 1 : vector<512x4xbf16>, vector<512x4xbf16>, vector<512x4xbf16>, vector<512x4xbf16>, vector<512x4xbf16>, vector<512x4xbf16>, vector<512x4xbf16>, vector<512x4xbf16>, vector<512x4xbf16>, vector<512x92xbf16> -> vector<512x128xbf16>
    %c0_34 = arith.constant 0 : index
    %c0_35 = arith.constant 0 : index
    %21 = vector.load %arg1[%c0_34, %c0_35] : memref<128x4xbf16, #tpu.memory_space<vmem>>, vector<128x4xbf16>
    %cst_36 = arith.constant dense<0.000000e+00> : vector<512x4xf32>
    %22 = tpu.matmul %20, %21, %cst_36 {dimension_numbers = #tpu.dot_dimension_numbers<[1], [0], [0], [1], [0, 0, 1, 1], [], []>} : vector<512x128xbf16>, vector<128x4xbf16>, vector<512x4xf32> -> vector<512x4xf32>
    %c0_37 = arith.constant 0 : index
    %c0_38 = arith.constant 0 : index
    %23 = vector.load %arg4[%c0_37, %c0_38] : memref<1x4xf32, #tpu.memory_space<vmem>>, vector<1x4xf32>
    %c0_39 = arith.constant 0 : index
    %c0_40 = arith.constant 0 : index
    %24 = vector.load %arg5[%c0_39, %c0_40] : memref<1x4xf32, #tpu.memory_space<vmem>>, vector<1x4xf32>
    %cst_41 = arith.constant dense<0.000000e+00> : vector<1x4xf32>
    %25 = tpu.matmul %0, %22, %cst_41 {dimension_numbers = #tpu.dot_dimension_numbers<[1], [0], [0], [1], [0, 0, 1, 1], [], []>} : vector<1x512xf32>, vector<512x4xf32>, vector<1x4xf32> -> vector<1x4xf32>
    %26 = arith.mulf %22, %22 : vector<512x4xf32>
    %cst_42 = arith.constant dense<0.000000e+00> : vector<1x4xf32>
    %27 = tpu.matmul %0, %26, %cst_42 {dimension_numbers = #tpu.dot_dimension_numbers<[1], [0], [0], [1], [0, 0, 1, 1], [], []>} : vector<1x512xf32>, vector<512x4xf32>, vector<1x4xf32> -> vector<1x4xf32>
    %cst_43 = arith.constant 0.001953125 : f32
    %28 = vector.broadcast %cst_43 : f32 to vector<1x4xf32>
    %29 = arith.mulf %25, %28 : vector<1x4xf32>
    %cst_44 = arith.constant 0.001953125 : f32
    %30 = vector.broadcast %cst_44 : f32 to vector<1x4xf32>
    %31 = arith.mulf %27, %30 : vector<1x4xf32>
    %32 = arith.mulf %29, %29 : vector<1x4xf32>
    %33 = arith.subf %31, %32 : vector<1x4xf32>
    %cst_45 = arith.constant 0.000000e+00 : f32
    %34 = vector.broadcast %cst_45 : f32 to vector<1x4xf32>
    %35 = arith.maximumf %33, %34 : vector<1x4xf32>
    %cst_46 = arith.constant 9.99999974E-6 : f32
    %36 = vector.broadcast %cst_46 : f32 to vector<1x4xf32>
    %37 = arith.addf %35, %36 : vector<1x4xf32>
    %38 = math.rsqrt %37 : vector<1x4xf32>
    %39 = arith.mulf %23, %38 : vector<1x4xf32>
    %40 = arith.mulf %29, %39 : vector<1x4xf32>
    %41 = arith.subf %24, %40 : vector<1x4xf32>
    %42 = vector.broadcast %39 : vector<1x4xf32> to vector<512x4xf32>
    %43 = arith.mulf %22, %42 : vector<512x4xf32>
    %44 = vector.broadcast %41 : vector<1x4xf32> to vector<512x4xf32>
    %45 = arith.addf %43, %44 : vector<512x4xf32>
    %cst_47 = arith.constant 0.000000e+00 : f32
    %46 = vector.broadcast %cst_47 : f32 to vector<512x4xf32>
    %47 = arith.maximumf %45, %46 : vector<512x4xf32>
    %c0_48 = arith.constant 0 : index
    %c0_49 = arith.constant 0 : index
    %48 = vector.load %arg3[%c0_48, %c0_49] : memref<128x128xbf16, #tpu.memory_space<vmem>>, vector<128x128xbf16>
    %cst_50 = arith.constant dense<0.000000e+00> : vector<512x128xf32>
    %49 = tpu.matmul %20, %48, %cst_50 {dimension_numbers = #tpu.dot_dimension_numbers<[1], [0], [0], [1], [0, 0, 1, 1], [], []>} : vector<512x128xbf16>, vector<128x128xbf16>, vector<512x128xf32> -> vector<512x128xf32>
    %c0_51 = arith.constant 0 : index
    %c0_52 = arith.constant 0 : index
    %50 = vector.load %arg8[%c0_51, %c0_52] : memref<1x128xf32, #tpu.memory_space<vmem>>, vector<1x128xf32>
    %c0_53 = arith.constant 0 : index
    %c0_54 = arith.constant 0 : index
    %51 = vector.load %arg9[%c0_53, %c0_54] : memref<1x128xf32, #tpu.memory_space<vmem>>, vector<1x128xf32>
    %cst_55 = arith.constant dense<0.000000e+00> : vector<1x128xf32>
    %52 = tpu.matmul %0, %49, %cst_55 {dimension_numbers = #tpu.dot_dimension_numbers<[1], [0], [0], [1], [0, 0, 1, 1], [], []>} : vector<1x512xf32>, vector<512x128xf32>, vector<1x128xf32> -> vector<1x128xf32>
    %53 = arith.mulf %49, %49 : vector<512x128xf32>
    %cst_56 = arith.constant dense<0.000000e+00> : vector<1x128xf32>
    %54 = tpu.matmul %0, %53, %cst_56 {dimension_numbers = #tpu.dot_dimension_numbers<[1], [0], [0], [1], [0, 0, 1, 1], [], []>} : vector<1x512xf32>, vector<512x128xf32>, vector<1x128xf32> -> vector<1x128xf32>
    %cst_57 = arith.constant 0.001953125 : f32
    %55 = vector.broadcast %cst_57 : f32 to vector<1x128xf32>
    %56 = arith.mulf %52, %55 : vector<1x128xf32>
    %cst_58 = arith.constant 0.001953125 : f32
    %57 = vector.broadcast %cst_58 : f32 to vector<1x128xf32>
    %58 = arith.mulf %54, %57 : vector<1x128xf32>
    %59 = arith.mulf %56, %56 : vector<1x128xf32>
    %60 = arith.subf %58, %59 : vector<1x128xf32>
    %cst_59 = arith.constant 0.000000e+00 : f32
    %61 = vector.broadcast %cst_59 : f32 to vector<1x128xf32>
    %62 = arith.maximumf %60, %61 : vector<1x128xf32>
    %cst_60 = arith.constant 9.99999974E-6 : f32
    %63 = vector.broadcast %cst_60 : f32 to vector<1x128xf32>
    %64 = arith.addf %62, %63 : vector<1x128xf32>
    %65 = math.rsqrt %64 : vector<1x128xf32>
    %66 = arith.mulf %50, %65 : vector<1x128xf32>
    %67 = arith.mulf %56, %66 : vector<1x128xf32>
    %68 = arith.subf %51, %67 : vector<1x128xf32>
    %69 = vector.broadcast %66 : vector<1x128xf32> to vector<512x128xf32>
    %70 = arith.mulf %49, %69 : vector<512x128xf32>
    %71 = vector.broadcast %68 : vector<1x128xf32> to vector<512x128xf32>
    %72 = arith.addf %70, %71 : vector<512x128xf32>
    %cst_61 = arith.constant 0.000000e+00 : f32
    %73 = vector.broadcast %cst_61 : f32 to vector<2x1x18x4xf32>
    %cst_62 = arith.constant 0.000000e+00 : f32
    %74 = vector.broadcast %cst_62 : f32 to vector<2x18x1x4xf32>
    %c0_63 = arith.constant 0 : index
    %c0_64 = arith.constant 0 : index
    %c0_65 = arith.constant 0 : index
    %c0_66 = arith.constant 0 : index
    %75 = vector.load %arg11[%c0_63, %c0_64, %c0_65, %c0_66] : memref<2x18x18x4xf32, #tpu.memory_space<vmem>>, vector<2x1x18x4xf32>
    tpu.vector_store %arg11[%c0_63, %c0_64, %c0_65, %c0_66], %73 {strides = array<i32>} : memref<2x18x18x4xf32, #tpu.memory_space<vmem>>, vector<2x1x18x4xf32>,
    %c0_67 = arith.constant 0 : index
    %c17 = arith.constant 17 : index
    %c0_68 = arith.constant 0 : index
    %c0_69 = arith.constant 0 : index
    %76 = vector.load %arg11[%c0_67, %c17, %c0_68, %c0_69] : memref<2x18x18x4xf32, #tpu.memory_space<vmem>>, vector<2x1x18x4xf32>
    tpu.vector_store %arg11[%c0_67, %c17, %c0_68, %c0_69], %73 {strides = array<i32>} : memref<2x18x18x4xf32, #tpu.memory_space<vmem>>, vector<2x1x18x4xf32>,
    %c0_70 = arith.constant 0 : index
    %c0_71 = arith.constant 0 : index
    %c0_72 = arith.constant 0 : index
    %c0_73 = arith.constant 0 : index
    %77 = vector.load %arg11[%c0_70, %c0_71, %c0_72, %c0_73] : memref<2x18x18x4xf32, #tpu.memory_space<vmem>>, vector<2x18x1x4xf32>
    tpu.vector_store %arg11[%c0_70, %c0_71, %c0_72, %c0_73], %74 {strides = array<i32>} : memref<2x18x18x4xf32, #tpu.memory_space<vmem>>, vector<2x18x1x4xf32>,
    %c0_74 = arith.constant 0 : index
    %c0_75 = arith.constant 0 : index
    %c17_76 = arith.constant 17 : index
    %c0_77 = arith.constant 0 : index
    %78 = vector.load %arg11[%c0_74, %c0_75, %c17_76, %c0_77] : memref<2x18x18x4xf32, #tpu.memory_space<vmem>>, vector<2x18x1x4xf32>
    tpu.vector_store %arg11[%c0_74, %c0_75, %c17_76, %c0_77], %74 {strides = array<i32>} : memref<2x18x18x4xf32, #tpu.memory_space<vmem>>, vector<2x18x1x4xf32>,
    %79 = vector.shape_cast %47 : vector<512x4xf32> to vector<2x16x16x4xf32>
    %c0_78 = arith.constant 0 : index
    %c1_79 = arith.constant 1 : index
    %c1_80 = arith.constant 1 : index
    %c0_81 = arith.constant 0 : index
    %80 = vector.load %arg11[%c0_78, %c1_79, %c1_80, %c0_81] : memref<2x18x18x4xf32, #tpu.memory_space<vmem>>, vector<2x16x16x4xf32>
    tpu.vector_store %arg11[%c0_78, %c1_79, %c1_80, %c0_81], %79 {strides = array<i32>} : memref<2x18x18x4xf32, #tpu.memory_space<vmem>>, vector<2x16x16x4xf32>,
    %c0_82 = arith.constant 0 : index
    %c0_83 = arith.constant 0 : index
    %c0_84 = arith.constant 0 : index
    %c0_85 = arith.constant 0 : index
    %81 = vector.load %arg11[%c0_82, %c0_83, %c0_84, %c0_85] : memref<2x18x18x4xf32, #tpu.memory_space<vmem>>, vector<2x16x16x4xf32>
    %82 = vector.shape_cast %81 : vector<2x16x16x4xf32> to vector<512x4xf32>
    %83 = arith.truncf %82 : vector<512x4xf32> to vector<512x4xbf16>
    %c0_86 = arith.constant 0 : index
    %c0_87 = arith.constant 0 : index
    %c1_88 = arith.constant 1 : index
    %c0_89 = arith.constant 0 : index
    %84 = vector.load %arg11[%c0_86, %c0_87, %c1_88, %c0_89] : memref<2x18x18x4xf32, #tpu.memory_space<vmem>>, vector<2x16x16x4xf32>
    %85 = vector.shape_cast %84 : vector<2x16x16x4xf32> to vector<512x4xf32>
    %86 = arith.truncf %85 : vector<512x4xf32> to vector<512x4xbf16>
    %c0_90 = arith.constant 0 : index
    %c0_91 = arith.constant 0 : index
    %c2_92 = arith.constant 2 : index
    %c0_93 = arith.constant 0 : index
    %87 = vector.load %arg11[%c0_90, %c0_91, %c2_92, %c0_93] : memref<2x18x18x4xf32, #tpu.memory_space<vmem>>, vector<2x16x16x4xf32>
    %88 = vector.shape_cast %87 : vector<2x16x16x4xf32> to vector<512x4xf32>
    %89 = arith.truncf %88 : vector<512x4xf32> to vector<512x4xbf16>
    %c0_94 = arith.constant 0 : index
    %c1_95 = arith.constant 1 : index
    %c0_96 = arith.constant 0 : index
    %c0_97 = arith.constant 0 : index
    %90 = vector.load %arg11[%c0_94, %c1_95, %c0_96, %c0_97] : memref<2x18x18x4xf32, #tpu.memory_space<vmem>>, vector<2x16x16x4xf32>
    %91 = vector.shape_cast %90 : vector<2x16x16x4xf32> to vector<512x4xf32>
    %92 = arith.truncf %91 : vector<512x4xf32> to vector<512x4xbf16>
    %c0_98 = arith.constant 0 : index
    %c1_99 = arith.constant 1 : index
    %c1_100 = arith.constant 1 : index
    %c0_101 = arith.constant 0 : index
    %93 = vector.load %arg11[%c0_98, %c1_99, %c1_100, %c0_101] : memref<2x18x18x4xf32, #tpu.memory_space<vmem>>, vector<2x16x16x4xf32>
    %94 = vector.shape_cast %93 : vector<2x16x16x4xf32> to vector<512x4xf32>
    %95 = arith.truncf %94 : vector<512x4xf32> to vector<512x4xbf16>
    %c0_102 = arith.constant 0 : index
    %c1_103 = arith.constant 1 : index
    %c2_104 = arith.constant 2 : index
    %c0_105 = arith.constant 0 : index
    %96 = vector.load %arg11[%c0_102, %c1_103, %c2_104, %c0_105] : memref<2x18x18x4xf32, #tpu.memory_space<vmem>>, vector<2x16x16x4xf32>
    %97 = vector.shape_cast %96 : vector<2x16x16x4xf32> to vector<512x4xf32>
    %98 = arith.truncf %97 : vector<512x4xf32> to vector<512x4xbf16>
    %c0_106 = arith.constant 0 : index
    %c2_107 = arith.constant 2 : index
    %c0_108 = arith.constant 0 : index
    %c0_109 = arith.constant 0 : index
    %99 = vector.load %arg11[%c0_106, %c2_107, %c0_108, %c0_109] : memref<2x18x18x4xf32, #tpu.memory_space<vmem>>, vector<2x16x16x4xf32>
    %100 = vector.shape_cast %99 : vector<2x16x16x4xf32> to vector<512x4xf32>
    %101 = arith.truncf %100 : vector<512x4xf32> to vector<512x4xbf16>
    %c0_110 = arith.constant 0 : index
    %c2_111 = arith.constant 2 : index
    %c1_112 = arith.constant 1 : index
    %c0_113 = arith.constant 0 : index
    %102 = vector.load %arg11[%c0_110, %c2_111, %c1_112, %c0_113] : memref<2x18x18x4xf32, #tpu.memory_space<vmem>>, vector<2x16x16x4xf32>
    %103 = vector.shape_cast %102 : vector<2x16x16x4xf32> to vector<512x4xf32>
    %104 = arith.truncf %103 : vector<512x4xf32> to vector<512x4xbf16>
    %c0_114 = arith.constant 0 : index
    %c2_115 = arith.constant 2 : index
    %c2_116 = arith.constant 2 : index
    %c0_117 = arith.constant 0 : index
    %105 = vector.load %arg11[%c0_114, %c2_115, %c2_116, %c0_117] : memref<2x18x18x4xf32, #tpu.memory_space<vmem>>, vector<2x16x16x4xf32>
    %106 = vector.shape_cast %105 : vector<2x16x16x4xf32> to vector<512x4xf32>
    %107 = arith.truncf %106 : vector<512x4xf32> to vector<512x4xbf16>
    %cst_118 = arith.constant 0.000000e+00 : bf16
    %108 = vector.broadcast %cst_118 : bf16 to vector<512x92xbf16>
    %109 = tpu.concatenate %83, %86, %89, %92, %95, %98, %101, %104, %107, %108 in 1 : vector<512x4xbf16>, vector<512x4xbf16>, vector<512x4xbf16>, vector<512x4xbf16>, vector<512x4xbf16>, vector<512x4xbf16>, vector<512x4xbf16>, vector<512x4xbf16>, vector<512x4xbf16>, vector<512x92xbf16> -> vector<512x128xbf16>
    %c0_119 = arith.constant 0 : index
    %c0_120 = arith.constant 0 : index
    %110 = vector.load %arg2[%c0_119, %c0_120] : memref<128x128xbf16, #tpu.memory_space<vmem>>, vector<128x128xbf16>
    %cst_121 = arith.constant dense<0.000000e+00> : vector<512x128xf32>
    %111 = tpu.matmul %109, %110, %cst_121 {dimension_numbers = #tpu.dot_dimension_numbers<[1], [0], [0], [1], [0, 0, 1, 1], [], []>} : vector<512x128xbf16>, vector<128x128xbf16>, vector<512x128xf32> -> vector<512x128xf32>
    %c0_122 = arith.constant 0 : index
    %c0_123 = arith.constant 0 : index
    %112 = vector.load %arg6[%c0_122, %c0_123] : memref<1x128xf32, #tpu.memory_space<vmem>>, vector<1x128xf32>
    %c0_124 = arith.constant 0 : index
    %c0_125 = arith.constant 0 : index
    %113 = vector.load %arg7[%c0_124, %c0_125] : memref<1x128xf32, #tpu.memory_space<vmem>>, vector<1x128xf32>
    %cst_126 = arith.constant dense<0.000000e+00> : vector<1x128xf32>
    %114 = tpu.matmul %0, %111, %cst_126 {dimension_numbers = #tpu.dot_dimension_numbers<[1], [0], [0], [1], [0, 0, 1, 1], [], []>} : vector<1x512xf32>, vector<512x128xf32>, vector<1x128xf32> -> vector<1x128xf32>
    %115 = arith.mulf %111, %111 : vector<512x128xf32>
    %cst_127 = arith.constant dense<0.000000e+00> : vector<1x128xf32>
    %116 = tpu.matmul %0, %115, %cst_127 {dimension_numbers = #tpu.dot_dimension_numbers<[1], [0], [0], [1], [0, 0, 1, 1], [], []>} : vector<1x512xf32>, vector<512x128xf32>, vector<1x128xf32> -> vector<1x128xf32>
    %cst_128 = arith.constant 0.001953125 : f32
    %117 = vector.broadcast %cst_128 : f32 to vector<1x128xf32>
    %118 = arith.mulf %114, %117 : vector<1x128xf32>
    %cst_129 = arith.constant 0.001953125 : f32
    %119 = vector.broadcast %cst_129 : f32 to vector<1x128xf32>
    %120 = arith.mulf %116, %119 : vector<1x128xf32>
    %121 = arith.mulf %118, %118 : vector<1x128xf32>
    %122 = arith.subf %120, %121 : vector<1x128xf32>
    %cst_130 = arith.constant 0.000000e+00 : f32
    %123 = vector.broadcast %cst_130 : f32 to vector<1x128xf32>
    %124 = arith.maximumf %122, %123 : vector<1x128xf32>
    %cst_131 = arith.constant 9.99999974E-6 : f32
    %125 = vector.broadcast %cst_131 : f32 to vector<1x128xf32>
    %126 = arith.addf %124, %125 : vector<1x128xf32>
    %127 = math.rsqrt %126 : vector<1x128xf32>
    %128 = arith.mulf %112, %127 : vector<1x128xf32>
    %129 = arith.mulf %118, %128 : vector<1x128xf32>
    %130 = arith.subf %113, %129 : vector<1x128xf32>
    %131 = vector.broadcast %128 : vector<1x128xf32> to vector<512x128xf32>
    %132 = arith.mulf %111, %131 : vector<512x128xf32>
    %133 = vector.broadcast %130 : vector<1x128xf32> to vector<512x128xf32>
    %134 = arith.addf %132, %133 : vector<512x128xf32>
    %135 = arith.addf %134, %72 : vector<512x128xf32>
    %cst_132 = arith.constant 0.000000e+00 : f32
    %136 = vector.broadcast %cst_132 : f32 to vector<512x128xf32>
    %137 = arith.maximumf %135, %136 : vector<512x128xf32>
    %c0_133 = arith.constant 0 : index
    %c0_134 = arith.constant 0 : index
    %138 = vector.load %arg10[%c0_133, %c0_134] : memref<512x128xf32, #tpu.memory_space<vmem>>, vector<512x128xf32>
    tpu.vector_store %arg10[%c0_133, %c0_134], %137 {strides = array<i32>} : memref<512x128xf32, #tpu.memory_space<vmem>>, vector<512x128xf32>,
    return
  }
}

</mosaic_0001>

<llo_original>
// kernel: basic_block_forward.1
$region0: #{basic_block_forward.1}
  #allocation0 [shape = 'u32[]', space=smem, size = 0x4, offset = 0x4, fixed_abs, tag = 'smem constant byte address 0x4 - core index']
  #allocation1 [shape = 'u32[144,128]{1,0:T(1,128)}', space=vmem, size = 0x12000, scoped, tag = 'internal scratch']
  #allocation2 [shape = 'f32[2,18,18,4]{3,2,1,0:T(8,128)}', space=vmem, size = 0x6c000, scoped, tag = 'scratch operand']
  %s0 = inlined_call_operand.vmem [shape: bf16[2,18,18,4], index: 0, kind: input, shape index: {}]
  %s1 = inlined_call_operand.vmem [shape: bf16[128,4], index: 1, kind: input, shape index: {}]
  %s2 = inlined_call_operand.vmem [shape: bf16[128,128], index: 2, kind: input, shape index: {}]
  %s3 = inlined_call_operand.vmem [shape: bf16[128,128], index: 3, kind: input, shape index: {}]
  %s4 = inlined_call_operand.vmem [shape: f32[1,4], index: 4, kind: input, shape index: {}]
  %s5 = inlined_call_operand.vmem [shape: f32[1,4], index: 5, kind: input, shape index: {}]
  %s6 = inlined_call_operand.vmem [shape: f32[1,128], index: 6, kind: input, shape index: {}]
  %s7 = inlined_call_operand.vmem [shape: f32[1,128], index: 7, kind: input, shape index: {}]
  %s8 = inlined_call_operand.vmem [shape: f32[1,128], index: 8, kind: input, shape index: {}]
  %s9 = inlined_call_operand.vmem [shape: f32[1,128], index: 9, kind: input, shape index: {}]
  %s10 = inlined_call_operand.hbm [shape: f32[512,128], index: 10, kind: output, shape index: {}]
  %s11 = sld [smem:[#allocation0]]
  $region50: #{basic_block_forward.1} parent=0
    _
  %s13 = ssub.s32 1, %s11
  %s14 = scalar_select 0, %s13, %s11
  $region1: #{basic_block_forward.1} parent=0
    #allocation3 [shape = 'u8[262144]{0}', space=vmem, size = 0x40000, scoped, tag = 'output window, operand 0, single buffered']
    #allocation4 [shape = 's32[1]{0}', space=sflag, size = 0x4, scoped, tag = 'scoped memory for basic_block_forward.1']
    %15 = vsyncpa [#allocation4], 0
    // Predicated region
    $region2: #{basic_block_forward.1} parent=1 // pred_check
      _
    $region3: #{basic_block_forward.1} parent=1 // pred_check_branch
      %17 = sbr.rel (0) target = $region5
    $region4: #{basic_block_forward.1} parent=1 // pred_region
      _
    $region5: #{basic_block_forward.1} parent=1 // pred_fallthru
      _
    // Predicated region
    $region6: #{basic_block_forward.1} parent=1 // pred_check
      _
    $region7: #{basic_block_forward.1} parent=1 // pred_check_branch
      %19 = sbr.rel (0) target = $region9
    $region8: #{basic_block_forward.1} parent=1 // pred_region
      _
    $region9: #{basic_block_forward.1} parent=1 // pred_fallthru
      _
    // Predicated region
    $region10: #{basic_block_forward.1} parent=1 // pred_check
      _
    $region11: #{basic_block_forward.1} parent=1 // pred_check_branch
      %21 = sbr.rel (0) target = $region13
    $region12: #{basic_block_forward.1} parent=1 // pred_region
      _
    $region13: #{basic_block_forward.1} parent=1 // pred_fallthru
      _
    // Predicated region
    $region14: #{basic_block_forward.1} parent=1 // pred_check
      _
    $region15: #{basic_block_forward.1} parent=1 // pred_check_branch
      %23 = sbr.rel (0) target = $region17
    $region16: #{basic_block_forward.1} parent=1 // pred_region
      _
    $region17: #{basic_block_forward.1} parent=1 // pred_fallthru
      _
    // Predicated region
    $region18: #{basic_block_forward.1} parent=1 // pred_check
      _
    $region19: #{basic_block_forward.1} parent=1 // pred_check_branch
      %25 = sbr.rel (0) target = $region21
    $region20: #{basic_block_forward.1} parent=1 // pred_region
      _
    $region21: #{basic_block_forward.1} parent=1 // pred_fallthru
      _
    // Predicated region
    $region22: #{basic_block_forward.1} parent=1 // pred_check
      _
    $region23: #{basic_block_forward.1} parent=1 // pred_check_branch
      %27 = sbr.rel (0) target = $region25
    $region24: #{basic_block_forward.1} parent=1 // pred_region
      _
    $region25: #{basic_block_forward.1} parent=1 // pred_fallthru
      _
    // Predicated region
    $region26: #{basic_block_forward.1} parent=1 // pred_check
      _
    $region27: #{basic_block_forward.1} parent=1 // pred_check_branch
      %29 = sbr.rel (0) target = $region29
    $region28: #{basic_block_forward.1} parent=1 // pred_region
      _
    $region29: #{basic_block_forward.1} parent=1 // pred_fallthru
      _
    // Predicated region
    $region30: #{basic_block_forward.1} parent=1 // pred_check
      _
    $region31: #{basic_block_forward.1} parent=1 // pred_check_branch
      %31 = sbr.rel (0) target = $region33
    $region32: #{basic_block_forward.1} parent=1 // pred_region
      _
    $region33: #{basic_block_forward.1} parent=1 // pred_fallthru
      _
    // Predicated region
    $region34: #{basic_block_forward.1} parent=1 // pred_check
      _
    $region35: #{basic_block_forward.1} parent=1 // pred_check_branch
      %33 = sbr.rel (0) target = $region37
    $region36: #{basic_block_forward.1} parent=1 // pred_region
      _
    $region37: #{basic_block_forward.1} parent=1 // pred_fallthru
      _
    // Predicated region
    $region38: #{basic_block_forward.1} parent=1 // pred_check
      _
    $region39: #{basic_block_forward.1} parent=1 // pred_check_branch
      %35 = sbr.rel (0) target = $region41
    $region40: #{basic_block_forward.1} parent=1 // pred_region
      _
    $region41: #{basic_block_forward.1} parent=1 // pred_fallthru
      _
    %v37 = vld [vmem:[%s0] sm:$0xf]
    %v38 = vld [vmem:[%s0 + $0x4] sm:$0xf]
    %v39 = vld [vmem:[%s0 + $0xc] sm:$0xf]
    %v40 = vld [vmem:[%s0 + $0x10] sm:$0xf]
    %v41 = vld [vmem:[%s0 + $0x18] sm:$0xf]
    %v42 = vld [vmem:[%s0 + $0x1c] sm:$0xf]
    %v43 = vld [vmem:[%s0 + $0x24] sm:$0xf]
    %v44 = vld [vmem:[%s0 + $0x28] sm:$0xf]
    %v45 = vld [vmem:[%s0 + $0x30] sm:$0xf]
    %v46 = vld [vmem:[%s0 + $0x34] sm:$0xf]
    %v47 = vld [vmem:[%s0 + $0x3c] sm:$0xf]
    %v48 = vld [vmem:[%s0 + $0x40] sm:$0xf]
    %v49 = vld [vmem:[%s0 + $0x48] sm:$0xf]
    %v50 = vld [vmem:[%s0 + $0x4c] sm:$0xf]
    %v51 = vld [vmem:[%s0 + $0x54] sm:$0xf]
    %v52 = vld [vmem:[%s0 + $0x58] sm:$0xf]
    %v53 = vld [vmem:[%s0 + $0x60] sm:$0xf]
    %v54 = vld [vmem:[%s0 + $0x64] sm:$0xf]
    %v55 = vld [vmem:[%s0 + $0x6c] sm:$0xf]
    %v56 = vld [vmem:[%s0 + $0x70] sm:$0xf]
    %v57 = vld [vmem:[%s0 + $0x78] sm:$0xf]
    %v58 = vld [vmem:[%s0 + $0x7c] sm:$0xf]
    %v59 = vld [vmem:[%s0 + $0x84] sm:$0xf]
    %v60 = vld [vmem:[%s0 + $0x88] sm:$0xf]
    %v61 = vld [vmem:[%s0 + $0x90] sm:$0xf]
    %v62 = vld [vmem:[%s0 + $0x94] sm:$0xf]
    %v63 = vld [vmem:[%s0 + $0x9c] sm:$0xf]
    %v64 = vld [vmem:[%s0 + $0xa0] sm:$0xf]
    %v65 = vld [vmem:[%s0 + $0xa8] sm:$0xf]
    %v66 = vld [vmem:[%s0 + $0xac] sm:$0xf]
    %v67 = vld [vmem:[%s0 + $0xb4] sm:$0xf]
    %v68 = vld [vmem:[%s0 + $0xb8] sm:$0xf]
    %v69 = vld [vmem:[%s0 + $0xd8] sm:$0xf]
    %v70 = vld [vmem:[%s0 + $0xdc] sm:$0xf]
    %v71 = vld [vmem:[%s0 + $0xe4] sm:$0xf]
    %v72 = vld [vmem:[%s0 + $0xe8] sm:$0xf]
    %v73 = vld [vmem:[%s0 + $0xf0] sm:$0xf]
    %v74 = vld [vmem:[%s0 + $0xf4] sm:$0xf]
    %v75 = vld [vmem:[%s0 + $0xfc] sm:$0xf]
    %v76 = vld [vmem:[%s0 + $0x100] sm:$0xf]
    %v77 = vld [vmem:[%s0 + $0x108] sm:$0xf]
    %v78 = vld [vmem:[%s0 + $0x10c] sm:$0xf]
    %v79 = vld [vmem:[%s0 + $0x114] sm:$0xf]
    %v80 = vld [vmem:[%s0 + $0x118] sm:$0xf]
    %v81 = vld [vmem:[%s0 + $0x120] sm:$0xf]
    %v82 = vld [vmem:[%s0 + $0x124] sm:$0xf]
    %v83 = vld [vmem:[%s0 + $0x12c] sm:$0xf]
    %v84 = vld [vmem:[%s0 + $0x130] sm:$0xf]
    %v85 = vld [vmem:[%s0 + $0x138] sm:$0xf]
    %v86 = vld [vmem:[%s0 + $0x13c] sm:$0xf]
    %v87 = vld [vmem:[%s0 + $0x144] sm:$0xf]
    %v88 = vld [vmem:[%s0 + $0x148] sm:$0xf]
    %v89 = vld [vmem:[%s0 + $0x150] sm:$0xf]
    %v90 = vld [vmem:[%s0 + $0x154] sm:$0xf]
    %v91 = vld [vmem:[%s0 + $0x15c] sm:$0xf]
    %v92 = vld [vmem:[%s0 + $0x160] sm:$0xf]
    %v93 = vld [vmem:[%s0 + $0x168] sm:$0xf]
    %v94 = vld [vmem:[%s0 + $0x16c] sm:$0xf]
    %v95 = vld [vmem:[%s0 + $0x174] sm:$0xf]
    %v96 = vld [vmem:[%s0 + $0x178] sm:$0xf]
    %v97 = vld [vmem:[%s0 + $0x180] sm:$0xf]
    %v98 = vld [vmem:[%s0 + $0x184] sm:$0xf]
    %v99 = vld [vmem:[%s0 + $0x18c] sm:$0xf]
    %v100 = vld [vmem:[%s0 + $0x190] sm:$0xf]
    %v101 = vld [vmem:[%s0 + $0x8] sm:$0x1]
    %v102 = vld [vmem:[%s0 + $0x14] sm:$0x1]
    %v103 = vld [vmem:[%s0 + $0x20] sm:$0x1]
    %v104 = vld [vmem:[%s0 + $0x2c] sm:$0x1]
    %v105 = vld [vmem:[%s0 + $0x38] sm:$0x1]
    %v106 = vld [vmem:[%s0 + $0x44] sm:$0x1]
    %v107 = vld [vmem:[%s0 + $0x50] sm:$0x1]
    %v108 = vld [vmem:[%s0 + $0x5c] sm:$0x1]
    %v109 = vld [vmem:[%s0 + $0x68] sm:$0x1]
    %v110 = vld [vmem:[%s0 + $0x74] sm:$0x1]
    %v111 = vld [vmem:[%s0 + $0x80] sm:$0x1]
    %v112 = vld [vmem:[%s0 + $0x8c] sm:$0x1]
    %v113 = vld [vmem:[%s0 + $0x98] sm:$0x1]
    %v114 = vld [vmem:[%s0 + $0xa4] sm:$0x1]
    %v115 = vld [vmem:[%s0 + $0xb0] sm:$0x1]
    %v116 = vld [vmem:[%s0 + $0xbc] sm:$0x1]
    %v117 = vld [vmem:[%s0 + $0xe0] sm:$0x1]
    %v118 = vld [vmem:[%s0 + $0xec] sm:$0x1]
    %v119 = vld [vmem:[%s0 + $0xf8] sm:$0x1]
    %v120 = vld [vmem:[%s0 + $0x104] sm:$0x1]
    %v121 = vld [vmem:[%s0 + $0x110] sm:$0x1]
    %v122 = vld [vmem:[%s0 + $0x11c] sm:$0x1]
    %v123 = vld [vmem:[%s0 + $0x128] sm:$0x1]
    %v124 = vld [vmem:[%s0 + $0x134] sm:$0x1]
    %v125 = vld [vmem:[%s0 + $0x140] sm:$0x1]
    %v126 = vld [vmem:[%s0 + $0x14c] sm:$0x1]
    %v127 = vld [vmem:[%s0 + $0x158] sm:$0x1]
    %v128 = vld [vmem:[%s0 + $0x164] sm:$0x1]
    %v129 = vld [vmem:[%s0 + $0x170] sm:$0x1]
    %v130 = vld [vmem:[%s0 + $0x17c] sm:$0x1]
    %v131 = vld [vmem:[%s0 + $0x188] sm:$0x1]
    %v132 = vld [vmem:[%s0 + $0x194] sm:$0x1]
    %vm133 = vsmask.f32 3328
    %vm134 = vsmask.f32 7440
    %vm135 = vmor %vm133, %vm134
    %v137 = vshrl.u32 %v37, 16
    %v139 = vrot.slane %v137, 4
    %v140 = vshll.u32 %v37, 16
    %v142 = vrot.slane %v140, 5
    %v143 = vor.u32 %v139, %v142
    %v144 = vrot.slane %v143, 4
    %v146 = vshll.u32 %v38, 16
    %v148 = vrot.slane %v146, 5
    %v149 = vsel %vm135, %v144, %v148
    %v150 = vshrl.u32 %v38, 16
    %v152 = vrot.slane %v150, 4
    %v153 = vor.u32 %v152, %v148
    %v154 = vrot.slane %v153, 4
    %v156 = vshll.u32 %v101, 16
    %v158 = vrot.slane %v156, 5
    %v159 = vsel %vm135, %v154, %v158
    %v161 = vshrl.u32 %v39, 16
    %v163 = vrot.slane %v161, 4
    %v164 = vshll.u32 %v39, 16
    %v166 = vrot.slane %v164, 5
    %v167 = vor.u32 %v163, %v166
    %v168 = vrot.slane %v167, 4
    %v170 = vshll.u32 %v40, 16
    %v172 = vrot.slane %v170, 5
    %v173 = vsel %vm135, %v168, %v172
    %v174 = vshrl.u32 %v40, 16
    %v176 = vrot.slane %v174, 4
    %v177 = vor.u32 %v176, %v172
    %v178 = vrot.slane %v177, 4
    %v180 = vshll.u32 %v102, 16
    %v182 = vrot.slane %v180, 5
    %v183 = vsel %vm135, %v178, %v182
    %v185 = vshrl.u32 %v41, 16
    %v187 = vrot.slane %v185, 4
    %v188 = vshll.u32 %v41, 16
    %v190 = vrot.slane %v188, 5
    %v191 = vor.u32 %v187, %v190
    %v192 = vrot.slane %v191, 4
    %v194 = vshll.u32 %v42, 16
    %v196 = vrot.slane %v194, 5
    %v197 = vsel %vm135, %v192, %v196
    %v198 = vshrl.u32 %v42, 16
    %v200 = vrot.slane %v198, 4
    %v201 = vor.u32 %v200, %v196
    %v202 = vrot.slane %v201, 4
    %v204 = vshll.u32 %v103, 16
    %v206 = vrot.slane %v204, 5
    %v207 = vsel %vm135, %v202, %v206
    %v209 = vshrl.u32 %v43, 16
    %v211 = vrot.slane %v209, 4
    %v212 = vshll.u32 %v43, 16
    %v214 = vrot.slane %v212, 5
    %v215 = vor.u32 %v211, %v214
    %v216 = vrot.slane %v215, 4
    %v218 = vshll.u32 %v44, 16
    %v220 = vrot.slane %v218, 5
    %v221 = vsel %vm135, %v216, %v220
    %v222 = vshrl.u32 %v44, 16
    %v224 = vrot.slane %v222, 4
    %v225 = vor.u32 %v224, %v220
    %v226 = vrot.slane %v225, 4
    %v228 = vshll.u32 %v104, 16
    %v230 = vrot.slane %v228, 5
    %v231 = vsel %vm135, %v226, %v230
    %v233 = vshrl.u32 %v45, 16
    %v235 = vrot.slane %v233, 4
    %v236 = vshll.u32 %v45, 16
    %v238 = vrot.slane %v236, 5
    %v239 = vor.u32 %v235, %v238
    %v240 = vrot.slane %v239, 4
    %v242 = vshll.u32 %v46, 16
    %v244 = vrot.slane %v242, 5
    %v245 = vsel %vm135, %v240, %v244
    %v246 = vshrl.u32 %v46, 16
    %v248 = vrot.slane %v246, 4
    %v249 = vor.u32 %v248, %v244
    %v250 = vrot.slane %v249, 4
    %v252 = vshll.u32 %v105, 16
    %v254 = vrot.slane %v252, 5
    %v255 = vsel %vm135, %v250, %v254
    %v257 = vshrl.u32 %v47, 16
    %v259 = vrot.slane %v257, 4
    %v260 = vshll.u32 %v47, 16
    %v262 = vrot.slane %v260, 5
    %v263 = vor.u32 %v259, %v262
    %v264 = vrot.slane %v263, 4
    %v266 = vshll.u32 %v48, 16
    %v268 = vrot.slane %v266, 5
    %v269 = vsel %vm135, %v264, %v268
    %v270 = vshrl.u32 %v48, 16
    %v272 = vrot.slane %v270, 4
    %v273 = vor.u32 %v272, %v268
    %v274 = vrot.slane %v273, 4
    %v276 = vshll.u32 %v106, 16
    %v278 = vrot.slane %v276, 5
    %v279 = vsel %vm135, %v274, %v278
    %v281 = vshrl.u32 %v49, 16
    %v283 = vrot.slane %v281, 4
    %v284 = vshll.u32 %v49, 16
    %v286 = vrot.slane %v284, 5
    %v287 = vor.u32 %v283, %v286
    %v288 = vrot.slane %v287, 4
    %v290 = vshll.u32 %v50, 16
    %v292 = vrot.slane %v290, 5
    %v293 = vsel %vm135, %v288, %v292
    %v294 = vshrl.u32 %v50, 16
    %v296 = vrot.slane %v294, 4
    %v297 = vor.u32 %v296, %v292
    %v298 = vrot.slane %v297, 4
    %v300 = vshll.u32 %v107, 16
    %v302 = vrot.slane %v300, 5
    %v303 = vsel %vm135, %v298, %v302
    %v305 = vshrl.u32 %v51, 16
    %v307 = vrot.slane %v305, 4
    %v308 = vshll.u32 %v51, 16
    %v310 = vrot.slane %v308, 5
    %v311 = vor.u32 %v307, %v310
    %v312 = vrot.slane %v311, 4
    %v314 = vshll.u32 %v52, 16
    %v316 = vrot.slane %v314, 5
    %v317 = vsel %vm135, %v312, %v316
    %v318 = vshrl.u32 %v52, 16
    %v320 = vrot.slane %v318, 4
    %v321 = vor.u32 %v320, %v316
    %v322 = vrot.slane %v321, 4
    %v324 = vshll.u32 %v108, 16
    %v326 = vrot.slane %v324, 5
    %v327 = vsel %vm135, %v322, %v326
    %v329 = vshrl.u32 %v53, 16
    %v331 = vrot.slane %v329, 4
    %v332 = vshll.u32 %v53, 16
    %v334 = vrot.slane %v332, 5
    %v335 = vor.u32 %v331, %v334
    %v336 = vrot.slane %v335, 4
    %v338 = vshll.u32 %v54, 16
    %v340 = vrot.slane %v338, 5
    %v341 = vsel %vm135, %v336, %v340
    %v342 = vshrl.u32 %v54, 16
    %v344 = vrot.slane %v342, 4
    %v345 = vor.u32 %v344, %v340
    %v346 = vrot.slane %v345, 4
    %v348 = vshll.u32 %v109, 16
    %v350 = vrot.slane %v348, 5
    %v351 = vsel %vm135, %v346, %v350
    %v353 = vshrl.u32 %v55, 16
    %v355 = vrot.slane %v353, 4
    %v356 = vshll.u32 %v55, 16
    %v358 = vrot.slane %v356, 5
    %v359 = vor.u32 %v355, %v358
    %v360 = vrot.slane %v359, 4
    %v362 = vshll.u32 %v56, 16
    %v364 = vrot.slane %v362, 5
    %v365 = vsel %vm135, %v360, %v364
    %v366 = vshrl.u32 %v56, 16
    %v368 = vrot.slane %v366, 4
    %v369 = vor.u32 %v368, %v364
    %v370 = vrot.slane %v369, 4
    %v372 = vshll.u32 %v110, 16
    %v374 = vrot.slane %v372, 5
    %v375 = vsel %vm135, %v370, %v374
    %v377 = vshrl.u32 %v57, 16
    %v379 = vrot.slane %v377, 4
    %v380 = vshll.u32 %v57, 16
    %v382 = vrot.slane %v380, 5
    %v383 = vor.u32 %v379, %v382
    %v384 = vrot.slane %v383, 4
    %v386 = vshll.u32 %v58, 16
    %v388 = vrot.slane %v386, 5
    %v389 = vsel %vm135, %v384, %v388
    %v390 = vshrl.u32 %v58, 16
    %v392 = vrot.slane %v390, 4
    %v393 = vor.u32 %v392, %v388
    %v394 = vrot.slane %v393, 4
    %v396 = vshll.u32 %v111, 16
    %v398 = vrot.slane %v396, 5
    %v399 = vsel %vm135, %v394, %v398
    %v401 = vshrl.u32 %v59, 16
    %v403 = vrot.slane %v401, 4
    %v404 = vshll.u32 %v59, 16
    %v406 = vrot.slane %v404, 5
    %v407 = vor.u32 %v403, %v406
    %v408 = vrot.slane %v407, 4
    %v410 = vshll.u32 %v60, 16
    %v412 = vrot.slane %v410, 5
    %v413 = vsel %vm135, %v408, %v412
    %v414 = vshrl.u32 %v60, 16
    %v416 = vrot.slane %v414, 4
    %v417 = vor.u32 %v416, %v412
    %v418 = vrot.slane %v417, 4
    %v420 = vshll.u32 %v112, 16
    %v422 = vrot.slane %v420, 5
    %v423 = vsel %vm135, %v418, %v422
    %v425 = vshrl.u32 %v61, 16
    %v427 = vrot.slane %v425, 4
    %v428 = vshll.u32 %v61, 16
    %v430 = vrot.slane %v428, 5
    %v431 = vor.u32 %v427, %v430
    %v432 = vrot.slane %v431, 4
    %v434 = vshll.u32 %v62, 16
    %v436 = vrot.slane %v434, 5
    %v437 = vsel %vm135, %v432, %v436
    %v438 = vshrl.u32 %v62, 16
    %v440 = vrot.slane %v438, 4
    %v441 = vor.u32 %v440, %v436
    %v442 = vrot.slane %v441, 4
    %v444 = vshll.u32 %v113, 16
    %v446 = vrot.slane %v444, 5
    %v447 = vsel %vm135, %v442, %v446
    %v449 = vshrl.u32 %v63, 16
    %v451 = vrot.slane %v449, 4
    %v452 = vshll.u32 %v63, 16
    %v454 = vrot.slane %v452, 5
    %v455 = vor.u32 %v451, %v454
    %v456 = vrot.slane %v455, 4
    %v458 = vshll.u32 %v64, 16
    %v460 = vrot.slane %v458, 5
    %v461 = vsel %vm135, %v456, %v460
    %v462 = vshrl.u32 %v64, 16
    %v464 = vrot.slane %v462, 4
    %v465 = vor.u32 %v464, %v460
    %v466 = vrot.slane %v465, 4
    %v468 = vshll.u32 %v114, 16
    %v470 = vrot.slane %v468, 5
    %v471 = vsel %vm135, %v466, %v470
    %v473 = vshrl.u32 %v65, 16
    %v475 = vrot.slane %v473, 4
    %v476 = vshll.u32 %v65, 16
    %v478 = vrot.slane %v476, 5
    %v479 = vor.u32 %v475, %v478
    %v480 = vrot.slane %v479, 4
    %v482 = vshll.u32 %v66, 16
    %v484 = vrot.slane %v482, 5
    %v485 = vsel %vm135, %v480, %v484
    %v486 = vshrl.u32 %v66, 16
    %v488 = vrot.slane %v486, 4
    %v489 = vor.u32 %v488, %v484
    %v490 = vrot.slane %v489, 4
    %v492 = vshll.u32 %v115, 16
    %v494 = vrot.slane %v492, 5
    %v495 = vsel %vm135, %v490, %v494
    %v497 = vshrl.u32 %v67, 16
    %v499 = vrot.slane %v497, 4
    %v500 = vshll.u32 %v67, 16
    %v502 = vrot.slane %v500, 5
    %v503 = vor.u32 %v499, %v502
    %v504 = vrot.slane %v503, 4
    %v506 = vshll.u32 %v68, 16
    %v508 = vrot.slane %v506, 5
    %v509 = vsel %vm135, %v504, %v508
    %v510 = vshrl.u32 %v68, 16
    %v512 = vrot.slane %v510, 4
    %v513 = vor.u32 %v512, %v508
    %v514 = vrot.slane %v513, 4
    %v516 = vshll.u32 %v116, 16
    %v518 = vrot.slane %v516, 5
    %v519 = vsel %vm135, %v514, %v518
    %v521 = vshrl.u32 %v69, 16
    %v523 = vrot.slane %v521, 4
    %v524 = vshll.u32 %v69, 16
    %v526 = vrot.slane %v524, 5
    %v527 = vor.u32 %v523, %v526
    %v528 = vrot.slane %v527, 4
    %v530 = vshll.u32 %v70, 16
    %v532 = vrot.slane %v530, 5
    %v533 = vsel %vm135, %v528, %v532
    %v534 = vshrl.u32 %v70, 16
    %v536 = vrot.slane %v534, 4
    %v537 = vor.u32 %v536, %v532
    %v538 = vrot.slane %v537, 4
    %v540 = vshll.u32 %v117, 16
    %v542 = vrot.slane %v540, 5
    %v543 = vsel %vm135, %v538, %v542
    %v545 = vshrl.u32 %v71, 16
    %v547 = vrot.slane %v545, 4
    %v548 = vshll.u32 %v71, 16
    %v550 = vrot.slane %v548, 5
    %v551 = vor.u32 %v547, %v550
    %v552 = vrot.slane %v551, 4
    %v554 = vshll.u32 %v72, 16
    %v556 = vrot.slane %v554, 5
    %v557 = vsel %vm135, %v552, %v556
    %v558 = vshrl.u32 %v72, 16
    %v560 = vrot.slane %v558, 4
    %v561 = vor.u32 %v560, %v556
    %v562 = vrot.slane %v561, 4
    %v564 = vshll.u32 %v118, 16
    %v566 = vrot.slane %v564, 5
    %v567 = vsel %vm135, %v562, %v566
    %v569 = vshrl.u32 %v73, 16
    %v571 = vrot.slane %v569, 4
    %v572 = vshll.u32 %v73, 16
    %v574 = vrot.slane %v572, 5
    %v575 = vor.u32 %v571, %v574
    %v576 = vrot.slane %v575, 4
    %v578 = vshll.u32 %v74, 16
    %v580 = vrot.slane %v578, 5
    %v581 = vsel %vm135, %v576, %v580
    %v582 = vshrl.u32 %v74, 16
    %v584 = vrot.slane %v582, 4
    %v585 = vor.u32 %v584, %v580
    %v586 = vrot.slane %v585, 4
    %v588 = vshll.u32 %v119, 16
    %v590 = vrot.slane %v588, 5
    %v591 = vsel %vm135, %v586, %v590
    %v593 = vshrl.u32 %v75, 16
    %v595 = vrot.slane %v593, 4
    %v596 = vshll.u32 %v75, 16
    %v598 = vrot.slane %v596, 5
    %v599 = vor.u32 %v595, %v598
    %v600 = vrot.slane %v599, 4
    %v602 = vshll.u32 %v76, 16
    %v604 = vrot.slane %v602, 5
    %v605 = vsel %vm135, %v600, %v604
    %v606 = vshrl.u32 %v76, 16
    %v608 = vrot.slane %v606, 4
    %v609 = vor.u32 %v608, %v604
    %v610 = vrot.slane %v609, 4
    %v612 = vshll.u32 %v120, 16
    %v614 = vrot.slane %v612, 5
    %v615 = vsel %vm135, %v610, %v614
    %v617 = vshrl.u32 %v77, 16
    %v619 = vrot.slane %v617, 4
    %v620 = vshll.u32 %v77, 16
    %v622 = vrot.slane %v620, 5
    %v623 = vor.u32 %v619, %v622
    %v624 = vrot.slane %v623, 4
    %v626 = vshll.u32 %v78, 16
    %v628 = vrot.slane %v626, 5
    %v629 = vsel %vm135, %v624, %v628
    %v630 = vshrl.u32 %v78, 16
    %v632 = vrot.slane %v630, 4
    %v633 = vor.u32 %v632, %v628
    %v634 = vrot.slane %v633, 4
    %v636 = vshll.u32 %v121, 16
    %v638 = vrot.slane %v636, 5
    %v639 = vsel %vm135, %v634, %v638
    %v641 = vshrl.u32 %v79, 16
    %v643 = vrot.slane %v641, 4
    %v644 = vshll.u32 %v79, 16
    %v646 = vrot.slane %v644, 5
    %v647 = vor.u32 %v643, %v646
    %v648 = vrot.slane %v647, 4
    %v650 = vshll.u32 %v80, 16
    %v652 = vrot.slane %v650, 5
    %v653 = vsel %vm135, %v648, %v652
    %v654 = vshrl.u32 %v80, 16
    %v656 = vrot.slane %v654, 4
    %v657 = vor.u32 %v656, %v652
    %v658 = vrot.slane %v657, 4
    %v660 = vshll.u32 %v122, 16
    %v662 = vrot.slane %v660, 5
    %v663 = vsel %vm135, %v658, %v662
    %v665 = vshrl.u32 %v81, 16
    %v667 = vrot.slane %v665, 4
    %v668 = vshll.u32 %v81, 16
    %v670 = vrot.slane %v668, 5
    %v671 = vor.u32 %v667, %v670
    %v672 = vrot.slane %v671, 4
    %v674 = vshll.u32 %v82, 16
    %v676 = vrot.slane %v674, 5
    %v677 = vsel %vm135, %v672, %v676
    %v678 = vshrl.u32 %v82, 16
    %v680 = vrot.slane %v678, 4
    %v681 = vor.u32 %v680, %v676
    %v682 = vrot.slane %v681, 4
    %v684 = vshll.u32 %v123, 16
    %v686 = vrot.slane %v684, 5
    %v687 = vsel %vm135, %v682, %v686
    %v689 = vshrl.u32 %v83, 16
    %v691 = vrot.slane %v689, 4
    %v692 = vshll.u32 %v83, 16
    %v694 = vrot.slane %v692, 5
    %v695 = vor.u32 %v691, %v694
    %v696 = vrot.slane %v695, 4
    %v698 = vshll.u32 %v84, 16
    %v700 = vrot.slane %v698, 5
    %v701 = vsel %vm135, %v696, %v700
    %v702 = vshrl.u32 %v84, 16
    %v704 = vrot.slane %v702, 4
    %v705 = vor.u32 %v704, %v700
    %v706 = vrot.slane %v705, 4
    %v708 = vshll.u32 %v124, 16
    %v710 = vrot.slane %v708, 5
    %v711 = vsel %vm135, %v706, %v710
    %v713 = vshrl.u32 %v85, 16
    %v715 = vrot.slane %v713, 4
    %v716 = vshll.u32 %v85, 16
    %v718 = vrot.slane %v716, 5
    %v719 = vor.u32 %v715, %v718
    %v720 = vrot.slane %v719, 4
    %v722 = vshll.u32 %v86, 16
    %v724 = vrot.slane %v722, 5
    %v725 = vsel %vm135, %v720, %v724
    %v726 = vshrl.u32 %v86, 16
    %v728 = vrot.slane %v726, 4
    %v729 = vor.u32 %v728, %v724
    %v730 = vrot.slane %v729, 4
    %v732 = vshll.u32 %v125, 16
    %v734 = vrot.slane %v732, 5
    %v735 = vsel %vm135, %v730, %v734
    %v737 = vshrl.u32 %v87, 16
    %v739 = vrot.slane %v737, 4
    %v740 = vshll.u32 %v87, 16
    %v742 = vrot.slane %v740, 5
    %v743 = vor.u32 %v739, %v742
    %v744 = vrot.slane %v743, 4
    %v746 = vshll.u32 %v88, 16
    %v748 = vrot.slane %v746, 5
    %v749 = vsel %vm135, %v744, %v748
    %v750 = vshrl.u32 %v88, 16
    %v752 = vrot.slane %v750, 4
    %v753 = vor.u32 %v752, %v748
    %v754 = vrot.slane %v753, 4
    %v756 = vshll.u32 %v126, 16
    %v758 = vrot.slane %v756, 5
    %v759 = vsel %vm135, %v754, %v758
    %v761 = vshrl.u32 %v89, 16
    %v763 = vrot.slane %v761, 4
    %v764 = vshll.u32 %v89, 16
    %v766 = vrot.slane %v764, 5
    %v767 = vor.u32 %v763, %v766
    %v768 = vrot.slane %v767, 4
    %v770 = vshll.u32 %v90, 16
    %v772 = vrot.slane %v770, 5
    %v773 = vsel %vm135, %v768, %v772
    %v774 = vshrl.u32 %v90, 16
    %v776 = vrot.slane %v774, 4
    %v777 = vor.u32 %v776, %v772
    %v778 = vrot.slane %v777, 4
    %v780 = vshll.u32 %v127, 16
    %v782 = vrot.slane %v780, 5
    %v783 = vsel %vm135, %v778, %v782
    %v785 = vshrl.u32 %v91, 16
    %v787 = vrot.slane %v785, 4
    %v788 = vshll.u32 %v91, 16
    %v790 = vrot.slane %v788, 5
    %v791 = vor.u32 %v787, %v790
    %v792 = vrot.slane %v791, 4
    %v794 = vshll.u32 %v92, 16
    %v796 = vrot.slane %v794, 5
    %v797 = vsel %vm135, %v792, %v796
    %v798 = vshrl.u32 %v92, 16
    %v800 = vrot.slane %v798, 4
    %v801 = vor.u32 %v800, %v796
    %v802 = vrot.slane %v801, 4
    %v804 = vshll.u32 %v128, 16
    %v806 = vrot.slane %v804, 5
    %v807 = vsel %vm135, %v802, %v806
    %v809 = vshrl.u32 %v93, 16
    %v811 = vrot.slane %v809, 4
    %v812 = vshll.u32 %v93, 16
    %v814 = vrot.slane %v812, 5
    %v815 = vor.u32 %v811, %v814
    %v816 = vrot.slane %v815, 4
    %v818 = vshll.u32 %v94, 16
    %v820 = vrot.slane %v818, 5
    %v821 = vsel %vm135, %v816, %v820
    %v822 = vshrl.u32 %v94, 16
    %v824 = vrot.slane %v822, 4
    %v825 = vor.u32 %v824, %v820
    %v826 = vrot.slane %v825, 4
    %v828 = vshll.u32 %v129, 16
    %v830 = vrot.slane %v828, 5
    %v831 = vsel %vm135, %v826, %v830
    %v833 = vshrl.u32 %v95, 16
    %v835 = vrot.slane %v833, 4
    %v836 = vshll.u32 %v95, 16
    %v838 = vrot.slane %v836, 5
    %v839 = vor.u32 %v835, %v838
    %v840 = vrot.slane %v839, 4
    %v842 = vshll.u32 %v96, 16
    %v844 = vrot.slane %v842, 5
    %v845 = vsel %vm135, %v840, %v844
    %v846 = vshrl.u32 %v96, 16
    %v848 = vrot.slane %v846, 4
    %v849 = vor.u32 %v848, %v844
    %v850 = vrot.slane %v849, 4
    %v852 = vshll.u32 %v130, 16
    %v854 = vrot.slane %v852, 5
    %v855 = vsel %vm135, %v850, %v854
    %v857 = vshrl.u32 %v97, 16
    %v859 = vrot.slane %v857, 4
    %v860 = vshll.u32 %v97, 16
    %v862 = vrot.slane %v860, 5
    %v863 = vor.u32 %v859, %v862
    %v864 = vrot.slane %v863, 4
    %v866 = vshll.u32 %v98, 16
    %v868 = vrot.slane %v866, 5
    %v869 = vsel %vm135, %v864, %v868
    %v870 = vshrl.u32 %v98, 16
    %v872 = vrot.slane %v870, 4
    %v873 = vor.u32 %v872, %v868
    %v874 = vrot.slane %v873, 4
    %v876 = vshll.u32 %v131, 16
    %v878 = vrot.slane %v876, 5
    %v879 = vsel %vm135, %v874, %v878
    %v881 = vshrl.u32 %v99, 16
    %v883 = vrot.slane %v881, 4
    %v884 = vshll.u32 %v99, 16
    %v886 = vrot.slane %v884, 5
    %v887 = vor.u32 %v883, %v886
    %v888 = vrot.slane %v887, 4
    %v890 = vshll.u32 %v100, 16
    %v892 = vrot.slane %v890, 5
    %v893 = vsel %vm135, %v888, %v892
    %v894 = vshrl.u32 %v100, 16
    %v896 = vrot.slane %v894, 4
    %v897 = vor.u32 %v896, %v892
    %v898 = vrot.slane %v897, 4
    %v900 = vshll.u32 %v132, 16
    %v902 = vrot.slane %v900, 5
    %v903 = vsel %vm135, %v898, %v902
    %v904 = vld [vmem:[%s0] sm:$0xe]
    %v905 = vld [vmem:[%s0 + $0xc] sm:$0xe]
    %v906 = vld [vmem:[%s0 + $0x18] sm:$0xe]
    %v907 = vld [vmem:[%s0 + $0x24] sm:$0xe]
    %v908 = vld [vmem:[%s0 + $0x30] sm:$0xe]
    %v909 = vld [vmem:[%s0 + $0x3c] sm:$0xe]
    %v910 = vld [vmem:[%s0 + $0x48] sm:$0xe]
    %v911 = vld [vmem:[%s0 + $0x54] sm:$0xe]
    %v912 = vld [vmem:[%s0 + $0x60] sm:$0xe]
    %v913 = vld [vmem:[%s0 + $0x6c] sm:$0xe]
    %v914 = vld [vmem:[%s0 + $0x78] sm:$0xe]
    %v915 = vld [vmem:[%s0 + $0x84] sm:$0xe]
    %v916 = vld [vmem:[%s0 + $0x90] sm:$0xe]
    %v917 = vld [vmem:[%s0 + $0x9c] sm:$0xe]
    %v918 = vld [vmem:[%s0 + $0xa8] sm:$0xe]
    %v919 = vld [vmem:[%s0 + $0xb4] sm:$0xe]
    %v920 = vld [vmem:[%s0 + $0xd8] sm:$0xe]
    %v921 = vld [vmem:[%s0 + $0xe4] sm:$0xe]
    %v922 = vld [vmem:[%s0 + $0xf0] sm:$0xe]
    %v923 = vld [vmem:[%s0 + $0xfc] sm:$0xe]
    %v924 = vld [vmem:[%s0 + $0x108] sm:$0xe]
    %v925 = vld [vmem:[%s0 + $0x114] sm:$0xe]
    %v926 = vld [vmem:[%s0 + $0x120] sm:$0xe]
    %v927 = vld [vmem:[%s0 + $0x12c] sm:$0xe]
    %v928 = vld [vmem:[%s0 + $0x138] sm:$0xe]
    %v929 = vld [vmem:[%s0 + $0x144] sm:$0xe]
    %v930 = vld [vmem:[%s0 + $0x150] sm:$0xe]
    %v931 = vld [vmem:[%s0 + $0x15c] sm:$0xe]
    %v932 = vld [vmem:[%s0 + $0x168] sm:$0xe]
    %v933 = vld [vmem:[%s0 + $0x174] sm:$0xe]
    %v934 = vld [vmem:[%s0 + $0x180] sm:$0xe]
    %v935 = vld [vmem:[%s0 + $0x18c] sm:$0xe]
    %vm1032 = vcmask 1042432
    %vm1033 = vcmask 1046532
    %vm1034 = vmor %vm1032, %vm1033
    %v1035 = vrot.slane %v904, 5
    %v1036 = vrot.slane %v1035, 4
    %v1037 = vrot.slane %v38, 5
    %v1038 = vsel %vm1034, %v1036, %v1037
    %v1039 = vrot.slane %v1037, 4
    %v1040 = vrot.slane %v101, 5
    %v1041 = vsel %vm1034, %v1039, %v1040
    %v1042 = vrot.slane %v905, 5
    %v1043 = vrot.slane %v1042, 4
    %v1044 = vrot.slane %v40, 5
    %v1045 = vsel %vm1034, %v1043, %v1044
    %v1046 = vrot.slane %v1044, 4
    %v1047 = vrot.slane %v102, 5
    %v1048 = vsel %vm1034, %v1046, %v1047
    %v1049 = vrot.slane %v906, 5
    %v1050 = vrot.slane %v1049, 4
    %v1051 = vrot.slane %v42, 5
    %v1052 = vsel %vm1034, %v1050, %v1051
    %v1053 = vrot.slane %v1051, 4
    %v1054 = vrot.slane %v103, 5
    %v1055 = vsel %vm1034, %v1053, %v1054
    %v1056 = vrot.slane %v907, 5
    %v1057 = vrot.slane %v1056, 4
    %v1058 = vrot.slane %v44, 5
    %v1059 = vsel %vm1034, %v1057, %v1058
    %v1060 = vrot.slane %v1058, 4
    %v1061 = vrot.slane %v104, 5
    %v1062 = vsel %vm1034, %v1060, %v1061
    %v1063 = vrot.slane %v908, 5
    %v1064 = vrot.slane %v1063, 4
    %v1065 = vrot.slane %v46, 5
    %v1066 = vsel %vm1034, %v1064, %v1065
    %v1067 = vrot.slane %v1065, 4
    %v1068 = vrot.slane %v105, 5
    %v1069 = vsel %vm1034, %v1067, %v1068
    %v1070 = vrot.slane %v909, 5
    %v1071 = vrot.slane %v1070, 4
    %v1072 = vrot.slane %v48, 5
    %v1073 = vsel %vm1034, %v1071, %v1072
    %v1074 = vrot.slane %v1072, 4
    %v1075 = vrot.slane %v106, 5
    %v1076 = vsel %vm1034, %v1074, %v1075
    %v1077 = vrot.slane %v910, 5
    %v1078 = vrot.slane %v1077, 4
    %v1079 = vrot.slane %v50, 5
    %v1080 = vsel %vm1034, %v1078, %v1079
    %v1081 = vrot.slane %v1079, 4
    %v1082 = vrot.slane %v107, 5
    %v1083 = vsel %vm1034, %v1081, %v1082
    %v1084 = vrot.slane %v911, 5
    %v1085 = vrot.slane %v1084, 4
    %v1086 = vrot.slane %v52, 5
    %v1087 = vsel %vm1034, %v1085, %v1086
    %v1088 = vrot.slane %v1086, 4
    %v1089 = vrot.slane %v108, 5
    %v1090 = vsel %vm1034, %v1088, %v1089
    %v1091 = vrot.slane %v912, 5
    %v1092 = vrot.slane %v1091, 4
    %v1093 = vrot.slane %v54, 5
    %v1094 = vsel %vm1034, %v1092, %v1093
    %v1095 = vrot.slane %v1093, 4
    %v1096 = vrot.slane %v109, 5
    %v1097 = vsel %vm1034, %v1095, %v1096
    %v1098 = vrot.slane %v913, 5
    %v1099 = vrot.slane %v1098, 4
    %v1100 = vrot.slane %v56, 5
    %v1101 = vsel %vm1034, %v1099, %v1100
    %v1102 = vrot.slane %v1100, 4
    %v1103 = vrot.slane %v110, 5
    %v1104 = vsel %vm1034, %v1102, %v1103
    %v1105 = vrot.slane %v914, 5
    %v1106 = vrot.slane %v1105, 4
    %v1107 = vrot.slane %v58, 5
    %v1108 = vsel %vm1034, %v1106, %v1107
    %v1109 = vrot.slane %v1107, 4
    %v1110 = vrot.slane %v111, 5
    %v1111 = vsel %vm1034, %v1109, %v1110
    %v1112 = vrot.slane %v915, 5
    %v1113 = vrot.slane %v1112, 4
    %v1114 = vrot.slane %v60, 5
    %v1115 = vsel %vm1034, %v1113, %v1114
    %v1116 = vrot.slane %v1114, 4
    %v1117 = vrot.slane %v112, 5
    %v1118 = vsel %vm1034, %v1116, %v1117
    %v1119 = vrot.slane %v916, 5
    %v1120 = vrot.slane %v1119, 4
    %v1121 = vrot.slane %v62, 5
    %v1122 = vsel %vm1034, %v1120, %v1121
    %v1123 = vrot.slane %v1121, 4
    %v1124 = vrot.slane %v113, 5
    %v1125 = vsel %vm1034, %v1123, %v1124
    %v1126 = vrot.slane %v917, 5
    %v1127 = vrot.slane %v1126, 4
    %v1128 = vrot.slane %v64, 5
    %v1129 = vsel %vm1034, %v1127, %v1128
    %v1130 = vrot.slane %v1128, 4
    %v1131 = vrot.slane %v114, 5
    %v1132 = vsel %vm1034, %v1130, %v1131
    %v1133 = vrot.slane %v918, 5
    %v1134 = vrot.slane %v1133, 4
    %v1135 = vrot.slane %v66, 5
    %v1136 = vsel %vm1034, %v1134, %v1135
    %v1137 = vrot.slane %v1135, 4
    %v1138 = vrot.slane %v115, 5
    %v1139 = vsel %vm1034, %v1137, %v1138
    %v1140 = vrot.slane %v919, 5
    %v1141 = vrot.slane %v1140, 4
    %v1142 = vrot.slane %v68, 5
    %v1143 = vsel %vm1034, %v1141, %v1142
    %v1144 = vrot.slane %v1142, 4
    %v1145 = vrot.slane %v116, 5
    %v1146 = vsel %vm1034, %v1144, %v1145
    %v1147 = vrot.slane %v920, 5
    %v1148 = vrot.slane %v1147, 4
    %v1149 = vrot.slane %v70, 5
    %v1150 = vsel %vm1034, %v1148, %v1149
    %v1151 = vrot.slane %v1149, 4
    %v1152 = vrot.slane %v117, 5
    %v1153 = vsel %vm1034, %v1151, %v1152
    %v1154 = vrot.slane %v921, 5
    %v1155 = vrot.slane %v1154, 4
    %v1156 = vrot.slane %v72, 5
    %v1157 = vsel %vm1034, %v1155, %v1156
    %v1158 = vrot.slane %v1156, 4
    %v1159 = vrot.slane %v118, 5
    %v1160 = vsel %vm1034, %v1158, %v1159
    %v1161 = vrot.slane %v922, 5
    %v1162 = vrot.slane %v1161, 4
    %v1163 = vrot.slane %v74, 5
    %v1164 = vsel %vm1034, %v1162, %v1163
    %v1165 = vrot.slane %v1163, 4
    %v1166 = vrot.slane %v119, 5
    %v1167 = vsel %vm1034, %v1165, %v1166
    %v1168 = vrot.slane %v923, 5
    %v1169 = vrot.slane %v1168, 4
    %v1170 = vrot.slane %v76, 5
    %v1171 = vsel %vm1034, %v1169, %v1170
    %v1172 = vrot.slane %v1170, 4
    %v1173 = vrot.slane %v120, 5
    %v1174 = vsel %vm1034, %v1172, %v1173
    %v1175 = vrot.slane %v924, 5
    %v1176 = vrot.slane %v1175, 4
    %v1177 = vrot.slane %v78, 5
    %v1178 = vsel %vm1034, %v1176, %v1177
    %v1179 = vrot.slane %v1177, 4
    %v1180 = vrot.slane %v121, 5
    %v1181 = vsel %vm1034, %v1179, %v1180
    %v1182 = vrot.slane %v925, 5
    %v1183 = vrot.slane %v1182, 4
    %v1184 = vrot.slane %v80, 5
    %v1185 = vsel %vm1034, %v1183, %v1184
    %v1186 = vrot.slane %v1184, 4
    %v1187 = vrot.slane %v122, 5
    %v1188 = vsel %vm1034, %v1186, %v1187
    %v1189 = vrot.slane %v926, 5
    %v1190 = vrot.slane %v1189, 4
    %v1191 = vrot.slane %v82, 5
    %v1192 = vsel %vm1034, %v1190, %v1191
    %v1193 = vrot.slane %v1191, 4
    %v1194 = vrot.slane %v123, 5
    %v1195 = vsel %vm1034, %v1193, %v1194
    %v1196 = vrot.slane %v927, 5
    %v1197 = vrot.slane %v1196, 4
    %v1198 = vrot.slane %v84, 5
    %v1199 = vsel %vm1034, %v1197, %v1198
    %v1200 = vrot.slane %v1198, 4
    %v1201 = vrot.slane %v124, 5
    %v1202 = vsel %vm1034, %v1200, %v1201
    %v1203 = vrot.slane %v928, 5
    %v1204 = vrot.slane %v1203, 4
    %v1205 = vrot.slane %v86, 5
    %v1206 = vsel %vm1034, %v1204, %v1205
    %v1207 = vrot.slane %v1205, 4
    %v1208 = vrot.slane %v125, 5
    %v1209 = vsel %vm1034, %v1207, %v1208
    %v1210 = vrot.slane %v929, 5
    %v1211 = vrot.slane %v1210, 4
    %v1212 = vrot.slane %v88, 5
    %v1213 = vsel %vm1034, %v1211, %v1212
    %v1214 = vrot.slane %v1212, 4
    %v1215 = vrot.slane %v126, 5
    %v1216 = vsel %vm1034, %v1214, %v1215
    %v1217 = vrot.slane %v930, 5
    %v1218 = vrot.slane %v1217, 4
    %v1219 = vrot.slane %v90, 5
    %v1220 = vsel %vm1034, %v1218, %v1219
    %v1221 = vrot.slane %v1219, 4
    %v1222 = vrot.slane %v127, 5
    %v1223 = vsel %vm1034, %v1221, %v1222
    %v1224 = vrot.slane %v931, 5
    %v1225 = vrot.slane %v1224, 4
    %v1226 = vrot.slane %v92, 5
    %v1227 = vsel %vm1034, %v1225, %v1226
    %v1228 = vrot.slane %v1226, 4
    %v1229 = vrot.slane %v128, 5
    %v1230 = vsel %vm1034, %v1228, %v1229
    %v1231 = vrot.slane %v932, 5
    %v1232 = vrot.slane %v1231, 4
    %v1233 = vrot.slane %v94, 5
    %v1234 = vsel %vm1034, %v1232, %v1233
    %v1235 = vrot.slane %v1233, 4
    %v1236 = vrot.slane %v129, 5
    %v1237 = vsel %vm1034, %v1235, %v1236
    %v1238 = vrot.slane %v933, 5
    %v1239 = vrot.slane %v1238, 4
    %v1240 = vrot.slane %v96, 5
    %v1241 = vsel %vm1034, %v1239, %v1240
    %v1242 = vrot.slane %v1240, 4
    %v1243 = vrot.slane %v130, 5
    %v1244 = vsel %vm1034, %v1242, %v1243
    %v1245 = vrot.slane %v934, 5
    %v1246 = vrot.slane %v1245, 4
    %v1247 = vrot.slane %v98, 5
    %v1248 = vsel %vm1034, %v1246, %v1247
    %v1249 = vrot.slane %v1247, 4
    %v1250 = vrot.slane %v131, 5
    %v1251 = vsel %vm1034, %v1249, %v1250
    %v1252 = vrot.slane %v935, 5
    %v1253 = vrot.slane %v1252, 4
    %v1254 = vrot.slane %v100, 5
    %v1255 = vsel %vm1034, %v1253, %v1254
    %v1256 = vrot.slane %v1254, 4
    %v1257 = vrot.slane %v132, 5
    %v1258 = vsel %vm1034, %v1256, %v1257
    %s1259 = scalar_lea.vmem %s0, 12
    %v1260 = vld [vmem:[%s1259] sm:$0xf]
    %v1261 = vld [vmem:[%s1259 + $0x4] sm:$0xf]
    %v1262 = vld [vmem:[%s1259 + $0xc] sm:$0xf]
    %v1263 = vld [vmem:[%s1259 + $0x10] sm:$0xf]
    %v1264 = vld [vmem:[%s1259 + $0x18] sm:$0xf]
    %v1265 = vld [vmem:[%s1259 + $0x1c] sm:$0xf]
    %v1266 = vld [vmem:[%s1259 + $0x24] sm:$0xf]
    %v1267 = vld [vmem:[%s1259 + $0x28] sm:$0xf]
    %v1268 = vld [vmem:[%s1259 + $0x30] sm:$0xf]
    %v1269 = vld [vmem:[%s1259 + $0x34] sm:$0xf]
    %v1270 = vld [vmem:[%s1259 + $0x3c] sm:$0xf]
    %v1271 = vld [vmem:[%s1259 + $0x40] sm:$0xf]
    %v1272 = vld [vmem:[%s1259 + $0x48] sm:$0xf]
    %v1273 = vld [vmem:[%s1259 + $0x4c] sm:$0xf]
    %v1274 = vld [vmem:[%s1259 + $0x54] sm:$0xf]
    %v1275 = vld [vmem:[%s1259 + $0x58] sm:$0xf]
    %v1276 = vld [vmem:[%s1259 + $0x60] sm:$0xf]
    %v1277 = vld [vmem:[%s1259 + $0x64] sm:$0xf]
    %v1278 = vld [vmem:[%s1259 + $0x6c] sm:$0xf]
    %v1279 = vld [vmem:[%s1259 + $0x70] sm:$0xf]
    %v1280 = vld [vmem:[%s1259 + $0x78] sm:$0xf]
    %v1281 = vld [vmem:[%s1259 + $0x7c] sm:$0xf]
    %v1282 = vld [vmem:[%s1259 + $0x84] sm:$0xf]
    %v1283 = vld [vmem:[%s1259 + $0x88] sm:$0xf]
    %v1284 = vld [vmem:[%s1259 + $0x90] sm:$0xf]
    %v1285 = vld [vmem:[%s1259 + $0x94] sm:$0xf]
    %v1286 = vld [vmem:[%s1259 + $0x9c] sm:$0xf]
    %v1287 = vld [vmem:[%s1259 + $0xa0] sm:$0xf]
    %v1288 = vld [vmem:[%s1259 + $0xa8] sm:$0xf]
    %v1289 = vld [vmem:[%s1259 + $0xac] sm:$0xf]
    %v1290 = vld [vmem:[%s1259 + $0xb4] sm:$0xf]
    %v1291 = vld [vmem:[%s1259 + $0xb8] sm:$0xf]
    %v1292 = vld [vmem:[%s1259 + $0xd8] sm:$0xf]
    %v1293 = vld [vmem:[%s1259 + $0xdc] sm:$0xf]
    %v1294 = vld [vmem:[%s1259 + $0xe4] sm:$0xf]
    %v1295 = vld [vmem:[%s1259 + $0xe8] sm:$0xf]
    %v1296 = vld [vmem:[%s1259 + $0xf0] sm:$0xf]
    %v1297 = vld [vmem:[%s1259 + $0xf4] sm:$0xf]
    %v1298 = vld [vmem:[%s1259 + $0xfc] sm:$0xf]
    %v1299 = vld [vmem:[%s1259 + $0x100] sm:$0xf]
    %v1300 = vld [vmem:[%s1259 + $0x108] sm:$0xf]
    %v1301 = vld [vmem:[%s1259 + $0x10c] sm:$0xf]
    %v1302 = vld [vmem:[%s1259 + $0x114] sm:$0xf]
    %v1303 = vld [vmem:[%s1259 + $0x118] sm:$0xf]
    %v1304 = vld [vmem:[%s1259 + $0x120] sm:$0xf]
    %v1305 = vld [vmem:[%s1259 + $0x124] sm:$0xf]
    %v1306 = vld [vmem:[%s1259 + $0x12c] sm:$0xf]
    %v1307 = vld [vmem:[%s1259 + $0x130] sm:$0xf]
    %v1308 = vld [vmem:[%s1259 + $0x138] sm:$0xf]
    %v1309 = vld [vmem:[%s1259 + $0x13c] sm:$0xf]
    %v1310 = vld [vmem:[%s1259 + $0x144] sm:$0xf]
    %v1311 = vld [vmem:[%s1259 + $0x148] sm:$0xf]
    %v1312 = vld [vmem:[%s1259 + $0x150] sm:$0xf]
    %v1313 = vld [vmem:[%s1259 + $0x154] sm:$0xf]
    %v1314 = vld [vmem:[%s1259 + $0x15c] sm:$0xf]
    %v1315 = vld [vmem:[%s1259 + $0x160] sm:$0xf]
    %v1316 = vld [vmem:[%s1259 + $0x168] sm:$0xf]
    %v1317 = vld [vmem:[%s1259 + $0x16c] sm:$0xf]
    %v1318 = vld [vmem:[%s1259 + $0x174] sm:$0xf]
    %v1319 = vld [vmem:[%s1259 + $0x178] sm:$0xf]
    %v1320 = vld [vmem:[%s1259 + $0x180] sm:$0xf]
    %v1321 = vld [vmem:[%s1259 + $0x184] sm:$0xf]
    %v1322 = vld [vmem:[%s1259 + $0x18c] sm:$0xf]
    %v1323 = vld [vmem:[%s1259 + $0x190] sm:$0xf]
    %v1324 = vld [vmem:[%s1259 + $0x8] sm:$0x1]
    %v1325 = vld [vmem:[%s1259 + $0x14] sm:$0x1]
    %v1326 = vld [vmem:[%s1259 + $0x20] sm:$0x1]
    %v1327 = vld [vmem:[%s1259 + $0x2c] sm:$0x1]
    %v1328 = vld [vmem:[%s1259 + $0x38] sm:$0x1]
    %v1329 = vld [vmem:[%s1259 + $0x44] sm:$0x1]
    %v1330 = vld [vmem:[%s1259 + $0x50] sm:$0x1]
    %v1331 = vld [vmem:[%s1259 + $0x5c] sm:$0x1]
    %v1332 = vld [vmem:[%s1259 + $0x68] sm:$0x1]
    %v1333 = vld [vmem:[%s1259 + $0x74] sm:$0x1]
    %v1334 = vld [vmem:[%s1259 + $0x80] sm:$0x1]
    %v1335 = vld [vmem:[%s1259 + $0x8c] sm:$0x1]
    %v1336 = vld [vmem:[%s1259 + $0x98] sm:$0x1]
    %v1337 = vld [vmem:[%s1259 + $0xa4] sm:$0x1]
    %v1338 = vld [vmem:[%s1259 + $0xb0] sm:$0x1]
    %v1339 = vld [vmem:[%s1259 + $0xbc] sm:$0x1]
    %v1340 = vld [vmem:[%s1259 + $0xe0] sm:$0x1]
    %v1341 = vld [vmem:[%s1259 + $0xec] sm:$0x1]
    %v1342 = vld [vmem:[%s1259 + $0xf8] sm:$0x1]
    %v1343 = vld [vmem:[%s1259 + $0x104] sm:$0x1]
    %v1344 = vld [vmem:[%s1259 + $0x110] sm:$0x1]
    %v1345 = vld [vmem:[%s1259 + $0x11c] sm:$0x1]
    %v1346 = vld [vmem:[%s1259 + $0x128] sm:$0x1]
    %v1347 = vld [vmem:[%s1259 + $0x134] sm:$0x1]
    %v1348 = vld [vmem:[%s1259 + $0x140] sm:$0x1]
    %v1349 = vld [vmem:[%s1259 + $0x14c] sm:$0x1]
    %v1350 = vld [vmem:[%s1259 + $0x158] sm:$0x1]
    %v1351 = vld [vmem:[%s1259 + $0x164] sm:$0x1]
    %v1352 = vld [vmem:[%s1259 + $0x170] sm:$0x1]
    %v1353 = vld [vmem:[%s1259 + $0x17c] sm:$0x1]
    %v1354 = vld [vmem:[%s1259 + $0x188] sm:$0x1]
    %v1355 = vld [vmem:[%s1259 + $0x194] sm:$0x1]
    %v1357 = vshrl.u32 %v1260, 16
    %v1359 = vrot.slane %v1357, 4
    %v1360 = vshll.u32 %v1260, 16
    %v1362 = vrot.slane %v1360, 5
    %v1363 = vor.u32 %v1359, %v1362
    %v1364 = vrot.slane %v1363, 4
    %v1366 = vshll.u32 %v1261, 16
    %v1368 = vrot.slane %v1366, 5
    %v1369 = vsel %vm135, %v1364, %v1368
    %v1370 = vshrl.u32 %v1261, 16
    %v1372 = vrot.slane %v1370, 4
    %v1373 = vor.u32 %v1372, %v1368
    %v1374 = vrot.slane %v1373, 4
    %v1376 = vshll.u32 %v1324, 16
    %v1378 = vrot.slane %v1376, 5
    %v1379 = vsel %vm135, %v1374, %v1378
    %v1381 = vshrl.u32 %v1262, 16
    %v1383 = vrot.slane %v1381, 4
    %v1384 = vshll.u32 %v1262, 16
    %v1386 = vrot.slane %v1384, 5
    %v1387 = vor.u32 %v1383, %v1386
    %v1388 = vrot.slane %v1387, 4
    %v1390 = vshll.u32 %v1263, 16
    %v1392 = vrot.slane %v1390, 5
    %v1393 = vsel %vm135, %v1388, %v1392
    %v1394 = vshrl.u32 %v1263, 16
    %v1396 = vrot.slane %v1394, 4
    %v1397 = vor.u32 %v1396, %v1392
    %v1398 = vrot.slane %v1397, 4
    %v1400 = vshll.u32 %v1325, 16
    %v1402 = vrot.slane %v1400, 5
    %v1403 = vsel %vm135, %v1398, %v1402
    %v1405 = vshrl.u32 %v1264, 16
    %v1407 = vrot.slane %v1405, 4
    %v1408 = vshll.u32 %v1264, 16
    %v1410 = vrot.slane %v1408, 5
    %v1411 = vor.u32 %v1407, %v1410
    %v1412 = vrot.slane %v1411, 4
    %v1414 = vshll.u32 %v1265, 16
    %v1416 = vrot.slane %v1414, 5
    %v1417 = vsel %vm135, %v1412, %v1416
    %v1418 = vshrl.u32 %v1265, 16
    %v1420 = vrot.slane %v1418, 4
    %v1421 = vor.u32 %v1420, %v1416
    %v1422 = vrot.slane %v1421, 4
    %v1424 = vshll.u32 %v1326, 16
    %v1426 = vrot.slane %v1424, 5
    %v1427 = vsel %vm135, %v1422, %v1426
    %v1429 = vshrl.u32 %v1266, 16
    %v1431 = vrot.slane %v1429, 4
    %v1432 = vshll.u32 %v1266, 16
    %v1434 = vrot.slane %v1432, 5
    %v1435 = vor.u32 %v1431, %v1434
    %v1436 = vrot.slane %v1435, 4
    %v1438 = vshll.u32 %v1267, 16
    %v1440 = vrot.slane %v1438, 5
    %v1441 = vsel %vm135, %v1436, %v1440
    %v1442 = vshrl.u32 %v1267, 16
    %v1444 = vrot.slane %v1442, 4
    %v1445 = vor.u32 %v1444, %v1440
    %v1446 = vrot.slane %v1445, 4
    %v1448 = vshll.u32 %v1327, 16
    %v1450 = vrot.slane %v1448, 5
    %v1451 = vsel %vm135, %v1446, %v1450
    %v1453 = vshrl.u32 %v1268, 16
    %v1455 = vrot.slane %v1453, 4
    %v1456 = vshll.u32 %v1268, 16
    %v1458 = vrot.slane %v1456, 5
    %v1459 = vor.u32 %v1455, %v1458
    %v1460 = vrot.slane %v1459, 4
    %v1462 = vshll.u32 %v1269, 16
    %v1464 = vrot.slane %v1462, 5
    %v1465 = vsel %vm135, %v1460, %v1464
    %v1466 = vshrl.u32 %v1269, 16
    %v1468 = vrot.slane %v1466, 4
    %v1469 = vor.u32 %v1468, %v1464
    %v1470 = vrot.slane %v1469, 4
    %v1472 = vshll.u32 %v1328, 16
    %v1474 = vrot.slane %v1472, 5
    %v1475 = vsel %vm135, %v1470, %v1474
    %v1477 = vshrl.u32 %v1270, 16
    %v1479 = vrot.slane %v1477, 4
    %v1480 = vshll.u32 %v1270, 16
    %v1482 = vrot.slane %v1480, 5
    %v1483 = vor.u32 %v1479, %v1482
    %v1484 = vrot.slane %v1483, 4
    %v1486 = vshll.u32 %v1271, 16
    %v1488 = vrot.slane %v1486, 5
    %v1489 = vsel %vm135, %v1484, %v1488
    %v1490 = vshrl.u32 %v1271, 16
    %v1492 = vrot.slane %v1490, 4
    %v1493 = vor.u32 %v1492, %v1488
    %v1494 = vrot.slane %v1493, 4
    %v1496 = vshll.u32 %v1329, 16
    %v1498 = vrot.slane %v1496, 5
    %v1499 = vsel %vm135, %v1494, %v1498
    %v1501 = vshrl.u32 %v1272, 16
    %v1503 = vrot.slane %v1501, 4
    %v1504 = vshll.u32 %v1272, 16
    %v1506 = vrot.slane %v1504, 5
    %v1507 = vor.u32 %v1503, %v1506
    %v1508 = vrot.slane %v1507, 4
    %v1510 = vshll.u32 %v1273, 16
    %v1512 = vrot.slane %v1510, 5
    %v1513 = vsel %vm135, %v1508, %v1512
    %v1514 = vshrl.u32 %v1273, 16
    %v1516 = vrot.slane %v1514, 4
    %v1517 = vor.u32 %v1516, %v1512
    %v1518 = vrot.slane %v1517, 4
    %v1520 = vshll.u32 %v1330, 16
    %v1522 = vrot.slane %v1520, 5
    %v1523 = vsel %vm135, %v1518, %v1522
    %v1525 = vshrl.u32 %v1274, 16
    %v1527 = vrot.slane %v1525, 4
    %v1528 = vshll.u32 %v1274, 16
    %v1530 = vrot.slane %v1528, 5
    %v1531 = vor.u32 %v1527, %v1530
    %v1532 = vrot.slane %v1531, 4
    %v1534 = vshll.u32 %v1275, 16
    %v1536 = vrot.slane %v1534, 5
    %v1537 = vsel %vm135, %v1532, %v1536
    %v1538 = vshrl.u32 %v1275, 16
    %v1540 = vrot.slane %v1538, 4
    %v1541 = vor.u32 %v1540, %v1536
    %v1542 = vrot.slane %v1541, 4
    %v1544 = vshll.u32 %v1331, 16
    %v1546 = vrot.slane %v1544, 5
    %v1547 = vsel %vm135, %v1542, %v1546
    %v1549 = vshrl.u32 %v1276, 16
    %v1551 = vrot.slane %v1549, 4
    %v1552 = vshll.u32 %v1276, 16
    %v1554 = vrot.slane %v1552, 5
    %v1555 = vor.u32 %v1551, %v1554
    %v1556 = vrot.slane %v1555, 4
    %v1558 = vshll.u32 %v1277, 16
    %v1560 = vrot.slane %v1558, 5
    %v1561 = vsel %vm135, %v1556, %v1560
    %v1562 = vshrl.u32 %v1277, 16
    %v1564 = vrot.slane %v1562, 4
    %v1565 = vor.u32 %v1564, %v1560
    %v1566 = vrot.slane %v1565, 4
    %v1568 = vshll.u32 %v1332, 16
    %v1570 = vrot.slane %v1568, 5
    %v1571 = vsel %vm135, %v1566, %v1570
    %v1573 = vshrl.u32 %v1278, 16
    %v1575 = vrot.slane %v1573, 4
    %v1576 = vshll.u32 %v1278, 16
    %v1578 = vrot.slane %v1576, 5
    %v1579 = vor.u32 %v1575, %v1578
    %v1580 = vrot.slane %v1579, 4
    %v1582 = vshll.u32 %v1279, 16
    %v1584 = vrot.slane %v1582, 5
    %v1585 = vsel %vm135, %v1580, %v1584
    %v1586 = vshrl.u32 %v1279, 16
    %v1588 = vrot.slane %v1586, 4
    %v1589 = vor.u32 %v1588, %v1584
    %v1590 = vrot.slane %v1589, 4
    %v1592 = vshll.u32 %v1333, 16
    %v1594 = vrot.slane %v1592, 5
    %v1595 = vsel %vm135, %v1590, %v1594
    %v1597 = vshrl.u32 %v1280, 16
    %v1599 = vrot.slane %v1597, 4
    %v1600 = vshll.u32 %v1280, 16
    %v1602 = vrot.slane %v1600, 5
    %v1603 = vor.u32 %v1599, %v1602
    %v1604 = vrot.slane %v1603, 4
    %v1606 = vshll.u32 %v1281, 16
    %v1608 = vrot.slane %v1606, 5
    %v1609 = vsel %vm135, %v1604, %v1608
    %v1610 = vshrl.u32 %v1281, 16
    %v1612 = vrot.slane %v1610, 4
    %v1613 = vor.u32 %v1612, %v1608
    %v1614 = vrot.slane %v1613, 4
    %v1616 = vshll.u32 %v1334, 16
    %v1618 = vrot.slane %v1616, 5
    %v1619 = vsel %vm135, %v1614, %v1618
    %v1621 = vshrl.u32 %v1282, 16
    %v1623 = vrot.slane %v1621, 4
    %v1624 = vshll.u32 %v1282, 16
    %v1626 = vrot.slane %v1624, 5
    %v1627 = vor.u32 %v1623, %v1626
    %v1628 = vrot.slane %v1627, 4
    %v1630 = vshll.u32 %v1283, 16
    %v1632 = vrot.slane %v1630, 5
    %v1633 = vsel %vm135, %v1628, %v1632
    %v1634 = vshrl.u32 %v1283, 16
    %v1636 = vrot.slane %v1634, 4
    %v1637 = vor.u32 %v1636, %v1632
    %v1638 = vrot.slane %v1637, 4
    %v1640 = vshll.u32 %v1335, 16
    %v1642 = vrot.slane %v1640, 5
    %v1643 = vsel %vm135, %v1638, %v1642
    %v1645 = vshrl.u32 %v1284, 16
    %v1647 = vrot.slane %v1645, 4
    %v1648 = vshll.u32 %v1284, 16
    %v1650 = vrot.slane %v1648, 5
    %v1651 = vor.u32 %v1647, %v1650
    %v1652 = vrot.slane %v1651, 4
    %v1654 = vshll.u32 %v1285, 16
    %v1656 = vrot.slane %v1654, 5
    %v1657 = vsel %vm135, %v1652, %v1656
    %v1658 = vshrl.u32 %v1285, 16
    %v1660 = vrot.slane %v1658, 4
    %v1661 = vor.u32 %v1660, %v1656
    %v1662 = vrot.slane %v1661, 4
    %v1664 = vshll.u32 %v1336, 16
    %v1666 = vrot.slane %v1664, 5
    %v1667 = vsel %vm135, %v1662, %v1666
    %v1669 = vshrl.u32 %v1286, 16
    %v1671 = vrot.slane %v1669, 4
    %v1672 = vshll.u32 %v1286, 16
    %v1674 = vrot.slane %v1672, 5
    %v1675 = vor.u32 %v1671, %v1674
    %v1676 = vrot.slane %v1675, 4
    %v1678 = vshll.u32 %v1287, 16
    %v1680 = vrot.slane %v1678, 5
    %v1681 = vsel %vm135, %v1676, %v1680
    %v1682 = vshrl.u32 %v1287, 16
    %v1684 = vrot.slane %v1682, 4
    %v1685 = vor.u32 %v1684, %v1680
    %v1686 = vrot.slane %v1685, 4
    %v1688 = vshll.u32 %v1337, 16
    %v1690 = vrot.slane %v1688, 5
    %v1691 = vsel %vm135, %v1686, %v1690
    %v1693 = vshrl.u32 %v1288, 16
    %v1695 = vrot.slane %v1693, 4
    %v1696 = vshll.u32 %v1288, 16
    %v1698 = vrot.slane %v1696, 5
    %v1699 = vor.u32 %v1695, %v1698
    %v1700 = vrot.slane %v1699, 4
    %v1702 = vshll.u32 %v1289, 16
    %v1704 = vrot.slane %v1702, 5
    %v1705 = vsel %vm135, %v1700, %v1704
    %v1706 = vshrl.u32 %v1289, 16
    %v1708 = vrot.slane %v1706, 4
    %v1709 = vor.u32 %v1708, %v1704
    %v1710 = vrot.slane %v1709, 4
    %v1712 = vshll.u32 %v1338, 16
    %v1714 = vrot.slane %v1712, 5
    %v1715 = vsel %vm135, %v1710, %v1714
    %v1717 = vshrl.u32 %v1290, 16
    %v1719 = vrot.slane %v1717, 4
    %v1720 = vshll.u32 %v1290, 16
    %v1722 = vrot.slane %v1720, 5
    %v1723 = vor.u32 %v1719, %v1722
    %v1724 = vrot.slane %v1723, 4
    %v1726 = vshll.u32 %v1291, 16
    %v1728 = vrot.slane %v1726, 5
    %v1729 = vsel %vm135, %v1724, %v1728
    %v1730 = vshrl.u32 %v1291, 16
    %v1732 = vrot.slane %v1730, 4
    %v1733 = vor.u32 %v1732, %v1728
    %v1734 = vrot.slane %v1733, 4
    %v1736 = vshll.u32 %v1339, 16
    %v1738 = vrot.slane %v1736, 5
    %v1739 = vsel %vm135, %v1734, %v1738
    %v1741 = vshrl.u32 %v1292, 16
    %v1743 = vrot.slane %v1741, 4
    %v1744 = vshll.u32 %v1292, 16
    %v1746 = vrot.slane %v1744, 5
    %v1747 = vor.u32 %v1743, %v1746
    %v1748 = vrot.slane %v1747, 4
    %v1750 = vshll.u32 %v1293, 16
    %v1752 = vrot.slane %v1750, 5
    %v1753 = vsel %vm135, %v1748, %v1752
    %v1754 = vshrl.u32 %v1293, 16
    %v1756 = vrot.slane %v1754, 4
    %v1757 = vor.u32 %v1756, %v1752
    %v1758 = vrot.slane %v1757, 4
    %v1760 = vshll.u32 %v1340, 16
    %v1762 = vrot.slane %v1760, 5
    %v1763 = vsel %vm135, %v1758, %v1762
    %v1765 = vshrl.u32 %v1294, 16
    %v1767 = vrot.slane %v1765, 4
    %v1768 = vshll.u32 %v1294, 16
    %v1770 = vrot.slane %v1768, 5
    %v1771 = vor.u32 %v1767, %v1770
    %v1772 = vrot.slane %v1771, 4
    %v1774 = vshll.u32 %v1295, 16
    %v1776 = vrot.slane %v1774, 5
    %v1777 = vsel %vm135, %v1772, %v1776
    %v1778 = vshrl.u32 %v1295, 16
    %v1780 = vrot.slane %v1778, 4
    %v1781 = vor.u32 %v1780, %v1776
    %v1782 = vrot.slane %v1781, 4
    %v1784 = vshll.u32 %v1341, 16
    %v1786 = vrot.slane %v1784, 5
    %v1787 = vsel %vm135, %v1782, %v1786
    %v1789 = vshrl.u32 %v1296, 16
    %v1791 = vrot.slane %v1789, 4
    %v1792 = vshll.u32 %v1296, 16
    %v1794 = vrot.slane %v1792, 5
    %v1795 = vor.u32 %v1791, %v1794
    %v1796 = vrot.slane %v1795, 4
    %v1798 = vshll.u32 %v1297, 16
    %v1800 = vrot.slane %v1798, 5
    %v1801 = vsel %vm135, %v1796, %v1800
    %v1802 = vshrl.u32 %v1297, 16
    %v1804 = vrot.slane %v1802, 4
    %v1805 = vor.u32 %v1804, %v1800
    %v1806 = vrot.slane %v1805, 4
    %v1808 = vshll.u32 %v1342, 16
    %v1810 = vrot.slane %v1808, 5
    %v1811 = vsel %vm135, %v1806, %v1810
    %v1813 = vshrl.u32 %v1298, 16
    %v1815 = vrot.slane %v1813, 4
    %v1816 = vshll.u32 %v1298, 16
    %v1818 = vrot.slane %v1816, 5
    %v1819 = vor.u32 %v1815, %v1818
    %v1820 = vrot.slane %v1819, 4
    %v1822 = vshll.u32 %v1299, 16
    %v1824 = vrot.slane %v1822, 5
    %v1825 = vsel %vm135, %v1820, %v1824
    %v1826 = vshrl.u32 %v1299, 16
    %v1828 = vrot.slane %v1826, 4
    %v1829 = vor.u32 %v1828, %v1824
    %v1830 = vrot.slane %v1829, 4
    %v1832 = vshll.u32 %v1343, 16
    %v1834 = vrot.slane %v1832, 5
    %v1835 = vsel %vm135, %v1830, %v1834
    %v1837 = vshrl.u32 %v1300, 16
    %v1839 = vrot.slane %v1837, 4
    %v1840 = vshll.u32 %v1300, 16
    %v1842 = vrot.slane %v1840, 5
    %v1843 = vor.u32 %v1839, %v1842
    %v1844 = vrot.slane %v1843, 4
    %v1846 = vshll.u32 %v1301, 16
    %v1848 = vrot.slane %v1846, 5
    %v1849 = vsel %vm135, %v1844, %v1848
    %v1850 = vshrl.u32 %v1301, 16
    %v1852 = vrot.slane %v1850, 4
    %v1853 = vor.u32 %v1852, %v1848
    %v1854 = vrot.slane %v1853, 4
    %v1856 = vshll.u32 %v1344, 16
    %v1858 = vrot.slane %v1856, 5
    %v1859 = vsel %vm135, %v1854, %v1858
    %v1861 = vshrl.u32 %v1302, 16
    %v1863 = vrot.slane %v1861, 4
    %v1864 = vshll.u32 %v1302, 16
    %v1866 = vrot.slane %v1864, 5
    %v1867 = vor.u32 %v1863, %v1866
    %v1868 = vrot.slane %v1867, 4
    %v1870 = vshll.u32 %v1303, 16
    %v1872 = vrot.slane %v1870, 5
    %v1873 = vsel %vm135, %v1868, %v1872
    %v1874 = vshrl.u32 %v1303, 16
    %v1876 = vrot.slane %v1874, 4
    %v1877 = vor.u32 %v1876, %v1872
    %v1878 = vrot.slane %v1877, 4
    %v1880 = vshll.u32 %v1345, 16
    %v1882 = vrot.slane %v1880, 5
    %v1883 = vsel %vm135, %v1878, %v1882
    %v1885 = vshrl.u32 %v1304, 16
    %v1887 = vrot.slane %v1885, 4
    %v1888 = vshll.u32 %v1304, 16
    %v1890 = vrot.slane %v1888, 5
    %v1891 = vor.u32 %v1887, %v1890
    %v1892 = vrot.slane %v1891, 4
    %v1894 = vshll.u32 %v1305, 16
    %v1896 = vrot.slane %v1894, 5
    %v1897 = vsel %vm135, %v1892, %v1896
    %v1898 = vshrl.u32 %v1305, 16
    %v1900 = vrot.slane %v1898, 4
    %v1901 = vor.u32 %v1900, %v1896
    %v1902 = vrot.slane %v1901, 4
    %v1904 = vshll.u32 %v1346, 16
    %v1906 = vrot.slane %v1904, 5
    %v1907 = vsel %vm135, %v1902, %v1906
    %v1909 = vshrl.u32 %v1306, 16
    %v1911 = vrot.slane %v1909, 4
    %v1912 = vshll.u32 %v1306, 16
    %v1914 = vrot.slane %v1912, 5
    %v1915 = vor.u32 %v1911, %v1914
    %v1916 = vrot.slane %v1915, 4
    %v1918 = vshll.u32 %v1307, 16
    %v1920 = vrot.slane %v1918, 5
    %v1921 = vsel %vm135, %v1916, %v1920
    %v1922 = vshrl.u32 %v1307, 16
    %v1924 = vrot.slane %v1922, 4
    %v1925 = vor.u32 %v1924, %v1920
    %v1926 = vrot.slane %v1925, 4
    %v1928 = vshll.u32 %v1347, 16
    %v1930 = vrot.slane %v1928, 5
    %v1931 = vsel %vm135, %v1926, %v1930
    %v1933 = vshrl.u32 %v1308, 16
    %v1935 = vrot.slane %v1933, 4
    %v1936 = vshll.u32 %v1308, 16
    %v1938 = vrot.slane %v1936, 5
    %v1939 = vor.u32 %v1935, %v1938
    %v1940 = vrot.slane %v1939, 4
    %v1942 = vshll.u32 %v1309, 16
    %v1944 = vrot.slane %v1942, 5
    %v1945 = vsel %vm135, %v1940, %v1944
    %v1946 = vshrl.u32 %v1309, 16
    %v1948 = vrot.slane %v1946, 4
    %v1949 = vor.u32 %v1948, %v1944
    %v1950 = vrot.slane %v1949, 4
    %v1952 = vshll.u32 %v1348, 16
    %v1954 = vrot.slane %v1952, 5
    %v1955 = vsel %vm135, %v1950, %v1954
    %v1957 = vshrl.u32 %v1310, 16
    %v1959 = vrot.slane %v1957, 4
    %v1960 = vshll.u32 %v1310, 16
    %v1962 = vrot.slane %v1960, 5
    %v1963 = vor.u32 %v1959, %v1962
    %v1964 = vrot.slane %v1963, 4
    %v1966 = vshll.u32 %v1311, 16
    %v1968 = vrot.slane %v1966, 5
    %v1969 = vsel %vm135, %v1964, %v1968
    %v1970 = vshrl.u32 %v1311, 16
    %v1972 = vrot.slane %v1970, 4
    %v1973 = vor.u32 %v1972, %v1968
    %v1974 = vrot.slane %v1973, 4
    %v1976 = vshll.u32 %v1349, 16
    %v1978 = vrot.slane %v1976, 5
    %v1979 = vsel %vm135, %v1974, %v1978
    %v1981 = vshrl.u32 %v1312, 16
    %v1983 = vrot.slane %v1981, 4
    %v1984 = vshll.u32 %v1312, 16
    %v1986 = vrot.slane %v1984, 5
    %v1987 = vor.u32 %v1983, %v1986
    %v1988 = vrot.slane %v1987, 4
    %v1990 = vshll.u32 %v1313, 16
    %v1992 = vrot.slane %v1990, 5
    %v1993 = vsel %vm135, %v1988, %v1992
    %v1994 = vshrl.u32 %v1313, 16
    %v1996 = vrot.slane %v1994, 4
    %v1997 = vor.u32 %v1996, %v1992
    %v1998 = vrot.slane %v1997, 4
    %v2000 = vshll.u32 %v1350, 16
    %v2002 = vrot.slane %v2000, 5
    %v2003 = vsel %vm135, %v1998, %v2002
    %v2005 = vshrl.u32 %v1314, 16
    %v2007 = vrot.slane %v2005, 4
    %v2008 = vshll.u32 %v1314, 16
    %v2010 = vrot.slane %v2008, 5
    %v2011 = vor.u32 %v2007, %v2010
    %v2012 = vrot.slane %v2011, 4
    %v2014 = vshll.u32 %v1315, 16
    %v2016 = vrot.slane %v2014, 5
    %v2017 = vsel %vm135, %v2012, %v2016
    %v2018 = vshrl.u32 %v1315, 16
    %v2020 = vrot.slane %v2018, 4
    %v2021 = vor.u32 %v2020, %v2016
    %v2022 = vrot.slane %v2021, 4
    %v2024 = vshll.u32 %v1351, 16
    %v2026 = vrot.slane %v2024, 5
    %v2027 = vsel %vm135, %v2022, %v2026
    %v2029 = vshrl.u32 %v1316, 16
    %v2031 = vrot.slane %v2029, 4
    %v2032 = vshll.u32 %v1316, 16
    %v2034 = vrot.slane %v2032, 5
    %v2035 = vor.u32 %v2031, %v2034
    %v2036 = vrot.slane %v2035, 4
    %v2038 = vshll.u32 %v1317, 16
    %v2040 = vrot.slane %v2038, 5
    %v2041 = vsel %vm135, %v2036, %v2040
    %v2042 = vshrl.u32 %v1317, 16
    %v2044 = vrot.slane %v2042, 4
    %v2045 = vor.u32 %v2044, %v2040
    %v2046 = vrot.slane %v2045, 4
    %v2048 = vshll.u32 %v1352, 16
    %v2050 = vrot.slane %v2048, 5
    %v2051 = vsel %vm135, %v2046, %v2050
    %v2053 = vshrl.u32 %v1318, 16
    %v2055 = vrot.slane %v2053, 4
    %v2056 = vshll.u32 %v1318, 16
    %v2058 = vrot.slane %v2056, 5
    %v2059 = vor.u32 %v2055, %v2058
    %v2060 = vrot.slane %v2059, 4
    %v2062 = vshll.u32 %v1319, 16
    %v2064 = vrot.slane %v2062, 5
    %v2065 = vsel %vm135, %v2060, %v2064
    %v2066 = vshrl.u32 %v1319, 16
    %v2068 = vrot.slane %v2066, 4
    %v2069 = vor.u32 %v2068, %v2064
    %v2070 = vrot.slane %v2069, 4
    %v2072 = vshll.u32 %v1353, 16
    %v2074 = vrot.slane %v2072, 5
    %v2075 = vsel %vm135, %v2070, %v2074
    %v2077 = vshrl.u32 %v1320, 16
    %v2079 = vrot.slane %v2077, 4
    %v2080 = vshll.u32 %v1320, 16
    %v2082 = vrot.slane %v2080, 5
    %v2083 = vor.u32 %v2079, %v2082
    %v2084 = vrot.slane %v2083, 4
    %v2086 = vshll.u32 %v1321, 16
    %v2088 = vrot.slane %v2086, 5
    %v2089 = vsel %vm135, %v2084, %v2088
    %v2090 = vshrl.u32 %v1321, 16
    %v2092 = vrot.slane %v2090, 4
    %v2093 = vor.u32 %v2092, %v2088
    %v2094 = vrot.slane %v2093, 4
    %v2096 = vshll.u32 %v1354, 16
    %v2098 = vrot.slane %v2096, 5
    %v2099 = vsel %vm135, %v2094, %v2098
    %v2101 = vshrl.u32 %v1322, 16
    %v2103 = vrot.slane %v2101, 4
    %v2104 = vshll.u32 %v1322, 16
    %v2106 = vrot.slane %v2104, 5
    %v2107 = vor.u32 %v2103, %v2106
    %v2108 = vrot.slane %v2107, 4
    %v2110 = vshll.u32 %v1323, 16
    %v2112 = vrot.slane %v2110, 5
    %v2113 = vsel %vm135, %v2108, %v2112
    %v2114 = vshrl.u32 %v1323, 16
    %v2116 = vrot.slane %v2114, 4
    %v2117 = vor.u32 %v2116, %v2112
    %v2118 = vrot.slane %v2117, 4
    %v2120 = vshll.u32 %v1355, 16
    %v2122 = vrot.slane %v2120, 5
    %v2123 = vsel %vm135, %v2118, %v2122
    %v2124 = vld [vmem:[%s1259] sm:$0xe]
    %v2125 = vld [vmem:[%s1259 + $0xc] sm:$0xe]
    %v2126 = vld [vmem:[%s1259 + $0x18] sm:$0xe]
    %v2127 = vld [vmem:[%s1259 + $0x24] sm:$0xe]
    %v2128 = vld [vmem:[%s1259 + $0x30] sm:$0xe]
    %v2129 = vld [vmem:[%s1259 + $0x3c] sm:$0xe]
    %v2130 = vld [vmem:[%s1259 + $0x48] sm:$0xe]
    %v2131 = vld [vmem:[%s1259 + $0x54] sm:$0xe]
    %v2132 = vld [vmem:[%s1259 + $0x60] sm:$0xe]
    %v2133 = vld [vmem:[%s1259 + $0x6c] sm:$0xe]
    %v2134 = vld [vmem:[%s1259 + $0x78] sm:$0xe]
    %v2135 = vld [vmem:[%s1259 + $0x84] sm:$0xe]
    %v2136 = vld [vmem:[%s1259 + $0x90] sm:$0xe]
    %v2137 = vld [vmem:[%s1259 + $0x9c] sm:$0xe]
    %v2138 = vld [vmem:[%s1259 + $0xa8] sm:$0xe]
    %v2139 = vld [vmem:[%s1259 + $0xb4] sm:$0xe]
    %v2140 = vld [vmem:[%s1259 + $0xd8] sm:$0xe]
    %v2141 = vld [vmem:[%s1259 + $0xe4] sm:$0xe]
    %v2142 = vld [vmem:[%s1259 + $0xf0] sm:$0xe]
    %v2143 = vld [vmem:[%s1259 + $0xfc] sm:$0xe]
    %v2144 = vld [vmem:[%s1259 + $0x108] sm:$0xe]
    %v2145 = vld [vmem:[%s1259 + $0x114] sm:$0xe]
    %v2146 = vld [vmem:[%s1259 + $0x120] sm:$0xe]
    %v2147 = vld [vmem:[%s1259 + $0x12c] sm:$0xe]
    %v2148 = vld [vmem:[%s1259 + $0x138] sm:$0xe]
    %v2149 = vld [vmem:[%s1259 + $0x144] sm:$0xe]
    %v2150 = vld [vmem:[%s1259 + $0x150] sm:$0xe]
    %v2151 = vld [vmem:[%s1259 + $0x15c] sm:$0xe]
    %v2152 = vld [vmem:[%s1259 + $0x168] sm:$0xe]
    %v2153 = vld [vmem:[%s1259 + $0x174] sm:$0xe]
    %v2154 = vld [vmem:[%s1259 + $0x180] sm:$0xe]
    %v2155 = vld [vmem:[%s1259 + $0x18c] sm:$0xe]
    %v2252 = vrot.slane %v2124, 5
    %v2253 = vrot.slane %v2252, 4
    %v2254 = vrot.slane %v1261, 5
    %v2255 = vsel %vm1034, %v2253, %v2254
    %v2256 = vrot.slane %v2254, 4
    %v2257 = vrot.slane %v1324, 5
    %v2258 = vsel %vm1034, %v2256, %v2257
    %v2259 = vrot.slane %v2125, 5
    %v2260 = vrot.slane %v2259, 4
    %v2261 = vrot.slane %v1263, 5
    %v2262 = vsel %vm1034, %v2260, %v2261
    %v2263 = vrot.slane %v2261, 4
    %v2264 = vrot.slane %v1325, 5
    %v2265 = vsel %vm1034, %v2263, %v2264
    %v2266 = vrot.slane %v2126, 5
    %v2267 = vrot.slane %v2266, 4
    %v2268 = vrot.slane %v1265, 5
    %v2269 = vsel %vm1034, %v2267, %v2268
    %v2270 = vrot.slane %v2268, 4
    %v2271 = vrot.slane %v1326, 5
    %v2272 = vsel %vm1034, %v2270, %v2271
    %v2273 = vrot.slane %v2127, 5
    %v2274 = vrot.slane %v2273, 4
    %v2275 = vrot.slane %v1267, 5
    %v2276 = vsel %vm1034, %v2274, %v2275
    %v2277 = vrot.slane %v2275, 4
    %v2278 = vrot.slane %v1327, 5
    %v2279 = vsel %vm1034, %v2277, %v2278
    %v2280 = vrot.slane %v2128, 5
    %v2281 = vrot.slane %v2280, 4
    %v2282 = vrot.slane %v1269, 5
    %v2283 = vsel %vm1034, %v2281, %v2282
    %v2284 = vrot.slane %v2282, 4
    %v2285 = vrot.slane %v1328, 5
    %v2286 = vsel %vm1034, %v2284, %v2285
    %v2287 = vrot.slane %v2129, 5
    %v2288 = vrot.slane %v2287, 4
    %v2289 = vrot.slane %v1271, 5
    %v2290 = vsel %vm1034, %v2288, %v2289
    %v2291 = vrot.slane %v2289, 4
    %v2292 = vrot.slane %v1329, 5
    %v2293 = vsel %vm1034, %v2291, %v2292
    %v2294 = vrot.slane %v2130, 5
    %v2295 = vrot.slane %v2294, 4
    %v2296 = vrot.slane %v1273, 5
    %v2297 = vsel %vm1034, %v2295, %v2296
    %v2298 = vrot.slane %v2296, 4
    %v2299 = vrot.slane %v1330, 5
    %v2300 = vsel %vm1034, %v2298, %v2299
    %v2301 = vrot.slane %v2131, 5
    %v2302 = vrot.slane %v2301, 4
    %v2303 = vrot.slane %v1275, 5
    %v2304 = vsel %vm1034, %v2302, %v2303
    %v2305 = vrot.slane %v2303, 4
    %v2306 = vrot.slane %v1331, 5
    %v2307 = vsel %vm1034, %v2305, %v2306
    %v2308 = vrot.slane %v2132, 5
    %v2309 = vrot.slane %v2308, 4
    %v2310 = vrot.slane %v1277, 5
    %v2311 = vsel %vm1034, %v2309, %v2310
    %v2312 = vrot.slane %v2310, 4
    %v2313 = vrot.slane %v1332, 5
    %v2314 = vsel %vm1034, %v2312, %v2313
    %v2315 = vrot.slane %v2133, 5
    %v2316 = vrot.slane %v2315, 4
    %v2317 = vrot.slane %v1279, 5
    %v2318 = vsel %vm1034, %v2316, %v2317
    %v2319 = vrot.slane %v2317, 4
    %v2320 = vrot.slane %v1333, 5
    %v2321 = vsel %vm1034, %v2319, %v2320
    %v2322 = vrot.slane %v2134, 5
    %v2323 = vrot.slane %v2322, 4
    %v2324 = vrot.slane %v1281, 5
    %v2325 = vsel %vm1034, %v2323, %v2324
    %v2326 = vrot.slane %v2324, 4
    %v2327 = vrot.slane %v1334, 5
    %v2328 = vsel %vm1034, %v2326, %v2327
    %v2329 = vrot.slane %v2135, 5
    %v2330 = vrot.slane %v2329, 4
    %v2331 = vrot.slane %v1283, 5
    %v2332 = vsel %vm1034, %v2330, %v2331
    %v2333 = vrot.slane %v2331, 4
    %v2334 = vrot.slane %v1335, 5
    %v2335 = vsel %vm1034, %v2333, %v2334
    %v2336 = vrot.slane %v2136, 5
    %v2337 = vrot.slane %v2336, 4
    %v2338 = vrot.slane %v1285, 5
    %v2339 = vsel %vm1034, %v2337, %v2338
    %v2340 = vrot.slane %v2338, 4
    %v2341 = vrot.slane %v1336, 5
    %v2342 = vsel %vm1034, %v2340, %v2341
    %v2343 = vrot.slane %v2137, 5
    %v2344 = vrot.slane %v2343, 4
    %v2345 = vrot.slane %v1287, 5
    %v2346 = vsel %vm1034, %v2344, %v2345
    %v2347 = vrot.slane %v2345, 4
    %v2348 = vrot.slane %v1337, 5
    %v2349 = vsel %vm1034, %v2347, %v2348
    %v2350 = vrot.slane %v2138, 5
    %v2351 = vrot.slane %v2350, 4
    %v2352 = vrot.slane %v1289, 5
    %v2353 = vsel %vm1034, %v2351, %v2352
    %v2354 = vrot.slane %v2352, 4
    %v2355 = vrot.slane %v1338, 5
    %v2356 = vsel %vm1034, %v2354, %v2355
    %v2357 = vrot.slane %v2139, 5
    %v2358 = vrot.slane %v2357, 4
    %v2359 = vrot.slane %v1291, 5
    %v2360 = vsel %vm1034, %v2358, %v2359
    %v2361 = vrot.slane %v2359, 4
    %v2362 = vrot.slane %v1339, 5
    %v2363 = vsel %vm1034, %v2361, %v2362
    %v2364 = vrot.slane %v2140, 5
    %v2365 = vrot.slane %v2364, 4
    %v2366 = vrot.slane %v1293, 5
    %v2367 = vsel %vm1034, %v2365, %v2366
    %v2368 = vrot.slane %v2366, 4
    %v2369 = vrot.slane %v1340, 5
    %v2370 = vsel %vm1034, %v2368, %v2369
    %v2371 = vrot.slane %v2141, 5
    %v2372 = vrot.slane %v2371, 4
    %v2373 = vrot.slane %v1295, 5
    %v2374 = vsel %vm1034, %v2372, %v2373
    %v2375 = vrot.slane %v2373, 4
    %v2376 = vrot.slane %v1341, 5
    %v2377 = vsel %vm1034, %v2375, %v2376
    %v2378 = vrot.slane %v2142, 5
    %v2379 = vrot.slane %v2378, 4
    %v2380 = vrot.slane %v1297, 5
    %v2381 = vsel %vm1034, %v2379, %v2380
    %v2382 = vrot.slane %v2380, 4
    %v2383 = vrot.slane %v1342, 5
    %v2384 = vsel %vm1034, %v2382, %v2383
    %v2385 = vrot.slane %v2143, 5
    %v2386 = vrot.slane %v2385, 4
    %v2387 = vrot.slane %v1299, 5
    %v2388 = vsel %vm1034, %v2386, %v2387
    %v2389 = vrot.slane %v2387, 4
    %v2390 = vrot.slane %v1343, 5
    %v2391 = vsel %vm1034, %v2389, %v2390
    %v2392 = vrot.slane %v2144, 5
    %v2393 = vrot.slane %v2392, 4
    %v2394 = vrot.slane %v1301, 5
    %v2395 = vsel %vm1034, %v2393, %v2394
    %v2396 = vrot.slane %v2394, 4
    %v2397 = vrot.slane %v1344, 5
    %v2398 = vsel %vm1034, %v2396, %v2397
    %v2399 = vrot.slane %v2145, 5
    %v2400 = vrot.slane %v2399, 4
    %v2401 = vrot.slane %v1303, 5
    %v2402 = vsel %vm1034, %v2400, %v2401
    %v2403 = vrot.slane %v2401, 4
    %v2404 = vrot.slane %v1345, 5
    %v2405 = vsel %vm1034, %v2403, %v2404
    %v2406 = vrot.slane %v2146, 5
    %v2407 = vrot.slane %v2406, 4
    %v2408 = vrot.slane %v1305, 5
    %v2409 = vsel %vm1034, %v2407, %v2408
    %v2410 = vrot.slane %v2408, 4
    %v2411 = vrot.slane %v1346, 5
    %v2412 = vsel %vm1034, %v2410, %v2411
    %v2413 = vrot.slane %v2147, 5
    %v2414 = vrot.slane %v2413, 4
    %v2415 = vrot.slane %v1307, 5
    %v2416 = vsel %vm1034, %v2414, %v2415
    %v2417 = vrot.slane %v2415, 4
    %v2418 = vrot.slane %v1347, 5
    %v2419 = vsel %vm1034, %v2417, %v2418
    %v2420 = vrot.slane %v2148, 5
    %v2421 = vrot.slane %v2420, 4
    %v2422 = vrot.slane %v1309, 5
    %v2423 = vsel %vm1034, %v2421, %v2422
    %v2424 = vrot.slane %v2422, 4
    %v2425 = vrot.slane %v1348, 5
    %v2426 = vsel %vm1034, %v2424, %v2425
    %v2427 = vrot.slane %v2149, 5
    %v2428 = vrot.slane %v2427, 4
    %v2429 = vrot.slane %v1311, 5
    %v2430 = vsel %vm1034, %v2428, %v2429
    %v2431 = vrot.slane %v2429, 4
    %v2432 = vrot.slane %v1349, 5
    %v2433 = vsel %vm1034, %v2431, %v2432
    %v2434 = vrot.slane %v2150, 5
    %v2435 = vrot.slane %v2434, 4
    %v2436 = vrot.slane %v1313, 5
    %v2437 = vsel %vm1034, %v2435, %v2436
    %v2438 = vrot.slane %v2436, 4
    %v2439 = vrot.slane %v1350, 5
    %v2440 = vsel %vm1034, %v2438, %v2439
    %v2441 = vrot.slane %v2151, 5
    %v2442 = vrot.slane %v2441, 4
    %v2443 = vrot.slane %v1315, 5
    %v2444 = vsel %vm1034, %v2442, %v2443
    %v2445 = vrot.slane %v2443, 4
    %v2446 = vrot.slane %v1351, 5
    %v2447 = vsel %vm1034, %v2445, %v2446
    %v2448 = vrot.slane %v2152, 5
    %v2449 = vrot.slane %v2448, 4
    %v2450 = vrot.slane %v1317, 5
    %v2451 = vsel %vm1034, %v2449, %v2450
    %v2452 = vrot.slane %v2450, 4
    %v2453 = vrot.slane %v1352, 5
    %v2454 = vsel %vm1034, %v2452, %v2453
    %v2455 = vrot.slane %v2153, 5
    %v2456 = vrot.slane %v2455, 4
    %v2457 = vrot.slane %v1319, 5
    %v2458 = vsel %vm1034, %v2456, %v2457
    %v2459 = vrot.slane %v2457, 4
    %v2460 = vrot.slane %v1353, 5
    %v2461 = vsel %vm1034, %v2459, %v2460
    %v2462 = vrot.slane %v2154, 5
    %v2463 = vrot.slane %v2462, 4
    %v2464 = vrot.slane %v1321, 5
    %v2465 = vsel %vm1034, %v2463, %v2464
    %v2466 = vrot.slane %v2464, 4
    %v2467 = vrot.slane %v1354, 5
    %v2468 = vsel %vm1034, %v2466, %v2467
    %v2469 = vrot.slane %v2155, 5
    %v2470 = vrot.slane %v2469, 4
    %v2471 = vrot.slane %v1323, 5
    %v2472 = vsel %vm1034, %v2470, %v2471
    %v2473 = vrot.slane %v2471, 4
    %v2474 = vrot.slane %v1355, 5
    %v2475 = vsel %vm1034, %v2473, %v2474
    %s2476 = scalar_lea.vmem %s0, 24
    %v2477 = vld [vmem:[%s2476] sm:$0xf]
    %v2478 = vld [vmem:[%s2476 + $0x4] sm:$0xf]
    %v2479 = vld [vmem:[%s2476 + $0xc] sm:$0xf]
    %v2480 = vld [vmem:[%s2476 + $0x10] sm:$0xf]
    %v2481 = vld [vmem:[%s2476 + $0x18] sm:$0xf]
    %v2482 = vld [vmem:[%s2476 + $0x1c] sm:$0xf]
    %v2483 = vld [vmem:[%s2476 + $0x24] sm:$0xf]
    %v2484 = vld [vmem:[%s2476 + $0x28] sm:$0xf]
    %v2485 = vld [vmem:[%s2476 + $0x30] sm:$0xf]
    %v2486 = vld [vmem:[%s2476 + $0x34] sm:$0xf]
    %v2487 = vld [vmem:[%s2476 + $0x3c] sm:$0xf]
    %v2488 = vld [vmem:[%s2476 + $0x40] sm:$0xf]
    %v2489 = vld [vmem:[%s2476 + $0x48] sm:$0xf]
    %v2490 = vld [vmem:[%s2476 + $0x4c] sm:$0xf]
    %v2491 = vld [vmem:[%s2476 + $0x54] sm:$0xf]
    %v2492 = vld [vmem:[%s2476 + $0x58] sm:$0xf]
    %v2493 = vld [vmem:[%s2476 + $0x60] sm:$0xf]
    %v2494 = vld [vmem:[%s2476 + $0x64] sm:$0xf]
    %v2495 = vld [vmem:[%s2476 + $0x6c] sm:$0xf]
    %v2496 = vld [vmem:[%s2476 + $0x70] sm:$0xf]
    %v2497 = vld [vmem:[%s2476 + $0x78] sm:$0xf]
    %v2498 = vld [vmem:[%s2476 + $0x7c] sm:$0xf]
    %v2499 = vld [vmem:[%s2476 + $0x84] sm:$0xf]
    %v2500 = vld [vmem:[%s2476 + $0x88] sm:$0xf]
    %v2501 = vld [vmem:[%s2476 + $0x90] sm:$0xf]
    %v2502 = vld [vmem:[%s2476 + $0x94] sm:$0xf]
    %v2503 = vld [vmem:[%s2476 + $0x9c] sm:$0xf]
    %v2504 = vld [vmem:[%s2476 + $0xa0] sm:$0xf]
    %v2505 = vld [vmem:[%s2476 + $0xa8] sm:$0xf]
    %v2506 = vld [vmem:[%s2476 + $0xac] sm:$0xf]
    %v2507 = vld [vmem:[%s2476 + $0xb4] sm:$0xf]
    %v2508 = vld [vmem:[%s2476 + $0xb8] sm:$0xf]
    %v2509 = vld [vmem:[%s2476 + $0xd8] sm:$0xf]
    %v2510 = vld [vmem:[%s2476 + $0xdc] sm:$0xf]
    %v2511 = vld [vmem:[%s2476 + $0xe4] sm:$0xf]
    %v2512 = vld [vmem:[%s2476 + $0xe8] sm:$0xf]
    %v2513 = vld [vmem:[%s2476 + $0xf0] sm:$0xf]
    %v2514 = vld [vmem:[%s2476 + $0xf4] sm:$0xf]
    %v2515 = vld [vmem:[%s2476 + $0xfc] sm:$0xf]
    %v2516 = vld [vmem:[%s2476 + $0x100] sm:$0xf]
    %v2517 = vld [vmem:[%s2476 + $0x108] sm:$0xf]
    %v2518 = vld [vmem:[%s2476 + $0x10c] sm:$0xf]
    %v2519 = vld [vmem:[%s2476 + $0x114] sm:$0xf]
    %v2520 = vld [vmem:[%s2476 + $0x118] sm:$0xf]
    %v2521 = vld [vmem:[%s2476 + $0x120] sm:$0xf]
    %v2522 = vld [vmem:[%s2476 + $0x124] sm:$0xf]
    %v2523 = vld [vmem:[%s2476 + $0x12c] sm:$0xf]
    %v2524 = vld [vmem:[%s2476 + $0x130] sm:$0xf]
    %v2525 = vld [vmem:[%s2476 + $0x138] sm:$0xf]
    %v2526 = vld [vmem:[%s2476 + $0x13c] sm:$0xf]
    %v2527 = vld [vmem:[%s2476 + $0x144] sm:$0xf]
    %v2528 = vld [vmem:[%s2476 + $0x148] sm:$0xf]
    %v2529 = vld [vmem:[%s2476 + $0x150] sm:$0xf]
    %v2530 = vld [vmem:[%s2476 + $0x154] sm:$0xf]
    %v2531 = vld [vmem:[%s2476 + $0x15c] sm:$0xf]
    %v2532 = vld [vmem:[%s2476 + $0x160] sm:$0xf]
    %v2533 = vld [vmem:[%s2476 + $0x168] sm:$0xf]
    %v2534 = vld [vmem:[%s2476 + $0x16c] sm:$0xf]
    %v2535 = vld [vmem:[%s2476 + $0x174] sm:$0xf]
    %v2536 = vld [vmem:[%s2476 + $0x178] sm:$0xf]
    %v2537 = vld [vmem:[%s2476 + $0x180] sm:$0xf]
    %v2538 = vld [vmem:[%s2476 + $0x184] sm:$0xf]
    %v2539 = vld [vmem:[%s2476 + $0x18c] sm:$0xf]
    %v2540 = vld [vmem:[%s2476 + $0x190] sm:$0xf]
    %v2541 = vld [vmem:[%s2476 + $0x8] sm:$0x1]
    %v2542 = vld [vmem:[%s2476 + $0x14] sm:$0x1]
    %v2543 = vld [vmem:[%s2476 + $0x20] sm:$0x1]
    %v2544 = vld [vmem:[%s2476 + $0x2c] sm:$0x1]
    %v2545 = vld [vmem:[%s2476 + $0x38] sm:$0x1]
    %v2546 = vld [vmem:[%s2476 + $0x44] sm:$0x1]
    %v2547 = vld [vmem:[%s2476 + $0x50] sm:$0x1]
    %v2548 = vld [vmem:[%s2476 + $0x5c] sm:$0x1]
    %v2549 = vld [vmem:[%s2476 + $0x68] sm:$0x1]
    %v2550 = vld [vmem:[%s2476 + $0x74] sm:$0x1]
    %v2551 = vld [vmem:[%s2476 + $0x80] sm:$0x1]
    %v2552 = vld [vmem:[%s2476 + $0x8c] sm:$0x1]
    %v2553 = vld [vmem:[%s2476 + $0x98] sm:$0x1]
    %v2554 = vld [vmem:[%s2476 + $0xa4] sm:$0x1]
    %v2555 = vld [vmem:[%s2476 + $0xb0] sm:$0x1]
    %v2556 = vld [vmem:[%s2476 + $0xbc] sm:$0x1]
    %v2557 = vld [vmem:[%s2476 + $0xe0] sm:$0x1]
    %v2558 = vld [vmem:[%s2476 + $0xec] sm:$0x1]
    %v2559 = vld [vmem:[%s2476 + $0xf8] sm:$0x1]
    %v2560 = vld [vmem:[%s2476 + $0x104] sm:$0x1]
    %v2561 = vld [vmem:[%s2476 + $0x110] sm:$0x1]
    %v2562 = vld [vmem:[%s2476 + $0x11c] sm:$0x1]
    %v2563 = vld [vmem:[%s2476 + $0x128] sm:$0x1]
    %v2564 = vld [vmem:[%s2476 + $0x134] sm:$0x1]
    %v2565 = vld [vmem:[%s2476 + $0x140] sm:$0x1]
    %v2566 = vld [vmem:[%s2476 + $0x14c] sm:$0x1]
    %v2567 = vld [vmem:[%s2476 + $0x158] sm:$0x1]
    %v2568 = vld [vmem:[%s2476 + $0x164] sm:$0x1]
    %v2569 = vld [vmem:[%s2476 + $0x170] sm:$0x1]
    %v2570 = vld [vmem:[%s2476 + $0x17c] sm:$0x1]
    %v2571 = vld [vmem:[%s2476 + $0x188] sm:$0x1]
    %v2572 = vld [vmem:[%s2476 + $0x194] sm:$0x1]
    %v2574 = vshrl.u32 %v2477, 16
    %v2576 = vrot.slane %v2574, 4
    %v2577 = vshll.u32 %v2477, 16
    %v2579 = vrot.slane %v2577, 5
    %v2580 = vor.u32 %v2576, %v2579
    %v2581 = vrot.slane %v2580, 4
    %v2583 = vshll.u32 %v2478, 16
    %v2585 = vrot.slane %v2583, 5
    %v2586 = vsel %vm135, %v2581, %v2585
    %v2587 = vshrl.u32 %v2478, 16
    %v2589 = vrot.slane %v2587, 4
    %v2590 = vor.u32 %v2589, %v2585
    %v2591 = vrot.slane %v2590, 4
    %v2593 = vshll.u32 %v2541, 16
    %v2595 = vrot.slane %v2593, 5
    %v2596 = vsel %vm135, %v2591, %v2595
    %v2598 = vshrl.u32 %v2479, 16
    %v2600 = vrot.slane %v2598, 4
    %v2601 = vshll.u32 %v2479, 16
    %v2603 = vrot.slane %v2601, 5
    %v2604 = vor.u32 %v2600, %v2603
    %v2605 = vrot.slane %v2604, 4
    %v2607 = vshll.u32 %v2480, 16
    %v2609 = vrot.slane %v2607, 5
    %v2610 = vsel %vm135, %v2605, %v2609
    %v2611 = vshrl.u32 %v2480, 16
    %v2613 = vrot.slane %v2611, 4
    %v2614 = vor.u32 %v2613, %v2609
    %v2615 = vrot.slane %v2614, 4
    %v2617 = vshll.u32 %v2542, 16
    %v2619 = vrot.slane %v2617, 5
    %v2620 = vsel %vm135, %v2615, %v2619
    %v2622 = vshrl.u32 %v2481, 16
    %v2624 = vrot.slane %v2622, 4
    %v2625 = vshll.u32 %v2481, 16
    %v2627 = vrot.slane %v2625, 5
    %v2628 = vor.u32 %v2624, %v2627
    %v2629 = vrot.slane %v2628, 4
    %v2631 = vshll.u32 %v2482, 16
    %v2633 = vrot.slane %v2631, 5
    %v2634 = vsel %vm135, %v2629, %v2633
    %v2635 = vshrl.u32 %v2482, 16
    %v2637 = vrot.slane %v2635, 4
    %v2638 = vor.u32 %v2637, %v2633
    %v2639 = vrot.slane %v2638, 4
    %v2641 = vshll.u32 %v2543, 16
    %v2643 = vrot.slane %v2641, 5
    %v2644 = vsel %vm135, %v2639, %v2643
    %v2646 = vshrl.u32 %v2483, 16
    %v2648 = vrot.slane %v2646, 4
    %v2649 = vshll.u32 %v2483, 16
    %v2651 = vrot.slane %v2649, 5
    %v2652 = vor.u32 %v2648, %v2651
    %v2653 = vrot.slane %v2652, 4
    %v2655 = vshll.u32 %v2484, 16
    %v2657 = vrot.slane %v2655, 5
    %v2658 = vsel %vm135, %v2653, %v2657
    %v2659 = vshrl.u32 %v2484, 16
    %v2661 = vrot.slane %v2659, 4
    %v2662 = vor.u32 %v2661, %v2657
    %v2663 = vrot.slane %v2662, 4
    %v2665 = vshll.u32 %v2544, 16
    %v2667 = vrot.slane %v2665, 5
    %v2668 = vsel %vm135, %v2663, %v2667
    %v2670 = vshrl.u32 %v2485, 16
    %v2672 = vrot.slane %v2670, 4
    %v2673 = vshll.u32 %v2485, 16
    %v2675 = vrot.slane %v2673, 5
    %v2676 = vor.u32 %v2672, %v2675
    %v2677 = vrot.slane %v2676, 4
    %v2679 = vshll.u32 %v2486, 16
    %v2681 = vrot.slane %v2679, 5
    %v2682 = vsel %vm135, %v2677, %v2681
    %v2683 = vshrl.u32 %v2486, 16
    %v2685 = vrot.slane %v2683, 4
    %v2686 = vor.u32 %v2685, %v2681
    %v2687 = vrot.slane %v2686, 4
    %v2689 = vshll.u32 %v2545, 16
    %v2691 = vrot.slane %v2689, 5
    %v2692 = vsel %vm135, %v2687, %v2691
    %v2694 = vshrl.u32 %v2487, 16
    %v2696 = vrot.slane %v2694, 4
    %v2697 = vshll.u32 %v2487, 16
    %v2699 = vrot.slane %v2697, 5
    %v2700 = vor.u32 %v2696, %v2699
    %v2701 = vrot.slane %v2700, 4
    %v2703 = vshll.u32 %v2488, 16
    %v2705 = vrot.slane %v2703, 5
    %v2706 = vsel %vm135, %v2701, %v2705
    %v2707 = vshrl.u32 %v2488, 16
    %v2709 = vrot.slane %v2707, 4
    %v2710 = vor.u32 %v2709, %v2705
    %v2711 = vrot.slane %v2710, 4
    %v2713 = vshll.u32 %v2546, 16
    %v2715 = vrot.slane %v2713, 5
    %v2716 = vsel %vm135, %v2711, %v2715
    %v2718 = vshrl.u32 %v2489, 16
    %v2720 = vrot.slane %v2718, 4
    %v2721 = vshll.u32 %v2489, 16
    %v2723 = vrot.slane %v2721, 5
    %v2724 = vor.u32 %v2720, %v2723
    %v2725 = vrot.slane %v2724, 4
    %v2727 = vshll.u32 %v2490, 16
    %v2729 = vrot.slane %v2727, 5
    %v2730 = vsel %vm135, %v2725, %v2729
    %v2731 = vshrl.u32 %v2490, 16
    %v2733 = vrot.slane %v2731, 4
    %v2734 = vor.u32 %v2733, %v2729
    %v2735 = vrot.slane %v2734, 4
    %v2737 = vshll.u32 %v2547, 16
    %v2739 = vrot.slane %v2737, 5
    %v2740 = vsel %vm135, %v2735, %v2739
    %v2742 = vshrl.u32 %v2491, 16
    %v2744 = vrot.slane %v2742, 4
    %v2745 = vshll.u32 %v2491, 16
    %v2747 = vrot.slane %v2745, 5
    %v2748 = vor.u32 %v2744, %v2747
    %v2749 = vrot.slane %v2748, 4
    %v2751 = vshll.u32 %v2492, 16
    %v2753 = vrot.slane %v2751, 5
    %v2754 = vsel %vm135, %v2749, %v2753
    %v2755 = vshrl.u32 %v2492, 16
    %v2757 = vrot.slane %v2755, 4
    %v2758 = vor.u32 %v2757, %v2753
    %v2759 = vrot.slane %v2758, 4
    %v2761 = vshll.u32 %v2548, 16
    %v2763 = vrot.slane %v2761, 5
    %v2764 = vsel %vm135, %v2759, %v2763
    %v2766 = vshrl.u32 %v2493, 16
    %v2768 = vrot.slane %v2766, 4
    %v2769 = vshll.u32 %v2493, 16
    %v2771 = vrot.slane %v2769, 5
    %v2772 = vor.u32 %v2768, %v2771
    %v2773 = vrot.slane %v2772, 4
    %v2775 = vshll.u32 %v2494, 16
    %v2777 = vrot.slane %v2775, 5
    %v2778 = vsel %vm135, %v2773, %v2777
    %v2779 = vshrl.u32 %v2494, 16
    %v2781 = vrot.slane %v2779, 4
    %v2782 = vor.u32 %v2781, %v2777
    %v2783 = vrot.slane %v2782, 4
    %v2785 = vshll.u32 %v2549, 16
    %v2787 = vrot.slane %v2785, 5
    %v2788 = vsel %vm135, %v2783, %v2787
    %v2790 = vshrl.u32 %v2495, 16
    %v2792 = vrot.slane %v2790, 4
    %v2793 = vshll.u32 %v2495, 16
    %v2795 = vrot.slane %v2793, 5
    %v2796 = vor.u32 %v2792, %v2795
    %v2797 = vrot.slane %v2796, 4
    %v2799 = vshll.u32 %v2496, 16
    %v2801 = vrot.slane %v2799, 5
    %v2802 = vsel %vm135, %v2797, %v2801
    %v2803 = vshrl.u32 %v2496, 16
    %v2805 = vrot.slane %v2803, 4
    %v2806 = vor.u32 %v2805, %v2801
    %v2807 = vrot.slane %v2806, 4
    %v2809 = vshll.u32 %v2550, 16
    %v2811 = vrot.slane %v2809, 5
    %v2812 = vsel %vm135, %v2807, %v2811
    %v2814 = vshrl.u32 %v2497, 16
    %v2816 = vrot.slane %v2814, 4
    %v2817 = vshll.u32 %v2497, 16
    %v2819 = vrot.slane %v2817, 5
    %v2820 = vor.u32 %v2816, %v2819
    %v2821 = vrot.slane %v2820, 4
    %v2823 = vshll.u32 %v2498, 16
    %v2825 = vrot.slane %v2823, 5
    %v2826 = vsel %vm135, %v2821, %v2825
    %v2827 = vshrl.u32 %v2498, 16
    %v2829 = vrot.slane %v2827, 4
    %v2830 = vor.u32 %v2829, %v2825
    %v2831 = vrot.slane %v2830, 4
    %v2833 = vshll.u32 %v2551, 16
    %v2835 = vrot.slane %v2833, 5
    %v2836 = vsel %vm135, %v2831, %v2835
    %v2838 = vshrl.u32 %v2499, 16
    %v2840 = vrot.slane %v2838, 4
    %v2841 = vshll.u32 %v2499, 16
    %v2843 = vrot.slane %v2841, 5
    %v2844 = vor.u32 %v2840, %v2843
    %v2845 = vrot.slane %v2844, 4
    %v2847 = vshll.u32 %v2500, 16
    %v2849 = vrot.slane %v2847, 5
    %v2850 = vsel %vm135, %v2845, %v2849
    %v2851 = vshrl.u32 %v2500, 16
    %v2853 = vrot.slane %v2851, 4
    %v2854 = vor.u32 %v2853, %v2849
    %v2855 = vrot.slane %v2854, 4
    %v2857 = vshll.u32 %v2552, 16
    %v2859 = vrot.slane %v2857, 5
    %v2860 = vsel %vm135, %v2855, %v2859
    %v2862 = vshrl.u32 %v2501, 16
    %v2864 = vrot.slane %v2862, 4
    %v2865 = vshll.u32 %v2501, 16
    %v2867 = vrot.slane %v2865, 5
    %v2868 = vor.u32 %v2864, %v2867
    %v2869 = vrot.slane %v2868, 4
    %v2871 = vshll.u32 %v2502, 16
    %v2873 = vrot.slane %v2871, 5
    %v2874 = vsel %vm135, %v2869, %v2873
    %v2875 = vshrl.u32 %v2502, 16
    %v2877 = vrot.slane %v2875, 4
    %v2878 = vor.u32 %v2877, %v2873
    %v2879 = vrot.slane %v2878, 4
    %v2881 = vshll.u32 %v2553, 16
    %v2883 = vrot.slane %v2881, 5
    %v2884 = vsel %vm135, %v2879, %v2883
    %v2886 = vshrl.u32 %v2503, 16
    %v2888 = vrot.slane %v2886, 4
    %v2889 = vshll.u32 %v2503, 16
    %v2891 = vrot.slane %v2889, 5
    %v2892 = vor.u32 %v2888, %v2891
    %v2893 = vrot.slane %v2892, 4
    %v2895 = vshll.u32 %v2504, 16
    %v2897 = vrot.slane %v2895, 5
    %v2898 = vsel %vm135, %v2893, %v2897
    %v2899 = vshrl.u32 %v2504, 16
    %v2901 = vrot.slane %v2899, 4
    %v2902 = vor.u32 %v2901, %v2897
    %v2903 = vrot.slane %v2902, 4
    %v2905 = vshll.u32 %v2554, 16
    %v2907 = vrot.slane %v2905, 5
    %v2908 = vsel %vm135, %v2903, %v2907
    %v2910 = vshrl.u32 %v2505, 16
    %v2912 = vrot.slane %v2910, 4
    %v2913 = vshll.u32 %v2505, 16
    %v2915 = vrot.slane %v2913, 5
    %v2916 = vor.u32 %v2912, %v2915
    %v2917 = vrot.slane %v2916, 4
    %v2919 = vshll.u32 %v2506, 16
    %v2921 = vrot.slane %v2919, 5
    %v2922 = vsel %vm135, %v2917, %v2921
    %v2923 = vshrl.u32 %v2506, 16
    %v2925 = vrot.slane %v2923, 4
    %v2926 = vor.u32 %v2925, %v2921
    %v2927 = vrot.slane %v2926, 4
    %v2929 = vshll.u32 %v2555, 16
    %v2931 = vrot.slane %v2929, 5
    %v2932 = vsel %vm135, %v2927, %v2931
    %v2934 = vshrl.u32 %v2507, 16
    %v2936 = vrot.slane %v2934, 4
    %v2937 = vshll.u32 %v2507, 16
    %v2939 = vrot.slane %v2937, 5
    %v2940 = vor.u32 %v2936, %v2939
    %v2941 = vrot.slane %v2940, 4
    %v2943 = vshll.u32 %v2508, 16
    %v2945 = vrot.slane %v2943, 5
    %v2946 = vsel %vm135, %v2941, %v2945
    %v2947 = vshrl.u32 %v2508, 16
    %v2949 = vrot.slane %v2947, 4
    %v2950 = vor.u32 %v2949, %v2945
    %v2951 = vrot.slane %v2950, 4
    %v2953 = vshll.u32 %v2556, 16
    %v2955 = vrot.slane %v2953, 5
    %v2956 = vsel %vm135, %v2951, %v2955
    %v2958 = vshrl.u32 %v2509, 16
    %v2960 = vrot.slane %v2958, 4
    %v2961 = vshll.u32 %v2509, 16
    %v2963 = vrot.slane %v2961, 5
    %v2964 = vor.u32 %v2960, %v2963
    %v2965 = vrot.slane %v2964, 4
    %v2967 = vshll.u32 %v2510, 16
    %v2969 = vrot.slane %v2967, 5
    %v2970 = vsel %vm135, %v2965, %v2969
    %v2971 = vshrl.u32 %v2510, 16
    %v2973 = vrot.slane %v2971, 4
    %v2974 = vor.u32 %v2973, %v2969
    %v2975 = vrot.slane %v2974, 4
    %v2977 = vshll.u32 %v2557, 16
    %v2979 = vrot.slane %v2977, 5
    %v2980 = vsel %vm135, %v2975, %v2979
    %v2982 = vshrl.u32 %v2511, 16
    %v2984 = vrot.slane %v2982, 4
    %v2985 = vshll.u32 %v2511, 16
    %v2987 = vrot.slane %v2985, 5
    %v2988 = vor.u32 %v2984, %v2987
    %v2989 = vrot.slane %v2988, 4
    %v2991 = vshll.u32 %v2512, 16
    %v2993 = vrot.slane %v2991, 5
    %v2994 = vsel %vm135, %v2989, %v2993
    %v2995 = vshrl.u32 %v2512, 16
    %v2997 = vrot.slane %v2995, 4
    %v2998 = vor.u32 %v2997, %v2993
    %v2999 = vrot.slane %v2998, 4
    %v3001 = vshll.u32 %v2558, 16
    %v3003 = vrot.slane %v3001, 5
    %v3004 = vsel %vm135, %v2999, %v3003
    %v3006 = vshrl.u32 %v2513, 16
    %v3008 = vrot.slane %v3006, 4
    %v3009 = vshll.u32 %v2513, 16
    %v3011 = vrot.slane %v3009, 5
    %v3012 = vor.u32 %v3008, %v3011
    %v3013 = vrot.slane %v3012, 4
    %v3015 = vshll.u32 %v2514, 16
    %v3017 = vrot.slane %v3015, 5
    %v3018 = vsel %vm135, %v3013, %v3017
    %v3019 = vshrl.u32 %v2514, 16
    %v3021 = vrot.slane %v3019, 4
    %v3022 = vor.u32 %v3021, %v3017
    %v3023 = vrot.slane %v3022, 4
    %v3025 = vshll.u32 %v2559, 16
    %v3027 = vrot.slane %v3025, 5
    %v3028 = vsel %vm135, %v3023, %v3027
    %v3030 = vshrl.u32 %v2515, 16
    %v3032 = vrot.slane %v3030, 4
    %v3033 = vshll.u32 %v2515, 16
    %v3035 = vrot.slane %v3033, 5
    %v3036 = vor.u32 %v3032, %v3035
    %v3037 = vrot.slane %v3036, 4
    %v3039 = vshll.u32 %v2516, 16
    %v3041 = vrot.slane %v3039, 5
    %v3042 = vsel %vm135, %v3037, %v3041
    %v3043 = vshrl.u32 %v2516, 16
    %v3045 = vrot.slane %v3043, 4
    %v3046 = vor.u32 %v3045, %v3041
    %v3047 = vrot.slane %v3046, 4
    %v3049 = vshll.u32 %v2560, 16
    %v3051 = vrot.slane %v3049, 5
    %v3052 = vsel %vm135, %v3047, %v3051
    %v3054 = vshrl.u32 %v2517, 16
    %v3056 = vrot.slane %v3054, 4
    %v3057 = vshll.u32 %v2517, 16
    %v3059 = vrot.slane %v3057, 5
    %v3060 = vor.u32 %v3056, %v3059
    %v3061 = vrot.slane %v3060, 4
    %v3063 = vshll.u32 %v2518, 16
    %v3065 = vrot.slane %v3063, 5
    %v3066 = vsel %vm135, %v3061, %v3065
    %v3067 = vshrl.u32 %v2518, 16
    %v3069 = vrot.slane %v3067, 4
    %v3070 = vor.u32 %v3069, %v3065
    %v3071 = vrot.slane %v3070, 4
    %v3073 = vshll.u32 %v2561, 16
    %v3075 = vrot.slane %v3073, 5
    %v3076 = vsel %vm135, %v3071, %v3075
    %v3078 = vshrl.u32 %v2519, 16
    %v3080 = vrot.slane %v3078, 4
    %v3081 = vshll.u32 %v2519, 16
    %v3083 = vrot.slane %v3081, 5
    %v3084 = vor.u32 %v3080, %v3083
    %v3085 = vrot.slane %v3084, 4
    %v3087 = vshll.u32 %v2520, 16
    %v3089 = vrot.slane %v3087, 5
    %v3090 = vsel %vm135, %v3085, %v3089
    %v3091 = vshrl.u32 %v2520, 16
    %v3093 = vrot.slane %v3091, 4
    %v3094 = vor.u32 %v3093, %v3089
    %v3095 = vrot.slane %v3094, 4
    %v3097 = vshll.u32 %v2562, 16
    %v3099 = vrot.slane %v3097, 5
    %v3100 = vsel %vm135, %v3095, %v3099
    %v3102 = vshrl.u32 %v2521, 16
    %v3104 = vrot.slane %v3102, 4
    %v3105 = vshll.u32 %v2521, 16
    %v3107 = vrot.slane %v3105, 5
    %v3108 = vor.u32 %v3104, %v3107
    %v3109 = vrot.slane %v3108, 4
    %v3111 = vshll.u32 %v2522, 16
    %v3113 = vrot.slane %v3111, 5
    %v3114 = vsel %vm135, %v3109, %v3113
    %v3115 = vshrl.u32 %v2522, 16
    %v3117 = vrot.slane %v3115, 4
    %v3118 = vor.u32 %v3117, %v3113
    %v3119 = vrot.slane %v3118, 4
    %v3121 = vshll.u32 %v2563, 16
    %v3123 = vrot.slane %v3121, 5
    %v3124 = vsel %vm135, %v3119, %v3123
    %v3126 = vshrl.u32 %v2523, 16
    %v3128 = vrot.slane %v3126, 4
    %v3129 = vshll.u32 %v2523, 16
    %v3131 = vrot.slane %v3129, 5
    %v3132 = vor.u32 %v3128, %v3131
    %v3133 = vrot.slane %v3132, 4
    %v3135 = vshll.u32 %v2524, 16
    %v3137 = vrot.slane %v3135, 5
    %v3138 = vsel %vm135, %v3133, %v3137
    %v3139 = vshrl.u32 %v2524, 16
    %v3141 = vrot.slane %v3139, 4
    %v3142 = vor.u32 %v3141, %v3137
    %v3143 = vrot.slane %v3142, 4
    %v3145 = vshll.u32 %v2564, 16
    %v3147 = vrot.slane %v3145, 5
    %v3148 = vsel %vm135, %v3143, %v3147
    %v3150 = vshrl.u32 %v2525, 16
    %v3152 = vrot.slane %v3150, 4
    %v3153 = vshll.u32 %v2525, 16
    %v3155 = vrot.slane %v3153, 5
    %v3156 = vor.u32 %v3152, %v3155
    %v3157 = vrot.slane %v3156, 4
    %v3159 = vshll.u32 %v2526, 16
    %v3161 = vrot.slane %v3159, 5
    %v3162 = vsel %vm135, %v3157, %v3161
    %v3163 = vshrl.u32 %v2526, 16
    %v3165 = vrot.slane %v3163, 4
    %v3166 = vor.u32 %v3165, %v3161
    %v3167 = vrot.slane %v3166, 4
    %v3169 = vshll.u32 %v2565, 16
    %v3171 = vrot.slane %v3169, 5
    %v3172 = vsel %vm135, %v3167, %v3171
    %v3174 = vshrl.u32 %v2527, 16
    %v3176 = vrot.slane %v3174, 4
    %v3177 = vshll.u32 %v2527, 16
    %v3179 = vrot.slane %v3177, 5
    %v3180 = vor.u32 %v3176, %v3179
    %v3181 = vrot.slane %v3180, 4
    %v3183 = vshll.u32 %v2528, 16
    %v3185 = vrot.slane %v3183, 5
    %v3186 = vsel %vm135, %v3181, %v3185
    %v3187 = vshrl.u32 %v2528, 16
    %v3189 = vrot.slane %v3187, 4
    %v3190 = vor.u32 %v3189, %v3185
    %v3191 = vrot.slane %v3190, 4
    %v3193 = vshll.u32 %v2566, 16
    %v3195 = vrot.slane %v3193, 5
    %v3196 = vsel %vm135, %v3191, %v3195
    %v3198 = vshrl.u32 %v2529, 16
    %v3200 = vrot.slane %v3198, 4
    %v3201 = vshll.u32 %v2529, 16
    %v3203 = vrot.slane %v3201, 5
    %v3204 = vor.u32 %v3200, %v3203
    %v3205 = vrot.slane %v3204, 4
    %v3207 = vshll.u32 %v2530, 16
    %v3209 = vrot.slane %v3207, 5
    %v3210 = vsel %vm135, %v3205, %v3209
    %v3211 = vshrl.u32 %v2530, 16
    %v3213 = vrot.slane %v3211, 4
    %v3214 = vor.u32 %v3213, %v3209
    %v3215 = vrot.slane %v3214, 4
    %v3217 = vshll.u32 %v2567, 16
    %v3219 = vrot.slane %v3217, 5
    %v3220 = vsel %vm135, %v3215, %v3219
    %v3222 = vshrl.u32 %v2531, 16
    %v3224 = vrot.slane %v3222, 4
    %v3225 = vshll.u32 %v2531, 16
    %v3227 = vrot.slane %v3225, 5
    %v3228 = vor.u32 %v3224, %v3227
    %v3229 = vrot.slane %v3228, 4
    %v3231 = vshll.u32 %v2532, 16
    %v3233 = vrot.slane %v3231, 5
    %v3234 = vsel %vm135, %v3229, %v3233
    %v3235 = vshrl.u32 %v2532, 16
    %v3237 = vrot.slane %v3235, 4
    %v3238 = vor.u32 %v3237, %v3233
    %v3239 = vrot.slane %v3238, 4
    %v3241 = vshll.u32 %v2568, 16
    %v3243 = vrot.slane %v3241, 5
    %v3244 = vsel %vm135, %v3239, %v3243
    %v3246 = vshrl.u32 %v2533, 16
    %v3248 = vrot.slane %v3246, 4
    %v3249 = vshll.u32 %v2533, 16
    %v3251 = vrot.slane %v3249, 5
    %v3252 = vor.u32 %v3248, %v3251
    %v3253 = vrot.slane %v3252, 4
    %v3255 = vshll.u32 %v2534, 16
    %v3257 = vrot.slane %v3255, 5
    %v3258 = vsel %vm135, %v3253, %v3257
    %v3259 = vshrl.u32 %v2534, 16
    %v3261 = vrot.slane %v3259, 4
    %v3262 = vor.u32 %v3261, %v3257
    %v3263 = vrot.slane %v3262, 4
    %v3265 = vshll.u32 %v2569, 16
    %v3267 = vrot.slane %v3265, 5
    %v3268 = vsel %vm135, %v3263, %v3267
    %v3270 = vshrl.u32 %v2535, 16
    %v3272 = vrot.slane %v3270, 4
    %v3273 = vshll.u32 %v2535, 16
    %v3275 = vrot.slane %v3273, 5
    %v3276 = vor.u32 %v3272, %v3275
    %v3277 = vrot.slane %v3276, 4
    %v3279 = vshll.u32 %v2536, 16
    %v3281 = vrot.slane %v3279, 5
    %v3282 = vsel %vm135, %v3277, %v3281
    %v3283 = vshrl.u32 %v2536, 16
    %v3285 = vrot.slane %v3283, 4
    %v3286 = vor.u32 %v3285, %v3281
    %v3287 = vrot.slane %v3286, 4
    %v3289 = vshll.u32 %v2570, 16
    %v3291 = vrot.slane %v3289, 5
    %v3292 = vsel %vm135, %v3287, %v3291
    %v3294 = vshrl.u32 %v2537, 16
    %v3296 = vrot.slane %v3294, 4
    %v3297 = vshll.u32 %v2537, 16
    %v3299 = vrot.slane %v3297, 5
    %v3300 = vor.u32 %v3296, %v3299
    %v3301 = vrot.slane %v3300, 4
    %v3303 = vshll.u32 %v2538, 16
    %v3305 = vrot.slane %v3303, 5
    %v3306 = vsel %vm135, %v3301, %v3305
    %v3307 = vshrl.u32 %v2538, 16
    %v3309 = vrot.slane %v3307, 4
    %v3310 = vor.u32 %v3309, %v3305
    %v3311 = vrot.slane %v3310, 4
    %v3313 = vshll.u32 %v2571, 16
    %v3315 = vrot.slane %v3313, 5
    %v3316 = vsel %vm135, %v3311, %v3315
    %v3318 = vshrl.u32 %v2539, 16
    %v3320 = vrot.slane %v3318, 4
    %v3321 = vshll.u32 %v2539, 16
    %v3323 = vrot.slane %v3321, 5
    %v3324 = vor.u32 %v3320, %v3323
    %v3325 = vrot.slane %v3324, 4
    %v3327 = vshll.u32 %v2540, 16
    %v3329 = vrot.slane %v3327, 5
    %v3330 = vsel %vm135, %v3325, %v3329
    %v3331 = vshrl.u32 %v2540, 16
    %v3333 = vrot.slane %v3331, 4
    %v3334 = vor.u32 %v3333, %v3329
    %v3335 = vrot.slane %v3334, 4
    %v3337 = vshll.u32 %v2572, 16
    %v3339 = vrot.slane %v3337, 5
    %v3340 = vsel %vm135, %v3335, %v3339
    %v3341 = vld [vmem:[%s2476] sm:$0xe]
    %v3342 = vld [vmem:[%s2476 + $0xc] sm:$0xe]
    %v3343 = vld [vmem:[%s2476 + $0x18] sm:$0xe]
    %v3344 = vld [vmem:[%s2476 + $0x24] sm:$0xe]
    %v3345 = vld [vmem:[%s2476 + $0x30] sm:$0xe]
    %v3346 = vld [vmem:[%s2476 + $0x3c] sm:$0xe]
    %v3347 = vld [vmem:[%s2476 + $0x48] sm:$0xe]
    %v3348 = vld [vmem:[%s2476 + $0x54] sm:$0xe]
    %v3349 = vld [vmem:[%s2476 + $0x60] sm:$0xe]
    %v3350 = vld [vmem:[%s2476 + $0x6c] sm:$0xe]
    %v3351 = vld [vmem:[%s2476 + $0x78] sm:$0xe]
    %v3352 = vld [vmem:[%s2476 + $0x84] sm:$0xe]
    %v3353 = vld [vmem:[%s2476 + $0x90] sm:$0xe]
    %v3354 = vld [vmem:[%s2476 + $0x9c] sm:$0xe]
    %v3355 = vld [vmem:[%s2476 + $0xa8] sm:$0xe]
    %v3356 = vld [vmem:[%s2476 + $0xb4] sm:$0xe]
    %v3357 = vld [vmem:[%s2476 + $0xd8] sm:$0xe]
    %v3358 = vld [vmem:[%s2476 + $0xe4] sm:$0xe]
    %v3359 = vld [vmem:[%s2476 + $0xf0] sm:$0xe]
    %v3360 = vld [vmem:[%s2476 + $0xfc] sm:$0xe]
    %v3361 = vld [vmem:[%s2476 + $0x108] sm:$0xe]
    %v3362 = vld [vmem:[%s2476 + $0x114] sm:$0xe]
    %v3363 = vld [vmem:[%s2476 + $0x120] sm:$0xe]
    %v3364 = vld [vmem:[%s2476 + $0x12c] sm:$0xe]
    %v3365 = vld [vmem:[%s2476 + $0x138] sm:$0xe]
    %v3366 = vld [vmem:[%s2476 + $0x144] sm:$0xe]
    %v3367 = vld [vmem:[%s2476 + $0x150] sm:$0xe]
    %v3368 = vld [vmem:[%s2476 + $0x15c] sm:$0xe]
    %v3369 = vld [vmem:[%s2476 + $0x168] sm:$0xe]
    %v3370 = vld [vmem:[%s2476 + $0x174] sm:$0xe]
    %v3371 = vld [vmem:[%s2476 + $0x180] sm:$0xe]
    %v3372 = vld [vmem:[%s2476 + $0x18c] sm:$0xe]
    %v3469 = vrot.slane %v3341, 5
    %v3470 = vrot.slane %v3469, 4
    %v3471 = vrot.slane %v2478, 5
    %v3472 = vsel %vm1034, %v3470, %v3471
    %v3473 = vrot.slane %v3471, 4
    %v3474 = vrot.slane %v2541, 5
    %v3475 = vsel %vm1034, %v3473, %v3474
    %v3476 = vrot.slane %v3342, 5
    %v3477 = vrot.slane %v3476, 4
    %v3478 = vrot.slane %v2480, 5
    %v3479 = vsel %vm1034, %v3477, %v3478
    %v3480 = vrot.slane %v3478, 4
    %v3481 = vrot.slane %v2542, 5
    %v3482 = vsel %vm1034, %v3480, %v3481
    %v3483 = vrot.slane %v3343, 5
    %v3484 = vrot.slane %v3483, 4
    %v3485 = vrot.slane %v2482, 5
    %v3486 = vsel %vm1034, %v3484, %v3485
    %v3487 = vrot.slane %v3485, 4
    %v3488 = vrot.slane %v2543, 5
    %v3489 = vsel %vm1034, %v3487, %v3488
    %v3490 = vrot.slane %v3344, 5
    %v3491 = vrot.slane %v3490, 4
    %v3492 = vrot.slane %v2484, 5
    %v3493 = vsel %vm1034, %v3491, %v3492
    %v3494 = vrot.slane %v3492, 4
    %v3495 = vrot.slane %v2544, 5
    %v3496 = vsel %vm1034, %v3494, %v3495
    %v3497 = vrot.slane %v3345, 5
    %v3498 = vrot.slane %v3497, 4
    %v3499 = vrot.slane %v2486, 5
    %v3500 = vsel %vm1034, %v3498, %v3499
    %v3501 = vrot.slane %v3499, 4
    %v3502 = vrot.slane %v2545, 5
    %v3503 = vsel %vm1034, %v3501, %v3502
    %v3504 = vrot.slane %v3346, 5
    %v3505 = vrot.slane %v3504, 4
    %v3506 = vrot.slane %v2488, 5
    %v3507 = vsel %vm1034, %v3505, %v3506
    %v3508 = vrot.slane %v3506, 4
    %v3509 = vrot.slane %v2546, 5
    %v3510 = vsel %vm1034, %v3508, %v3509
    %v3511 = vrot.slane %v3347, 5
    %v3512 = vrot.slane %v3511, 4
    %v3513 = vrot.slane %v2490, 5
    %v3514 = vsel %vm1034, %v3512, %v3513
    %v3515 = vrot.slane %v3513, 4
    %v3516 = vrot.slane %v2547, 5
    %v3517 = vsel %vm1034, %v3515, %v3516
    %v3518 = vrot.slane %v3348, 5
    %v3519 = vrot.slane %v3518, 4
    %v3520 = vrot.slane %v2492, 5
    %v3521 = vsel %vm1034, %v3519, %v3520
    %v3522 = vrot.slane %v3520, 4
    %v3523 = vrot.slane %v2548, 5
    %v3524 = vsel %vm1034, %v3522, %v3523
    %v3525 = vrot.slane %v3349, 5
    %v3526 = vrot.slane %v3525, 4
    %v3527 = vrot.slane %v2494, 5
    %v3528 = vsel %vm1034, %v3526, %v3527
    %v3529 = vrot.slane %v3527, 4
    %v3530 = vrot.slane %v2549, 5
    %v3531 = vsel %vm1034, %v3529, %v3530
    %v3532 = vrot.slane %v3350, 5
    %v3533 = vrot.slane %v3532, 4
    %v3534 = vrot.slane %v2496, 5
    %v3535 = vsel %vm1034, %v3533, %v3534
    %v3536 = vrot.slane %v3534, 4
    %v3537 = vrot.slane %v2550, 5
    %v3538 = vsel %vm1034, %v3536, %v3537
    %v3539 = vrot.slane %v3351, 5
    %v3540 = vrot.slane %v3539, 4
    %v3541 = vrot.slane %v2498, 5
    %v3542 = vsel %vm1034, %v3540, %v3541
    %v3543 = vrot.slane %v3541, 4
    %v3544 = vrot.slane %v2551, 5
    %v3545 = vsel %vm1034, %v3543, %v3544
    %v3546 = vrot.slane %v3352, 5
    %v3547 = vrot.slane %v3546, 4
    %v3548 = vrot.slane %v2500, 5
    %v3549 = vsel %vm1034, %v3547, %v3548
    %v3550 = vrot.slane %v3548, 4
    %v3551 = vrot.slane %v2552, 5
    %v3552 = vsel %vm1034, %v3550, %v3551
    %v3553 = vrot.slane %v3353, 5
    %v3554 = vrot.slane %v3553, 4
    %v3555 = vrot.slane %v2502, 5
    %v3556 = vsel %vm1034, %v3554, %v3555
    %v3557 = vrot.slane %v3555, 4
    %v3558 = vrot.slane %v2553, 5
    %v3559 = vsel %vm1034, %v3557, %v3558
    %v3560 = vrot.slane %v3354, 5
    %v3561 = vrot.slane %v3560, 4
    %v3562 = vrot.slane %v2504, 5
    %v3563 = vsel %vm1034, %v3561, %v3562
    %v3564 = vrot.slane %v3562, 4
    %v3565 = vrot.slane %v2554, 5
    %v3566 = vsel %vm1034, %v3564, %v3565
    %v3567 = vrot.slane %v3355, 5
    %v3568 = vrot.slane %v3567, 4
    %v3569 = vrot.slane %v2506, 5
    %v3570 = vsel %vm1034, %v3568, %v3569
    %v3571 = vrot.slane %v3569, 4
    %v3572 = vrot.slane %v2555, 5
    %v3573 = vsel %vm1034, %v3571, %v3572
    %v3574 = vrot.slane %v3356, 5
    %v3575 = vrot.slane %v3574, 4
    %v3576 = vrot.slane %v2508, 5
    %v3577 = vsel %vm1034, %v3575, %v3576
    %v3578 = vrot.slane %v3576, 4
    %v3579 = vrot.slane %v2556, 5
    %v3580 = vsel %vm1034, %v3578, %v3579
    %v3581 = vrot.slane %v3357, 5
    %v3582 = vrot.slane %v3581, 4
    %v3583 = vrot.slane %v2510, 5
    %v3584 = vsel %vm1034, %v3582, %v3583
    %v3585 = vrot.slane %v3583, 4
    %v3586 = vrot.slane %v2557, 5
    %v3587 = vsel %vm1034, %v3585, %v3586
    %v3588 = vrot.slane %v3358, 5
    %v3589 = vrot.slane %v3588, 4
    %v3590 = vrot.slane %v2512, 5
    %v3591 = vsel %vm1034, %v3589, %v3590
    %v3592 = vrot.slane %v3590, 4
    %v3593 = vrot.slane %v2558, 5
    %v3594 = vsel %vm1034, %v3592, %v3593
    %v3595 = vrot.slane %v3359, 5
    %v3596 = vrot.slane %v3595, 4
    %v3597 = vrot.slane %v2514, 5
    %v3598 = vsel %vm1034, %v3596, %v3597
    %v3599 = vrot.slane %v3597, 4
    %v3600 = vrot.slane %v2559, 5
    %v3601 = vsel %vm1034, %v3599, %v3600
    %v3602 = vrot.slane %v3360, 5
    %v3603 = vrot.slane %v3602, 4
    %v3604 = vrot.slane %v2516, 5
    %v3605 = vsel %vm1034, %v3603, %v3604
    %v3606 = vrot.slane %v3604, 4
    %v3607 = vrot.slane %v2560, 5
    %v3608 = vsel %vm1034, %v3606, %v3607
    %v3609 = vrot.slane %v3361, 5
    %v3610 = vrot.slane %v3609, 4
    %v3611 = vrot.slane %v2518, 5
    %v3612 = vsel %vm1034, %v3610, %v3611
    %v3613 = vrot.slane %v3611, 4
    %v3614 = vrot.slane %v2561, 5
    %v3615 = vsel %vm1034, %v3613, %v3614
    %v3616 = vrot.slane %v3362, 5
    %v3617 = vrot.slane %v3616, 4
    %v3618 = vrot.slane %v2520, 5
    %v3619 = vsel %vm1034, %v3617, %v3618
    %v3620 = vrot.slane %v3618, 4
    %v3621 = vrot.slane %v2562, 5
    %v3622 = vsel %vm1034, %v3620, %v3621
    %v3623 = vrot.slane %v3363, 5
    %v3624 = vrot.slane %v3623, 4
    %v3625 = vrot.slane %v2522, 5
    %v3626 = vsel %vm1034, %v3624, %v3625
    %v3627 = vrot.slane %v3625, 4
    %v3628 = vrot.slane %v2563, 5
    %v3629 = vsel %vm1034, %v3627, %v3628
    %v3630 = vrot.slane %v3364, 5
    %v3631 = vrot.slane %v3630, 4
    %v3632 = vrot.slane %v2524, 5
    %v3633 = vsel %vm1034, %v3631, %v3632
    %v3634 = vrot.slane %v3632, 4
    %v3635 = vrot.slane %v2564, 5
    %v3636 = vsel %vm1034, %v3634, %v3635
    %v3637 = vrot.slane %v3365, 5
    %v3638 = vrot.slane %v3637, 4
    %v3639 = vrot.slane %v2526, 5
    %v3640 = vsel %vm1034, %v3638, %v3639
    %v3641 = vrot.slane %v3639, 4
    %v3642 = vrot.slane %v2565, 5
    %v3643 = vsel %vm1034, %v3641, %v3642
    %v3644 = vrot.slane %v3366, 5
    %v3645 = vrot.slane %v3644, 4
    %v3646 = vrot.slane %v2528, 5
    %v3647 = vsel %vm1034, %v3645, %v3646
    %v3648 = vrot.slane %v3646, 4
    %v3649 = vrot.slane %v2566, 5
    %v3650 = vsel %vm1034, %v3648, %v3649
    %v3651 = vrot.slane %v3367, 5
    %v3652 = vrot.slane %v3651, 4
    %v3653 = vrot.slane %v2530, 5
    %v3654 = vsel %vm1034, %v3652, %v3653
    %v3655 = vrot.slane %v3653, 4
    %v3656 = vrot.slane %v2567, 5
    %v3657 = vsel %vm1034, %v3655, %v3656
    %v3658 = vrot.slane %v3368, 5
    %v3659 = vrot.slane %v3658, 4
    %v3660 = vrot.slane %v2532, 5
    %v3661 = vsel %vm1034, %v3659, %v3660
    %v3662 = vrot.slane %v3660, 4
    %v3663 = vrot.slane %v2568, 5
    %v3664 = vsel %vm1034, %v3662, %v3663
    %v3665 = vrot.slane %v3369, 5
    %v3666 = vrot.slane %v3665, 4
    %v3667 = vrot.slane %v2534, 5
    %v3668 = vsel %vm1034, %v3666, %v3667
    %v3669 = vrot.slane %v3667, 4
    %v3670 = vrot.slane %v2569, 5
    %v3671 = vsel %vm1034, %v3669, %v3670
    %v3672 = vrot.slane %v3370, 5
    %v3673 = vrot.slane %v3672, 4
    %v3674 = vrot.slane %v2536, 5
    %v3675 = vsel %vm1034, %v3673, %v3674
    %v3676 = vrot.slane %v3674, 4
    %v3677 = vrot.slane %v2570, 5
    %v3678 = vsel %vm1034, %v3676, %v3677
    %v3679 = vrot.slane %v3371, 5
    %v3680 = vrot.slane %v3679, 4
    %v3681 = vrot.slane %v2538, 5
    %v3682 = vsel %vm1034, %v3680, %v3681
    %v3683 = vrot.slane %v3681, 4
    %v3684 = vrot.slane %v2571, 5
    %v3685 = vsel %vm1034, %v3683, %v3684
    %v3686 = vrot.slane %v3372, 5
    %v3687 = vrot.slane %v3686, 4
    %v3688 = vrot.slane %v2540, 5
    %v3689 = vsel %vm1034, %v3687, %v3688
    %v3690 = vrot.slane %v3688, 4
    %v3691 = vrot.slane %v2572, 5
    %v3692 = vsel %vm1034, %v3690, %v3691
    %v3725 = vunpack.c.l.b16 %v37
    %v3726 = vunpack.c.l.b16 %v38
    %v3727 = vunpack.c.l.b16 %v39
    %v3728 = vunpack.c.l.b16 %v40
    %v3729 = vunpack.c.l.b16 %v41
    %v3730 = vunpack.c.l.b16 %v42
    %v3731 = vunpack.c.l.b16 %v43
    %v3732 = vunpack.c.l.b16 %v44
    %v3733 = vunpack.c.l.b16 %v45
    %v3734 = vunpack.c.l.b16 %v46
    %v3735 = vunpack.c.l.b16 %v47
    %v3736 = vunpack.c.l.b16 %v48
    %v3737 = vunpack.c.l.b16 %v49
    %v3738 = vunpack.c.l.b16 %v50
    %v3739 = vunpack.c.l.b16 %v51
    %v3740 = vunpack.c.l.b16 %v52
    %v3741 = vunpack.c.l.b16 %v53
    %v3742 = vunpack.c.l.b16 %v54
    %v3743 = vunpack.c.l.b16 %v55
    %v3744 = vunpack.c.l.b16 %v56
    %v3745 = vunpack.c.l.b16 %v57
    %v3746 = vunpack.c.l.b16 %v58
    %v3747 = vunpack.c.l.b16 %v59
    %v3748 = vunpack.c.l.b16 %v60
    %v3749 = vunpack.c.l.b16 %v61
    %v3750 = vunpack.c.l.b16 %v62
    %v3751 = vunpack.c.l.b16 %v63
    %v3752 = vunpack.c.l.b16 %v64
    %v3753 = vunpack.c.l.b16 %v65
    %v3754 = vunpack.c.l.b16 %v66
    %v3755 = vunpack.c.l.b16 %v67
    %v3756 = vunpack.c.l.b16 %v68
    %v3757 = vunpack.c.l.b16 %v69
    %v3758 = vunpack.c.l.b16 %v70
    %v3759 = vunpack.c.l.b16 %v71
    %v3760 = vunpack.c.l.b16 %v72
    %v3761 = vunpack.c.l.b16 %v73
    %v3762 = vunpack.c.l.b16 %v74
    %v3763 = vunpack.c.l.b16 %v75
    %v3764 = vunpack.c.l.b16 %v76
    %v3765 = vunpack.c.l.b16 %v77
    %v3766 = vunpack.c.l.b16 %v78
    %v3767 = vunpack.c.l.b16 %v79
    %v3768 = vunpack.c.l.b16 %v80
    %v3769 = vunpack.c.l.b16 %v81
    %v3770 = vunpack.c.l.b16 %v82
    %v3771 = vunpack.c.l.b16 %v83
    %v3772 = vunpack.c.l.b16 %v84
    %v3773 = vunpack.c.l.b16 %v85
    %v3774 = vunpack.c.l.b16 %v86
    %v3775 = vunpack.c.l.b16 %v87
    %v3776 = vunpack.c.l.b16 %v88
    %v3777 = vunpack.c.l.b16 %v89
    %v3778 = vunpack.c.l.b16 %v90
    %v3779 = vunpack.c.l.b16 %v91
    %v3780 = vunpack.c.l.b16 %v92
    %v3781 = vunpack.c.l.b16 %v93
    %v3782 = vunpack.c.l.b16 %v94
    %v3783 = vunpack.c.l.b16 %v95
    %v3784 = vunpack.c.l.b16 %v96
    %v3785 = vunpack.c.l.b16 %v97
    %v3786 = vunpack.c.l.b16 %v98
    %v3787 = vunpack.c.l.b16 %v99
    %v3788 = vunpack.c.l.b16 %v100
    %v3789 = vpack.c.b16 %v3726, %v3725
    %v3790 = vpack.c.b16 %v3728, %v3727
    %v3791 = vpack.c.b16 %v3730, %v3729
    %v3792 = vpack.c.b16 %v3732, %v3731
    %v3793 = vpack.c.b16 %v3734, %v3733
    %v3794 = vpack.c.b16 %v3736, %v3735
    %v3795 = vpack.c.b16 %v3738, %v3737
    %v3796 = vpack.c.b16 %v3740, %v3739
    %v3797 = vpack.c.b16 %v3742, %v3741
    %v3798 = vpack.c.b16 %v3744, %v3743
    %v3799 = vpack.c.b16 %v3746, %v3745
    %v3800 = vpack.c.b16 %v3748, %v3747
    %v3801 = vpack.c.b16 %v3750, %v3749
    %v3802 = vpack.c.b16 %v3752, %v3751
    %v3803 = vpack.c.b16 %v3754, %v3753
    %v3804 = vpack.c.b16 %v3756, %v3755
    %v3805 = vpack.c.b16 %v3758, %v3757
    %v3806 = vpack.c.b16 %v3760, %v3759
    %v3807 = vpack.c.b16 %v3762, %v3761
    %v3808 = vpack.c.b16 %v3764, %v3763
    %v3809 = vpack.c.b16 %v3766, %v3765
    %v3810 = vpack.c.b16 %v3768, %v3767
    %v3811 = vpack.c.b16 %v3770, %v3769
    %v3812 = vpack.c.b16 %v3772, %v3771
    %v3813 = vpack.c.b16 %v3774, %v3773
    %v3814 = vpack.c.b16 %v3776, %v3775
    %v3815 = vpack.c.b16 %v3778, %v3777
    %v3816 = vpack.c.b16 %v3780, %v3779
    %v3817 = vpack.c.b16 %v3782, %v3781
    %v3818 = vpack.c.b16 %v3784, %v3783
    %v3819 = vpack.c.b16 %v3786, %v3785
    %v3820 = vpack.c.b16 %v3788, %v3787
    %v3821 = vunpack.c.l.b16 %v149
    %v3822 = vunpack.c.l.b16 %v159
    %v3823 = vunpack.c.l.b16 %v173
    %v3824 = vunpack.c.l.b16 %v183
    %v3825 = vunpack.c.l.b16 %v197
    %v3826 = vunpack.c.l.b16 %v207
    %v3827 = vunpack.c.l.b16 %v221
    %v3828 = vunpack.c.l.b16 %v231
    %v3829 = vunpack.c.l.b16 %v245
    %v3830 = vunpack.c.l.b16 %v255
    %v3831 = vunpack.c.l.b16 %v269
    %v3832 = vunpack.c.l.b16 %v279
    %v3833 = vunpack.c.l.b16 %v293
    %v3834 = vunpack.c.l.b16 %v303
    %v3835 = vunpack.c.l.b16 %v317
    %v3836 = vunpack.c.l.b16 %v327
    %v3837 = vunpack.c.l.b16 %v341
    %v3838 = vunpack.c.l.b16 %v351
    %v3839 = vunpack.c.l.b16 %v365
    %v3840 = vunpack.c.l.b16 %v375
    %v3841 = vunpack.c.l.b16 %v389
    %v3842 = vunpack.c.l.b16 %v399
    %v3843 = vunpack.c.l.b16 %v413
    %v3844 = vunpack.c.l.b16 %v423
    %v3845 = vunpack.c.l.b16 %v437
    %v3846 = vunpack.c.l.b16 %v447
    %v3847 = vunpack.c.l.b16 %v461
    %v3848 = vunpack.c.l.b16 %v471
    %v3849 = vunpack.c.l.b16 %v485
    %v3850 = vunpack.c.l.b16 %v495
    %v3851 = vunpack.c.l.b16 %v509
    %v3852 = vunpack.c.l.b16 %v519
    %v3853 = vunpack.c.l.b16 %v533
    %v3854 = vunpack.c.l.b16 %v543
    %v3855 = vunpack.c.l.b16 %v557
    %v3856 = vunpack.c.l.b16 %v567
    %v3857 = vunpack.c.l.b16 %v581
    %v3858 = vunpack.c.l.b16 %v591
    %v3859 = vunpack.c.l.b16 %v605
    %v3860 = vunpack.c.l.b16 %v615
    %v3861 = vunpack.c.l.b16 %v629
    %v3862 = vunpack.c.l.b16 %v639
    %v3863 = vunpack.c.l.b16 %v653
    %v3864 = vunpack.c.l.b16 %v663
    %v3865 = vunpack.c.l.b16 %v677
    %v3866 = vunpack.c.l.b16 %v687
    %v3867 = vunpack.c.l.b16 %v701
    %v3868 = vunpack.c.l.b16 %v711
    %v3869 = vunpack.c.l.b16 %v725
    %v3870 = vunpack.c.l.b16 %v735
    %v3871 = vunpack.c.l.b16 %v749
    %v3872 = vunpack.c.l.b16 %v759
    %v3873 = vunpack.c.l.b16 %v773
    %v3874 = vunpack.c.l.b16 %v783
    %v3875 = vunpack.c.l.b16 %v797
    %v3876 = vunpack.c.l.b16 %v807
    %v3877 = vunpack.c.l.b16 %v821
    %v3878 = vunpack.c.l.b16 %v831
    %v3879 = vunpack.c.l.b16 %v845
    %v3880 = vunpack.c.l.b16 %v855
    %v3881 = vunpack.c.l.b16 %v869
    %v3882 = vunpack.c.l.b16 %v879
    %v3883 = vunpack.c.l.b16 %v893
    %v3884 = vunpack.c.l.b16 %v903
    %v3885 = vpack.c.b16 %v3822, %v3821
    %v3886 = vpack.c.b16 %v3824, %v3823
    %v3887 = vpack.c.b16 %v3826, %v3825
    %v3888 = vpack.c.b16 %v3828, %v3827
    %v3889 = vpack.c.b16 %v3830, %v3829
    %v3890 = vpack.c.b16 %v3832, %v3831
    %v3891 = vpack.c.b16 %v3834, %v3833
    %v3892 = vpack.c.b16 %v3836, %v3835
    %v3893 = vpack.c.b16 %v3838, %v3837
    %v3894 = vpack.c.b16 %v3840, %v3839
    %v3895 = vpack.c.b16 %v3842, %v3841
    %v3896 = vpack.c.b16 %v3844, %v3843
    %v3897 = vpack.c.b16 %v3846, %v3845
    %v3898 = vpack.c.b16 %v3848, %v3847
    %v3899 = vpack.c.b16 %v3850, %v3849
    %v3900 = vpack.c.b16 %v3852, %v3851
    %v3901 = vpack.c.b16 %v3854, %v3853
    %v3902 = vpack.c.b16 %v3856, %v3855
    %v3903 = vpack.c.b16 %v3858, %v3857
    %v3904 = vpack.c.b16 %v3860, %v3859
    %v3905 = vpack.c.b16 %v3862, %v3861
    %v3906 = vpack.c.b16 %v3864, %v3863
    %v3907 = vpack.c.b16 %v3866, %v3865
    %v3908 = vpack.c.b16 %v3868, %v3867
    %v3909 = vpack.c.b16 %v3870, %v3869
    %v3910 = vpack.c.b16 %v3872, %v3871
    %v3911 = vpack.c.b16 %v3874, %v3873
    %v3912 = vpack.c.b16 %v3876, %v3875
    %v3913 = vpack.c.b16 %v3878, %v3877
    %v3914 = vpack.c.b16 %v3880, %v3879
    %v3915 = vpack.c.b16 %v3882, %v3881
    %v3916 = vpack.c.b16 %v3884, %v3883
    %3917 = vrot.lane.b32.xlu0 %v3885, 4
    %v3918 = vpop.permute.xlu0 %3917
    %3919 = vrot.lane.b32.xlu0 %v3886, 4
    %v3920 = vpop.permute.xlu0 %3919
    %3921 = vrot.lane.b32.xlu0 %v3887, 4
    %v3922 = vpop.permute.xlu0 %3921
    %3923 = vrot.lane.b32.xlu0 %v3888, 4
    %v3924 = vpop.permute.xlu0 %3923
    %3925 = vrot.lane.b32.xlu0 %v3889, 4
    %v3926 = vpop.permute.xlu0 %3925
    %3927 = vrot.lane.b32.xlu0 %v3890, 4
    %v3928 = vpop.permute.xlu0 %3927
    %3929 = vrot.lane.b32.xlu0 %v3891, 4
    %v3930 = vpop.permute.xlu0 %3929
    %3931 = vrot.lane.b32.xlu0 %v3892, 4
    %v3932 = vpop.permute.xlu0 %3931
    %3933 = vrot.lane.b32.xlu0 %v3893, 4
    %v3934 = vpop.permute.xlu0 %3933
    %3935 = vrot.lane.b32.xlu0 %v3894, 4
    %v3936 = vpop.permute.xlu0 %3935
    %3937 = vrot.lane.b32.xlu0 %v3895, 4
    %v3938 = vpop.permute.xlu0 %3937
    %3939 = vrot.lane.b32.xlu0 %v3896, 4
    %v3940 = vpop.permute.xlu0 %3939
    %3941 = vrot.lane.b32.xlu0 %v3897, 4
    %v3942 = vpop.permute.xlu0 %3941
    %3943 = vrot.lane.b32.xlu0 %v3898, 4
    %v3944 = vpop.permute.xlu0 %3943
    %3945 = vrot.lane.b32.xlu0 %v3899, 4
    %v3946 = vpop.permute.xlu0 %3945
    %3947 = vrot.lane.b32.xlu0 %v3900, 4
    %v3948 = vpop.permute.xlu0 %3947
    %3949 = vrot.lane.b32.xlu0 %v3901, 4
    %v3950 = vpop.permute.xlu0 %3949
    %3951 = vrot.lane.b32.xlu0 %v3902, 4
    %v3952 = vpop.permute.xlu0 %3951
    %3953 = vrot.lane.b32.xlu0 %v3903, 4
    %v3954 = vpop.permute.xlu0 %3953
    %3955 = vrot.lane.b32.xlu0 %v3904, 4
    %v3956 = vpop.permute.xlu0 %3955
    %3957 = vrot.lane.b32.xlu0 %v3905, 4
    %v3958 = vpop.permute.xlu0 %3957
    %3959 = vrot.lane.b32.xlu0 %v3906, 4
    %v3960 = vpop.permute.xlu0 %3959
    %3961 = vrot.lane.b32.xlu0 %v3907, 4
    %v3962 = vpop.permute.xlu0 %3961
    %3963 = vrot.lane.b32.xlu0 %v3908, 4
    %v3964 = vpop.permute.xlu0 %3963
    %3965 = vrot.lane.b32.xlu0 %v3909, 4
    %v3966 = vpop.permute.xlu0 %3965
    %3967 = vrot.lane.b32.xlu0 %v3910, 4
    %v3968 = vpop.permute.xlu0 %3967
    %3969 = vrot.lane.b32.xlu0 %v3911, 4
    %v3970 = vpop.permute.xlu0 %3969
    %3971 = vrot.lane.b32.xlu0 %v3912, 4
    %v3972 = vpop.permute.xlu0 %3971
    %3973 = vrot.lane.b32.xlu0 %v3913, 4
    %v3974 = vpop.permute.xlu0 %3973
    %3975 = vrot.lane.b32.xlu0 %v3914, 4
    %v3976 = vpop.permute.xlu0 %3975
    %3977 = vrot.lane.b32.xlu0 %v3915, 4
    %v3978 = vpop.permute.xlu0 %3977
    %3979 = vrot.lane.b32.xlu0 %v3916, 4
    %v3980 = vpop.permute.xlu0 %3979
    %v3981 = vunpack.c.l.b16 %v1038
    %v3982 = vunpack.c.l.b16 %v1041
    %v3983 = vunpack.c.l.b16 %v1045
    %v3984 = vunpack.c.l.b16 %v1048
    %v3985 = vunpack.c.l.b16 %v1052
    %v3986 = vunpack.c.l.b16 %v1055
    %v3987 = vunpack.c.l.b16 %v1059
    %v3988 = vunpack.c.l.b16 %v1062
    %v3989 = vunpack.c.l.b16 %v1066
    %v3990 = vunpack.c.l.b16 %v1069
    %v3991 = vunpack.c.l.b16 %v1073
    %v3992 = vunpack.c.l.b16 %v1076
    %v3993 = vunpack.c.l.b16 %v1080
    %v3994 = vunpack.c.l.b16 %v1083
    %v3995 = vunpack.c.l.b16 %v1087
    %v3996 = vunpack.c.l.b16 %v1090
    %v3997 = vunpack.c.l.b16 %v1094
    %v3998 = vunpack.c.l.b16 %v1097
    %v3999 = vunpack.c.l.b16 %v1101
    %v4000 = vunpack.c.l.b16 %v1104
    %v4001 = vunpack.c.l.b16 %v1108
    %v4002 = vunpack.c.l.b16 %v1111
    %v4003 = vunpack.c.l.b16 %v1115
    %v4004 = vunpack.c.l.b16 %v1118
    %v4005 = vunpack.c.l.b16 %v1122
    %v4006 = vunpack.c.l.b16 %v1125
    %v4007 = vunpack.c.l.b16 %v1129
    %v4008 = vunpack.c.l.b16 %v1132
    %v4009 = vunpack.c.l.b16 %v1136
    %v4010 = vunpack.c.l.b16 %v1139
    %v4011 = vunpack.c.l.b16 %v1143
    %v4012 = vunpack.c.l.b16 %v1146
    %v4013 = vunpack.c.l.b16 %v1150
    %v4014 = vunpack.c.l.b16 %v1153
    %v4015 = vunpack.c.l.b16 %v1157
    %v4016 = vunpack.c.l.b16 %v1160
    %v4017 = vunpack.c.l.b16 %v1164
    %v4018 = vunpack.c.l.b16 %v1167
    %v4019 = vunpack.c.l.b16 %v1171
    %v4020 = vunpack.c.l.b16 %v1174
    %v4021 = vunpack.c.l.b16 %v1178
    %v4022 = vunpack.c.l.b16 %v1181
    %v4023 = vunpack.c.l.b16 %v1185
    %v4024 = vunpack.c.l.b16 %v1188
    %v4025 = vunpack.c.l.b16 %v1192
    %v4026 = vunpack.c.l.b16 %v1195
    %v4027 = vunpack.c.l.b16 %v1199
    %v4028 = vunpack.c.l.b16 %v1202
    %v4029 = vunpack.c.l.b16 %v1206
    %v4030 = vunpack.c.l.b16 %v1209
    %v4031 = vunpack.c.l.b16 %v1213
    %v4032 = vunpack.c.l.b16 %v1216
    %v4033 = vunpack.c.l.b16 %v1220
    %v4034 = vunpack.c.l.b16 %v1223
    %v4035 = vunpack.c.l.b16 %v1227
    %v4036 = vunpack.c.l.b16 %v1230
    %v4037 = vunpack.c.l.b16 %v1234
    %v4038 = vunpack.c.l.b16 %v1237
    %v4039 = vunpack.c.l.b16 %v1241
    %v4040 = vunpack.c.l.b16 %v1244
    %v4041 = vunpack.c.l.b16 %v1248
    %v4042 = vunpack.c.l.b16 %v1251
    %v4043 = vunpack.c.l.b16 %v1255
    %v4044 = vunpack.c.l.b16 %v1258
    %v4045 = vpack.c.b16 %v3982, %v3981
    %v4046 = vpack.c.b16 %v3984, %v3983
    %v4047 = vpack.c.b16 %v3986, %v3985
    %v4048 = vpack.c.b16 %v3988, %v3987
    %v4049 = vpack.c.b16 %v3990, %v3989
    %v4050 = vpack.c.b16 %v3992, %v3991
    %v4051 = vpack.c.b16 %v3994, %v3993
    %v4052 = vpack.c.b16 %v3996, %v3995
    %v4053 = vpack.c.b16 %v3998, %v3997
    %v4054 = vpack.c.b16 %v4000, %v3999
    %v4055 = vpack.c.b16 %v4002, %v4001
    %v4056 = vpack.c.b16 %v4004, %v4003
    %v4057 = vpack.c.b16 %v4006, %v4005
    %v4058 = vpack.c.b16 %v4008, %v4007
    %v4059 = vpack.c.b16 %v4010, %v4009
    %v4060 = vpack.c.b16 %v4012, %v4011
    %v4061 = vpack.c.b16 %v4014, %v4013
    %v4062 = vpack.c.b16 %v4016, %v4015
    %v4063 = vpack.c.b16 %v4018, %v4017
    %v4064 = vpack.c.b16 %v4020, %v4019
    %v4065 = vpack.c.b16 %v4022, %v4021
    %v4066 = vpack.c.b16 %v4024, %v4023
    %v4067 = vpack.c.b16 %v4026, %v4025
    %v4068 = vpack.c.b16 %v4028, %v4027
    %v4069 = vpack.c.b16 %v4030, %v4029
    %v4070 = vpack.c.b16 %v4032, %v4031
    %v4071 = vpack.c.b16 %v4034, %v4033
    %v4072 = vpack.c.b16 %v4036, %v4035
    %v4073 = vpack.c.b16 %v4038, %v4037
    %v4074 = vpack.c.b16 %v4040, %v4039
    %v4075 = vpack.c.b16 %v4042, %v4041
    %v4076 = vpack.c.b16 %v4044, %v4043
    %4077 = vrot.lane.b32.xlu0 %v4045, 8
    %v4078 = vpop.permute.xlu0 %4077
    %4079 = vrot.lane.b32.xlu0 %v4046, 8
    %v4080 = vpop.permute.xlu0 %4079
    %4081 = vrot.lane.b32.xlu0 %v4047, 8
    %v4082 = vpop.permute.xlu0 %4081
    %4083 = vrot.lane.b32.xlu0 %v4048, 8
    %v4084 = vpop.permute.xlu0 %4083
    %4085 = vrot.lane.b32.xlu0 %v4049, 8
    %v4086 = vpop.permute.xlu0 %4085
    %4087 = vrot.lane.b32.xlu0 %v4050, 8
    %v4088 = vpop.permute.xlu0 %4087
    %4089 = vrot.lane.b32.xlu0 %v4051, 8
    %v4090 = vpop.permute.xlu0 %4089
    %4091 = vrot.lane.b32.xlu0 %v4052, 8
    %v4092 = vpop.permute.xlu0 %4091
    %4093 = vrot.lane.b32.xlu0 %v4053, 8
    %v4094 = vpop.permute.xlu0 %4093
    %4095 = vrot.lane.b32.xlu0 %v4054, 8
    %v4096 = vpop.permute.xlu0 %4095
    %4097 = vrot.lane.b32.xlu0 %v4055, 8
    %v4098 = vpop.permute.xlu0 %4097
    %4099 = vrot.lane.b32.xlu0 %v4056, 8
    %v4100 = vpop.permute.xlu0 %4099
    %4101 = vrot.lane.b32.xlu0 %v4057, 8
    %v4102 = vpop.permute.xlu0 %4101
    %4103 = vrot.lane.b32.xlu0 %v4058, 8
    %v4104 = vpop.permute.xlu0 %4103
    %4105 = vrot.lane.b32.xlu0 %v4059, 8
    %v4106 = vpop.permute.xlu0 %4105
    %4107 = vrot.lane.b32.xlu0 %v4060, 8
    %v4108 = vpop.permute.xlu0 %4107
    %4109 = vrot.lane.b32.xlu0 %v4061, 8
    %v4110 = vpop.permute.xlu0 %4109
    %4111 = vrot.lane.b32.xlu0 %v4062, 8
    %v4112 = vpop.permute.xlu0 %4111
    %4113 = vrot.lane.b32.xlu0 %v4063, 8
    %v4114 = vpop.permute.xlu0 %4113
    %4115 = vrot.lane.b32.xlu0 %v4064, 8
    %v4116 = vpop.permute.xlu0 %4115
    %4117 = vrot.lane.b32.xlu0 %v4065, 8
    %v4118 = vpop.permute.xlu0 %4117
    %4119 = vrot.lane.b32.xlu0 %v4066, 8
    %v4120 = vpop.permute.xlu0 %4119
    %4121 = vrot.lane.b32.xlu0 %v4067, 8
    %v4122 = vpop.permute.xlu0 %4121
    %4123 = vrot.lane.b32.xlu0 %v4068, 8
    %v4124 = vpop.permute.xlu0 %4123
    %4125 = vrot.lane.b32.xlu0 %v4069, 8
    %v4126 = vpop.permute.xlu0 %4125
    %4127 = vrot.lane.b32.xlu0 %v4070, 8
    %v4128 = vpop.permute.xlu0 %4127
    %4129 = vrot.lane.b32.xlu0 %v4071, 8
    %v4130 = vpop.permute.xlu0 %4129
    %4131 = vrot.lane.b32.xlu0 %v4072, 8
    %v4132 = vpop.permute.xlu0 %4131
    %4133 = vrot.lane.b32.xlu0 %v4073, 8
    %v4134 = vpop.permute.xlu0 %4133
    %4135 = vrot.lane.b32.xlu0 %v4074, 8
    %v4136 = vpop.permute.xlu0 %4135
    %4137 = vrot.lane.b32.xlu0 %v4075, 8
    %v4138 = vpop.permute.xlu0 %4137
    %4139 = vrot.lane.b32.xlu0 %v4076, 8
    %v4140 = vpop.permute.xlu0 %4139
    %v4173 = vunpack.c.l.b16 %v1260
    %v4174 = vunpack.c.l.b16 %v1261
    %v4175 = vunpack.c.l.b16 %v1262
    %v4176 = vunpack.c.l.b16 %v1263
    %v4177 = vunpack.c.l.b16 %v1264
    %v4178 = vunpack.c.l.b16 %v1265
    %v4179 = vunpack.c.l.b16 %v1266
    %v4180 = vunpack.c.l.b16 %v1267
    %v4181 = vunpack.c.l.b16 %v1268
    %v4182 = vunpack.c.l.b16 %v1269
    %v4183 = vunpack.c.l.b16 %v1270
    %v4184 = vunpack.c.l.b16 %v1271
    %v4185 = vunpack.c.l.b16 %v1272
    %v4186 = vunpack.c.l.b16 %v1273
    %v4187 = vunpack.c.l.b16 %v1274
    %v4188 = vunpack.c.l.b16 %v1275
    %v4189 = vunpack.c.l.b16 %v1276
    %v4190 = vunpack.c.l.b16 %v1277
    %v4191 = vunpack.c.l.b16 %v1278
    %v4192 = vunpack.c.l.b16 %v1279
    %v4193 = vunpack.c.l.b16 %v1280
    %v4194 = vunpack.c.l.b16 %v1281
    %v4195 = vunpack.c.l.b16 %v1282
    %v4196 = vunpack.c.l.b16 %v1283
    %v4197 = vunpack.c.l.b16 %v1284
    %v4198 = vunpack.c.l.b16 %v1285
    %v4199 = vunpack.c.l.b16 %v1286
    %v4200 = vunpack.c.l.b16 %v1287
    %v4201 = vunpack.c.l.b16 %v1288
    %v4202 = vunpack.c.l.b16 %v1289
    %v4203 = vunpack.c.l.b16 %v1290
    %v4204 = vunpack.c.l.b16 %v1291
    %v4205 = vunpack.c.l.b16 %v1292
    %v4206 = vunpack.c.l.b16 %v1293
    %v4207 = vunpack.c.l.b16 %v1294
    %v4208 = vunpack.c.l.b16 %v1295
    %v4209 = vunpack.c.l.b16 %v1296
    %v4210 = vunpack.c.l.b16 %v1297
    %v4211 = vunpack.c.l.b16 %v1298
    %v4212 = vunpack.c.l.b16 %v1299
    %v4213 = vunpack.c.l.b16 %v1300
    %v4214 = vunpack.c.l.b16 %v1301
    %v4215 = vunpack.c.l.b16 %v1302
    %v4216 = vunpack.c.l.b16 %v1303
    %v4217 = vunpack.c.l.b16 %v1304
    %v4218 = vunpack.c.l.b16 %v1305
    %v4219 = vunpack.c.l.b16 %v1306
    %v4220 = vunpack.c.l.b16 %v1307
    %v4221 = vunpack.c.l.b16 %v1308
    %v4222 = vunpack.c.l.b16 %v1309
    %v4223 = vunpack.c.l.b16 %v1310
    %v4224 = vunpack.c.l.b16 %v1311
    %v4225 = vunpack.c.l.b16 %v1312
    %v4226 = vunpack.c.l.b16 %v1313
    %v4227 = vunpack.c.l.b16 %v1314
    %v4228 = vunpack.c.l.b16 %v1315
    %v4229 = vunpack.c.l.b16 %v1316
    %v4230 = vunpack.c.l.b16 %v1317
    %v4231 = vunpack.c.l.b16 %v1318
    %v4232 = vunpack.c.l.b16 %v1319
    %v4233 = vunpack.c.l.b16 %v1320
    %v4234 = vunpack.c.l.b16 %v1321
    %v4235 = vunpack.c.l.b16 %v1322
    %v4236 = vunpack.c.l.b16 %v1323
    %v4237 = vpack.c.b16 %v4174, %v4173
    %v4238 = vpack.c.b16 %v4176, %v4175
    %v4239 = vpack.c.b16 %v4178, %v4177
    %v4240 = vpack.c.b16 %v4180, %v4179
    %v4241 = vpack.c.b16 %v4182, %v4181
    %v4242 = vpack.c.b16 %v4184, %v4183
    %v4243 = vpack.c.b16 %v4186, %v4185
    %v4244 = vpack.c.b16 %v4188, %v4187
    %v4245 = vpack.c.b16 %v4190, %v4189
    %v4246 = vpack.c.b16 %v4192, %v4191
    %v4247 = vpack.c.b16 %v4194, %v4193
    %v4248 = vpack.c.b16 %v4196, %v4195
    %v4249 = vpack.c.b16 %v4198, %v4197
    %v4250 = vpack.c.b16 %v4200, %v4199
    %v4251 = vpack.c.b16 %v4202, %v4201
    %v4252 = vpack.c.b16 %v4204, %v4203
    %v4253 = vpack.c.b16 %v4206, %v4205
    %v4254 = vpack.c.b16 %v4208, %v4207
    %v4255 = vpack.c.b16 %v4210, %v4209
    %v4256 = vpack.c.b16 %v4212, %v4211
    %v4257 = vpack.c.b16 %v4214, %v4213
    %v4258 = vpack.c.b16 %v4216, %v4215
    %v4259 = vpack.c.b16 %v4218, %v4217
    %v4260 = vpack.c.b16 %v4220, %v4219
    %v4261 = vpack.c.b16 %v4222, %v4221
    %v4262 = vpack.c.b16 %v4224, %v4223
    %v4263 = vpack.c.b16 %v4226, %v4225
    %v4264 = vpack.c.b16 %v4228, %v4227
    %v4265 = vpack.c.b16 %v4230, %v4229
    %v4266 = vpack.c.b16 %v4232, %v4231
    %v4267 = vpack.c.b16 %v4234, %v4233
    %v4268 = vpack.c.b16 %v4236, %v4235
    %4269 = vrot.lane.b32.xlu0 %v4237, 12
    %v4270 = vpop.permute.xlu0 %4269
    %4271 = vrot.lane.b32.xlu0 %v4238, 12
    %v4272 = vpop.permute.xlu0 %4271
    %4273 = vrot.lane.b32.xlu0 %v4239, 12
    %v4274 = vpop.permute.xlu0 %4273
    %4275 = vrot.lane.b32.xlu0 %v4240, 12
    %v4276 = vpop.permute.xlu0 %4275
    %4277 = vrot.lane.b32.xlu0 %v4241, 12
    %v4278 = vpop.permute.xlu0 %4277
    %4279 = vrot.lane.b32.xlu0 %v4242, 12
    %v4280 = vpop.permute.xlu0 %4279
    %4281 = vrot.lane.b32.xlu0 %v4243, 12
    %v4282 = vpop.permute.xlu0 %4281
    %4283 = vrot.lane.b32.xlu0 %v4244, 12
    %v4284 = vpop.permute.xlu0 %4283
    %4285 = vrot.lane.b32.xlu0 %v4245, 12
    %v4286 = vpop.permute.xlu0 %4285
    %4287 = vrot.lane.b32.xlu0 %v4246, 12
    %v4288 = vpop.permute.xlu0 %4287
    %4289 = vrot.lane.b32.xlu0 %v4247, 12
    %v4290 = vpop.permute.xlu0 %4289
    %4291 = vrot.lane.b32.xlu0 %v4248, 12
    %v4292 = vpop.permute.xlu0 %4291
    %4293 = vrot.lane.b32.xlu0 %v4249, 12
    %v4294 = vpop.permute.xlu0 %4293
    %4295 = vrot.lane.b32.xlu0 %v4250, 12
    %v4296 = vpop.permute.xlu0 %4295
    %4297 = vrot.lane.b32.xlu0 %v4251, 12
    %v4298 = vpop.permute.xlu0 %4297
    %4299 = vrot.lane.b32.xlu0 %v4252, 12
    %v4300 = vpop.permute.xlu0 %4299
    %4301 = vrot.lane.b32.xlu0 %v4253, 12
    %v4302 = vpop.permute.xlu0 %4301
    %4303 = vrot.lane.b32.xlu0 %v4254, 12
    %v4304 = vpop.permute.xlu0 %4303
    %4305 = vrot.lane.b32.xlu0 %v4255, 12
    %v4306 = vpop.permute.xlu0 %4305
    %4307 = vrot.lane.b32.xlu0 %v4256, 12
    %v4308 = vpop.permute.xlu0 %4307
    %4309 = vrot.lane.b32.xlu0 %v4257, 12
    %v4310 = vpop.permute.xlu0 %4309
    %4311 = vrot.lane.b32.xlu0 %v4258, 12
    %v4312 = vpop.permute.xlu0 %4311
    %4313 = vrot.lane.b32.xlu0 %v4259, 12
    %v4314 = vpop.permute.xlu0 %4313
    %4315 = vrot.lane.b32.xlu0 %v4260, 12
    %v4316 = vpop.permute.xlu0 %4315
    %4317 = vrot.lane.b32.xlu0 %v4261, 12
    %v4318 = vpop.permute.xlu0 %4317
    %4319 = vrot.lane.b32.xlu0 %v4262, 12
    %v4320 = vpop.permute.xlu0 %4319
    %4321 = vrot.lane.b32.xlu0 %v4263, 12
    %v4322 = vpop.permute.xlu0 %4321
    %4323 = vrot.lane.b32.xlu0 %v4264, 12
    %v4324 = vpop.permute.xlu0 %4323
    %4325 = vrot.lane.b32.xlu0 %v4265, 12
    %v4326 = vpop.permute.xlu0 %4325
    %4327 = vrot.lane.b32.xlu0 %v4266, 12
    %v4328 = vpop.permute.xlu0 %4327
    %4329 = vrot.lane.b32.xlu0 %v4267, 12
    %v4330 = vpop.permute.xlu0 %4329
    %4331 = vrot.lane.b32.xlu0 %v4268, 12
    %v4332 = vpop.permute.xlu0 %4331
    %v4333 = vunpack.c.l.b16 %v1369
    %v4334 = vunpack.c.l.b16 %v1379
    %v4335 = vunpack.c.l.b16 %v1393
    %v4336 = vunpack.c.l.b16 %v1403
    %v4337 = vunpack.c.l.b16 %v1417
    %v4338 = vunpack.c.l.b16 %v1427
    %v4339 = vunpack.c.l.b16 %v1441
    %v4340 = vunpack.c.l.b16 %v1451
    %v4341 = vunpack.c.l.b16 %v1465
    %v4342 = vunpack.c.l.b16 %v1475
    %v4343 = vunpack.c.l.b16 %v1489
    %v4344 = vunpack.c.l.b16 %v1499
    %v4345 = vunpack.c.l.b16 %v1513
    %v4346 = vunpack.c.l.b16 %v1523
    %v4347 = vunpack.c.l.b16 %v1537
    %v4348 = vunpack.c.l.b16 %v1547
    %v4349 = vunpack.c.l.b16 %v1561
    %v4350 = vunpack.c.l.b16 %v1571
    %v4351 = vunpack.c.l.b16 %v1585
    %v4352 = vunpack.c.l.b16 %v1595
    %v4353 = vunpack.c.l.b16 %v1609
    %v4354 = vunpack.c.l.b16 %v1619
    %v4355 = vunpack.c.l.b16 %v1633
    %v4356 = vunpack.c.l.b16 %v1643
    %v4357 = vunpack.c.l.b16 %v1657
    %v4358 = vunpack.c.l.b16 %v1667
    %v4359 = vunpack.c.l.b16 %v1681
    %v4360 = vunpack.c.l.b16 %v1691
    %v4361 = vunpack.c.l.b16 %v1705
    %v4362 = vunpack.c.l.b16 %v1715
    %v4363 = vunpack.c.l.b16 %v1729
    %v4364 = vunpack.c.l.b16 %v1739
    %v4365 = vunpack.c.l.b16 %v1753
    %v4366 = vunpack.c.l.b16 %v1763
    %v4367 = vunpack.c.l.b16 %v1777
    %v4368 = vunpack.c.l.b16 %v1787
    %v4369 = vunpack.c.l.b16 %v1801
    %v4370 = vunpack.c.l.b16 %v1811
    %v4371 = vunpack.c.l.b16 %v1825
    %v4372 = vunpack.c.l.b16 %v1835
    %v4373 = vunpack.c.l.b16 %v1849
    %v4374 = vunpack.c.l.b16 %v1859
    %v4375 = vunpack.c.l.b16 %v1873
    %v4376 = vunpack.c.l.b16 %v1883
    %v4377 = vunpack.c.l.b16 %v1897
    %v4378 = vunpack.c.l.b16 %v1907
    %v4379 = vunpack.c.l.b16 %v1921
    %v4380 = vunpack.c.l.b16 %v1931
    %v4381 = vunpack.c.l.b16 %v1945
    %v4382 = vunpack.c.l.b16 %v1955
    %v4383 = vunpack.c.l.b16 %v1969
    %v4384 = vunpack.c.l.b16 %v1979
    %v4385 = vunpack.c.l.b16 %v1993
    %v4386 = vunpack.c.l.b16 %v2003
    %v4387 = vunpack.c.l.b16 %v2017
    %v4388 = vunpack.c.l.b16 %v2027
    %v4389 = vunpack.c.l.b16 %v2041
    %v4390 = vunpack.c.l.b16 %v2051
    %v4391 = vunpack.c.l.b16 %v2065
    %v4392 = vunpack.c.l.b16 %v2075
    %v4393 = vunpack.c.l.b16 %v2089
    %v4394 = vunpack.c.l.b16 %v2099
    %v4395 = vunpack.c.l.b16 %v2113
    %v4396 = vunpack.c.l.b16 %v2123
    %v4397 = vpack.c.b16 %v4334, %v4333
    %v4398 = vpack.c.b16 %v4336, %v4335
    %v4399 = vpack.c.b16 %v4338, %v4337
    %v4400 = vpack.c.b16 %v4340, %v4339
    %v4401 = vpack.c.b16 %v4342, %v4341
    %v4402 = vpack.c.b16 %v4344, %v4343
    %v4403 = vpack.c.b16 %v4346, %v4345
    %v4404 = vpack.c.b16 %v4348, %v4347
    %v4405 = vpack.c.b16 %v4350, %v4349
    %v4406 = vpack.c.b16 %v4352, %v4351
    %v4407 = vpack.c.b16 %v4354, %v4353
    %v4408 = vpack.c.b16 %v4356, %v4355
    %v4409 = vpack.c.b16 %v4358, %v4357
    %v4410 = vpack.c.b16 %v4360, %v4359
    %v4411 = vpack.c.b16 %v4362, %v4361
    %v4412 = vpack.c.b16 %v4364, %v4363
    %v4413 = vpack.c.b16 %v4366, %v4365
    %v4414 = vpack.c.b16 %v4368, %v4367
    %v4415 = vpack.c.b16 %v4370, %v4369
    %v4416 = vpack.c.b16 %v4372, %v4371
    %v4417 = vpack.c.b16 %v4374, %v4373
    %v4418 = vpack.c.b16 %v4376, %v4375
    %v4419 = vpack.c.b16 %v4378, %v4377
    %v4420 = vpack.c.b16 %v4380, %v4379
    %v4421 = vpack.c.b16 %v4382, %v4381
    %v4422 = vpack.c.b16 %v4384, %v4383
    %v4423 = vpack.c.b16 %v4386, %v4385
    %v4424 = vpack.c.b16 %v4388, %v4387
    %v4425 = vpack.c.b16 %v4390, %v4389
    %v4426 = vpack.c.b16 %v4392, %v4391
    %v4427 = vpack.c.b16 %v4394, %v4393
    %v4428 = vpack.c.b16 %v4396, %v4395
    %4429 = vrot.lane.b32.xlu0 %v4397, 16
    %v4430 = vpop.permute.xlu0 %4429
    %4431 = vrot.lane.b32.xlu0 %v4398, 16
    %v4432 = vpop.permute.xlu0 %4431
    %4433 = vrot.lane.b32.xlu0 %v4399, 16
    %v4434 = vpop.permute.xlu0 %4433
    %4435 = vrot.lane.b32.xlu0 %v4400, 16
    %v4436 = vpop.permute.xlu0 %4435
    %4437 = vrot.lane.b32.xlu0 %v4401, 16
    %v4438 = vpop.permute.xlu0 %4437
    %4439 = vrot.lane.b32.xlu0 %v4402, 16
    %v4440 = vpop.permute.xlu0 %4439
    %4441 = vrot.lane.b32.xlu0 %v4403, 16
    %v4442 = vpop.permute.xlu0 %4441
    %4443 = vrot.lane.b32.xlu0 %v4404, 16
    %v4444 = vpop.permute.xlu0 %4443
    %4445 = vrot.lane.b32.xlu0 %v4405, 16
    %v4446 = vpop.permute.xlu0 %4445
    %4447 = vrot.lane.b32.xlu0 %v4406, 16
    %v4448 = vpop.permute.xlu0 %4447
    %4449 = vrot.lane.b32.xlu0 %v4407, 16
    %v4450 = vpop.permute.xlu0 %4449
    %4451 = vrot.lane.b32.xlu0 %v4408, 16
    %v4452 = vpop.permute.xlu0 %4451
    %4453 = vrot.lane.b32.xlu0 %v4409, 16
    %v4454 = vpop.permute.xlu0 %4453
    %4455 = vrot.lane.b32.xlu0 %v4410, 16
    %v4456 = vpop.permute.xlu0 %4455
    %4457 = vrot.lane.b32.xlu0 %v4411, 16
    %v4458 = vpop.permute.xlu0 %4457
    %4459 = vrot.lane.b32.xlu0 %v4412, 16
    %v4460 = vpop.permute.xlu0 %4459
    %4461 = vrot.lane.b32.xlu0 %v4413, 16
    %v4462 = vpop.permute.xlu0 %4461
    %4463 = vrot.lane.b32.xlu0 %v4414, 16
    %v4464 = vpop.permute.xlu0 %4463
    %4465 = vrot.lane.b32.xlu0 %v4415, 16
    %v4466 = vpop.permute.xlu0 %4465
    %4467 = vrot.lane.b32.xlu0 %v4416, 16
    %v4468 = vpop.permute.xlu0 %4467
    %4469 = vrot.lane.b32.xlu0 %v4417, 16
    %v4470 = vpop.permute.xlu0 %4469
    %4471 = vrot.lane.b32.xlu0 %v4418, 16
    %v4472 = vpop.permute.xlu0 %4471
    %4473 = vrot.lane.b32.xlu0 %v4419, 16
    %v4474 = vpop.permute.xlu0 %4473
    %4475 = vrot.lane.b32.xlu0 %v4420, 16
    %v4476 = vpop.permute.xlu0 %4475
    %4477 = vrot.lane.b32.xlu0 %v4421, 16
    %v4478 = vpop.permute.xlu0 %4477
    %4479 = vrot.lane.b32.xlu0 %v4422, 16
    %v4480 = vpop.permute.xlu0 %4479
    %4481 = vrot.lane.b32.xlu0 %v4423, 16
    %v4482 = vpop.permute.xlu0 %4481
    %4483 = vrot.lane.b32.xlu0 %v4424, 16
    %v4484 = vpop.permute.xlu0 %4483
    %4485 = vrot.lane.b32.xlu0 %v4425, 16
    %v4486 = vpop.permute.xlu0 %4485
    %4487 = vrot.lane.b32.xlu0 %v4426, 16
    %v4488 = vpop.permute.xlu0 %4487
    %4489 = vrot.lane.b32.xlu0 %v4427, 16
    %v4490 = vpop.permute.xlu0 %4489
    %4491 = vrot.lane.b32.xlu0 %v4428, 16
    %v4492 = vpop.permute.xlu0 %4491
    %v4493 = vunpack.c.l.b16 %v2255
    %v4494 = vunpack.c.l.b16 %v2258
    %v4495 = vunpack.c.l.b16 %v2262
    %v4496 = vunpack.c.l.b16 %v2265
    %v4497 = vunpack.c.l.b16 %v2269
    %v4498 = vunpack.c.l.b16 %v2272
    %v4499 = vunpack.c.l.b16 %v2276
    %v4500 = vunpack.c.l.b16 %v2279
    %v4501 = vunpack.c.l.b16 %v2283
    %v4502 = vunpack.c.l.b16 %v2286
    %v4503 = vunpack.c.l.b16 %v2290
    %v4504 = vunpack.c.l.b16 %v2293
    %v4505 = vunpack.c.l.b16 %v2297
    %v4506 = vunpack.c.l.b16 %v2300
    %v4507 = vunpack.c.l.b16 %v2304
    %v4508 = vunpack.c.l.b16 %v2307
    %v4509 = vunpack.c.l.b16 %v2311
    %v4510 = vunpack.c.l.b16 %v2314
    %v4511 = vunpack.c.l.b16 %v2318
    %v4512 = vunpack.c.l.b16 %v2321
    %v4513 = vunpack.c.l.b16 %v2325
    %v4514 = vunpack.c.l.b16 %v2328
    %v4515 = vunpack.c.l.b16 %v2332
    %v4516 = vunpack.c.l.b16 %v2335
    %v4517 = vunpack.c.l.b16 %v2339
    %v4518 = vunpack.c.l.b16 %v2342
    %v4519 = vunpack.c.l.b16 %v2346
    %v4520 = vunpack.c.l.b16 %v2349
    %v4521 = vunpack.c.l.b16 %v2353
    %v4522 = vunpack.c.l.b16 %v2356
    %v4523 = vunpack.c.l.b16 %v2360
    %v4524 = vunpack.c.l.b16 %v2363
    %v4525 = vunpack.c.l.b16 %v2367
    %v4526 = vunpack.c.l.b16 %v2370
    %v4527 = vunpack.c.l.b16 %v2374
    %v4528 = vunpack.c.l.b16 %v2377
    %v4529 = vunpack.c.l.b16 %v2381
    %v4530 = vunpack.c.l.b16 %v2384
    %v4531 = vunpack.c.l.b16 %v2388
    %v4532 = vunpack.c.l.b16 %v2391
    %v4533 = vunpack.c.l.b16 %v2395
    %v4534 = vunpack.c.l.b16 %v2398
    %v4535 = vunpack.c.l.b16 %v2402
    %v4536 = vunpack.c.l.b16 %v2405
    %v4537 = vunpack.c.l.b16 %v2409
    %v4538 = vunpack.c.l.b16 %v2412
    %v4539 = vunpack.c.l.b16 %v2416
    %v4540 = vunpack.c.l.b16 %v2419
    %v4541 = vunpack.c.l.b16 %v2423
    %v4542 = vunpack.c.l.b16 %v2426
    %v4543 = vunpack.c.l.b16 %v2430
    %v4544 = vunpack.c.l.b16 %v2433
    %v4545 = vunpack.c.l.b16 %v2437
    %v4546 = vunpack.c.l.b16 %v2440
    %v4547 = vunpack.c.l.b16 %v2444
    %v4548 = vunpack.c.l.b16 %v2447
    %v4549 = vunpack.c.l.b16 %v2451
    %v4550 = vunpack.c.l.b16 %v2454
    %v4551 = vunpack.c.l.b16 %v2458
    %v4552 = vunpack.c.l.b16 %v2461
    %v4553 = vunpack.c.l.b16 %v2465
    %v4554 = vunpack.c.l.b16 %v2468
    %v4555 = vunpack.c.l.b16 %v2472
    %v4556 = vunpack.c.l.b16 %v2475
    %v4557 = vpack.c.b16 %v4494, %v4493
    %v4558 = vpack.c.b16 %v4496, %v4495
    %v4559 = vpack.c.b16 %v4498, %v4497
    %v4560 = vpack.c.b16 %v4500, %v4499
    %v4561 = vpack.c.b16 %v4502, %v4501
    %v4562 = vpack.c.b16 %v4504, %v4503
    %v4563 = vpack.c.b16 %v4506, %v4505
    %v4564 = vpack.c.b16 %v4508, %v4507
    %v4565 = vpack.c.b16 %v4510, %v4509
    %v4566 = vpack.c.b16 %v4512, %v4511
    %v4567 = vpack.c.b16 %v4514, %v4513
    %v4568 = vpack.c.b16 %v4516, %v4515
    %v4569 = vpack.c.b16 %v4518, %v4517
    %v4570 = vpack.c.b16 %v4520, %v4519
    %v4571 = vpack.c.b16 %v4522, %v4521
    %v4572 = vpack.c.b16 %v4524, %v4523
    %v4573 = vpack.c.b16 %v4526, %v4525
    %v4574 = vpack.c.b16 %v4528, %v4527
    %v4575 = vpack.c.b16 %v4530, %v4529
    %v4576 = vpack.c.b16 %v4532, %v4531
    %v4577 = vpack.c.b16 %v4534, %v4533
    %v4578 = vpack.c.b16 %v4536, %v4535
    %v4579 = vpack.c.b16 %v4538, %v4537
    %v4580 = vpack.c.b16 %v4540, %v4539
    %v4581 = vpack.c.b16 %v4542, %v4541
    %v4582 = vpack.c.b16 %v4544, %v4543
    %v4583 = vpack.c.b16 %v4546, %v4545
    %v4584 = vpack.c.b16 %v4548, %v4547
    %v4585 = vpack.c.b16 %v4550, %v4549
    %v4586 = vpack.c.b16 %v4552, %v4551
    %v4587 = vpack.c.b16 %v4554, %v4553
    %v4588 = vpack.c.b16 %v4556, %v4555
    %4589 = vrot.lane.b32.xlu0 %v4557, 20
    %v4590 = vpop.permute.xlu0 %4589
    %4591 = vrot.lane.b32.xlu0 %v4558, 20
    %v4592 = vpop.permute.xlu0 %4591
    %4593 = vrot.lane.b32.xlu0 %v4559, 20
    %v4594 = vpop.permute.xlu0 %4593
    %4595 = vrot.lane.b32.xlu0 %v4560, 20
    %v4596 = vpop.permute.xlu0 %4595
    %4597 = vrot.lane.b32.xlu0 %v4561, 20
    %v4598 = vpop.permute.xlu0 %4597
    %4599 = vrot.lane.b32.xlu0 %v4562, 20
    %v4600 = vpop.permute.xlu0 %4599
    %4601 = vrot.lane.b32.xlu0 %v4563, 20
    %v4602 = vpop.permute.xlu0 %4601
    %4603 = vrot.lane.b32.xlu0 %v4564, 20
    %v4604 = vpop.permute.xlu0 %4603
    %4605 = vrot.lane.b32.xlu0 %v4565, 20
    %v4606 = vpop.permute.xlu0 %4605
    %4607 = vrot.lane.b32.xlu0 %v4566, 20
    %v4608 = vpop.permute.xlu0 %4607
    %4609 = vrot.lane.b32.xlu0 %v4567, 20
    %v4610 = vpop.permute.xlu0 %4609
    %4611 = vrot.lane.b32.xlu0 %v4568, 20
    %v4612 = vpop.permute.xlu0 %4611
    %4613 = vrot.lane.b32.xlu0 %v4569, 20
    %v4614 = vpop.permute.xlu0 %4613
    %4615 = vrot.lane.b32.xlu0 %v4570, 20
    %v4616 = vpop.permute.xlu0 %4615
    %4617 = vrot.lane.b32.xlu0 %v4571, 20
    %v4618 = vpop.permute.xlu0 %4617
    %4619 = vrot.lane.b32.xlu0 %v4572, 20
    %v4620 = vpop.permute.xlu0 %4619
    %4621 = vrot.lane.b32.xlu0 %v4573, 20
    %v4622 = vpop.permute.xlu0 %4621
    %4623 = vrot.lane.b32.xlu0 %v4574, 20
    %v4624 = vpop.permute.xlu0 %4623
    %4625 = vrot.lane.b32.xlu0 %v4575, 20
    %v4626 = vpop.permute.xlu0 %4625
    %4627 = vrot.lane.b32.xlu0 %v4576, 20
    %v4628 = vpop.permute.xlu0 %4627
    %4629 = vrot.lane.b32.xlu0 %v4577, 20
    %v4630 = vpop.permute.xlu0 %4629
    %4631 = vrot.lane.b32.xlu0 %v4578, 20
    %v4632 = vpop.permute.xlu0 %4631
    %4633 = vrot.lane.b32.xlu0 %v4579, 20
    %v4634 = vpop.permute.xlu0 %4633
    %4635 = vrot.lane.b32.xlu0 %v4580, 20
    %v4636 = vpop.permute.xlu0 %4635
    %4637 = vrot.lane.b32.xlu0 %v4581, 20
    %v4638 = vpop.permute.xlu0 %4637
    %4639 = vrot.lane.b32.xlu0 %v4582, 20
    %v4640 = vpop.permute.xlu0 %4639
    %4641 = vrot.lane.b32.xlu0 %v4583, 20
    %v4642 = vpop.permute.xlu0 %4641
    %4643 = vrot.lane.b32.xlu0 %v4584, 20
    %v4644 = vpop.permute.xlu0 %4643
    %4645 = vrot.lane.b32.xlu0 %v4585, 20
    %v4646 = vpop.permute.xlu0 %4645
    %4647 = vrot.lane.b32.xlu0 %v4586, 20
    %v4648 = vpop.permute.xlu0 %4647
    %4649 = vrot.lane.b32.xlu0 %v4587, 20
    %v4650 = vpop.permute.xlu0 %4649
    %4651 = vrot.lane.b32.xlu0 %v4588, 20
    %v4652 = vpop.permute.xlu0 %4651
    %v4685 = vunpack.c.l.b16 %v2477
    %v4686 = vunpack.c.l.b16 %v2478
    %v4687 = vunpack.c.l.b16 %v2479
    %v4688 = vunpack.c.l.b16 %v2480
    %v4689 = vunpack.c.l.b16 %v2481
    %v4690 = vunpack.c.l.b16 %v2482
    %v4691 = vunpack.c.l.b16 %v2483
    %v4692 = vunpack.c.l.b16 %v2484
    %v4693 = vunpack.c.l.b16 %v2485
    %v4694 = vunpack.c.l.b16 %v2486
    %v4695 = vunpack.c.l.b16 %v2487
    %v4696 = vunpack.c.l.b16 %v2488
    %v4697 = vunpack.c.l.b16 %v2489
    %v4698 = vunpack.c.l.b16 %v2490
    %v4699 = vunpack.c.l.b16 %v2491
    %v4700 = vunpack.c.l.b16 %v2492
    %v4701 = vunpack.c.l.b16 %v2493
    %v4702 = vunpack.c.l.b16 %v2494
    %v4703 = vunpack.c.l.b16 %v2495
    %v4704 = vunpack.c.l.b16 %v2496
    %v4705 = vunpack.c.l.b16 %v2497
    %v4706 = vunpack.c.l.b16 %v2498
    %v4707 = vunpack.c.l.b16 %v2499
    %v4708 = vunpack.c.l.b16 %v2500
    %v4709 = vunpack.c.l.b16 %v2501
    %v4710 = vunpack.c.l.b16 %v2502
    %v4711 = vunpack.c.l.b16 %v2503
    %v4712 = vunpack.c.l.b16 %v2504
    %v4713 = vunpack.c.l.b16 %v2505
    %v4714 = vunpack.c.l.b16 %v2506
    %v4715 = vunpack.c.l.b16 %v2507
    %v4716 = vunpack.c.l.b16 %v2508
    %v4717 = vunpack.c.l.b16 %v2509
    %v4718 = vunpack.c.l.b16 %v2510
    %v4719 = vunpack.c.l.b16 %v2511
    %v4720 = vunpack.c.l.b16 %v2512
    %v4721 = vunpack.c.l.b16 %v2513
    %v4722 = vunpack.c.l.b16 %v2514
    %v4723 = vunpack.c.l.b16 %v2515
    %v4724 = vunpack.c.l.b16 %v2516
    %v4725 = vunpack.c.l.b16 %v2517
    %v4726 = vunpack.c.l.b16 %v2518
    %v4727 = vunpack.c.l.b16 %v2519
    %v4728 = vunpack.c.l.b16 %v2520
    %v4729 = vunpack.c.l.b16 %v2521
    %v4730 = vunpack.c.l.b16 %v2522
    %v4731 = vunpack.c.l.b16 %v2523
    %v4732 = vunpack.c.l.b16 %v2524
    %v4733 = vunpack.c.l.b16 %v2525
    %v4734 = vunpack.c.l.b16 %v2526
    %v4735 = vunpack.c.l.b16 %v2527
    %v4736 = vunpack.c.l.b16 %v2528
    %v4737 = vunpack.c.l.b16 %v2529
    %v4738 = vunpack.c.l.b16 %v2530
    %v4739 = vunpack.c.l.b16 %v2531
    %v4740 = vunpack.c.l.b16 %v2532
    %v4741 = vunpack.c.l.b16 %v2533
    %v4742 = vunpack.c.l.b16 %v2534
    %v4743 = vunpack.c.l.b16 %v2535
    %v4744 = vunpack.c.l.b16 %v2536
    %v4745 = vunpack.c.l.b16 %v2537
    %v4746 = vunpack.c.l.b16 %v2538
    %v4747 = vunpack.c.l.b16 %v2539
    %v4748 = vunpack.c.l.b16 %v2540
    %v4749 = vpack.c.b16 %v4686, %v4685
    %v4750 = vpack.c.b16 %v4688, %v4687
    %v4751 = vpack.c.b16 %v4690, %v4689
    %v4752 = vpack.c.b16 %v4692, %v4691
    %v4753 = vpack.c.b16 %v4694, %v4693
    %v4754 = vpack.c.b16 %v4696, %v4695
    %v4755 = vpack.c.b16 %v4698, %v4697
    %v4756 = vpack.c.b16 %v4700, %v4699
    %v4757 = vpack.c.b16 %v4702, %v4701
    %v4758 = vpack.c.b16 %v4704, %v4703
    %v4759 = vpack.c.b16 %v4706, %v4705
    %v4760 = vpack.c.b16 %v4708, %v4707
    %v4761 = vpack.c.b16 %v4710, %v4709
    %v4762 = vpack.c.b16 %v4712, %v4711
    %v4763 = vpack.c.b16 %v4714, %v4713
    %v4764 = vpack.c.b16 %v4716, %v4715
    %v4765 = vpack.c.b16 %v4718, %v4717
    %v4766 = vpack.c.b16 %v4720, %v4719
    %v4767 = vpack.c.b16 %v4722, %v4721
    %v4768 = vpack.c.b16 %v4724, %v4723
    %v4769 = vpack.c.b16 %v4726, %v4725
    %v4770 = vpack.c.b16 %v4728, %v4727
    %v4771 = vpack.c.b16 %v4730, %v4729
    %v4772 = vpack.c.b16 %v4732, %v4731
    %v4773 = vpack.c.b16 %v4734, %v4733
    %v4774 = vpack.c.b16 %v4736, %v4735
    %v4775 = vpack.c.b16 %v4738, %v4737
    %v4776 = vpack.c.b16 %v4740, %v4739
    %v4777 = vpack.c.b16 %v4742, %v4741
    %v4778 = vpack.c.b16 %v4744, %v4743
    %v4779 = vpack.c.b16 %v4746, %v4745
    %v4780 = vpack.c.b16 %v4748, %v4747
    %4781 = vrot.lane.b32.xlu0 %v4749, 24
    %v4782 = vpop.permute.xlu0 %4781
    %4783 = vrot.lane.b32.xlu0 %v4750, 24
    %v4784 = vpop.permute.xlu0 %4783
    %4785 = vrot.lane.b32.xlu0 %v4751, 24
    %v4786 = vpop.permute.xlu0 %4785
    %4787 = vrot.lane.b32.xlu0 %v4752, 24
    %v4788 = vpop.permute.xlu0 %4787
    %4789 = vrot.lane.b32.xlu0 %v4753, 24
    %v4790 = vpop.permute.xlu0 %4789
    %4791 = vrot.lane.b32.xlu0 %v4754, 24
    %v4792 = vpop.permute.xlu0 %4791
    %4793 = vrot.lane.b32.xlu0 %v4755, 24
    %v4794 = vpop.permute.xlu0 %4793
    %4795 = vrot.lane.b32.xlu0 %v4756, 24
    %v4796 = vpop.permute.xlu0 %4795
    %4797 = vrot.lane.b32.xlu0 %v4757, 24
    %v4798 = vpop.permute.xlu0 %4797
    %4799 = vrot.lane.b32.xlu0 %v4758, 24
    %v4800 = vpop.permute.xlu0 %4799
    %4801 = vrot.lane.b32.xlu0 %v4759, 24
    %v4802 = vpop.permute.xlu0 %4801
    %4803 = vrot.lane.b32.xlu0 %v4760, 24
    %v4804 = vpop.permute.xlu0 %4803
    %4805 = vrot.lane.b32.xlu0 %v4761, 24
    %v4806 = vpop.permute.xlu0 %4805
    %4807 = vrot.lane.b32.xlu0 %v4762, 24
    %v4808 = vpop.permute.xlu0 %4807
    %4809 = vrot.lane.b32.xlu0 %v4763, 24
    %v4810 = vpop.permute.xlu0 %4809
    %4811 = vrot.lane.b32.xlu0 %v4764, 24
    %v4812 = vpop.permute.xlu0 %4811
    %4813 = vrot.lane.b32.xlu0 %v4765, 24
    %v4814 = vpop.permute.xlu0 %4813
    %4815 = vrot.lane.b32.xlu0 %v4766, 24
    %v4816 = vpop.permute.xlu0 %4815
    %4817 = vrot.lane.b32.xlu0 %v4767, 24
    %v4818 = vpop.permute.xlu0 %4817
    %4819 = vrot.lane.b32.xlu0 %v4768, 24
    %v4820 = vpop.permute.xlu0 %4819
    %4821 = vrot.lane.b32.xlu0 %v4769, 24
    %v4822 = vpop.permute.xlu0 %4821
    %4823 = vrot.lane.b32.xlu0 %v4770, 24
    %v4824 = vpop.permute.xlu0 %4823
    %4825 = vrot.lane.b32.xlu0 %v4771, 24
    %v4826 = vpop.permute.xlu0 %4825
    %4827 = vrot.lane.b32.xlu0 %v4772, 24
    %v4828 = vpop.permute.xlu0 %4827
    %4829 = vrot.lane.b32.xlu0 %v4773, 24
    %v4830 = vpop.permute.xlu0 %4829
    %4831 = vrot.lane.b32.xlu0 %v4774, 24
    %v4832 = vpop.permute.xlu0 %4831
    %4833 = vrot.lane.b32.xlu0 %v4775, 24
    %v4834 = vpop.permute.xlu0 %4833
    %4835 = vrot.lane.b32.xlu0 %v4776, 24
    %v4836 = vpop.permute.xlu0 %4835
    %4837 = vrot.lane.b32.xlu0 %v4777, 24
    %v4838 = vpop.permute.xlu0 %4837
    %4839 = vrot.lane.b32.xlu0 %v4778, 24
    %v4840 = vpop.permute.xlu0 %4839
    %4841 = vrot.lane.b32.xlu0 %v4779, 24
    %v4842 = vpop.permute.xlu0 %4841
    %4843 = vrot.lane.b32.xlu0 %v4780, 24
    %v4844 = vpop.permute.xlu0 %4843
    %v4845 = vunpack.c.l.b16 %v2586
    %v4846 = vunpack.c.l.b16 %v2596
    %v4847 = vunpack.c.l.b16 %v2610
    %v4848 = vunpack.c.l.b16 %v2620
    %v4849 = vunpack.c.l.b16 %v2634
    %v4850 = vunpack.c.l.b16 %v2644
    %v4851 = vunpack.c.l.b16 %v2658
    %v4852 = vunpack.c.l.b16 %v2668
    %v4853 = vunpack.c.l.b16 %v2682
    %v4854 = vunpack.c.l.b16 %v2692
    %v4855 = vunpack.c.l.b16 %v2706
    %v4856 = vunpack.c.l.b16 %v2716
    %v4857 = vunpack.c.l.b16 %v2730
    %v4858 = vunpack.c.l.b16 %v2740
    %v4859 = vunpack.c.l.b16 %v2754
    %v4860 = vunpack.c.l.b16 %v2764
    %v4861 = vunpack.c.l.b16 %v2778
    %v4862 = vunpack.c.l.b16 %v2788
    %v4863 = vunpack.c.l.b16 %v2802
    %v4864 = vunpack.c.l.b16 %v2812
    %v4865 = vunpack.c.l.b16 %v2826
    %v4866 = vunpack.c.l.b16 %v2836
    %v4867 = vunpack.c.l.b16 %v2850
    %v4868 = vunpack.c.l.b16 %v2860
    %v4869 = vunpack.c.l.b16 %v2874
    %v4870 = vunpack.c.l.b16 %v2884
    %v4871 = vunpack.c.l.b16 %v2898
    %v4872 = vunpack.c.l.b16 %v2908
    %v4873 = vunpack.c.l.b16 %v2922
    %v4874 = vunpack.c.l.b16 %v2932
    %v4875 = vunpack.c.l.b16 %v2946
    %v4876 = vunpack.c.l.b16 %v2956
    %v4877 = vunpack.c.l.b16 %v2970
    %v4878 = vunpack.c.l.b16 %v2980
    %v4879 = vunpack.c.l.b16 %v2994
    %v4880 = vunpack.c.l.b16 %v3004
    %v4881 = vunpack.c.l.b16 %v3018
    %v4882 = vunpack.c.l.b16 %v3028
    %v4883 = vunpack.c.l.b16 %v3042
    %v4884 = vunpack.c.l.b16 %v3052
    %v4885 = vunpack.c.l.b16 %v3066
    %v4886 = vunpack.c.l.b16 %v3076
    %v4887 = vunpack.c.l.b16 %v3090
    %v4888 = vunpack.c.l.b16 %v3100
    %v4889 = vunpack.c.l.b16 %v3114
    %v4890 = vunpack.c.l.b16 %v3124
    %v4891 = vunpack.c.l.b16 %v3138
    %v4892 = vunpack.c.l.b16 %v3148
    %v4893 = vunpack.c.l.b16 %v3162
    %v4894 = vunpack.c.l.b16 %v3172
    %v4895 = vunpack.c.l.b16 %v3186
    %v4896 = vunpack.c.l.b16 %v3196
    %v4897 = vunpack.c.l.b16 %v3210
    %v4898 = vunpack.c.l.b16 %v3220
    %v4899 = vunpack.c.l.b16 %v3234
    %v4900 = vunpack.c.l.b16 %v3244
    %v4901 = vunpack.c.l.b16 %v3258
    %v4902 = vunpack.c.l.b16 %v3268
    %v4903 = vunpack.c.l.b16 %v3282
    %v4904 = vunpack.c.l.b16 %v3292
    %v4905 = vunpack.c.l.b16 %v3306
    %v4906 = vunpack.c.l.b16 %v3316
    %v4907 = vunpack.c.l.b16 %v3330
    %v4908 = vunpack.c.l.b16 %v3340
    %v4909 = vpack.c.b16 %v4846, %v4845
    %v4910 = vpack.c.b16 %v4848, %v4847
    %v4911 = vpack.c.b16 %v4850, %v4849
    %v4912 = vpack.c.b16 %v4852, %v4851
    %v4913 = vpack.c.b16 %v4854, %v4853
    %v4914 = vpack.c.b16 %v4856, %v4855
    %v4915 = vpack.c.b16 %v4858, %v4857
    %v4916 = vpack.c.b16 %v4860, %v4859
    %v4917 = vpack.c.b16 %v4862, %v4861
    %v4918 = vpack.c.b16 %v4864, %v4863
    %v4919 = vpack.c.b16 %v4866, %v4865
    %v4920 = vpack.c.b16 %v4868, %v4867
    %v4921 = vpack.c.b16 %v4870, %v4869
    %v4922 = vpack.c.b16 %v4872, %v4871
    %v4923 = vpack.c.b16 %v4874, %v4873
    %v4924 = vpack.c.b16 %v4876, %v4875
    %v4925 = vpack.c.b16 %v4878, %v4877
    %v4926 = vpack.c.b16 %v4880, %v4879
    %v4927 = vpack.c.b16 %v4882, %v4881
    %v4928 = vpack.c.b16 %v4884, %v4883
    %v4929 = vpack.c.b16 %v4886, %v4885
    %v4930 = vpack.c.b16 %v4888, %v4887
    %v4931 = vpack.c.b16 %v4890, %v4889
    %v4932 = vpack.c.b16 %v4892, %v4891
    %v4933 = vpack.c.b16 %v4894, %v4893
    %v4934 = vpack.c.b16 %v4896, %v4895
    %v4935 = vpack.c.b16 %v4898, %v4897
    %v4936 = vpack.c.b16 %v4900, %v4899
    %v4937 = vpack.c.b16 %v4902, %v4901
    %v4938 = vpack.c.b16 %v4904, %v4903
    %v4939 = vpack.c.b16 %v4906, %v4905
    %v4940 = vpack.c.b16 %v4908, %v4907
    %4941 = vrot.lane.b32.xlu0 %v4909, 28
    %v4942 = vpop.permute.xlu0 %4941
    %4943 = vrot.lane.b32.xlu0 %v4910, 28
    %v4944 = vpop.permute.xlu0 %4943
    %4945 = vrot.lane.b32.xlu0 %v4911, 28
    %v4946 = vpop.permute.xlu0 %4945
    %4947 = vrot.lane.b32.xlu0 %v4912, 28
    %v4948 = vpop.permute.xlu0 %4947
    %4949 = vrot.lane.b32.xlu0 %v4913, 28
    %v4950 = vpop.permute.xlu0 %4949
    %4951 = vrot.lane.b32.xlu0 %v4914, 28
    %v4952 = vpop.permute.xlu0 %4951
    %4953 = vrot.lane.b32.xlu0 %v4915, 28
    %v4954 = vpop.permute.xlu0 %4953
    %4955 = vrot.lane.b32.xlu0 %v4916, 28
    %v4956 = vpop.permute.xlu0 %4955
    %4957 = vrot.lane.b32.xlu0 %v4917, 28
    %v4958 = vpop.permute.xlu0 %4957
    %4959 = vrot.lane.b32.xlu0 %v4918, 28
    %v4960 = vpop.permute.xlu0 %4959
    %4961 = vrot.lane.b32.xlu0 %v4919, 28
    %v4962 = vpop.permute.xlu0 %4961
    %4963 = vrot.lane.b32.xlu0 %v4920, 28
    %v4964 = vpop.permute.xlu0 %4963
    %4965 = vrot.lane.b32.xlu0 %v4921, 28
    %v4966 = vpop.permute.xlu0 %4965
    %4967 = vrot.lane.b32.xlu0 %v4922, 28
    %v4968 = vpop.permute.xlu0 %4967
    %4969 = vrot.lane.b32.xlu0 %v4923, 28
    %v4970 = vpop.permute.xlu0 %4969
    %4971 = vrot.lane.b32.xlu0 %v4924, 28
    %v4972 = vpop.permute.xlu0 %4971
    %4973 = vrot.lane.b32.xlu0 %v4925, 28
    %v4974 = vpop.permute.xlu0 %4973
    %4975 = vrot.lane.b32.xlu0 %v4926, 28
    %v4976 = vpop.permute.xlu0 %4975
    %4977 = vrot.lane.b32.xlu0 %v4927, 28
    %v4978 = vpop.permute.xlu0 %4977
    %4979 = vrot.lane.b32.xlu0 %v4928, 28
    %v4980 = vpop.permute.xlu0 %4979
    %4981 = vrot.lane.b32.xlu0 %v4929, 28
    %v4982 = vpop.permute.xlu0 %4981
    %4983 = vrot.lane.b32.xlu0 %v4930, 28
    %v4984 = vpop.permute.xlu0 %4983
    %4985 = vrot.lane.b32.xlu0 %v4931, 28
    %v4986 = vpop.permute.xlu0 %4985
    %4987 = vrot.lane.b32.xlu0 %v4932, 28
    %v4988 = vpop.permute.xlu0 %4987
    %4989 = vrot.lane.b32.xlu0 %v4933, 28
    %v4990 = vpop.permute.xlu0 %4989
    %4991 = vrot.lane.b32.xlu0 %v4934, 28
    %v4992 = vpop.permute.xlu0 %4991
    %4993 = vrot.lane.b32.xlu0 %v4935, 28
    %v4994 = vpop.permute.xlu0 %4993
    %4995 = vrot.lane.b32.xlu0 %v4936, 28
    %v4996 = vpop.permute.xlu0 %4995
    %4997 = vrot.lane.b32.xlu0 %v4937, 28
    %v4998 = vpop.permute.xlu0 %4997
    %4999 = vrot.lane.b32.xlu0 %v4938, 28
    %v5000 = vpop.permute.xlu0 %4999
    %5001 = vrot.lane.b32.xlu0 %v4939, 28
    %v5002 = vpop.permute.xlu0 %5001
    %5003 = vrot.lane.b32.xlu0 %v4940, 28
    %v5004 = vpop.permute.xlu0 %5003
    %v5005 = vunpack.c.l.b16 %v3472
    %v5006 = vunpack.c.l.b16 %v3475
    %v5007 = vunpack.c.l.b16 %v3479
    %v5008 = vunpack.c.l.b16 %v3482
    %v5009 = vunpack.c.l.b16 %v3486
    %v5010 = vunpack.c.l.b16 %v3489
    %v5011 = vunpack.c.l.b16 %v3493
    %v5012 = vunpack.c.l.b16 %v3496
    %v5013 = vunpack.c.l.b16 %v3500
    %v5014 = vunpack.c.l.b16 %v3503
    %v5015 = vunpack.c.l.b16 %v3507
    %v5016 = vunpack.c.l.b16 %v3510
    %v5017 = vunpack.c.l.b16 %v3514
    %v5018 = vunpack.c.l.b16 %v3517
    %v5019 = vunpack.c.l.b16 %v3521
    %v5020 = vunpack.c.l.b16 %v3524
    %v5021 = vunpack.c.l.b16 %v3528
    %v5022 = vunpack.c.l.b16 %v3531
    %v5023 = vunpack.c.l.b16 %v3535
    %v5024 = vunpack.c.l.b16 %v3538
    %v5025 = vunpack.c.l.b16 %v3542
    %v5026 = vunpack.c.l.b16 %v3545
    %v5027 = vunpack.c.l.b16 %v3549
    %v5028 = vunpack.c.l.b16 %v3552
    %v5029 = vunpack.c.l.b16 %v3556
    %v5030 = vunpack.c.l.b16 %v3559
    %v5031 = vunpack.c.l.b16 %v3563
    %v5032 = vunpack.c.l.b16 %v3566
    %v5033 = vunpack.c.l.b16 %v3570
    %v5034 = vunpack.c.l.b16 %v3573
    %v5035 = vunpack.c.l.b16 %v3577
    %v5036 = vunpack.c.l.b16 %v3580
    %v5037 = vunpack.c.l.b16 %v3584
    %v5038 = vunpack.c.l.b16 %v3587
    %v5039 = vunpack.c.l.b16 %v3591
    %v5040 = vunpack.c.l.b16 %v3594
    %v5041 = vunpack.c.l.b16 %v3598
    %v5042 = vunpack.c.l.b16 %v3601
    %v5043 = vunpack.c.l.b16 %v3605
    %v5044 = vunpack.c.l.b16 %v3608
    %v5045 = vunpack.c.l.b16 %v3612
    %v5046 = vunpack.c.l.b16 %v3615
    %v5047 = vunpack.c.l.b16 %v3619
    %v5048 = vunpack.c.l.b16 %v3622
    %v5049 = vunpack.c.l.b16 %v3626
    %v5050 = vunpack.c.l.b16 %v3629
    %v5051 = vunpack.c.l.b16 %v3633
    %v5052 = vunpack.c.l.b16 %v3636
    %v5053 = vunpack.c.l.b16 %v3640
    %v5054 = vunpack.c.l.b16 %v3643
    %v5055 = vunpack.c.l.b16 %v3647
    %v5056 = vunpack.c.l.b16 %v3650
    %v5057 = vunpack.c.l.b16 %v3654
    %v5058 = vunpack.c.l.b16 %v3657
    %v5059 = vunpack.c.l.b16 %v3661
    %v5060 = vunpack.c.l.b16 %v3664
    %v5061 = vunpack.c.l.b16 %v3668
    %v5062 = vunpack.c.l.b16 %v3671
    %v5063 = vunpack.c.l.b16 %v3675
    %v5064 = vunpack.c.l.b16 %v3678
    %v5065 = vunpack.c.l.b16 %v3682
    %v5066 = vunpack.c.l.b16 %v3685
    %v5067 = vunpack.c.l.b16 %v3689
    %v5068 = vunpack.c.l.b16 %v3692
    %v5069 = vpack.c.b16 %v5006, %v5005
    %v5070 = vpack.c.b16 %v5008, %v5007
    %v5071 = vpack.c.b16 %v5010, %v5009
    %v5072 = vpack.c.b16 %v5012, %v5011
    %v5073 = vpack.c.b16 %v5014, %v5013
    %v5074 = vpack.c.b16 %v5016, %v5015
    %v5075 = vpack.c.b16 %v5018, %v5017
    %v5076 = vpack.c.b16 %v5020, %v5019
    %v5077 = vpack.c.b16 %v5022, %v5021
    %v5078 = vpack.c.b16 %v5024, %v5023
    %v5079 = vpack.c.b16 %v5026, %v5025
    %v5080 = vpack.c.b16 %v5028, %v5027
    %v5081 = vpack.c.b16 %v5030, %v5029
    %v5082 = vpack.c.b16 %v5032, %v5031
    %v5083 = vpack.c.b16 %v5034, %v5033
    %v5084 = vpack.c.b16 %v5036, %v5035
    %v5085 = vpack.c.b16 %v5038, %v5037
    %v5086 = vpack.c.b16 %v5040, %v5039
    %v5087 = vpack.c.b16 %v5042, %v5041
    %v5088 = vpack.c.b16 %v5044, %v5043
    %v5089 = vpack.c.b16 %v5046, %v5045
    %v5090 = vpack.c.b16 %v5048, %v5047
    %v5091 = vpack.c.b16 %v5050, %v5049
    %v5092 = vpack.c.b16 %v5052, %v5051
    %v5093 = vpack.c.b16 %v5054, %v5053
    %v5094 = vpack.c.b16 %v5056, %v5055
    %v5095 = vpack.c.b16 %v5058, %v5057
    %v5096 = vpack.c.b16 %v5060, %v5059
    %v5097 = vpack.c.b16 %v5062, %v5061
    %v5098 = vpack.c.b16 %v5064, %v5063
    %v5099 = vpack.c.b16 %v5066, %v5065
    %v5100 = vpack.c.b16 %v5068, %v5067
    %5101 = vrot.lane.b32.xlu0 %v5069, 32
    %v5102 = vpop.permute.xlu0 %5101
    %5103 = vrot.lane.b32.xlu0 %v5070, 32
    %v5104 = vpop.permute.xlu0 %5103
    %5105 = vrot.lane.b32.xlu0 %v5071, 32
    %v5106 = vpop.permute.xlu0 %5105
    %5107 = vrot.lane.b32.xlu0 %v5072, 32
    %v5108 = vpop.permute.xlu0 %5107
    %5109 = vrot.lane.b32.xlu0 %v5073, 32
    %v5110 = vpop.permute.xlu0 %5109
    %5111 = vrot.lane.b32.xlu0 %v5074, 32
    %v5112 = vpop.permute.xlu0 %5111
    %5113 = vrot.lane.b32.xlu0 %v5075, 32
    %v5114 = vpop.permute.xlu0 %5113
    %5115 = vrot.lane.b32.xlu0 %v5076, 32
    %v5116 = vpop.permute.xlu0 %5115
    %5117 = vrot.lane.b32.xlu0 %v5077, 32
    %v5118 = vpop.permute.xlu0 %5117
    %5119 = vrot.lane.b32.xlu0 %v5078, 32
    %v5120 = vpop.permute.xlu0 %5119
    %5121 = vrot.lane.b32.xlu0 %v5079, 32
    %v5122 = vpop.permute.xlu0 %5121
    %5123 = vrot.lane.b32.xlu0 %v5080, 32
    %v5124 = vpop.permute.xlu0 %5123
    %5125 = vrot.lane.b32.xlu0 %v5081, 32
    %v5126 = vpop.permute.xlu0 %5125
    %5127 = vrot.lane.b32.xlu0 %v5082, 32
    %v5128 = vpop.permute.xlu0 %5127
    %5129 = vrot.lane.b32.xlu0 %v5083, 32
    %v5130 = vpop.permute.xlu0 %5129
    %5131 = vrot.lane.b32.xlu0 %v5084, 32
    %v5132 = vpop.permute.xlu0 %5131
    %5133 = vrot.lane.b32.xlu0 %v5085, 32
    %v5134 = vpop.permute.xlu0 %5133
    %5135 = vrot.lane.b32.xlu0 %v5086, 32
    %v5136 = vpop.permute.xlu0 %5135
    %5137 = vrot.lane.b32.xlu0 %v5087, 32
    %v5138 = vpop.permute.xlu0 %5137
    %5139 = vrot.lane.b32.xlu0 %v5088, 32
    %v5140 = vpop.permute.xlu0 %5139
    %5141 = vrot.lane.b32.xlu0 %v5089, 32
    %v5142 = vpop.permute.xlu0 %5141
    %5143 = vrot.lane.b32.xlu0 %v5090, 32
    %v5144 = vpop.permute.xlu0 %5143
    %5145 = vrot.lane.b32.xlu0 %v5091, 32
    %v5146 = vpop.permute.xlu0 %5145
    %5147 = vrot.lane.b32.xlu0 %v5092, 32
    %v5148 = vpop.permute.xlu0 %5147
    %5149 = vrot.lane.b32.xlu0 %v5093, 32
    %v5150 = vpop.permute.xlu0 %5149
    %5151 = vrot.lane.b32.xlu0 %v5094, 32
    %v5152 = vpop.permute.xlu0 %5151
    %5153 = vrot.lane.b32.xlu0 %v5095, 32
    %v5154 = vpop.permute.xlu0 %5153
    %5155 = vrot.lane.b32.xlu0 %v5096, 32
    %v5156 = vpop.permute.xlu0 %5155
    %5157 = vrot.lane.b32.xlu0 %v5097, 32
    %v5158 = vpop.permute.xlu0 %5157
    %5159 = vrot.lane.b32.xlu0 %v5098, 32
    %v5160 = vpop.permute.xlu0 %5159
    %5161 = vrot.lane.b32.xlu0 %v5099, 32
    %v5162 = vpop.permute.xlu0 %5161
    %5163 = vrot.lane.b32.xlu0 %v5100, 32
    %v5164 = vpop.permute.xlu0 %5163
    %vm5165 = vcmask 31744
    %v5168 = vsel %vm5165, %v3789, %v3918
    %v5171 = vsel %vm5165, %v3790, %v3920
    %v5174 = vsel %vm5165, %v3791, %v3922
    %v5177 = vsel %vm5165, %v3792, %v3924
    %v5180 = vsel %vm5165, %v3793, %v3926
    %v5183 = vsel %vm5165, %v3794, %v3928
    %v5186 = vsel %vm5165, %v3795, %v3930
    %v5189 = vsel %vm5165, %v3796, %v3932
    %v5192 = vsel %vm5165, %v3797, %v3934
    %v5195 = vsel %vm5165, %v3798, %v3936
    %v5198 = vsel %vm5165, %v3799, %v3938
    %v5201 = vsel %vm5165, %v3800, %v3940
    %v5204 = vsel %vm5165, %v3801, %v3942
    %v5207 = vsel %vm5165, %v3802, %v3944
    %v5210 = vsel %vm5165, %v3803, %v3946
    %v5213 = vsel %vm5165, %v3804, %v3948
    %v5216 = vsel %vm5165, %v3805, %v3950
    %v5219 = vsel %vm5165, %v3806, %v3952
    %v5222 = vsel %vm5165, %v3807, %v3954
    %v5225 = vsel %vm5165, %v3808, %v3956
    %v5228 = vsel %vm5165, %v3809, %v3958
    %v5231 = vsel %vm5165, %v3810, %v3960
    %v5234 = vsel %vm5165, %v3811, %v3962
    %v5237 = vsel %vm5165, %v3812, %v3964
    %v5240 = vsel %vm5165, %v3813, %v3966
    %v5243 = vsel %vm5165, %v3814, %v3968
    %v5246 = vsel %vm5165, %v3815, %v3970
    %v5249 = vsel %vm5165, %v3816, %v3972
    %v5252 = vsel %vm5165, %v3817, %v3974
    %v5255 = vsel %vm5165, %v3818, %v3976
    %v5258 = vsel %vm5165, %v3819, %v3978
    %v5261 = vsel %vm5165, %v3820, %v3980
    %vm5262 = vcmask 64512
    %v5264 = vsel %vm5262, %v5168, %v4078
    %v5266 = vsel %vm5262, %v5171, %v4080
    %v5268 = vsel %vm5262, %v5174, %v4082
    %v5270 = vsel %vm5262, %v5177, %v4084
    %v5272 = vsel %vm5262, %v5180, %v4086
    %v5274 = vsel %vm5262, %v5183, %v4088
    %v5276 = vsel %vm5262, %v5186, %v4090
    %v5278 = vsel %vm5262, %v5189, %v4092
    %v5280 = vsel %vm5262, %v5192, %v4094
    %v5282 = vsel %vm5262, %v5195, %v4096
    %v5284 = vsel %vm5262, %v5198, %v4098
    %v5286 = vsel %vm5262, %v5201, %v4100
    %v5288 = vsel %vm5262, %v5204, %v4102
    %v5290 = vsel %vm5262, %v5207, %v4104
    %v5292 = vsel %vm5262, %v5210, %v4106
    %v5294 = vsel %vm5262, %v5213, %v4108
    %v5296 = vsel %vm5262, %v5216, %v4110
    %v5298 = vsel %vm5262, %v5219, %v4112
    %v5300 = vsel %vm5262, %v5222, %v4114
    %v5302 = vsel %vm5262, %v5225, %v4116
    %v5304 = vsel %vm5262, %v5228, %v4118
    %v5306 = vsel %vm5262, %v5231, %v4120
    %v5308 = vsel %vm5262, %v5234, %v4122
    %v5310 = vsel %vm5262, %v5237, %v4124
    %v5312 = vsel %vm5262, %v5240, %v4126
    %v5314 = vsel %vm5262, %v5243, %v4128
    %v5316 = vsel %vm5262, %v5246, %v4130
    %v5318 = vsel %vm5262, %v5249, %v4132
    %v5320 = vsel %vm5262, %v5252, %v4134
    %v5322 = vsel %vm5262, %v5255, %v4136
    %v5324 = vsel %vm5262, %v5258, %v4138
    %v5326 = vsel %vm5262, %v5261, %v4140
    %vm5327 = vcmask 97280
    %v5329 = vsel %vm5327, %v5264, %v4270
    %v5331 = vsel %vm5327, %v5266, %v4272
    %v5333 = vsel %vm5327, %v5268, %v4274
    %v5335 = vsel %vm5327, %v5270, %v4276
    %v5337 = vsel %vm5327, %v5272, %v4278
    %v5339 = vsel %vm5327, %v5274, %v4280
    %v5341 = vsel %vm5327, %v5276, %v4282
    %v5343 = vsel %vm5327, %v5278, %v4284
    %v5345 = vsel %vm5327, %v5280, %v4286
    %v5347 = vsel %vm5327, %v5282, %v4288
    %v5349 = vsel %vm5327, %v5284, %v4290
    %v5351 = vsel %vm5327, %v5286, %v4292
    %v5353 = vsel %vm5327, %v5288, %v4294
    %v5355 = vsel %vm5327, %v5290, %v4296
    %v5357 = vsel %vm5327, %v5292, %v4298
    %v5359 = vsel %vm5327, %v5294, %v4300
    %v5361 = vsel %vm5327, %v5296, %v4302
    %v5363 = vsel %vm5327, %v5298, %v4304
    %v5365 = vsel %vm5327, %v5300, %v4306
    %v5367 = vsel %vm5327, %v5302, %v4308
    %v5369 = vsel %vm5327, %v5304, %v4310
    %v5371 = vsel %vm5327, %v5306, %v4312
    %v5373 = vsel %vm5327, %v5308, %v4314
    %v5375 = vsel %vm5327, %v5310, %v4316
    %v5377 = vsel %vm5327, %v5312, %v4318
    %v5379 = vsel %vm5327, %v5314, %v4320
    %v5381 = vsel %vm5327, %v5316, %v4322
    %v5383 = vsel %vm5327, %v5318, %v4324
    %v5385 = vsel %vm5327, %v5320, %v4326
    %v5387 = vsel %vm5327, %v5322, %v4328
    %v5389 = vsel %vm5327, %v5324, %v4330
    %v5391 = vsel %vm5327, %v5326, %v4332
    %vm5392 = vcmask 130048
    %v5394 = vsel %vm5392, %v5329, %v4430
    %v5396 = vsel %vm5392, %v5331, %v4432
    %v5398 = vsel %vm5392, %v5333, %v4434
    %v5400 = vsel %vm5392, %v5335, %v4436
    %v5402 = vsel %vm5392, %v5337, %v4438
    %v5404 = vsel %vm5392, %v5339, %v4440
    %v5406 = vsel %vm5392, %v5341, %v4442
    %v5408 = vsel %vm5392, %v5343, %v4444
    %v5410 = vsel %vm5392, %v5345, %v4446
    %v5412 = vsel %vm5392, %v5347, %v4448
    %v5414 = vsel %vm5392, %v5349, %v4450
    %v5416 = vsel %vm5392, %v5351, %v4452
    %v5418 = vsel %vm5392, %v5353, %v4454
    %v5420 = vsel %vm5392, %v5355, %v4456
    %v5422 = vsel %vm5392, %v5357, %v4458
    %v5424 = vsel %vm5392, %v5359, %v4460
    %v5426 = vsel %vm5392, %v5361, %v4462
    %v5428 = vsel %vm5392, %v5363, %v4464
    %v5430 = vsel %vm5392, %v5365, %v4466
    %v5432 = vsel %vm5392, %v5367, %v4468
    %v5434 = vsel %vm5392, %v5369, %v4470
    %v5436 = vsel %vm5392, %v5371, %v4472
    %v5438 = vsel %vm5392, %v5373, %v4474
    %v5440 = vsel %vm5392, %v5375, %v4476
    %v5442 = vsel %vm5392, %v5377, %v4478
    %v5444 = vsel %vm5392, %v5379, %v4480
    %v5446 = vsel %vm5392, %v5381, %v4482
    %v5448 = vsel %vm5392, %v5383, %v4484
    %v5450 = vsel %vm5392, %v5385, %v4486
    %v5452 = vsel %vm5392, %v5387, %v4488
    %v5454 = vsel %vm5392, %v5389, %v4490
    %v5456 = vsel %vm5392, %v5391, %v4492
    %vm5457 = vcmask 162816
    %v5459 = vsel %vm5457, %v5394, %v4590
    %v5461 = vsel %vm5457, %v5396, %v4592
    %v5463 = vsel %vm5457, %v5398, %v4594
    %v5465 = vsel %vm5457, %v5400, %v4596
    %v5467 = vsel %vm5457, %v5402, %v4598
    %v5469 = vsel %vm5457, %v5404, %v4600
    %v5471 = vsel %vm5457, %v5406, %v4602
    %v5473 = vsel %vm5457, %v5408, %v4604
    %v5475 = vsel %vm5457, %v5410, %v4606
    %v5477 = vsel %vm5457, %v5412, %v4608
    %v5479 = vsel %vm5457, %v5414, %v4610
    %v5481 = vsel %vm5457, %v5416, %v4612
    %v5483 = vsel %vm5457, %v5418, %v4614
    %v5485 = vsel %vm5457, %v5420, %v4616
    %v5487 = vsel %vm5457, %v5422, %v4618
    %v5489 = vsel %vm5457, %v5424, %v4620
    %v5491 = vsel %vm5457, %v5426, %v4622
    %v5493 = vsel %vm5457, %v5428, %v4624
    %v5495 = vsel %vm5457, %v5430, %v4626
    %v5497 = vsel %vm5457, %v5432, %v4628
    %v5499 = vsel %vm5457, %v5434, %v4630
    %v5501 = vsel %vm5457, %v5436, %v4632
    %v5503 = vsel %vm5457, %v5438, %v4634
    %v5505 = vsel %vm5457, %v5440, %v4636
    %v5507 = vsel %vm5457, %v5442, %v4638
    %v5509 = vsel %vm5457, %v5444, %v4640
    %v5511 = vsel %vm5457, %v5446, %v4642
    %v5513 = vsel %vm5457, %v5448, %v4644
    %v5515 = vsel %vm5457, %v5450, %v4646
    %v5517 = vsel %vm5457, %v5452, %v4648
    %v5519 = vsel %vm5457, %v5454, %v4650
    %v5521 = vsel %vm5457, %v5456, %v4652
    %vm5522 = vcmask 195584
    %v5524 = vsel %vm5522, %v5459, %v4782
    %v5526 = vsel %vm5522, %v5461, %v4784
    %v5528 = vsel %vm5522, %v5463, %v4786
    %v5530 = vsel %vm5522, %v5465, %v4788
    %v5532 = vsel %vm5522, %v5467, %v4790
    %v5534 = vsel %vm5522, %v5469, %v4792
    %v5536 = vsel %vm5522, %v5471, %v4794
    %v5538 = vsel %vm5522, %v5473, %v4796
    %v5540 = vsel %vm5522, %v5475, %v4798
    %v5542 = vsel %vm5522, %v5477, %v4800
    %v5544 = vsel %vm5522, %v5479, %v4802
    %v5546 = vsel %vm5522, %v5481, %v4804
    %v5548 = vsel %vm5522, %v5483, %v4806
    %v5550 = vsel %vm5522, %v5485, %v4808
    %v5552 = vsel %vm5522, %v5487, %v4810
    %v5554 = vsel %vm5522, %v5489, %v4812
    %v5556 = vsel %vm5522, %v5491, %v4814
    %v5558 = vsel %vm5522, %v5493, %v4816
    %v5560 = vsel %vm5522, %v5495, %v4818
    %v5562 = vsel %vm5522, %v5497, %v4820
    %v5564 = vsel %vm5522, %v5499, %v4822
    %v5566 = vsel %vm5522, %v5501, %v4824
    %v5568 = vsel %vm5522, %v5503, %v4826
    %v5570 = vsel %vm5522, %v5505, %v4828
    %v5572 = vsel %vm5522, %v5507, %v4830
    %v5574 = vsel %vm5522, %v5509, %v4832
    %v5576 = vsel %vm5522, %v5511, %v4834
    %v5578 = vsel %vm5522, %v5513, %v4836
    %v5580 = vsel %vm5522, %v5515, %v4838
    %v5582 = vsel %vm5522, %v5517, %v4840
    %v5584 = vsel %vm5522, %v5519, %v4842
    %v5586 = vsel %vm5522, %v5521, %v4844
    %vm5587 = vcmask 228352
    %v5589 = vsel %vm5587, %v5524, %v4942
    %v5591 = vsel %vm5587, %v5526, %v4944
    %v5593 = vsel %vm5587, %v5528, %v4946
    %v5595 = vsel %vm5587, %v5530, %v4948
    %v5597 = vsel %vm5587, %v5532, %v4950
    %v5599 = vsel %vm5587, %v5534, %v4952
    %v5601 = vsel %vm5587, %v5536, %v4954
    %v5603 = vsel %vm5587, %v5538, %v4956
    %v5605 = vsel %vm5587, %v5540, %v4958
    %v5607 = vsel %vm5587, %v5542, %v4960
    %v5609 = vsel %vm5587, %v5544, %v4962
    %v5611 = vsel %vm5587, %v5546, %v4964
    %v5613 = vsel %vm5587, %v5548, %v4966
    %v5615 = vsel %vm5587, %v5550, %v4968
    %v5617 = vsel %vm5587, %v5552, %v4970
    %v5619 = vsel %vm5587, %v5554, %v4972
    %v5621 = vsel %vm5587, %v5556, %v4974
    %v5623 = vsel %vm5587, %v5558, %v4976
    %v5625 = vsel %vm5587, %v5560, %v4978
    %v5627 = vsel %vm5587, %v5562, %v4980
    %v5629 = vsel %vm5587, %v5564, %v4982
    %v5631 = vsel %vm5587, %v5566, %v4984
    %v5633 = vsel %vm5587, %v5568, %v4986
    %v5635 = vsel %vm5587, %v5570, %v4988
    %v5637 = vsel %vm5587, %v5572, %v4990
    %v5639 = vsel %vm5587, %v5574, %v4992
    %v5641 = vsel %vm5587, %v5576, %v4994
    %v5643 = vsel %vm5587, %v5578, %v4996
    %v5645 = vsel %vm5587, %v5580, %v4998
    %v5647 = vsel %vm5587, %v5582, %v5000
    %v5649 = vsel %vm5587, %v5584, %v5002
    %v5651 = vsel %vm5587, %v5586, %v5004
    %vm5652 = vcmask 261120
    %v5654 = vsel %vm5652, %v5589, %v5102
    %v5656 = vsel %vm5652, %v5591, %v5104
    %v5658 = vsel %vm5652, %v5593, %v5106
    %v5660 = vsel %vm5652, %v5595, %v5108
    %v5662 = vsel %vm5652, %v5597, %v5110
    %v5664 = vsel %vm5652, %v5599, %v5112
    %v5666 = vsel %vm5652, %v5601, %v5114
    %v5668 = vsel %vm5652, %v5603, %v5116
    %v5670 = vsel %vm5652, %v5605, %v5118
    %v5672 = vsel %vm5652, %v5607, %v5120
    %v5674 = vsel %vm5652, %v5609, %v5122
    %v5676 = vsel %vm5652, %v5611, %v5124
    %v5678 = vsel %vm5652, %v5613, %v5126
    %v5680 = vsel %vm5652, %v5615, %v5128
    %v5682 = vsel %vm5652, %v5617, %v5130
    %v5684 = vsel %vm5652, %v5619, %v5132
    %v5686 = vsel %vm5652, %v5621, %v5134
    %v5688 = vsel %vm5652, %v5623, %v5136
    %v5690 = vsel %vm5652, %v5625, %v5138
    %v5692 = vsel %vm5652, %v5627, %v5140
    %v5694 = vsel %vm5652, %v5629, %v5142
    %v5696 = vsel %vm5652, %v5631, %v5144
    %v5698 = vsel %vm5652, %v5633, %v5146
    %v5700 = vsel %vm5652, %v5635, %v5148
    %v5702 = vsel %vm5652, %v5637, %v5150
    %v5704 = vsel %vm5652, %v5639, %v5152
    %v5706 = vsel %vm5652, %v5641, %v5154
    %v5708 = vsel %vm5652, %v5643, %v5156
    %v5710 = vsel %vm5652, %v5645, %v5158
    %v5712 = vsel %vm5652, %v5647, %v5160
    %v5714 = vsel %vm5652, %v5649, %v5162
    %v5716 = vsel %vm5652, %v5651, %v5164
    %vm5717 = vcmask 293888
    %v5719 = vsel %vm5717, %v5654, 0
    %v5721 = vsel %vm5717, %v5656, 0
    %v5723 = vsel %vm5717, %v5658, 0
    %v5725 = vsel %vm5717, %v5660, 0
    %v5727 = vsel %vm5717, %v5662, 0
    %v5729 = vsel %vm5717, %v5664, 0
    %v5731 = vsel %vm5717, %v5666, 0
    %v5733 = vsel %vm5717, %v5668, 0
    %v5735 = vsel %vm5717, %v5670, 0
    %v5737 = vsel %vm5717, %v5672, 0
    %v5739 = vsel %vm5717, %v5674, 0
    %v5741 = vsel %vm5717, %v5676, 0
    %v5743 = vsel %vm5717, %v5678, 0
    %v5745 = vsel %vm5717, %v5680, 0
    %v5747 = vsel %vm5717, %v5682, 0
    %v5749 = vsel %vm5717, %v5684, 0
    %v5751 = vsel %vm5717, %v5686, 0
    %v5753 = vsel %vm5717, %v5688, 0
    %v5755 = vsel %vm5717, %v5690, 0
    %v5757 = vsel %vm5717, %v5692, 0
    %v5759 = vsel %vm5717, %v5694, 0
    %v5761 = vsel %vm5717, %v5696, 0
    %v5763 = vsel %vm5717, %v5698, 0
    %v5765 = vsel %vm5717, %v5700, 0
    %v5767 = vsel %vm5717, %v5702, 0
    %v5769 = vsel %vm5717, %v5704, 0
    %v5771 = vsel %vm5717, %v5706, 0
    %v5773 = vsel %vm5717, %v5708, 0
    %v5775 = vsel %vm5717, %v5710, 0
    %v5777 = vsel %vm5717, %v5712, 0
    %v5779 = vsel %vm5717, %v5714, 0
    %v5781 = vsel %vm5717, %v5716, 0
    %v5783 = vld [vmem:[%s1] sm:$0xf]
    %v5784 = vld [vmem:[%s1 + $0x4] sm:$0xf]
    %v5785 = vld [vmem:[%s1 + $0x8] sm:$0xf]
    %v5786 = vld [vmem:[%s1 + $0xc] sm:$0xf]
    %v5787 = vld [vmem:[%s1 + $0x10] sm:$0xf]
    %v5788 = vld [vmem:[%s1 + $0x14] sm:$0xf]
    %v5789 = vld [vmem:[%s1 + $0x18] sm:$0xf]
    %v5790 = vld [vmem:[%s1 + $0x1c] sm:$0xf]
    %v5791 = vld [vmem:[%s1 + $0x20] sm:$0xf]
    %v5792 = vld [vmem:[%s1 + $0x24] sm:$0xf]
    %v5793 = vld [vmem:[%s1 + $0x28] sm:$0xf]
    %v5794 = vld [vmem:[%s1 + $0x2c] sm:$0xf]
    %v5795 = vld [vmem:[%s1 + $0x30] sm:$0xf]
    %v5796 = vld [vmem:[%s1 + $0x34] sm:$0xf]
    %v5797 = vld [vmem:[%s1 + $0x38] sm:$0xf]
    %v5798 = vld [vmem:[%s1 + $0x3c] sm:$0xf]
    %v5815 = vunpack.c.l.b16 %v5783
    %v5816 = vunpack.c.l.b16 %v5784
    %v5817 = vunpack.c.l.b16 %v5785
    %v5818 = vunpack.c.l.b16 %v5786
    %v5819 = vunpack.c.l.b16 %v5787
    %v5820 = vunpack.c.l.b16 %v5788
    %v5821 = vunpack.c.l.b16 %v5789
    %v5822 = vunpack.c.l.b16 %v5790
    %v5823 = vunpack.c.l.b16 %v5791
    %v5824 = vunpack.c.l.b16 %v5792
    %v5825 = vunpack.c.l.b16 %v5793
    %v5826 = vunpack.c.l.b16 %v5794
    %v5827 = vunpack.c.l.b16 %v5795
    %v5828 = vunpack.c.l.b16 %v5796
    %v5829 = vunpack.c.l.b16 %v5797
    %v5830 = vunpack.c.l.b16 %v5798
    %v5831 = vpack.c.b16 %v5816, %v5815
    %v5832 = vpack.c.b16 %v5818, %v5817
    %v5833 = vpack.c.b16 %v5820, %v5819
    %v5834 = vpack.c.b16 %v5822, %v5821
    %v5835 = vpack.c.b16 %v5824, %v5823
    %v5836 = vpack.c.b16 %v5826, %v5825
    %v5837 = vpack.c.b16 %v5828, %v5827
    %v5838 = vpack.c.b16 %v5830, %v5829
    %5847 = vmatprep.subr.bf16.mxu0 0
    %5848 = vmatpush1.bf16.msra.mxu0 %v5831
    %5849 = vmatprep.subr.bf16.mxu0 0
    %5850 = vmatpush1.bf16.msra.mxu0 %v5832
    %5851 = vmatprep.subr.bf16.mxu0 0
    %5852 = vmatpush1.bf16.msra.mxu0 %v5833
    %5853 = vmatprep.subr.bf16.mxu0 0
    %5854 = vmatpush1.bf16.msra.mxu0 %v5834
    %5855 = vmatprep.subr.bf16.mxu0 0
    %5856 = vmatpush1.bf16.msra.mxu0 %v5835
    %5857 = vmatprep.subr.bf16.mxu0 0
    %5858 = vmatpush1.bf16.msra.mxu0 %v5836
    %5859 = vmatprep.subr.bf16.mxu0 0
    %5860 = vmatpush1.bf16.msra.mxu0 %v5837
    %5861 = vmatprep.subr.bf16.mxu0 0
    %5862 = vmatpush1.bf16.msra.mxu0 %v5838
    %5863 = vmatprep.subr.bf16.mxu0 0
    %5864 = vmatpush1.bf16.msra.mxu0 0
    %5865 = vmatprep.subr.bf16.mxu0 0
    %5866 = vmatpush1.bf16.msra.mxu0 0
    %5867 = vmatprep.subr.bf16.mxu0 0
    %5868 = vmatpush1.bf16.msra.mxu0 0
    %5869 = vmatprep.subr.bf16.mxu0 0
    %5870 = vmatpush1.bf16.msra.mxu0 0
    %5871 = vmatprep.subr.bf16.mxu0 0
    %5872 = vmatpush1.bf16.msra.mxu0 0
    %5873 = vmatprep.subr.bf16.mxu0 0
    %5874 = vmatpush1.bf16.msra.mxu0 0
    %5875 = vmatprep.subr.bf16.mxu0 0
    %5876 = vmatpush1.bf16.msra.mxu0 0
    %5877 = vmatprep.subr.bf16.mxu0 0
    %5878 = vmatpush1.bf16.msra.mxu0 0
    %5879 = vmatprep.mubr.bf16.mxu0 0
    %5880 = vmatmul.mubr.bf16.gmra.mrb[0].mxu0 %v5719
    %v5881 = vpop.f32.mrb[0].mxu0
    %v5882 = vadd.f32 0.0, %v5881
    %v5883 = vpop.f32.mrb[0].mxu0
    %v5884 = vpop.f32.mrb[0].mxu0
    %v5885 = vadd.f32 0.0, %v5884
    %v5886 = vpop.f32.mrb[0].mxu0
    %5887 = vmatprep.mubr.bf16.mxu0 0
    %5888 = vmatmul.mubr.bf16.gmra.mrb[0].mxu0 %v5721
    %v5889 = vpop.f32.mrb[0].mxu0
    %v5890 = vadd.f32 0.0, %v5889
    %v5891 = vpop.f32.mrb[0].mxu0
    %v5892 = vpop.f32.mrb[0].mxu0
    %v5893 = vadd.f32 0.0, %v5892
    %v5894 = vpop.f32.mrb[0].mxu0
    %5895 = vmatprep.mubr.bf16.mxu0 0
    %5896 = vmatmul.mubr.bf16.gmra.mrb[0].mxu0 %v5723
    %v5897 = vpop.f32.mrb[0].mxu0
    %v5898 = vadd.f32 0.0, %v5897
    %v5899 = vpop.f32.mrb[0].mxu0
    %v5900 = vpop.f32.mrb[0].mxu0
    %v5901 = vadd.f32 0.0, %v5900
    %v5902 = vpop.f32.mrb[0].mxu0
    %5903 = vmatprep.mubr.bf16.mxu0 0
    %5904 = vmatmul.mubr.bf16.gmra.mrb[0].mxu0 %v5725
    %v5905 = vpop.f32.mrb[0].mxu0
    %v5906 = vadd.f32 0.0, %v5905
    %v5907 = vpop.f32.mrb[0].mxu0
    %v5908 = vpop.f32.mrb[0].mxu0
    %v5909 = vadd.f32 0.0, %v5908
    %v5910 = vpop.f32.mrb[0].mxu0
    %5911 = vmatprep.mubr.bf16.mxu0 0
    %5912 = vmatmul.mubr.bf16.gmra.mrb[0].mxu0 %v5727
    %v5913 = vpop.f32.mrb[0].mxu0
    %v5914 = vadd.f32 0.0, %v5913
    %v5915 = vpop.f32.mrb[0].mxu0
    %v5916 = vpop.f32.mrb[0].mxu0
    %v5917 = vadd.f32 0.0, %v5916
    %v5918 = vpop.f32.mrb[0].mxu0
    %5919 = vmatprep.mubr.bf16.mxu0 0
    %5920 = vmatmul.mubr.bf16.gmra.mrb[0].mxu0 %v5729
    %v5921 = vpop.f32.mrb[0].mxu0
    %v5922 = vadd.f32 0.0, %v5921
    %v5923 = vpop.f32.mrb[0].mxu0
    %v5924 = vpop.f32.mrb[0].mxu0
    %v5925 = vadd.f32 0.0, %v5924
    %v5926 = vpop.f32.mrb[0].mxu0
    %5927 = vmatprep.mubr.bf16.mxu0 0
    %5928 = vmatmul.mubr.bf16.gmra.mrb[0].mxu0 %v5731
    %v5929 = vpop.f32.mrb[0].mxu0
    %v5930 = vadd.f32 0.0, %v5929
    %v5931 = vpop.f32.mrb[0].mxu0
    %v5932 = vpop.f32.mrb[0].mxu0
    %v5933 = vadd.f32 0.0, %v5932
    %v5934 = vpop.f32.mrb[0].mxu0
    %5935 = vmatprep.mubr.bf16.mxu0 0
    %5936 = vmatmul.mubr.bf16.gmra.mrb[0].mxu0 %v5733
    %v5937 = vpop.f32.mrb[0].mxu0
    %v5938 = vadd.f32 0.0, %v5937
    %v5939 = vpop.f32.mrb[0].mxu0
    %v5940 = vpop.f32.mrb[0].mxu0
    %v5941 = vadd.f32 0.0, %v5940
    %v5942 = vpop.f32.mrb[0].mxu0
    %5943 = vmatprep.mubr.bf16.mxu0 0
    %5944 = vmatmul.mubr.bf16.gmra.mrb[0].mxu0 %v5735
    %v5945 = vpop.f32.mrb[0].mxu0
    %v5946 = vadd.f32 0.0, %v5945
    %v5947 = vpop.f32.mrb[0].mxu0
    %v5948 = vpop.f32.mrb[0].mxu0
    %v5949 = vadd.f32 0.0, %v5948
    %v5950 = vpop.f32.mrb[0].mxu0
    %5951 = vmatprep.mubr.bf16.mxu0 0
    %5952 = vmatmul.mubr.bf16.gmra.mrb[0].mxu0 %v5737
    %v5953 = vpop.f32.mrb[0].mxu0
    %v5954 = vadd.f32 0.0, %v5953
    %v5955 = vpop.f32.mrb[0].mxu0
    %v5956 = vpop.f32.mrb[0].mxu0
    %v5957 = vadd.f32 0.0, %v5956
    %v5958 = vpop.f32.mrb[0].mxu0
    %5959 = vmatprep.mubr.bf16.mxu0 0
    %5960 = vmatmul.mubr.bf16.gmra.mrb[0].mxu0 %v5739
    %v5961 = vpop.f32.mrb[0].mxu0
    %v5962 = vadd.f32 0.0, %v5961
    %v5963 = vpop.f32.mrb[0].mxu0
    %v5964 = vpop.f32.mrb[0].mxu0
    %v5965 = vadd.f32 0.0, %v5964
    %v5966 = vpop.f32.mrb[0].mxu0
    %5967 = vmatprep.mubr.bf16.mxu0 0
    %5968 = vmatmul.mubr.bf16.gmra.mrb[0].mxu0 %v5741
    %v5969 = vpop.f32.mrb[0].mxu0
    %v5970 = vadd.f32 0.0, %v5969
    %v5971 = vpop.f32.mrb[0].mxu0
    %v5972 = vpop.f32.mrb[0].mxu0
    %v5973 = vadd.f32 0.0, %v5972
    %v5974 = vpop.f32.mrb[0].mxu0
    %5975 = vmatprep.mubr.bf16.mxu0 0
    %5976 = vmatmul.mubr.bf16.gmra.mrb[0].mxu0 %v5743
    %v5977 = vpop.f32.mrb[0].mxu0
    %v5978 = vadd.f32 0.0, %v5977
    %v5979 = vpop.f32.mrb[0].mxu0
    %v5980 = vpop.f32.mrb[0].mxu0
    %v5981 = vadd.f32 0.0, %v5980
    %v5982 = vpop.f32.mrb[0].mxu0
    %5983 = vmatprep.mubr.bf16.mxu0 0
    %5984 = vmatmul.mubr.bf16.gmra.mrb[0].mxu0 %v5745
    %v5985 = vpop.f32.mrb[0].mxu0
    %v5986 = vadd.f32 0.0, %v5985
    %v5987 = vpop.f32.mrb[0].mxu0
    %v5988 = vpop.f32.mrb[0].mxu0
    %v5989 = vadd.f32 0.0, %v5988
    %v5990 = vpop.f32.mrb[0].mxu0
    %5991 = vmatprep.mubr.bf16.mxu0 0
    %5992 = vmatmul.mubr.bf16.gmra.mrb[0].mxu0 %v5747
    %v5993 = vpop.f32.mrb[0].mxu0
    %v5994 = vadd.f32 0.0, %v5993
    %v5995 = vpop.f32.mrb[0].mxu0
    %v5996 = vpop.f32.mrb[0].mxu0
    %v5997 = vadd.f32 0.0, %v5996
    %v5998 = vpop.f32.mrb[0].mxu0
    %5999 = vmatprep.mubr.bf16.mxu0 0
    %6000 = vmatmul.mubr.bf16.gmra.mrb[0].mxu0 %v5749
    %v6001 = vpop.f32.mrb[0].mxu0
    %v6002 = vadd.f32 0.0, %v6001
    %v6003 = vpop.f32.mrb[0].mxu0
    %v6004 = vpop.f32.mrb[0].mxu0
    %v6005 = vadd.f32 0.0, %v6004
    %v6006 = vpop.f32.mrb[0].mxu0
    %6007 = vmatprep.mubr.bf16.mxu0 0
    %6008 = vmatmul.mubr.bf16.gmra.mrb[0].mxu0 %v5751
    %v6009 = vpop.f32.mrb[0].mxu0
    %v6010 = vadd.f32 0.0, %v6009
    %v6011 = vpop.f32.mrb[0].mxu0
    %v6012 = vpop.f32.mrb[0].mxu0
    %v6013 = vadd.f32 0.0, %v6012
    %v6014 = vpop.f32.mrb[0].mxu0
    %6015 = vmatprep.mubr.bf16.mxu0 0
    %6016 = vmatmul.mubr.bf16.gmra.mrb[0].mxu0 %v5753
    %v6017 = vpop.f32.mrb[0].mxu0
    %v6018 = vadd.f32 0.0, %v6017
    %v6019 = vpop.f32.mrb[0].mxu0
    %v6020 = vpop.f32.mrb[0].mxu0
    %v6021 = vadd.f32 0.0, %v6020
    %v6022 = vpop.f32.mrb[0].mxu0
    %6023 = vmatprep.mubr.bf16.mxu0 0
    %6024 = vmatmul.mubr.bf16.gmra.mrb[0].mxu0 %v5755
    %v6025 = vpop.f32.mrb[0].mxu0
    %v6026 = vadd.f32 0.0, %v6025
    %v6027 = vpop.f32.mrb[0].mxu0
    %v6028 = vpop.f32.mrb[0].mxu0
    %v6029 = vadd.f32 0.0, %v6028
    %v6030 = vpop.f32.mrb[0].mxu0
    %6031 = vmatprep.mubr.bf16.mxu0 0
    %6032 = vmatmul.mubr.bf16.gmra.mrb[0].mxu0 %v5757
    %v6033 = vpop.f32.mrb[0].mxu0
    %v6034 = vadd.f32 0.0, %v6033
    %v6035 = vpop.f32.mrb[0].mxu0
    %v6036 = vpop.f32.mrb[0].mxu0
    %v6037 = vadd.f32 0.0, %v6036
    %v6038 = vpop.f32.mrb[0].mxu0
    %6039 = vmatprep.mubr.bf16.mxu0 0
    %6040 = vmatmul.mubr.bf16.gmra.mrb[0].mxu0 %v5759
    %v6041 = vpop.f32.mrb[0].mxu0
    %v6042 = vadd.f32 0.0, %v6041
    %v6043 = vpop.f32.mrb[0].mxu0
    %v6044 = vpop.f32.mrb[0].mxu0
    %v6045 = vadd.f32 0.0, %v6044
    %v6046 = vpop.f32.mrb[0].mxu0
    %6047 = vmatprep.mubr.bf16.mxu0 0
    %6048 = vmatmul.mubr.bf16.gmra.mrb[0].mxu0 %v5761
    %v6049 = vpop.f32.mrb[0].mxu0
    %v6050 = vadd.f32 0.0, %v6049
    %v6051 = vpop.f32.mrb[0].mxu0
    %v6052 = vpop.f32.mrb[0].mxu0
    %v6053 = vadd.f32 0.0, %v6052
    %v6054 = vpop.f32.mrb[0].mxu0
    %6055 = vmatprep.mubr.bf16.mxu0 0
    %6056 = vmatmul.mubr.bf16.gmra.mrb[0].mxu0 %v5763
    %v6057 = vpop.f32.mrb[0].mxu0
    %v6058 = vadd.f32 0.0, %v6057
    %v6059 = vpop.f32.mrb[0].mxu0
    %v6060 = vpop.f32.mrb[0].mxu0
    %v6061 = vadd.f32 0.0, %v6060
    %v6062 = vpop.f32.mrb[0].mxu0
    %6063 = vmatprep.mubr.bf16.mxu0 0
    %6064 = vmatmul.mubr.bf16.gmra.mrb[0].mxu0 %v5765
    %v6065 = vpop.f32.mrb[0].mxu0
    %v6066 = vadd.f32 0.0, %v6065
    %v6067 = vpop.f32.mrb[0].mxu0
    %v6068 = vpop.f32.mrb[0].mxu0
    %v6069 = vadd.f32 0.0, %v6068
    %v6070 = vpop.f32.mrb[0].mxu0
    %6071 = vmatprep.mubr.bf16.mxu0 0
    %6072 = vmatmul.mubr.bf16.gmra.mrb[0].mxu0 %v5767
    %v6073 = vpop.f32.mrb[0].mxu0
    %v6074 = vadd.f32 0.0, %v6073
    %v6075 = vpop.f32.mrb[0].mxu0
    %v6076 = vpop.f32.mrb[0].mxu0
    %v6077 = vadd.f32 0.0, %v6076
    %v6078 = vpop.f32.mrb[0].mxu0
    %6079 = vmatprep.mubr.bf16.mxu0 0
    %6080 = vmatmul.mubr.bf16.gmra.mrb[0].mxu0 %v5769
    %v6081 = vpop.f32.mrb[0].mxu0
    %v6082 = vadd.f32 0.0, %v6081
    %v6083 = vpop.f32.mrb[0].mxu0
    %v6084 = vpop.f32.mrb[0].mxu0
    %v6085 = vadd.f32 0.0, %v6084
    %v6086 = vpop.f32.mrb[0].mxu0
    %6087 = vmatprep.mubr.bf16.mxu0 0
    %6088 = vmatmul.mubr.bf16.gmra.mrb[0].mxu0 %v5771
    %v6089 = vpop.f32.mrb[0].mxu0
    %v6090 = vadd.f32 0.0, %v6089
    %v6091 = vpop.f32.mrb[0].mxu0
    %v6092 = vpop.f32.mrb[0].mxu0
    %v6093 = vadd.f32 0.0, %v6092
    %v6094 = vpop.f32.mrb[0].mxu0
    %6095 = vmatprep.mubr.bf16.mxu0 0
    %6096 = vmatmul.mubr.bf16.gmra.mrb[0].mxu0 %v5773
    %v6097 = vpop.f32.mrb[0].mxu0
    %v6098 = vadd.f32 0.0, %v6097
    %v6099 = vpop.f32.mrb[0].mxu0
    %v6100 = vpop.f32.mrb[0].mxu0
    %v6101 = vadd.f32 0.0, %v6100
    %v6102 = vpop.f32.mrb[0].mxu0
    %6103 = vmatprep.mubr.bf16.mxu0 0
    %6104 = vmatmul.mubr.bf16.gmra.mrb[0].mxu0 %v5775
    %v6105 = vpop.f32.mrb[0].mxu0
    %v6106 = vadd.f32 0.0, %v6105
    %v6107 = vpop.f32.mrb[0].mxu0
    %v6108 = vpop.f32.mrb[0].mxu0
    %v6109 = vadd.f32 0.0, %v6108
    %v6110 = vpop.f32.mrb[0].mxu0
    %6111 = vmatprep.mubr.bf16.mxu0 0
    %6112 = vmatmul.mubr.bf16.gmra.mrb[0].mxu0 %v5777
    %v6113 = vpop.f32.mrb[0].mxu0
    %v6114 = vadd.f32 0.0, %v6113
    %v6115 = vpop.f32.mrb[0].mxu0
    %v6116 = vpop.f32.mrb[0].mxu0
    %v6117 = vadd.f32 0.0, %v6116
    %v6118 = vpop.f32.mrb[0].mxu0
    %6119 = vmatprep.mubr.bf16.mxu0 0
    %6120 = vmatmul.mubr.bf16.gmra.mrb[0].mxu0 %v5779
    %v6121 = vpop.f32.mrb[0].mxu0
    %v6122 = vadd.f32 0.0, %v6121
    %v6123 = vpop.f32.mrb[0].mxu0
    %v6124 = vpop.f32.mrb[0].mxu0
    %v6125 = vadd.f32 0.0, %v6124
    %v6126 = vpop.f32.mrb[0].mxu0
    %6127 = vmatprep.mubr.bf16.mxu0 0
    %6128 = vmatmul.mubr.bf16.gmra.mrb[0].mxu0 %v5781
    %v6129 = vpop.f32.mrb[0].mxu0
    %v6130 = vadd.f32 0.0, %v6129
    %v6131 = vpop.f32.mrb[0].mxu0
    %v6132 = vpop.f32.mrb[0].mxu0
    %v6133 = vadd.f32 0.0, %v6132
    %v6134 = vpop.f32.mrb[0].mxu0
    %6135 = vdwg.mxu0
    %v6136 = vld [vmem:[%s4] sm:$0x1]
    %v6137 = vld [vmem:[%s5] sm:$0x1]
    %6138 = vmatprep.subr.mxu0 0.0
    %6139 = vmatpush1.msra.mxu0 %v5882
    %6140 = vmatprep.subr.mxu0 0.0
    %6141 = vmatpush1.msra.mxu0 %v5885
    %6142 = vmatprep.subr.mxu0 0.0
    %6143 = vmatpush1.msra.mxu0 %v5890
    %6144 = vmatprep.subr.mxu0 0.0
    %6145 = vmatpush1.msra.mxu0 %v5893
    %6146 = vmatprep.subr.mxu0 0.0
    %6147 = vmatpush1.msra.mxu0 %v5898
    %6148 = vmatprep.subr.mxu0 0.0
    %6149 = vmatpush1.msra.mxu0 %v5901
    %6150 = vmatprep.subr.mxu0 0.0
    %6151 = vmatpush1.msra.mxu0 %v5906
    %6152 = vmatprep.subr.mxu0 0.0
    %6153 = vmatpush1.msra.mxu0 %v5909
    %6154 = vmatprep.subr.mxu0 0.0
    %6155 = vmatpush1.msra.mxu0 %v5914
    %6156 = vmatprep.subr.mxu0 0.0
    %6157 = vmatpush1.msra.mxu0 %v5917
    %6158 = vmatprep.subr.mxu0 0.0
    %6159 = vmatpush1.msra.mxu0 %v5922
    %6160 = vmatprep.subr.mxu0 0.0
    %6161 = vmatpush1.msra.mxu0 %v5925
    %6162 = vmatprep.subr.mxu0 0.0
    %6163 = vmatpush1.msra.mxu0 %v5930
    %6164 = vmatprep.subr.mxu0 0.0
    %6165 = vmatpush1.msra.mxu0 %v5933
    %6166 = vmatprep.subr.mxu0 0.0
    %6167 = vmatpush1.msra.mxu0 %v5938
    %6168 = vmatprep.subr.mxu0 0.0
    %6169 = vmatpush1.msra.mxu0 %v5941
    %6170 = vmatprep.subr.mxu0 0.0
    %6171 = vmatpush1.msra.mxu0 %v5946
    %6172 = vmatprep.subr.mxu0 0.0
    %6173 = vmatpush1.msra.mxu0 %v5949
    %6174 = vmatprep.subr.mxu0 0.0
    %6175 = vmatpush1.msra.mxu0 %v5954
    %6176 = vmatprep.subr.mxu0 0.0
    %6177 = vmatpush1.msra.mxu0 %v5957
    %6178 = vmatprep.subr.mxu0 0.0
    %6179 = vmatpush1.msra.mxu0 %v5962
    %6180 = vmatprep.subr.mxu0 0.0
    %6181 = vmatpush1.msra.mxu0 %v5965
    %6182 = vmatprep.subr.mxu0 0.0
    %6183 = vmatpush1.msra.mxu0 %v5970
    %6184 = vmatprep.subr.mxu0 0.0
    %6185 = vmatpush1.msra.mxu0 %v5973
    %6186 = vmatprep.subr.mxu0 0.0
    %6187 = vmatpush1.msra.mxu0 %v5978
    %6188 = vmatprep.subr.mxu0 0.0
    %6189 = vmatpush1.msra.mxu0 %v5981
    %6190 = vmatprep.subr.mxu0 0.0
    %6191 = vmatpush1.msra.mxu0 %v5986
    %6192 = vmatprep.subr.mxu0 0.0
    %6193 = vmatpush1.msra.mxu0 %v5989
    %6194 = vmatprep.subr.mxu0 0.0
    %6195 = vmatpush1.msra.mxu0 %v5994
    %6196 = vmatprep.subr.mxu0 0.0
    %6197 = vmatpush1.msra.mxu0 %v5997
    %6198 = vmatprep.subr.mxu0 0.0
    %6199 = vmatpush1.msra.mxu0 %v6002
    %6200 = vmatprep.subr.mxu0 0.0
    %6201 = vmatpush1.msra.mxu0 %v6005
    %6202 = vmatprep.mubr.f32.mxu0 1.0
    %6203 = vmatmul.mubr.f32.gmra.mrb[0].mxu0 1.0
    %v6204 = vpop.f32.mrb[0].mxu0
    %v6205 = vadd.f32 0.0, %v6204
    %v6206 = vpop.f32.mrb[0].mxu0
    %6207 = vdwg.mxu0
    %6208 = vmatprep.subr.mxu0 0.0
    %6209 = vmatpush1.msra.mxu0 %v6010
    %6210 = vmatprep.subr.mxu0 0.0
    %6211 = vmatpush1.msra.mxu0 %v6013
    %6212 = vmatprep.subr.mxu0 0.0
    %6213 = vmatpush1.msra.mxu0 %v6018
    %6214 = vmatprep.subr.mxu0 0.0
    %6215 = vmatpush1.msra.mxu0 %v6021
    %6216 = vmatprep.subr.mxu0 0.0
    %6217 = vmatpush1.msra.mxu0 %v6026
    %6218 = vmatprep.subr.mxu0 0.0
    %6219 = vmatpush1.msra.mxu0 %v6029
    %6220 = vmatprep.subr.mxu0 0.0
    %6221 = vmatpush1.msra.mxu0 %v6034
    %6222 = vmatprep.subr.mxu0 0.0
    %6223 = vmatpush1.msra.mxu0 %v6037
    %6224 = vmatprep.subr.mxu0 0.0
    %6225 = vmatpush1.msra.mxu0 %v6042
    %6226 = vmatprep.subr.mxu0 0.0
    %6227 = vmatpush1.msra.mxu0 %v6045
    %6228 = vmatprep.subr.mxu0 0.0
    %6229 = vmatpush1.msra.mxu0 %v6050
    %6230 = vmatprep.subr.mxu0 0.0
    %6231 = vmatpush1.msra.mxu0 %v6053
    %6232 = vmatprep.subr.mxu0 0.0
    %6233 = vmatpush1.msra.mxu0 %v6058
    %6234 = vmatprep.subr.mxu0 0.0
    %6235 = vmatpush1.msra.mxu0 %v6061
    %6236 = vmatprep.subr.mxu0 0.0
    %6237 = vmatpush1.msra.mxu0 %v6066
    %6238 = vmatprep.subr.mxu0 0.0
    %6239 = vmatpush1.msra.mxu0 %v6069
    %6240 = vmatprep.subr.mxu0 0.0
    %6241 = vmatpush1.msra.mxu0 %v6074
    %6242 = vmatprep.subr.mxu0 0.0
    %6243 = vmatpush1.msra.mxu0 %v6077
    %6244 = vmatprep.subr.mxu0 0.0
    %6245 = vmatpush1.msra.mxu0 %v6082
    %6246 = vmatprep.subr.mxu0 0.0
    %6247 = vmatpush1.msra.mxu0 %v6085
    %6248 = vmatprep.subr.mxu0 0.0
    %6249 = vmatpush1.msra.mxu0 %v6090
    %6250 = vmatprep.subr.mxu0 0.0
    %6251 = vmatpush1.msra.mxu0 %v6093
    %6252 = vmatprep.subr.mxu0 0.0
    %6253 = vmatpush1.msra.mxu0 %v6098
    %6254 = vmatprep.subr.mxu0 0.0
    %6255 = vmatpush1.msra.mxu0 %v6101
    %6256 = vmatprep.subr.mxu0 0.0
    %6257 = vmatpush1.msra.mxu0 %v6106
    %6258 = vmatprep.subr.mxu0 0.0
    %6259 = vmatpush1.msra.mxu0 %v6109
    %6260 = vmatprep.subr.mxu0 0.0
    %6261 = vmatpush1.msra.mxu0 %v6114
    %6262 = vmatprep.subr.mxu0 0.0
    %6263 = vmatpush1.msra.mxu0 %v6117
    %6264 = vmatprep.subr.mxu0 0.0
    %6265 = vmatpush1.msra.mxu0 %v6122
    %6266 = vmatprep.subr.mxu0 0.0
    %6267 = vmatpush1.msra.mxu0 %v6125
    %6268 = vmatprep.subr.mxu0 0.0
    %6269 = vmatpush1.msra.mxu0 %v6130
    %6270 = vmatprep.subr.mxu0 0.0
    %6271 = vmatpush1.msra.mxu0 %v6133
    %6272 = vmatprep.mubr.f32.mxu0 1.0
    %6273 = vmatmul.mubr.f32.gmra.mrb[0].mxu0 1.0
    %v6274 = vpop.f32.mrb[0].mxu0
    %v6275 = vadd.f32 %v6205, %v6274
    %v6276 = vpop.f32.mrb[0].mxu0
    %6277 = vdwg.mxu0
    %v6278 = vmul.f32 %v5882, %v5882
    %v6279 = vmul.f32 %v5885, %v5885
    %v6280 = vmul.f32 %v5890, %v5890
    %v6281 = vmul.f32 %v5893, %v5893
    %v6282 = vmul.f32 %v5898, %v5898
    %v6283 = vmul.f32 %v5901, %v5901
    %v6284 = vmul.f32 %v5906, %v5906
    %v6285 = vmul.f32 %v5909, %v5909
    %v6286 = vmul.f32 %v5914, %v5914
    %v6287 = vmul.f32 %v5917, %v5917
    %v6288 = vmul.f32 %v5922, %v5922
    %v6289 = vmul.f32 %v5925, %v5925
    %v6290 = vmul.f32 %v5930, %v5930
    %v6291 = vmul.f32 %v5933, %v5933
    %v6292 = vmul.f32 %v5938, %v5938
    %v6293 = vmul.f32 %v5941, %v5941
    %v6294 = vmul.f32 %v5946, %v5946
    %v6295 = vmul.f32 %v5949, %v5949
    %v6296 = vmul.f32 %v5954, %v5954
    %v6297 = vmul.f32 %v5957, %v5957
    %v6298 = vmul.f32 %v5962, %v5962
    %v6299 = vmul.f32 %v5965, %v5965
    %v6300 = vmul.f32 %v5970, %v5970
    %v6301 = vmul.f32 %v5973, %v5973
    %v6302 = vmul.f32 %v5978, %v5978
    %v6303 = vmul.f32 %v5981, %v5981
    %v6304 = vmul.f32 %v5986, %v5986
    %v6305 = vmul.f32 %v5989, %v5989
    %v6306 = vmul.f32 %v5994, %v5994
    %v6307 = vmul.f32 %v5997, %v5997
    %v6308 = vmul.f32 %v6002, %v6002
    %v6309 = vmul.f32 %v6005, %v6005
    %v6310 = vmul.f32 %v6010, %v6010
    %v6311 = vmul.f32 %v6013, %v6013
    %v6312 = vmul.f32 %v6018, %v6018
    %v6313 = vmul.f32 %v6021, %v6021
    %v6314 = vmul.f32 %v6026, %v6026
    %v6315 = vmul.f32 %v6029, %v6029
    %v6316 = vmul.f32 %v6034, %v6034
    %v6317 = vmul.f32 %v6037, %v6037
    %v6318 = vmul.f32 %v6042, %v6042
    %v6319 = vmul.f32 %v6045, %v6045
    %v6320 = vmul.f32 %v6050, %v6050
    %v6321 = vmul.f32 %v6053, %v6053
    %v6322 = vmul.f32 %v6058, %v6058
    %v6323 = vmul.f32 %v6061, %v6061
    %v6324 = vmul.f32 %v6066, %v6066
    %v6325 = vmul.f32 %v6069, %v6069
    %v6326 = vmul.f32 %v6074, %v6074
    %v6327 = vmul.f32 %v6077, %v6077
    %v6328 = vmul.f32 %v6082, %v6082
    %v6329 = vmul.f32 %v6085, %v6085
    %v6330 = vmul.f32 %v6090, %v6090
    %v6331 = vmul.f32 %v6093, %v6093
    %v6332 = vmul.f32 %v6098, %v6098
    %v6333 = vmul.f32 %v6101, %v6101
    %v6334 = vmul.f32 %v6106, %v6106
    %v6335 = vmul.f32 %v6109, %v6109
    %v6336 = vmul.f32 %v6114, %v6114
    %v6337 = vmul.f32 %v6117, %v6117
    %v6338 = vmul.f32 %v6122, %v6122
    %v6339 = vmul.f32 %v6125, %v6125
    %v6340 = vmul.f32 %v6130, %v6130
    %v6341 = vmul.f32 %v6133, %v6133
    %6342 = vmatprep.subr.mxu0 0.0
    %6343 = vmatpush1.msra.mxu0 %v6278
    %6344 = vmatprep.subr.mxu0 0.0
    %6345 = vmatpush1.msra.mxu0 %v6279
    %6346 = vmatprep.subr.mxu0 0.0
    %6347 = vmatpush1.msra.mxu0 %v6280
    %6348 = vmatprep.subr.mxu0 0.0
    %6349 = vmatpush1.msra.mxu0 %v6281
    %6350 = vmatprep.subr.mxu0 0.0
    %6351 = vmatpush1.msra.mxu0 %v6282
    %6352 = vmatprep.subr.mxu0 0.0
    %6353 = vmatpush1.msra.mxu0 %v6283
    %6354 = vmatprep.subr.mxu0 0.0
    %6355 = vmatpush1.msra.mxu0 %v6284
    %6356 = vmatprep.subr.mxu0 0.0
    %6357 = vmatpush1.msra.mxu0 %v6285
    %6358 = vmatprep.subr.mxu0 0.0
    %6359 = vmatpush1.msra.mxu0 %v6286
    %6360 = vmatprep.subr.mxu0 0.0
    %6361 = vmatpush1.msra.mxu0 %v6287
    %6362 = vmatprep.subr.mxu0 0.0
    %6363 = vmatpush1.msra.mxu0 %v6288
    %6364 = vmatprep.subr.mxu0 0.0
    %6365 = vmatpush1.msra.mxu0 %v6289
    %6366 = vmatprep.subr.mxu0 0.0
    %6367 = vmatpush1.msra.mxu0 %v6290
    %6368 = vmatprep.subr.mxu0 0.0
    %6369 = vmatpush1.msra.mxu0 %v6291
    %6370 = vmatprep.subr.mxu0 0.0
    %6371 = vmatpush1.msra.mxu0 %v6292
    %6372 = vmatprep.subr.mxu0 0.0
    %6373 = vmatpush1.msra.mxu0 %v6293
    %6374 = vmatprep.subr.mxu0 0.0
    %6375 = vmatpush1.msra.mxu0 %v6294
    %6376 = vmatprep.subr.mxu0 0.0
    %6377 = vmatpush1.msra.mxu0 %v6295
    %6378 = vmatprep.subr.mxu0 0.0
    %6379 = vmatpush1.msra.mxu0 %v6296
    %6380 = vmatprep.subr.mxu0 0.0
    %6381 = vmatpush1.msra.mxu0 %v6297
    %6382 = vmatprep.subr.mxu0 0.0
    %6383 = vmatpush1.msra.mxu0 %v6298
    %6384 = vmatprep.subr.mxu0 0.0
    %6385 = vmatpush1.msra.mxu0 %v6299
    %6386 = vmatprep.subr.mxu0 0.0
    %6387 = vmatpush1.msra.mxu0 %v6300
    %6388 = vmatprep.subr.mxu0 0.0
    %6389 = vmatpush1.msra.mxu0 %v6301
    %6390 = vmatprep.subr.mxu0 0.0
    %6391 = vmatpush1.msra.mxu0 %v6302
    %6392 = vmatprep.subr.mxu0 0.0
    %6393 = vmatpush1.msra.mxu0 %v6303
    %6394 = vmatprep.subr.mxu0 0.0
    %6395 = vmatpush1.msra.mxu0 %v6304
    %6396 = vmatprep.subr.mxu0 0.0
    %6397 = vmatpush1.msra.mxu0 %v6305
    %6398 = vmatprep.subr.mxu0 0.0
    %6399 = vmatpush1.msra.mxu0 %v6306
    %6400 = vmatprep.subr.mxu0 0.0
    %6401 = vmatpush1.msra.mxu0 %v6307
    %6402 = vmatprep.subr.mxu0 0.0
    %6403 = vmatpush1.msra.mxu0 %v6308
    %6404 = vmatprep.subr.mxu0 0.0
    %6405 = vmatpush1.msra.mxu0 %v6309
    %6406 = vmatprep.mubr.f32.mxu0 1.0
    %6407 = vmatmul.mubr.f32.gmra.mrb[0].mxu0 1.0
    %v6408 = vpop.f32.mrb[0].mxu0
    %v6409 = vadd.f32 0.0, %v6408
    %v6410 = vpop.f32.mrb[0].mxu0
    %6411 = vdwg.mxu0
    %6412 = vmatprep.subr.mxu0 0.0
    %6413 = vmatpush1.msra.mxu0 %v6310
    %6414 = vmatprep.subr.mxu0 0.0
    %6415 = vmatpush1.msra.mxu0 %v6311
    %6416 = vmatprep.subr.mxu0 0.0
    %6417 = vmatpush1.msra.mxu0 %v6312
    %6418 = vmatprep.subr.mxu0 0.0
    %6419 = vmatpush1.msra.mxu0 %v6313
    %6420 = vmatprep.subr.mxu0 0.0
    %6421 = vmatpush1.msra.mxu0 %v6314
    %6422 = vmatprep.subr.mxu0 0.0
    %6423 = vmatpush1.msra.mxu0 %v6315
    %6424 = vmatprep.subr.mxu0 0.0
    %6425 = vmatpush1.msra.mxu0 %v6316
    %6426 = vmatprep.subr.mxu0 0.0
    %6427 = vmatpush1.msra.mxu0 %v6317
    %6428 = vmatprep.subr.mxu0 0.0
    %6429 = vmatpush1.msra.mxu0 %v6318
    %6430 = vmatprep.subr.mxu0 0.0
    %6431 = vmatpush1.msra.mxu0 %v6319
    %6432 = vmatprep.subr.mxu0 0.0
    %6433 = vmatpush1.msra.mxu0 %v6320
    %6434 = vmatprep.subr.mxu0 0.0
    %6435 = vmatpush1.msra.mxu0 %v6321
    %6436 = vmatprep.subr.mxu0 0.0
    %6437 = vmatpush1.msra.mxu0 %v6322
    %6438 = vmatprep.subr.mxu0 0.0
    %6439 = vmatpush1.msra.mxu0 %v6323
    %6440 = vmatprep.subr.mxu0 0.0
    %6441 = vmatpush1.msra.mxu0 %v6324
    %6442 = vmatprep.subr.mxu0 0.0
    %6443 = vmatpush1.msra.mxu0 %v6325
    %6444 = vmatprep.subr.mxu0 0.0
    %6445 = vmatpush1.msra.mxu0 %v6326
    %6446 = vmatprep.subr.mxu0 0.0
    %6447 = vmatpush1.msra.mxu0 %v6327
    %6448 = vmatprep.subr.mxu0 0.0
    %6449 = vmatpush1.msra.mxu0 %v6328
    %6450 = vmatprep.subr.mxu0 0.0
    %6451 = vmatpush1.msra.mxu0 %v6329
    %6452 = vmatprep.subr.mxu0 0.0
    %6453 = vmatpush1.msra.mxu0 %v6330
    %6454 = vmatprep.subr.mxu0 0.0
    %6455 = vmatpush1.msra.mxu0 %v6331
    %6456 = vmatprep.subr.mxu0 0.0
    %6457 = vmatpush1.msra.mxu0 %v6332
    %6458 = vmatprep.subr.mxu0 0.0
    %6459 = vmatpush1.msra.mxu0 %v6333
    %6460 = vmatprep.subr.mxu0 0.0
    %6461 = vmatpush1.msra.mxu0 %v6334
    %6462 = vmatprep.subr.mxu0 0.0
    %6463 = vmatpush1.msra.mxu0 %v6335
    %6464 = vmatprep.subr.mxu0 0.0
    %6465 = vmatpush1.msra.mxu0 %v6336
    %6466 = vmatprep.subr.mxu0 0.0
    %6467 = vmatpush1.msra.mxu0 %v6337
    %6468 = vmatprep.subr.mxu0 0.0
    %6469 = vmatpush1.msra.mxu0 %v6338
    %6470 = vmatprep.subr.mxu0 0.0
    %6471 = vmatpush1.msra.mxu0 %v6339
    %6472 = vmatprep.subr.mxu0 0.0
    %6473 = vmatpush1.msra.mxu0 %v6340
    %6474 = vmatprep.subr.mxu0 0.0
    %6475 = vmatpush1.msra.mxu0 %v6341
    %6476 = vmatprep.mubr.f32.mxu0 1.0
    %6477 = vmatmul.mubr.f32.gmra.mrb[0].mxu0 1.0
    %v6478 = vpop.f32.mrb[0].mxu0
    %v6479 = vadd.f32 %v6409, %v6478
    %v6480 = vpop.f32.mrb[0].mxu0
    %6481 = vdwg.mxu0
    %v6482 = vmul.f32 %v6275, 0.001953125
    %v6483 = vmul.f32 %v6479, 0.001953125
    %v6484 = vmul.f32 %v6482, %v6482
    %v6485 = vsub.f32 %v6483, %v6484
    %v6486 = vmax.f32 %v6485, 0.0
    %v6487 = vadd.f32 %v6486, 1e-05
    %v6488 = vrsqrt.pop %v6487
    %v6489 = vmul.f32 %v6136, %v6488
    %v6490 = vmul.f32 %v6482, %v6489
    %v6491 = vsub.f32 %v6137, %v6490
    %v6493 = vlaneseq
    %v6494 = vshrl.u32 %v6493, 7
    %v6495 = vsub.s32 0, %v6494
    %v6496 = vrot.slane %v6489, %v6495
    %v6498 = vmul.f32 %v5882, %v6496
    %v6499 = vmul.f32 %v5885, %v6496
    %v6500 = vmul.f32 %v5890, %v6496
    %v6501 = vmul.f32 %v5893, %v6496
    %v6502 = vmul.f32 %v5898, %v6496
    %v6503 = vmul.f32 %v5901, %v6496
    %v6504 = vmul.f32 %v5906, %v6496
    %v6505 = vmul.f32 %v5909, %v6496
    %v6506 = vmul.f32 %v5914, %v6496
    %v6507 = vmul.f32 %v5917, %v6496
    %v6508 = vmul.f32 %v5922, %v6496
    %v6509 = vmul.f32 %v5925, %v6496
    %v6510 = vmul.f32 %v5930, %v6496
    %v6511 = vmul.f32 %v5933, %v6496
    %v6512 = vmul.f32 %v5938, %v6496
    %v6513 = vmul.f32 %v5941, %v6496
    %v6514 = vmul.f32 %v5946, %v6496
    %v6515 = vmul.f32 %v5949, %v6496
    %v6516 = vmul.f32 %v5954, %v6496
    %v6517 = vmul.f32 %v5957, %v6496
    %v6518 = vmul.f32 %v5962, %v6496
    %v6519 = vmul.f32 %v5965, %v6496
    %v6520 = vmul.f32 %v5970, %v6496
    %v6521 = vmul.f32 %v5973, %v6496
    %v6522 = vmul.f32 %v5978, %v6496
    %v6523 = vmul.f32 %v5981, %v6496
    %v6524 = vmul.f32 %v5986, %v6496
    %v6525 = vmul.f32 %v5989, %v6496
    %v6526 = vmul.f32 %v5994, %v6496
    %v6527 = vmul.f32 %v5997, %v6496
    %v6528 = vmul.f32 %v6002, %v6496
    %v6529 = vmul.f32 %v6005, %v6496
    %v6530 = vmul.f32 %v6010, %v6496
    %v6531 = vmul.f32 %v6013, %v6496
    %v6532 = vmul.f32 %v6018, %v6496
    %v6533 = vmul.f32 %v6021, %v6496
    %v6534 = vmul.f32 %v6026, %v6496
    %v6535 = vmul.f32 %v6029, %v6496
    %v6536 = vmul.f32 %v6034, %v6496
    %v6537 = vmul.f32 %v6037, %v6496
    %v6538 = vmul.f32 %v6042, %v6496
    %v6539 = vmul.f32 %v6045, %v6496
    %v6540 = vmul.f32 %v6050, %v6496
    %v6541 = vmul.f32 %v6053, %v6496
    %v6542 = vmul.f32 %v6058, %v6496
    %v6543 = vmul.f32 %v6061, %v6496
    %v6544 = vmul.f32 %v6066, %v6496
    %v6545 = vmul.f32 %v6069, %v6496
    %v6546 = vmul.f32 %v6074, %v6496
    %v6547 = vmul.f32 %v6077, %v6496
    %v6548 = vmul.f32 %v6082, %v6496
    %v6549 = vmul.f32 %v6085, %v6496
    %v6550 = vmul.f32 %v6090, %v6496
    %v6551 = vmul.f32 %v6093, %v6496
    %v6552 = vmul.f32 %v6098, %v6496
    %v6553 = vmul.f32 %v6101, %v6496
    %v6554 = vmul.f32 %v6106, %v6496
    %v6555 = vmul.f32 %v6109, %v6496
    %v6556 = vmul.f32 %v6114, %v6496
    %v6557 = vmul.f32 %v6117, %v6496
    %v6558 = vmul.f32 %v6122, %v6496
    %v6559 = vmul.f32 %v6125, %v6496
    %v6560 = vmul.f32 %v6130, %v6496
    %v6561 = vmul.f32 %v6133, %v6496
    %v6563 = vlaneseq
    %v6564 = vshrl.u32 %v6563, 7
    %v6565 = vsub.s32 0, %v6564
    %v6566 = vrot.slane %v6491, %v6565
    %v6568 = vadd.f32 %v6498, %v6566
    %v6569 = vadd.f32 %v6499, %v6566
    %v6570 = vadd.f32 %v6500, %v6566
    %v6571 = vadd.f32 %v6501, %v6566
    %v6572 = vadd.f32 %v6502, %v6566
    %v6573 = vadd.f32 %v6503, %v6566
    %v6574 = vadd.f32 %v6504, %v6566
    %v6575 = vadd.f32 %v6505, %v6566
    %v6576 = vadd.f32 %v6506, %v6566
    %v6577 = vadd.f32 %v6507, %v6566
    %v6578 = vadd.f32 %v6508, %v6566
    %v6579 = vadd.f32 %v6509, %v6566
    %v6580 = vadd.f32 %v6510, %v6566
    %v6581 = vadd.f32 %v6511, %v6566
    %v6582 = vadd.f32 %v6512, %v6566
    %v6583 = vadd.f32 %v6513, %v6566
    %v6584 = vadd.f32 %v6514, %v6566
    %v6585 = vadd.f32 %v6515, %v6566
    %v6586 = vadd.f32 %v6516, %v6566
    %v6587 = vadd.f32 %v6517, %v6566
    %v6588 = vadd.f32 %v6518, %v6566
    %v6589 = vadd.f32 %v6519, %v6566
    %v6590 = vadd.f32 %v6520, %v6566
    %v6591 = vadd.f32 %v6521, %v6566
    %v6592 = vadd.f32 %v6522, %v6566
    %v6593 = vadd.f32 %v6523, %v6566
    %v6594 = vadd.f32 %v6524, %v6566
    %v6595 = vadd.f32 %v6525, %v6566
    %v6596 = vadd.f32 %v6526, %v6566
    %v6597 = vadd.f32 %v6527, %v6566
    %v6598 = vadd.f32 %v6528, %v6566
    %v6599 = vadd.f32 %v6529, %v6566
    %v6600 = vadd.f32 %v6530, %v6566
    %v6601 = vadd.f32 %v6531, %v6566
    %v6602 = vadd.f32 %v6532, %v6566
    %v6603 = vadd.f32 %v6533, %v6566
    %v6604 = vadd.f32 %v6534, %v6566
    %v6605 = vadd.f32 %v6535, %v6566
    %v6606 = vadd.f32 %v6536, %v6566
    %v6607 = vadd.f32 %v6537, %v6566
    %v6608 = vadd.f32 %v6538, %v6566
    %v6609 = vadd.f32 %v6539, %v6566
    %v6610 = vadd.f32 %v6540, %v6566
    %v6611 = vadd.f32 %v6541, %v6566
    %v6612 = vadd.f32 %v6542, %v6566
    %v6613 = vadd.f32 %v6543, %v6566
    %v6614 = vadd.f32 %v6544, %v6566
    %v6615 = vadd.f32 %v6545, %v6566
    %v6616 = vadd.f32 %v6546, %v6566
    %v6617 = vadd.f32 %v6547, %v6566
    %v6618 = vadd.f32 %v6548, %v6566
    %v6619 = vadd.f32 %v6549, %v6566
    %v6620 = vadd.f32 %v6550, %v6566
    %v6621 = vadd.f32 %v6551, %v6566
    %v6622 = vadd.f32 %v6552, %v6566
    %v6623 = vadd.f32 %v6553, %v6566
    %v6624 = vadd.f32 %v6554, %v6566
    %v6625 = vadd.f32 %v6555, %v6566
    %v6626 = vadd.f32 %v6556, %v6566
    %v6627 = vadd.f32 %v6557, %v6566
    %v6628 = vadd.f32 %v6558, %v6566
    %v6629 = vadd.f32 %v6559, %v6566
    %v6630 = vadd.f32 %v6560, %v6566
    %v6631 = vadd.f32 %v6561, %v6566
    %v6632 = vmax.f32 %v6568, 0.0
    %v6633 = vmax.f32 %v6569, 0.0
    %v6634 = vmax.f32 %v6570, 0.0
    %v6635 = vmax.f32 %v6571, 0.0
    %v6636 = vmax.f32 %v6572, 0.0
    %v6637 = vmax.f32 %v6573, 0.0
    %v6638 = vmax.f32 %v6574, 0.0
    %v6639 = vmax.f32 %v6575, 0.0
    %v6640 = vmax.f32 %v6576, 0.0
    %v6641 = vmax.f32 %v6577, 0.0
    %v6642 = vmax.f32 %v6578, 0.0
    %v6643 = vmax.f32 %v6579, 0.0
    %v6644 = vmax.f32 %v6580, 0.0
    %v6645 = vmax.f32 %v6581, 0.0
    %v6646 = vmax.f32 %v6582, 0.0
    %v6647 = vmax.f32 %v6583, 0.0
    %v6648 = vmax.f32 %v6584, 0.0
    %v6649 = vmax.f32 %v6585, 0.0
    %v6650 = vmax.f32 %v6586, 0.0
    %v6651 = vmax.f32 %v6587, 0.0
    %v6652 = vmax.f32 %v6588, 0.0
    %v6653 = vmax.f32 %v6589, 0.0
    %v6654 = vmax.f32 %v6590, 0.0
    %v6655 = vmax.f32 %v6591, 0.0
    %v6656 = vmax.f32 %v6592, 0.0
    %v6657 = vmax.f32 %v6593, 0.0
    %v6658 = vmax.f32 %v6594, 0.0
    %v6659 = vmax.f32 %v6595, 0.0
    %v6660 = vmax.f32 %v6596, 0.0
    %v6661 = vmax.f32 %v6597, 0.0
    %v6662 = vmax.f32 %v6598, 0.0
    %v6663 = vmax.f32 %v6599, 0.0
    %v6664 = vmax.f32 %v6600, 0.0
    %v6665 = vmax.f32 %v6601, 0.0
    %v6666 = vmax.f32 %v6602, 0.0
    %v6667 = vmax.f32 %v6603, 0.0
    %v6668 = vmax.f32 %v6604, 0.0
    %v6669 = vmax.f32 %v6605, 0.0
    %v6670 = vmax.f32 %v6606, 0.0
    %v6671 = vmax.f32 %v6607, 0.0
    %v6672 = vmax.f32 %v6608, 0.0
    %v6673 = vmax.f32 %v6609, 0.0
    %v6674 = vmax.f32 %v6610, 0.0
    %v6675 = vmax.f32 %v6611, 0.0
    %v6676 = vmax.f32 %v6612, 0.0
    %v6677 = vmax.f32 %v6613, 0.0
    %v6678 = vmax.f32 %v6614, 0.0
    %v6679 = vmax.f32 %v6615, 0.0
    %v6680 = vmax.f32 %v6616, 0.0
    %v6681 = vmax.f32 %v6617, 0.0
    %v6682 = vmax.f32 %v6618, 0.0
    %v6683 = vmax.f32 %v6619, 0.0
    %v6684 = vmax.f32 %v6620, 0.0
    %v6685 = vmax.f32 %v6621, 0.0
    %v6686 = vmax.f32 %v6622, 0.0
    %v6687 = vmax.f32 %v6623, 0.0
    %v6688 = vmax.f32 %v6624, 0.0
    %v6689 = vmax.f32 %v6625, 0.0
    %v6690 = vmax.f32 %v6626, 0.0
    %v6691 = vmax.f32 %v6627, 0.0
    %v6692 = vmax.f32 %v6628, 0.0
    %v6693 = vmax.f32 %v6629, 0.0
    %v6694 = vmax.f32 %v6630, 0.0
    %v6695 = vmax.f32 %v6631, 0.0
    %v6696 = vld [vmem:[%s3] sm:$0xf]
    %v6697 = vld [vmem:[%s3 + $0x4] sm:$0xf]
    %v6698 = vld [vmem:[%s3 + $0x8] sm:$0xf]
    %v6699 = vld [vmem:[%s3 + $0xc] sm:$0xf]
    %v6700 = vld [vmem:[%s3 + $0x10] sm:$0xf]
    %v6701 = vld [vmem:[%s3 + $0x14] sm:$0xf]
    %v6702 = vld [vmem:[%s3 + $0x18] sm:$0xf]
    %v6703 = vld [vmem:[%s3 + $0x1c] sm:$0xf]
    %v6704 = vld [vmem:[%s3 + $0x20] sm:$0xf]
    %v6705 = vld [vmem:[%s3 + $0x24] sm:$0xf]
    %v6706 = vld [vmem:[%s3 + $0x28] sm:$0xf]
    %v6707 = vld [vmem:[%s3 + $0x2c] sm:$0xf]
    %v6708 = vld [vmem:[%s3 + $0x30] sm:$0xf]
    %v6709 = vld [vmem:[%s3 + $0x34] sm:$0xf]
    %v6710 = vld [vmem:[%s3 + $0x38] sm:$0xf]
    %v6711 = vld [vmem:[%s3 + $0x3c] sm:$0xf]
    %v6728 = vunpack.c.l.b16 %v6696
    %v6729 = vunpack.c.l.b16 %v6697
    %v6730 = vunpack.c.l.b16 %v6698
    %v6731 = vunpack.c.l.b16 %v6699
    %v6732 = vunpack.c.l.b16 %v6700
    %v6733 = vunpack.c.l.b16 %v6701
    %v6734 = vunpack.c.l.b16 %v6702
    %v6735 = vunpack.c.l.b16 %v6703
    %v6736 = vunpack.c.l.b16 %v6704
    %v6737 = vunpack.c.l.b16 %v6705
    %v6738 = vunpack.c.l.b16 %v6706
    %v6739 = vunpack.c.l.b16 %v6707
    %v6740 = vunpack.c.l.b16 %v6708
    %v6741 = vunpack.c.l.b16 %v6709
    %v6742 = vunpack.c.l.b16 %v6710
    %v6743 = vunpack.c.l.b16 %v6711
    %v6744 = vpack.c.b16 %v6729, %v6728
    %v6745 = vpack.c.b16 %v6731, %v6730
    %v6746 = vpack.c.b16 %v6733, %v6732
    %v6747 = vpack.c.b16 %v6735, %v6734
    %v6748 = vpack.c.b16 %v6737, %v6736
    %v6749 = vpack.c.b16 %v6739, %v6738
    %v6750 = vpack.c.b16 %v6741, %v6740
    %v6751 = vpack.c.b16 %v6743, %v6742
    %6760 = vmatprep.subr.bf16.mxu0 0
    %6761 = vmatpush1.bf16.msra.mxu0 %v6744
    %6762 = vmatprep.subr.bf16.mxu0 0
    %6763 = vmatpush1.bf16.msra.mxu0 %v6745
    %6764 = vmatprep.subr.bf16.mxu0 0
    %6765 = vmatpush1.bf16.msra.mxu0 %v6746
    %6766 = vmatprep.subr.bf16.mxu0 0
    %6767 = vmatpush1.bf16.msra.mxu0 %v6747
    %6768 = vmatprep.subr.bf16.mxu0 0
    %6769 = vmatpush1.bf16.msra.mxu0 %v6748
    %6770 = vmatprep.subr.bf16.mxu0 0
    %6771 = vmatpush1.bf16.msra.mxu0 %v6749
    %6772 = vmatprep.subr.bf16.mxu0 0
    %6773 = vmatpush1.bf16.msra.mxu0 %v6750
    %6774 = vmatprep.subr.bf16.mxu0 0
    %6775 = vmatpush1.bf16.msra.mxu0 %v6751
    %6776 = vmatprep.subr.bf16.mxu0 0
    %6777 = vmatpush1.bf16.msra.mxu0 0
    %6778 = vmatprep.subr.bf16.mxu0 0
    %6779 = vmatpush1.bf16.msra.mxu0 0
    %6780 = vmatprep.subr.bf16.mxu0 0
    %6781 = vmatpush1.bf16.msra.mxu0 0
    %6782 = vmatprep.subr.bf16.mxu0 0
    %6783 = vmatpush1.bf16.msra.mxu0 0
    %6784 = vmatprep.subr.bf16.mxu0 0
    %6785 = vmatpush1.bf16.msra.mxu0 0
    %6786 = vmatprep.subr.bf16.mxu0 0
    %6787 = vmatpush1.bf16.msra.mxu0 0
    %6788 = vmatprep.subr.bf16.mxu0 0
    %6789 = vmatpush1.bf16.msra.mxu0 0
    %6790 = vmatprep.subr.bf16.mxu0 0
    %6791 = vmatpush1.bf16.msra.mxu0 0
    %6792 = vmatprep.mubr.bf16.mxu0 0
    %6793 = vmatmul.mubr.bf16.gmra.mrb[0].mxu0 %v5719
    %v6794 = vpop.f32.mrb[0].mxu0
    %v6795 = vadd.f32 0.0, %v6794
    %v6796 = vpop.f32.mrb[0].mxu0
    %v6797 = vpop.f32.mrb[0].mxu0
    %v6798 = vadd.f32 0.0, %v6797
    %v6799 = vpop.f32.mrb[0].mxu0
    %6800 = vmatprep.mubr.bf16.mxu0 0
    %6801 = vmatmul.mubr.bf16.gmra.mrb[0].mxu0 %v5721
    %v6802 = vpop.f32.mrb[0].mxu0
    %v6803 = vadd.f32 0.0, %v6802
    %v6804 = vpop.f32.mrb[0].mxu0
    %v6805 = vpop.f32.mrb[0].mxu0
    %v6806 = vadd.f32 0.0, %v6805
    %v6807 = vpop.f32.mrb[0].mxu0
    %6808 = vmatprep.mubr.bf16.mxu0 0
    %6809 = vmatmul.mubr.bf16.gmra.mrb[0].mxu0 %v5723
    %v6810 = vpop.f32.mrb[0].mxu0
    %v6811 = vadd.f32 0.0, %v6810
    %v6812 = vpop.f32.mrb[0].mxu0
    %v6813 = vpop.f32.mrb[0].mxu0
    %v6814 = vadd.f32 0.0, %v6813
    %v6815 = vpop.f32.mrb[0].mxu0
    %6816 = vmatprep.mubr.bf16.mxu0 0
    %6817 = vmatmul.mubr.bf16.gmra.mrb[0].mxu0 %v5725
    %v6818 = vpop.f32.mrb[0].mxu0
    %v6819 = vadd.f32 0.0, %v6818
    %v6820 = vpop.f32.mrb[0].mxu0
    %v6821 = vpop.f32.mrb[0].mxu0
    %v6822 = vadd.f32 0.0, %v6821
    %v6823 = vpop.f32.mrb[0].mxu0
    %6824 = vmatprep.mubr.bf16.mxu0 0
    %6825 = vmatmul.mubr.bf16.gmra.mrb[0].mxu0 %v5727
    %v6826 = vpop.f32.mrb[0].mxu0
    %v6827 = vadd.f32 0.0, %v6826
    %v6828 = vpop.f32.mrb[0].mxu0
    %v6829 = vpop.f32.mrb[0].mxu0
    %v6830 = vadd.f32 0.0, %v6829
    %v6831 = vpop.f32.mrb[0].mxu0
    %6832 = vmatprep.mubr.bf16.mxu0 0
    %6833 = vmatmul.mubr.bf16.gmra.mrb[0].mxu0 %v5729
    %v6834 = vpop.f32.mrb[0].mxu0
    %v6835 = vadd.f32 0.0, %v6834
    %v6836 = vpop.f32.mrb[0].mxu0
    %v6837 = vpop.f32.mrb[0].mxu0
    %v6838 = vadd.f32 0.0, %v6837
    %v6839 = vpop.f32.mrb[0].mxu0
    %6840 = vmatprep.mubr.bf16.mxu0 0
    %6841 = vmatmul.mubr.bf16.gmra.mrb[0].mxu0 %v5731
    %v6842 = vpop.f32.mrb[0].mxu0
    %v6843 = vadd.f32 0.0, %v6842
    %v6844 = vpop.f32.mrb[0].mxu0
    %v6845 = vpop.f32.mrb[0].mxu0
    %v6846 = vadd.f32 0.0, %v6845
    %v6847 = vpop.f32.mrb[0].mxu0
    %6848 = vmatprep.mubr.bf16.mxu0 0
    %6849 = vmatmul.mubr.bf16.gmra.mrb[0].mxu0 %v5733
    %v6850 = vpop.f32.mrb[0].mxu0
    %v6851 = vadd.f32 0.0, %v6850
    %v6852 = vpop.f32.mrb[0].mxu0
    %v6853 = vpop.f32.mrb[0].mxu0
    %v6854 = vadd.f32 0.0, %v6853
    %v6855 = vpop.f32.mrb[0].mxu0
    %6856 = vmatprep.mubr.bf16.mxu0 0
    %6857 = vmatmul.mubr.bf16.gmra.mrb[0].mxu0 %v5735
    %v6858 = vpop.f32.mrb[0].mxu0
    %v6859 = vadd.f32 0.0, %v6858
    %v6860 = vpop.f32.mrb[0].mxu0
    %v6861 = vpop.f32.mrb[0].mxu0
    %v6862 = vadd.f32 0.0, %v6861
    %v6863 = vpop.f32.mrb[0].mxu0
    %6864 = vmatprep.mubr.bf16.mxu0 0
    %6865 = vmatmul.mubr.bf16.gmra.mrb[0].mxu0 %v5737
    %v6866 = vpop.f32.mrb[0].mxu0
    %v6867 = vadd.f32 0.0, %v6866
    %v6868 = vpop.f32.mrb[0].mxu0
    %v6869 = vpop.f32.mrb[0].mxu0
    %v6870 = vadd.f32 0.0, %v6869
    %v6871 = vpop.f32.mrb[0].mxu0
    %6872 = vmatprep.mubr.bf16.mxu0 0
    %6873 = vmatmul.mubr.bf16.gmra.mrb[0].mxu0 %v5739
    %v6874 = vpop.f32.mrb[0].mxu0
    %v6875 = vadd.f32 0.0, %v6874
    %v6876 = vpop.f32.mrb[0].mxu0
    %v6877 = vpop.f32.mrb[0].mxu0
    %v6878 = vadd.f32 0.0, %v6877
    %v6879 = vpop.f32.mrb[0].mxu0
    %6880 = vmatprep.mubr.bf16.mxu0 0
    %6881 = vmatmul.mubr.bf16.gmra.mrb[0].mxu0 %v5741
    %v6882 = vpop.f32.mrb[0].mxu0
    %v6883 = vadd.f32 0.0, %v6882
    %v6884 = vpop.f32.mrb[0].mxu0
    %v6885 = vpop.f32.mrb[0].mxu0
    %v6886 = vadd.f32 0.0, %v6885
    %v6887 = vpop.f32.mrb[0].mxu0
    %6888 = vmatprep.mubr.bf16.mxu0 0
    %6889 = vmatmul.mubr.bf16.gmra.mrb[0].mxu0 %v5743
    %v6890 = vpop.f32.mrb[0].mxu0
    %v6891 = vadd.f32 0.0, %v6890
    %v6892 = vpop.f32.mrb[0].mxu0
    %v6893 = vpop.f32.mrb[0].mxu0
    %v6894 = vadd.f32 0.0, %v6893
    %v6895 = vpop.f32.mrb[0].mxu0
    %6896 = vmatprep.mubr.bf16.mxu0 0
    %6897 = vmatmul.mubr.bf16.gmra.mrb[0].mxu0 %v5745
    %v6898 = vpop.f32.mrb[0].mxu0
    %v6899 = vadd.f32 0.0, %v6898
    %v6900 = vpop.f32.mrb[0].mxu0
    %v6901 = vpop.f32.mrb[0].mxu0
    %v6902 = vadd.f32 0.0, %v6901
    %v6903 = vpop.f32.mrb[0].mxu0
    %6904 = vmatprep.mubr.bf16.mxu0 0
    %6905 = vmatmul.mubr.bf16.gmra.mrb[0].mxu0 %v5747
    %v6906 = vpop.f32.mrb[0].mxu0
    %v6907 = vadd.f32 0.0, %v6906
    %v6908 = vpop.f32.mrb[0].mxu0
    %v6909 = vpop.f32.mrb[0].mxu0
    %v6910 = vadd.f32 0.0, %v6909
    %v6911 = vpop.f32.mrb[0].mxu0
    %6912 = vmatprep.mubr.bf16.mxu0 0
    %6913 = vmatmul.mubr.bf16.gmra.mrb[0].mxu0 %v5749
    %v6914 = vpop.f32.mrb[0].mxu0
    %v6915 = vadd.f32 0.0, %v6914
    %v6916 = vpop.f32.mrb[0].mxu0
    %v6917 = vpop.f32.mrb[0].mxu0
    %v6918 = vadd.f32 0.0, %v6917
    %v6919 = vpop.f32.mrb[0].mxu0
    %6920 = vmatprep.mubr.bf16.mxu0 0
    %6921 = vmatmul.mubr.bf16.gmra.mrb[0].mxu0 %v5751
    %v6922 = vpop.f32.mrb[0].mxu0
    %v6923 = vadd.f32 0.0, %v6922
    %v6924 = vpop.f32.mrb[0].mxu0
    %v6925 = vpop.f32.mrb[0].mxu0
    %v6926 = vadd.f32 0.0, %v6925
    %v6927 = vpop.f32.mrb[0].mxu0
    %6928 = vmatprep.mubr.bf16.mxu0 0
    %6929 = vmatmul.mubr.bf16.gmra.mrb[0].mxu0 %v5753
    %v6930 = vpop.f32.mrb[0].mxu0
    %v6931 = vadd.f32 0.0, %v6930
    %v6932 = vpop.f32.mrb[0].mxu0
    %v6933 = vpop.f32.mrb[0].mxu0
    %v6934 = vadd.f32 0.0, %v6933
    %v6935 = vpop.f32.mrb[0].mxu0
    %6936 = vmatprep.mubr.bf16.mxu0 0
    %6937 = vmatmul.mubr.bf16.gmra.mrb[0].mxu0 %v5755
    %v6938 = vpop.f32.mrb[0].mxu0
    %v6939 = vadd.f32 0.0, %v6938
    %v6940 = vpop.f32.mrb[0].mxu0
    %v6941 = vpop.f32.mrb[0].mxu0
    %v6942 = vadd.f32 0.0, %v6941
    %v6943 = vpop.f32.mrb[0].mxu0
    %6944 = vmatprep.mubr.bf16.mxu0 0
    %6945 = vmatmul.mubr.bf16.gmra.mrb[0].mxu0 %v5757
    %v6946 = vpop.f32.mrb[0].mxu0
    %v6947 = vadd.f32 0.0, %v6946
    %v6948 = vpop.f32.mrb[0].mxu0
    %v6949 = vpop.f32.mrb[0].mxu0
    %v6950 = vadd.f32 0.0, %v6949
    %v6951 = vpop.f32.mrb[0].mxu0
    %6952 = vmatprep.mubr.bf16.mxu0 0
    %6953 = vmatmul.mubr.bf16.gmra.mrb[0].mxu0 %v5759
    %v6954 = vpop.f32.mrb[0].mxu0
    %v6955 = vadd.f32 0.0, %v6954
    %v6956 = vpop.f32.mrb[0].mxu0
    %v6957 = vpop.f32.mrb[0].mxu0
    %v6958 = vadd.f32 0.0, %v6957
    %v6959 = vpop.f32.mrb[0].mxu0
    %6960 = vmatprep.mubr.bf16.mxu0 0
    %6961 = vmatmul.mubr.bf16.gmra.mrb[0].mxu0 %v5761
    %v6962 = vpop.f32.mrb[0].mxu0
    %v6963 = vadd.f32 0.0, %v6962
    %v6964 = vpop.f32.mrb[0].mxu0
    %v6965 = vpop.f32.mrb[0].mxu0
    %v6966 = vadd.f32 0.0, %v6965
    %v6967 = vpop.f32.mrb[0].mxu0
    %6968 = vmatprep.mubr.bf16.mxu0 0
    %6969 = vmatmul.mubr.bf16.gmra.mrb[0].mxu0 %v5763
    %v6970 = vpop.f32.mrb[0].mxu0
    %v6971 = vadd.f32 0.0, %v6970
    %v6972 = vpop.f32.mrb[0].mxu0
    %v6973 = vpop.f32.mrb[0].mxu0
    %v6974 = vadd.f32 0.0, %v6973
    %v6975 = vpop.f32.mrb[0].mxu0
    %6976 = vmatprep.mubr.bf16.mxu0 0
    %6977 = vmatmul.mubr.bf16.gmra.mrb[0].mxu0 %v5765
    %v6978 = vpop.f32.mrb[0].mxu0
    %v6979 = vadd.f32 0.0, %v6978
    %v6980 = vpop.f32.mrb[0].mxu0
    %v6981 = vpop.f32.mrb[0].mxu0
    %v6982 = vadd.f32 0.0, %v6981
    %v6983 = vpop.f32.mrb[0].mxu0
    %6984 = vmatprep.mubr.bf16.mxu0 0
    %6985 = vmatmul.mubr.bf16.gmra.mrb[0].mxu0 %v5767
    %v6986 = vpop.f32.mrb[0].mxu0
    %v6987 = vadd.f32 0.0, %v6986
    %v6988 = vpop.f32.mrb[0].mxu0
    %v6989 = vpop.f32.mrb[0].mxu0
    %v6990 = vadd.f32 0.0, %v6989
    %v6991 = vpop.f32.mrb[0].mxu0
    %6992 = vmatprep.mubr.bf16.mxu0 0
    %6993 = vmatmul.mubr.bf16.gmra.mrb[0].mxu0 %v5769
    %v6994 = vpop.f32.mrb[0].mxu0
    %v6995 = vadd.f32 0.0, %v6994
    %v6996 = vpop.f32.mrb[0].mxu0
    %v6997 = vpop.f32.mrb[0].mxu0
    %v6998 = vadd.f32 0.0, %v6997
    %v6999 = vpop.f32.mrb[0].mxu0
    %7000 = vmatprep.mubr.bf16.mxu0 0
    %7001 = vmatmul.mubr.bf16.gmra.mrb[0].mxu0 %v5771
    %v7002 = vpop.f32.mrb[0].mxu0
    %v7003 = vadd.f32 0.0, %v7002
    %v7004 = vpop.f32.mrb[0].mxu0
    %v7005 = vpop.f32.mrb[0].mxu0
    %v7006 = vadd.f32 0.0, %v7005
    %v7007 = vpop.f32.mrb[0].mxu0
    %7008 = vmatprep.mubr.bf16.mxu0 0
    %7009 = vmatmul.mubr.bf16.gmra.mrb[0].mxu0 %v5773
    %v7010 = vpop.f32.mrb[0].mxu0
    %v7011 = vadd.f32 0.0, %v7010
    %v7012 = vpop.f32.mrb[0].mxu0
    %v7013 = vpop.f32.mrb[0].mxu0
    %v7014 = vadd.f32 0.0, %v7013
    %v7015 = vpop.f32.mrb[0].mxu0
    %7016 = vmatprep.mubr.bf16.mxu0 0
    %7017 = vmatmul.mubr.bf16.gmra.mrb[0].mxu0 %v5775
    %v7018 = vpop.f32.mrb[0].mxu0
    %v7019 = vadd.f32 0.0, %v7018
    %v7020 = vpop.f32.mrb[0].mxu0
    %v7021 = vpop.f32.mrb[0].mxu0
    %v7022 = vadd.f32 0.0, %v7021
    %v7023 = vpop.f32.mrb[0].mxu0
    %7024 = vmatprep.mubr.bf16.mxu0 0
    %7025 = vmatmul.mubr.bf16.gmra.mrb[0].mxu0 %v5777
    %v7026 = vpop.f32.mrb[0].mxu0
    %v7027 = vadd.f32 0.0, %v7026
    %v7028 = vpop.f32.mrb[0].mxu0
    %v7029 = vpop.f32.mrb[0].mxu0
    %v7030 = vadd.f32 0.0, %v7029
    %v7031 = vpop.f32.mrb[0].mxu0
    %7032 = vmatprep.mubr.bf16.mxu0 0
    %7033 = vmatmul.mubr.bf16.gmra.mrb[0].mxu0 %v5779
    %v7034 = vpop.f32.mrb[0].mxu0
    %v7035 = vadd.f32 0.0, %v7034
    %v7036 = vpop.f32.mrb[0].mxu0
    %v7037 = vpop.f32.mrb[0].mxu0
    %v7038 = vadd.f32 0.0, %v7037
    %v7039 = vpop.f32.mrb[0].mxu0
    %7040 = vmatprep.mubr.bf16.mxu0 0
    %7041 = vmatmul.mubr.bf16.gmra.mrb[0].mxu0 %v5781
    %v7042 = vpop.f32.mrb[0].mxu0
    %v7043 = vadd.f32 0.0, %v7042
    %v7044 = vpop.f32.mrb[0].mxu0
    %v7045 = vpop.f32.mrb[0].mxu0
    %v7046 = vadd.f32 0.0, %v7045
    %v7047 = vpop.f32.mrb[0].mxu0
    %7048 = vdwg.mxu0
    %v7049 = vld [vmem:[%s8] sm:$0x1]
    %v7050 = vld [vmem:[%s9] sm:$0x1]
    %7051 = vmatprep.subr.mxu0 0.0
    %7052 = vmatpush1.msra.mxu0 %v6795
    %7053 = vmatprep.subr.mxu0 0.0
    %7054 = vmatpush1.msra.mxu0 %v6798
    %7055 = vmatprep.subr.mxu0 0.0
    %7056 = vmatpush1.msra.mxu0 %v6803
    %7057 = vmatprep.subr.mxu0 0.0
    %7058 = vmatpush1.msra.mxu0 %v6806
    %7059 = vmatprep.subr.mxu0 0.0
    %7060 = vmatpush1.msra.mxu0 %v6811
    %7061 = vmatprep.subr.mxu0 0.0
    %7062 = vmatpush1.msra.mxu0 %v6814
    %7063 = vmatprep.subr.mxu0 0.0
    %7064 = vmatpush1.msra.mxu0 %v6819
    %7065 = vmatprep.subr.mxu0 0.0
    %7066 = vmatpush1.msra.mxu0 %v6822
    %7067 = vmatprep.subr.mxu0 0.0
    %7068 = vmatpush1.msra.mxu0 %v6827
    %7069 = vmatprep.subr.mxu0 0.0
    %7070 = vmatpush1.msra.mxu0 %v6830
    %7071 = vmatprep.subr.mxu0 0.0
    %7072 = vmatpush1.msra.mxu0 %v6835
    %7073 = vmatprep.subr.mxu0 0.0
    %7074 = vmatpush1.msra.mxu0 %v6838
    %7075 = vmatprep.subr.mxu0 0.0
    %7076 = vmatpush1.msra.mxu0 %v6843
    %7077 = vmatprep.subr.mxu0 0.0
    %7078 = vmatpush1.msra.mxu0 %v6846
    %7079 = vmatprep.subr.mxu0 0.0
    %7080 = vmatpush1.msra.mxu0 %v6851
    %7081 = vmatprep.subr.mxu0 0.0
    %7082 = vmatpush1.msra.mxu0 %v6854
    %7083 = vmatprep.subr.mxu0 0.0
    %7084 = vmatpush1.msra.mxu0 %v6859
    %7085 = vmatprep.subr.mxu0 0.0
    %7086 = vmatpush1.msra.mxu0 %v6862
    %7087 = vmatprep.subr.mxu0 0.0
    %7088 = vmatpush1.msra.mxu0 %v6867
    %7089 = vmatprep.subr.mxu0 0.0
    %7090 = vmatpush1.msra.mxu0 %v6870
    %7091 = vmatprep.subr.mxu0 0.0
    %7092 = vmatpush1.msra.mxu0 %v6875
    %7093 = vmatprep.subr.mxu0 0.0
    %7094 = vmatpush1.msra.mxu0 %v6878
    %7095 = vmatprep.subr.mxu0 0.0
    %7096 = vmatpush1.msra.mxu0 %v6883
    %7097 = vmatprep.subr.mxu0 0.0
    %7098 = vmatpush1.msra.mxu0 %v6886
    %7099 = vmatprep.subr.mxu0 0.0
    %7100 = vmatpush1.msra.mxu0 %v6891
    %7101 = vmatprep.subr.mxu0 0.0
    %7102 = vmatpush1.msra.mxu0 %v6894
    %7103 = vmatprep.subr.mxu0 0.0
    %7104 = vmatpush1.msra.mxu0 %v6899
    %7105 = vmatprep.subr.mxu0 0.0
    %7106 = vmatpush1.msra.mxu0 %v6902
    %7107 = vmatprep.subr.mxu0 0.0
    %7108 = vmatpush1.msra.mxu0 %v6907
    %7109 = vmatprep.subr.mxu0 0.0
    %7110 = vmatpush1.msra.mxu0 %v6910
    %7111 = vmatprep.subr.mxu0 0.0
    %7112 = vmatpush1.msra.mxu0 %v6915
    %7113 = vmatprep.subr.mxu0 0.0
    %7114 = vmatpush1.msra.mxu0 %v6918
    %7115 = vmatprep.mubr.f32.mxu0 1.0
    %7116 = vmatmul.mubr.f32.gmra.mrb[0].mxu0 1.0
    %v7117 = vpop.f32.mrb[0].mxu0
    %v7118 = vadd.f32 0.0, %v7117
    %v7119 = vpop.f32.mrb[0].mxu0
    %7120 = vdwg.mxu0
    %7121 = vmatprep.subr.mxu0 0.0
    %7122 = vmatpush1.msra.mxu0 %v6923
    %7123 = vmatprep.subr.mxu0 0.0
    %7124 = vmatpush1.msra.mxu0 %v6926
    %7125 = vmatprep.subr.mxu0 0.0
    %7126 = vmatpush1.msra.mxu0 %v6931
    %7127 = vmatprep.subr.mxu0 0.0
    %7128 = vmatpush1.msra.mxu0 %v6934
    %7129 = vmatprep.subr.mxu0 0.0
    %7130 = vmatpush1.msra.mxu0 %v6939
    %7131 = vmatprep.subr.mxu0 0.0
    %7132 = vmatpush1.msra.mxu0 %v6942
    %7133 = vmatprep.subr.mxu0 0.0
    %7134 = vmatpush1.msra.mxu0 %v6947
    %7135 = vmatprep.subr.mxu0 0.0
    %7136 = vmatpush1.msra.mxu0 %v6950
    %7137 = vmatprep.subr.mxu0 0.0
    %7138 = vmatpush1.msra.mxu0 %v6955
    %7139 = vmatprep.subr.mxu0 0.0
    %7140 = vmatpush1.msra.mxu0 %v6958
    %7141 = vmatprep.subr.mxu0 0.0
    %7142 = vmatpush1.msra.mxu0 %v6963
    %7143 = vmatprep.subr.mxu0 0.0
    %7144 = vmatpush1.msra.mxu0 %v6966
    %7145 = vmatprep.subr.mxu0 0.0
    %7146 = vmatpush1.msra.mxu0 %v6971
    %7147 = vmatprep.subr.mxu0 0.0
    %7148 = vmatpush1.msra.mxu0 %v6974
    %7149 = vmatprep.subr.mxu0 0.0
    %7150 = vmatpush1.msra.mxu0 %v6979
    %7151 = vmatprep.subr.mxu0 0.0
    %7152 = vmatpush1.msra.mxu0 %v6982
    %7153 = vmatprep.subr.mxu0 0.0
    %7154 = vmatpush1.msra.mxu0 %v6987
    %7155 = vmatprep.subr.mxu0 0.0
    %7156 = vmatpush1.msra.mxu0 %v6990
    %7157 = vmatprep.subr.mxu0 0.0
    %7158 = vmatpush1.msra.mxu0 %v6995
    %7159 = vmatprep.subr.mxu0 0.0
    %7160 = vmatpush1.msra.mxu0 %v6998
    %7161 = vmatprep.subr.mxu0 0.0
    %7162 = vmatpush1.msra.mxu0 %v7003
    %7163 = vmatprep.subr.mxu0 0.0
    %7164 = vmatpush1.msra.mxu0 %v7006
    %7165 = vmatprep.subr.mxu0 0.0
    %7166 = vmatpush1.msra.mxu0 %v7011
    %7167 = vmatprep.subr.mxu0 0.0
    %7168 = vmatpush1.msra.mxu0 %v7014
    %7169 = vmatprep.subr.mxu0 0.0
    %7170 = vmatpush1.msra.mxu0 %v7019
    %7171 = vmatprep.subr.mxu0 0.0
    %7172 = vmatpush1.msra.mxu0 %v7022
    %7173 = vmatprep.subr.mxu0 0.0
    %7174 = vmatpush1.msra.mxu0 %v7027
    %7175 = vmatprep.subr.mxu0 0.0
    %7176 = vmatpush1.msra.mxu0 %v7030
    %7177 = vmatprep.subr.mxu0 0.0
    %7178 = vmatpush1.msra.mxu0 %v7035
    %7179 = vmatprep.subr.mxu0 0.0
    %7180 = vmatpush1.msra.mxu0 %v7038
    %7181 = vmatprep.subr.mxu0 0.0
    %7182 = vmatpush1.msra.mxu0 %v7043
    %7183 = vmatprep.subr.mxu0 0.0
    %7184 = vmatpush1.msra.mxu0 %v7046
    %7185 = vmatprep.mubr.f32.mxu0 1.0
    %7186 = vmatmul.mubr.f32.gmra.mrb[0].mxu0 1.0
    %v7187 = vpop.f32.mrb[0].mxu0
    %v7188 = vadd.f32 %v7118, %v7187
    %v7189 = vpop.f32.mrb[0].mxu0
    %7190 = vdwg.mxu0
    %v7191 = vmul.f32 %v6795, %v6795
    %v7192 = vmul.f32 %v6798, %v6798
    %v7193 = vmul.f32 %v6803, %v6803
    %v7194 = vmul.f32 %v6806, %v6806
    %v7195 = vmul.f32 %v6811, %v6811
    %v7196 = vmul.f32 %v6814, %v6814
    %v7197 = vmul.f32 %v6819, %v6819
    %v7198 = vmul.f32 %v6822, %v6822
    %v7199 = vmul.f32 %v6827, %v6827
    %v7200 = vmul.f32 %v6830, %v6830
    %v7201 = vmul.f32 %v6835, %v6835
    %v7202 = vmul.f32 %v6838, %v6838
    %v7203 = vmul.f32 %v6843, %v6843
    %v7204 = vmul.f32 %v6846, %v6846
    %v7205 = vmul.f32 %v6851, %v6851
    %v7206 = vmul.f32 %v6854, %v6854
    %v7207 = vmul.f32 %v6859, %v6859
    %v7208 = vmul.f32 %v6862, %v6862
    %v7209 = vmul.f32 %v6867, %v6867
    %v7210 = vmul.f32 %v6870, %v6870
    %v7211 = vmul.f32 %v6875, %v6875
    %v7212 = vmul.f32 %v6878, %v6878
    %v7213 = vmul.f32 %v6883, %v6883
    %v7214 = vmul.f32 %v6886, %v6886
    %v7215 = vmul.f32 %v6891, %v6891
    %v7216 = vmul.f32 %v6894, %v6894
    %v7217 = vmul.f32 %v6899, %v6899
    %v7218 = vmul.f32 %v6902, %v6902
    %v7219 = vmul.f32 %v6907, %v6907
    %v7220 = vmul.f32 %v6910, %v6910
    %v7221 = vmul.f32 %v6915, %v6915
    %v7222 = vmul.f32 %v6918, %v6918
    %v7223 = vmul.f32 %v6923, %v6923
    %v7224 = vmul.f32 %v6926, %v6926
    %v7225 = vmul.f32 %v6931, %v6931
    %v7226 = vmul.f32 %v6934, %v6934
    %v7227 = vmul.f32 %v6939, %v6939
    %v7228 = vmul.f32 %v6942, %v6942
    %v7229 = vmul.f32 %v6947, %v6947
    %v7230 = vmul.f32 %v6950, %v6950
    %v7231 = vmul.f32 %v6955, %v6955
    %v7232 = vmul.f32 %v6958, %v6958
    %v7233 = vmul.f32 %v6963, %v6963
    %v7234 = vmul.f32 %v6966, %v6966
    %v7235 = vmul.f32 %v6971, %v6971
    %v7236 = vmul.f32 %v6974, %v6974
    %v7237 = vmul.f32 %v6979, %v6979
    %v7238 = vmul.f32 %v6982, %v6982
    %v7239 = vmul.f32 %v6987, %v6987
    %v7240 = vmul.f32 %v6990, %v6990
    %v7241 = vmul.f32 %v6995, %v6995
    %v7242 = vmul.f32 %v6998, %v6998
    %v7243 = vmul.f32 %v7003, %v7003
    %v7244 = vmul.f32 %v7006, %v7006
    %v7245 = vmul.f32 %v7011, %v7011
    %v7246 = vmul.f32 %v7014, %v7014
    %v7247 = vmul.f32 %v7019, %v7019
    %v7248 = vmul.f32 %v7022, %v7022
    %v7249 = vmul.f32 %v7027, %v7027
    %v7250 = vmul.f32 %v7030, %v7030
    %v7251 = vmul.f32 %v7035, %v7035
    %v7252 = vmul.f32 %v7038, %v7038
    %v7253 = vmul.f32 %v7043, %v7043
    %v7254 = vmul.f32 %v7046, %v7046
    %7255 = vmatprep.subr.mxu0 0.0
    %7256 = vmatpush1.msra.mxu0 %v7191
    %7257 = vmatprep.subr.mxu0 0.0
    %7258 = vmatpush1.msra.mxu0 %v7192
    %7259 = vmatprep.subr.mxu0 0.0
    %7260 = vmatpush1.msra.mxu0 %v7193
    %7261 = vmatprep.subr.mxu0 0.0
    %7262 = vmatpush1.msra.mxu0 %v7194
    %7263 = vmatprep.subr.mxu0 0.0
    %7264 = vmatpush1.msra.mxu0 %v7195
    %7265 = vmatprep.subr.mxu0 0.0
    %7266 = vmatpush1.msra.mxu0 %v7196
    %7267 = vmatprep.subr.mxu0 0.0
    %7268 = vmatpush1.msra.mxu0 %v7197
    %7269 = vmatprep.subr.mxu0 0.0
    %7270 = vmatpush1.msra.mxu0 %v7198
    %7271 = vmatprep.subr.mxu0 0.0
    %7272 = vmatpush1.msra.mxu0 %v7199
    %7273 = vmatprep.subr.mxu0 0.0
    %7274 = vmatpush1.msra.mxu0 %v7200
    %7275 = vmatprep.subr.mxu0 0.0
    %7276 = vmatpush1.msra.mxu0 %v7201
    %7277 = vmatprep.subr.mxu0 0.0
    %7278 = vmatpush1.msra.mxu0 %v7202
    %7279 = vmatprep.subr.mxu0 0.0
    %7280 = vmatpush1.msra.mxu0 %v7203
    %7281 = vmatprep.subr.mxu0 0.0
    %7282 = vmatpush1.msra.mxu0 %v7204
    %7283 = vmatprep.subr.mxu0 0.0
    %7284 = vmatpush1.msra.mxu0 %v7205
    %7285 = vmatprep.subr.mxu0 0.0
    %7286 = vmatpush1.msra.mxu0 %v7206
    %7287 = vmatprep.subr.mxu0 0.0
    %7288 = vmatpush1.msra.mxu0 %v7207
    %7289 = vmatprep.subr.mxu0 0.0
    %7290 = vmatpush1.msra.mxu0 %v7208
    %7291 = vmatprep.subr.mxu0 0.0
    %7292 = vmatpush1.msra.mxu0 %v7209
    %7293 = vmatprep.subr.mxu0 0.0
    %7294 = vmatpush1.msra.mxu0 %v7210
    %7295 = vmatprep.subr.mxu0 0.0
    %7296 = vmatpush1.msra.mxu0 %v7211
    %7297 = vmatprep.subr.mxu0 0.0
    %7298 = vmatpush1.msra.mxu0 %v7212
    %7299 = vmatprep.subr.mxu0 0.0
    %7300 = vmatpush1.msra.mxu0 %v7213
    %7301 = vmatprep.subr.mxu0 0.0
    %7302 = vmatpush1.msra.mxu0 %v7214
    %7303 = vmatprep.subr.mxu0 0.0
    %7304 = vmatpush1.msra.mxu0 %v7215
    %7305 = vmatprep.subr.mxu0 0.0
    %7306 = vmatpush1.msra.mxu0 %v7216
    %7307 = vmatprep.subr.mxu0 0.0
    %7308 = vmatpush1.msra.mxu0 %v7217
    %7309 = vmatprep.subr.mxu0 0.0
    %7310 = vmatpush1.msra.mxu0 %v7218
    %7311 = vmatprep.subr.mxu0 0.0
    %7312 = vmatpush1.msra.mxu0 %v7219
    %7313 = vmatprep.subr.mxu0 0.0
    %7314 = vmatpush1.msra.mxu0 %v7220
    %7315 = vmatprep.subr.mxu0 0.0
    %7316 = vmatpush1.msra.mxu0 %v7221
    %7317 = vmatprep.subr.mxu0 0.0
    %7318 = vmatpush1.msra.mxu0 %v7222
    %7319 = vmatprep.mubr.f32.mxu0 1.0
    %7320 = vmatmul.mubr.f32.gmra.mrb[0].mxu0 1.0
    %v7321 = vpop.f32.mrb[0].mxu0
    %v7322 = vadd.f32 0.0, %v7321
    %v7323 = vpop.f32.mrb[0].mxu0
    %7324 = vdwg.mxu0
    %7325 = vmatprep.subr.mxu0 0.0
    %7326 = vmatpush1.msra.mxu0 %v7223
    %7327 = vmatprep.subr.mxu0 0.0
    %7328 = vmatpush1.msra.mxu0 %v7224
    %7329 = vmatprep.subr.mxu0 0.0
    %7330 = vmatpush1.msra.mxu0 %v7225
    %7331 = vmatprep.subr.mxu0 0.0
    %7332 = vmatpush1.msra.mxu0 %v7226
    %7333 = vmatprep.subr.mxu0 0.0
    %7334 = vmatpush1.msra.mxu0 %v7227
    %7335 = vmatprep.subr.mxu0 0.0
    %7336 = vmatpush1.msra.mxu0 %v7228
    %7337 = vmatprep.subr.mxu0 0.0
    %7338 = vmatpush1.msra.mxu0 %v7229
    %7339 = vmatprep.subr.mxu0 0.0
    %7340 = vmatpush1.msra.mxu0 %v7230
    %7341 = vmatprep.subr.mxu0 0.0
    %7342 = vmatpush1.msra.mxu0 %v7231
    %7343 = vmatprep.subr.mxu0 0.0
    %7344 = vmatpush1.msra.mxu0 %v7232
    %7345 = vmatprep.subr.mxu0 0.0
    %7346 = vmatpush1.msra.mxu0 %v7233
    %7347 = vmatprep.subr.mxu0 0.0
    %7348 = vmatpush1.msra.mxu0 %v7234
    %7349 = vmatprep.subr.mxu0 0.0
    %7350 = vmatpush1.msra.mxu0 %v7235
    %7351 = vmatprep.subr.mxu0 0.0
    %7352 = vmatpush1.msra.mxu0 %v7236
    %7353 = vmatprep.subr.mxu0 0.0
    %7354 = vmatpush1.msra.mxu0 %v7237
    %7355 = vmatprep.subr.mxu0 0.0
    %7356 = vmatpush1.msra.mxu0 %v7238
    %7357 = vmatprep.subr.mxu0 0.0
    %7358 = vmatpush1.msra.mxu0 %v7239
    %7359 = vmatprep.subr.mxu0 0.0
    %7360 = vmatpush1.msra.mxu0 %v7240
    %7361 = vmatprep.subr.mxu0 0.0
    %7362 = vmatpush1.msra.mxu0 %v7241
    %7363 = vmatprep.subr.mxu0 0.0
    %7364 = vmatpush1.msra.mxu0 %v7242
    %7365 = vmatprep.subr.mxu0 0.0
    %7366 = vmatpush1.msra.mxu0 %v7243
    %7367 = vmatprep.subr.mxu0 0.0
    %7368 = vmatpush1.msra.mxu0 %v7244
    %7369 = vmatprep.subr.mxu0 0.0
    %7370 = vmatpush1.msra.mxu0 %v7245
    %7371 = vmatprep.subr.mxu0 0.0
    %7372 = vmatpush1.msra.mxu0 %v7246
    %7373 = vmatprep.subr.mxu0 0.0
    %7374 = vmatpush1.msra.mxu0 %v7247
    %7375 = vmatprep.subr.mxu0 0.0
    %7376 = vmatpush1.msra.mxu0 %v7248
    %7377 = vmatprep.subr.mxu0 0.0
    %7378 = vmatpush1.msra.mxu0 %v7249
    %7379 = vmatprep.subr.mxu0 0.0
    %7380 = vmatpush1.msra.mxu0 %v7250
    %7381 = vmatprep.subr.mxu0 0.0
    %7382 = vmatpush1.msra.mxu0 %v7251
    %7383 = vmatprep.subr.mxu0 0.0
    %7384 = vmatpush1.msra.mxu0 %v7252
    %7385 = vmatprep.subr.mxu0 0.0
    %7386 = vmatpush1.msra.mxu0 %v7253
    %7387 = vmatprep.subr.mxu0 0.0
    %7388 = vmatpush1.msra.mxu0 %v7254
    %7389 = vmatprep.mubr.f32.mxu0 1.0
    %7390 = vmatmul.mubr.f32.gmra.mrb[0].mxu0 1.0
    %v7391 = vpop.f32.mrb[0].mxu0
    %v7392 = vadd.f32 %v7322, %v7391
    %v7393 = vpop.f32.mrb[0].mxu0
    %7394 = vdwg.mxu0
    %v7395 = vmul.f32 %v7188, 0.001953125
    %v7396 = vmul.f32 %v7392, 0.001953125
    %v7397 = vmul.f32 %v7395, %v7395
    %v7398 = vsub.f32 %v7396, %v7397
    %v7399 = vmax.f32 %v7398, 0.0
    %v7400 = vadd.f32 %v7399, 1e-05
    %v7401 = vrsqrt.pop %v7400
    %v7402 = vmul.f32 %v7049, %v7401
    %v7403 = vmul.f32 %v7395, %v7402
    %v7404 = vsub.f32 %v7050, %v7403
    %v7406 = vlaneseq
    %v7407 = vshrl.u32 %v7406, 7
    %v7408 = vsub.s32 0, %v7407
    %v7409 = vrot.slane %v7402, %v7408
    %v7411 = vmul.f32 %v6795, %v7409
    %v7412 = vmul.f32 %v6798, %v7409
    %v7413 = vmul.f32 %v6803, %v7409
    %v7414 = vmul.f32 %v6806, %v7409
    %v7415 = vmul.f32 %v6811, %v7409
    %v7416 = vmul.f32 %v6814, %v7409
    %v7417 = vmul.f32 %v6819, %v7409
    %v7418 = vmul.f32 %v6822, %v7409
    %v7419 = vmul.f32 %v6827, %v7409
    %v7420 = vmul.f32 %v6830, %v7409
    %v7421 = vmul.f32 %v6835, %v7409
    %v7422 = vmul.f32 %v6838, %v7409
    %v7423 = vmul.f32 %v6843, %v7409
    %v7424 = vmul.f32 %v6846, %v7409
    %v7425 = vmul.f32 %v6851, %v7409
    %v7426 = vmul.f32 %v6854, %v7409
    %v7427 = vmul.f32 %v6859, %v7409
    %v7428 = vmul.f32 %v6862, %v7409
    %v7429 = vmul.f32 %v6867, %v7409
    %v7430 = vmul.f32 %v6870, %v7409
    %v7431 = vmul.f32 %v6875, %v7409
    %v7432 = vmul.f32 %v6878, %v7409
    %v7433 = vmul.f32 %v6883, %v7409
    %v7434 = vmul.f32 %v6886, %v7409
    %v7435 = vmul.f32 %v6891, %v7409
    %v7436 = vmul.f32 %v6894, %v7409
    %v7437 = vmul.f32 %v6899, %v7409
    %v7438 = vmul.f32 %v6902, %v7409
    %v7439 = vmul.f32 %v6907, %v7409
    %v7440 = vmul.f32 %v6910, %v7409
    %v7441 = vmul.f32 %v6915, %v7409
    %v7442 = vmul.f32 %v6918, %v7409
    %v7443 = vmul.f32 %v6923, %v7409
    %v7444 = vmul.f32 %v6926, %v7409
    %v7445 = vmul.f32 %v6931, %v7409
    %v7446 = vmul.f32 %v6934, %v7409
    %v7447 = vmul.f32 %v6939, %v7409
    %v7448 = vmul.f32 %v6942, %v7409
    %v7449 = vmul.f32 %v6947, %v7409
    %v7450 = vmul.f32 %v6950, %v7409
    %v7451 = vmul.f32 %v6955, %v7409
    %v7452 = vmul.f32 %v6958, %v7409
    %v7453 = vmul.f32 %v6963, %v7409
    %v7454 = vmul.f32 %v6966, %v7409
    %v7455 = vmul.f32 %v6971, %v7409
    %v7456 = vmul.f32 %v6974, %v7409
    %v7457 = vmul.f32 %v6979, %v7409
    %v7458 = vmul.f32 %v6982, %v7409
    %v7459 = vmul.f32 %v6987, %v7409
    %v7460 = vmul.f32 %v6990, %v7409
    %v7461 = vmul.f32 %v6995, %v7409
    %v7462 = vmul.f32 %v6998, %v7409
    %v7463 = vmul.f32 %v7003, %v7409
    %v7464 = vmul.f32 %v7006, %v7409
    %v7465 = vmul.f32 %v7011, %v7409
    %v7466 = vmul.f32 %v7014, %v7409
    %v7467 = vmul.f32 %v7019, %v7409
    %v7468 = vmul.f32 %v7022, %v7409
    %v7469 = vmul.f32 %v7027, %v7409
    %v7470 = vmul.f32 %v7030, %v7409
    %v7471 = vmul.f32 %v7035, %v7409
    %v7472 = vmul.f32 %v7038, %v7409
    %v7473 = vmul.f32 %v7043, %v7409
    %v7474 = vmul.f32 %v7046, %v7409
    %v7476 = vlaneseq
    %v7477 = vshrl.u32 %v7476, 7
    %v7478 = vsub.s32 0, %v7477
    %v7479 = vrot.slane %v7404, %v7478
    %v7481 = vadd.f32 %v7411, %v7479
    %v7482 = vadd.f32 %v7412, %v7479
    %v7483 = vadd.f32 %v7413, %v7479
    %v7484 = vadd.f32 %v7414, %v7479
    %v7485 = vadd.f32 %v7415, %v7479
    %v7486 = vadd.f32 %v7416, %v7479
    %v7487 = vadd.f32 %v7417, %v7479
    %v7488 = vadd.f32 %v7418, %v7479
    %v7489 = vadd.f32 %v7419, %v7479
    %v7490 = vadd.f32 %v7420, %v7479
    %v7491 = vadd.f32 %v7421, %v7479
    %v7492 = vadd.f32 %v7422, %v7479
    %v7493 = vadd.f32 %v7423, %v7479
    %v7494 = vadd.f32 %v7424, %v7479
    %v7495 = vadd.f32 %v7425, %v7479
    %v7496 = vadd.f32 %v7426, %v7479
    %v7497 = vadd.f32 %v7427, %v7479
    %v7498 = vadd.f32 %v7428, %v7479
    %v7499 = vadd.f32 %v7429, %v7479
    %v7500 = vadd.f32 %v7430, %v7479
    %v7501 = vadd.f32 %v7431, %v7479
    %v7502 = vadd.f32 %v7432, %v7479
    %v7503 = vadd.f32 %v7433, %v7479
    %v7504 = vadd.f32 %v7434, %v7479
    %v7505 = vadd.f32 %v7435, %v7479
    %v7506 = vadd.f32 %v7436, %v7479
    %v7507 = vadd.f32 %v7437, %v7479
    %v7508 = vadd.f32 %v7438, %v7479
    %v7509 = vadd.f32 %v7439, %v7479
    %v7510 = vadd.f32 %v7440, %v7479
    %v7511 = vadd.f32 %v7441, %v7479
    %v7512 = vadd.f32 %v7442, %v7479
    %v7513 = vadd.f32 %v7443, %v7479
    %v7514 = vadd.f32 %v7444, %v7479
    %v7515 = vadd.f32 %v7445, %v7479
    %v7516 = vadd.f32 %v7446, %v7479
    %v7517 = vadd.f32 %v7447, %v7479
    %v7518 = vadd.f32 %v7448, %v7479
    %v7519 = vadd.f32 %v7449, %v7479
    %v7520 = vadd.f32 %v7450, %v7479
    %v7521 = vadd.f32 %v7451, %v7479
    %v7522 = vadd.f32 %v7452, %v7479
    %v7523 = vadd.f32 %v7453, %v7479
    %v7524 = vadd.f32 %v7454, %v7479
    %v7525 = vadd.f32 %v7455, %v7479
    %v7526 = vadd.f32 %v7456, %v7479
    %v7527 = vadd.f32 %v7457, %v7479
    %v7528 = vadd.f32 %v7458, %v7479
    %v7529 = vadd.f32 %v7459, %v7479
    %v7530 = vadd.f32 %v7460, %v7479
    %v7531 = vadd.f32 %v7461, %v7479
    %v7532 = vadd.f32 %v7462, %v7479
    %v7533 = vadd.f32 %v7463, %v7479
    %v7534 = vadd.f32 %v7464, %v7479
    %v7535 = vadd.f32 %v7465, %v7479
    %v7536 = vadd.f32 %v7466, %v7479
    %v7537 = vadd.f32 %v7467, %v7479
    %v7538 = vadd.f32 %v7468, %v7479
    %v7539 = vadd.f32 %v7469, %v7479
    %v7540 = vadd.f32 %v7470, %v7479
    %v7541 = vadd.f32 %v7471, %v7479
    %v7542 = vadd.f32 %v7472, %v7479
    %v7543 = vadd.f32 %v7473, %v7479
    %v7544 = vadd.f32 %v7474, %v7479
    %7545 = vst.msk [vmem:[#allocation2] sm:$0xff] %vm5165, 0.0
    %7546 = vst.msk [vmem:[#allocation2 + $0x8] sm:$0xff] %vm5165, 0.0
    %vm7547 = vcmask 25600
    %7548 = vst.msk [vmem:[#allocation2 + $0x10] sm:$0x3] %vm7547, 0.0
    %7549 = vst.msk [vmem:[#allocation2 + $0x1b0] sm:$0xff] %vm5165, 0.0
    %7550 = vst.msk [vmem:[#allocation2 + $0x1b8] sm:$0xff] %vm5165, 0.0
    %7551 = vst.msk [vmem:[#allocation2 + $0x1c0] sm:$0x3] %vm7547, 0.0
    %s7552 = scalar_lea.vmem [#allocation2], 408
    %7553 = vst.msk [vmem:[%s7552] sm:$0xff] %vm5165, 0.0
    %7554 = vst.msk [vmem:[%s7552 + $0x8] sm:$0xff] %vm5165, 0.0
    %7555 = vst.msk [vmem:[%s7552 + $0x10] sm:$0x3] %vm7547, 0.0
    %7556 = vst.msk [vmem:[%s7552 + $0x1b0] sm:$0xff] %vm5165, 0.0
    %7557 = vst.msk [vmem:[%s7552 + $0x1b8] sm:$0xff] %vm5165, 0.0
    %7558 = vst.msk [vmem:[%s7552 + $0x1c0] sm:$0x3] %vm7547, 0.0
    %vm7559 = vcmask 24576
    %7560 = vst.msk [vmem:[#allocation2] sm:$0x1] %vm7559, 0.0
    %7561 = vst.msk [vmem:[#allocation2 + $0x18] sm:$0x1] %vm7559, 0.0
    %7562 = vst.msk [vmem:[#allocation2 + $0x30] sm:$0x1] %vm7559, 0.0
    %7563 = vst.msk [vmem:[#allocation2 + $0x48] sm:$0x1] %vm7559, 0.0
    %7564 = vst.msk [vmem:[#allocation2 + $0x60] sm:$0x1] %vm7559, 0.0
    %7565 = vst.msk [vmem:[#allocation2 + $0x78] sm:$0x1] %vm7559, 0.0
    %7566 = vst.msk [vmem:[#allocation2 + $0x90] sm:$0x1] %vm7559, 0.0
    %7567 = vst.msk [vmem:[#allocation2 + $0xa8] sm:$0x1] %vm7559, 0.0
    %7568 = vst.msk [vmem:[#allocation2 + $0xc0] sm:$0x1] %vm7559, 0.0
    %7569 = vst.msk [vmem:[#allocation2 + $0xd8] sm:$0x1] %vm7559, 0.0
    %7570 = vst.msk [vmem:[#allocation2 + $0xf0] sm:$0x1] %vm7559, 0.0
    %7571 = vst.msk [vmem:[#allocation2 + $0x108] sm:$0x1] %vm7559, 0.0
    %7572 = vst.msk [vmem:[#allocation2 + $0x120] sm:$0x1] %vm7559, 0.0
    %7573 = vst.msk [vmem:[#allocation2 + $0x138] sm:$0x1] %vm7559, 0.0
    %7574 = vst.msk [vmem:[#allocation2 + $0x150] sm:$0x1] %vm7559, 0.0
    %7575 = vst.msk [vmem:[#allocation2 + $0x168] sm:$0x1] %vm7559, 0.0
    %7576 = vst.msk [vmem:[#allocation2 + $0x180] sm:$0x1] %vm7559, 0.0
    %7577 = vst.msk [vmem:[#allocation2 + $0x198] sm:$0x1] %vm7559, 0.0
    %7578 = vst.msk [vmem:[#allocation2 + $0x1b0] sm:$0x1] %vm7559, 0.0
    %7579 = vst.msk [vmem:[#allocation2 + $0x1c8] sm:$0x1] %vm7559, 0.0
    %7580 = vst.msk [vmem:[#allocation2 + $0x1e0] sm:$0x1] %vm7559, 0.0
    %7581 = vst.msk [vmem:[#allocation2 + $0x1f8] sm:$0x1] %vm7559, 0.0
    %7582 = vst.msk [vmem:[#allocation2 + $0x210] sm:$0x1] %vm7559, 0.0
    %7583 = vst.msk [vmem:[#allocation2 + $0x228] sm:$0x1] %vm7559, 0.0
    %7584 = vst.msk [vmem:[#allocation2 + $0x240] sm:$0x1] %vm7559, 0.0
    %7585 = vst.msk [vmem:[#allocation2 + $0x258] sm:$0x1] %vm7559, 0.0
    %7586 = vst.msk [vmem:[#allocation2 + $0x270] sm:$0x1] %vm7559, 0.0
    %7587 = vst.msk [vmem:[#allocation2 + $0x288] sm:$0x1] %vm7559, 0.0
    %7588 = vst.msk [vmem:[#allocation2 + $0x2a0] sm:$0x1] %vm7559, 0.0
    %7589 = vst.msk [vmem:[#allocation2 + $0x2b8] sm:$0x1] %vm7559, 0.0
    %7590 = vst.msk [vmem:[#allocation2 + $0x2d0] sm:$0x1] %vm7559, 0.0
    %7591 = vst.msk [vmem:[#allocation2 + $0x2e8] sm:$0x1] %vm7559, 0.0
    %7592 = vst.msk [vmem:[#allocation2 + $0x300] sm:$0x1] %vm7559, 0.0
    %7593 = vst.msk [vmem:[#allocation2 + $0x318] sm:$0x1] %vm7559, 0.0
    %7594 = vst.msk [vmem:[#allocation2 + $0x330] sm:$0x1] %vm7559, 0.0
    %7595 = vst.msk [vmem:[#allocation2 + $0x348] sm:$0x1] %vm7559, 0.0
    %7596 = vst.msk [vmem:[#allocation2 + $0x11] sm:$0x1] %vm7559, 0.0
    %7597 = vst.msk [vmem:[#allocation2 + $0x29] sm:$0x1] %vm7559, 0.0
    %7598 = vst.msk [vmem:[#allocation2 + $0x41] sm:$0x1] %vm7559, 0.0
    %7599 = vst.msk [vmem:[#allocation2 + $0x59] sm:$0x1] %vm7559, 0.0
    %7600 = vst.msk [vmem:[#allocation2 + $0x71] sm:$0x1] %vm7559, 0.0
    %7601 = vst.msk [vmem:[#allocation2 + $0x89] sm:$0x1] %vm7559, 0.0
    %7602 = vst.msk [vmem:[#allocation2 + $0xa1] sm:$0x1] %vm7559, 0.0
    %7603 = vst.msk [vmem:[#allocation2 + $0xb9] sm:$0x1] %vm7559, 0.0
    %7604 = vst.msk [vmem:[#allocation2 + $0xd1] sm:$0x1] %vm7559, 0.0
    %7605 = vst.msk [vmem:[#allocation2 + $0xe9] sm:$0x1] %vm7559, 0.0
    %7606 = vst.msk [vmem:[#allocation2 + $0x101] sm:$0x1] %vm7559, 0.0
    %7607 = vst.msk [vmem:[#allocation2 + $0x119] sm:$0x1] %vm7559, 0.0
    %7608 = vst.msk [vmem:[#allocation2 + $0x131] sm:$0x1] %vm7559, 0.0
    %7609 = vst.msk [vmem:[#allocation2 + $0x149] sm:$0x1] %vm7559, 0.0
    %7610 = vst.msk [vmem:[#allocation2 + $0x161] sm:$0x1] %vm7559, 0.0
    %7611 = vst.msk [vmem:[#allocation2 + $0x179] sm:$0x1] %vm7559, 0.0
    %7612 = vst.msk [vmem:[#allocation2 + $0x191] sm:$0x1] %vm7559, 0.0
    %7613 = vst.msk [vmem:[#allocation2 + $0x1a9] sm:$0x1] %vm7559, 0.0
    %7614 = vst.msk [vmem:[#allocation2 + $0x1c1] sm:$0x1] %vm7559, 0.0
    %7615 = vst.msk [vmem:[#allocation2 + $0x1d9] sm:$0x1] %vm7559, 0.0
    %7616 = vst.msk [vmem:[#allocation2 + $0x1f1] sm:$0x1] %vm7559, 0.0
    %7617 = vst.msk [vmem:[#allocation2 + $0x209] sm:$0x1] %vm7559, 0.0
    %7618 = vst.msk [vmem:[#allocation2 + $0x221] sm:$0x1] %vm7559, 0.0
    %7619 = vst.msk [vmem:[#allocation2 + $0x239] sm:$0x1] %vm7559, 0.0
    %7620 = vst.msk [vmem:[#allocation2 + $0x251] sm:$0x1] %vm7559, 0.0
    %7621 = vst.msk [vmem:[#allocation2 + $0x269] sm:$0x1] %vm7559, 0.0
    %7622 = vst.msk [vmem:[#allocation2 + $0x281] sm:$0x1] %vm7559, 0.0
    %7623 = vst.msk [vmem:[#allocation2 + $0x299] sm:$0x1] %vm7559, 0.0
    %7624 = vst.msk [vmem:[#allocation2 + $0x2b1] sm:$0x1] %vm7559, 0.0
    %7625 = vst.msk [vmem:[#allocation2 + $0x2c9] sm:$0x1] %vm7559, 0.0
    %7626 = vst.msk [vmem:[#allocation2 + $0x2e1] sm:$0x1] %vm7559, 0.0
    %7627 = vst.msk [vmem:[#allocation2 + $0x2f9] sm:$0x1] %vm7559, 0.0
    %7628 = vst.msk [vmem:[#allocation2 + $0x311] sm:$0x1] %vm7559, 0.0
    %7629 = vst.msk [vmem:[#allocation2 + $0x329] sm:$0x1] %vm7559, 0.0
    %7630 = vst.msk [vmem:[#allocation2 + $0x341] sm:$0x1] %vm7559, 0.0
    %7631 = vst.msk [vmem:[#allocation2 + $0x359] sm:$0x1] %vm7559, 0.0
    %s7632 = scalar_lea.vmem [#allocation2], 24
    %7633 = vst.msk [vmem:[%s7632 + $0x1] sm:$0xff] %vm5165, %v6632
    %7634 = vst.msk [vmem:[%s7632 + $0x9] sm:$0xff] %vm5165, %v6633
    %7635 = vst.msk [vmem:[%s7632 + $0x19] sm:$0xff] %vm5165, %v6634
    %7636 = vst.msk [vmem:[%s7632 + $0x21] sm:$0xff] %vm5165, %v6635
    %7637 = vst.msk [vmem:[%s7632 + $0x31] sm:$0xff] %vm5165, %v6636
    %7638 = vst.msk [vmem:[%s7632 + $0x39] sm:$0xff] %vm5165, %v6637
    %7639 = vst.msk [vmem:[%s7632 + $0x49] sm:$0xff] %vm5165, %v6638
    %7640 = vst.msk [vmem:[%s7632 + $0x51] sm:$0xff] %vm5165, %v6639
    %7641 = vst.msk [vmem:[%s7632 + $0x61] sm:$0xff] %vm5165, %v6640
    %7642 = vst.msk [vmem:[%s7632 + $0x69] sm:$0xff] %vm5165, %v6641
    %7643 = vst.msk [vmem:[%s7632 + $0x79] sm:$0xff] %vm5165, %v6642
    %7644 = vst.msk [vmem:[%s7632 + $0x81] sm:$0xff] %vm5165, %v6643
    %7645 = vst.msk [vmem:[%s7632 + $0x91] sm:$0xff] %vm5165, %v6644
    %7646 = vst.msk [vmem:[%s7632 + $0x99] sm:$0xff] %vm5165, %v6645
    %7647 = vst.msk [vmem:[%s7632 + $0xa9] sm:$0xff] %vm5165, %v6646
    %7648 = vst.msk [vmem:[%s7632 + $0xb1] sm:$0xff] %vm5165, %v6647
    %7649 = vst.msk [vmem:[%s7632 + $0xc1] sm:$0xff] %vm5165, %v6648
    %7650 = vst.msk [vmem:[%s7632 + $0xc9] sm:$0xff] %vm5165, %v6649
    %7651 = vst.msk [vmem:[%s7632 + $0xd9] sm:$0xff] %vm5165, %v6650
    %7652 = vst.msk [vmem:[%s7632 + $0xe1] sm:$0xff] %vm5165, %v6651
    %7653 = vst.msk [vmem:[%s7632 + $0xf1] sm:$0xff] %vm5165, %v6652
    %7654 = vst.msk [vmem:[%s7632 + $0xf9] sm:$0xff] %vm5165, %v6653
    %7655 = vst.msk [vmem:[%s7632 + $0x109] sm:$0xff] %vm5165, %v6654
    %7656 = vst.msk [vmem:[%s7632 + $0x111] sm:$0xff] %vm5165, %v6655
    %7657 = vst.msk [vmem:[%s7632 + $0x121] sm:$0xff] %vm5165, %v6656
    %7658 = vst.msk [vmem:[%s7632 + $0x129] sm:$0xff] %vm5165, %v6657
    %7659 = vst.msk [vmem:[%s7632 + $0x139] sm:$0xff] %vm5165, %v6658
    %7660 = vst.msk [vmem:[%s7632 + $0x141] sm:$0xff] %vm5165, %v6659
    %7661 = vst.msk [vmem:[%s7632 + $0x151] sm:$0xff] %vm5165, %v6660
    %7662 = vst.msk [vmem:[%s7632 + $0x159] sm:$0xff] %vm5165, %v6661
    %7663 = vst.msk [vmem:[%s7632 + $0x169] sm:$0xff] %vm5165, %v6662
    %7664 = vst.msk [vmem:[%s7632 + $0x171] sm:$0xff] %vm5165, %v6663
    %7665 = vst.msk [vmem:[%s7632 + $0x1b1] sm:$0xff] %vm5165, %v6664
    %7666 = vst.msk [vmem:[%s7632 + $0x1b9] sm:$0xff] %vm5165, %v6665
    %7667 = vst.msk [vmem:[%s7632 + $0x1c9] sm:$0xff] %vm5165, %v6666
    %7668 = vst.msk [vmem:[%s7632 + $0x1d1] sm:$0xff] %vm5165, %v6667
    %7669 = vst.msk [vmem:[%s7632 + $0x1e1] sm:$0xff] %vm5165, %v6668
    %7670 = vst.msk [vmem:[%s7632 + $0x1e9] sm:$0xff] %vm5165, %v6669
    %7671 = vst.msk [vmem:[%s7632 + $0x1f9] sm:$0xff] %vm5165, %v6670
    %7672 = vst.msk [vmem:[%s7632 + $0x201] sm:$0xff] %vm5165, %v6671
    %7673 = vst.msk [vmem:[%s7632 + $0x211] sm:$0xff] %vm5165, %v6672
    %7674 = vst.msk [vmem:[%s7632 + $0x219] sm:$0xff] %vm5165, %v6673
    %7675 = vst.msk [vmem:[%s7632 + $0x229] sm:$0xff] %vm5165, %v6674
    %7676 = vst.msk [vmem:[%s7632 + $0x231] sm:$0xff] %vm5165, %v6675
    %7677 = vst.msk [vmem:[%s7632 + $0x241] sm:$0xff] %vm5165, %v6676
    %7678 = vst.msk [vmem:[%s7632 + $0x249] sm:$0xff] %vm5165, %v6677
    %7679 = vst.msk [vmem:[%s7632 + $0x259] sm:$0xff] %vm5165, %v6678
    %7680 = vst.msk [vmem:[%s7632 + $0x261] sm:$0xff] %vm5165, %v6679
    %7681 = vst.msk [vmem:[%s7632 + $0x271] sm:$0xff] %vm5165, %v6680
    %7682 = vst.msk [vmem:[%s7632 + $0x279] sm:$0xff] %vm5165, %v6681
    %7683 = vst.msk [vmem:[%s7632 + $0x289] sm:$0xff] %vm5165, %v6682
    %7684 = vst.msk [vmem:[%s7632 + $0x291] sm:$0xff] %vm5165, %v6683
    %7685 = vst.msk [vmem:[%s7632 + $0x2a1] sm:$0xff] %vm5165, %v6684
    %7686 = vst.msk [vmem:[%s7632 + $0x2a9] sm:$0xff] %vm5165, %v6685
    %7687 = vst.msk [vmem:[%s7632 + $0x2b9] sm:$0xff] %vm5165, %v6686
    %7688 = vst.msk [vmem:[%s7632 + $0x2c1] sm:$0xff] %vm5165, %v6687
    %7689 = vst.msk [vmem:[%s7632 + $0x2d1] sm:$0xff] %vm5165, %v6688
    %7690 = vst.msk [vmem:[%s7632 + $0x2d9] sm:$0xff] %vm5165, %v6689
    %7691 = vst.msk [vmem:[%s7632 + $0x2e9] sm:$0xff] %vm5165, %v6690
    %7692 = vst.msk [vmem:[%s7632 + $0x2f1] sm:$0xff] %vm5165, %v6691
    %7693 = vst.msk [vmem:[%s7632 + $0x301] sm:$0xff] %vm5165, %v6692
    %7694 = vst.msk [vmem:[%s7632 + $0x309] sm:$0xff] %vm5165, %v6693
    %7695 = vst.msk [vmem:[%s7632 + $0x319] sm:$0xff] %vm5165, %v6694
    %7696 = vst.msk [vmem:[%s7632 + $0x321] sm:$0xff] %vm5165, %v6695
    %v7697 = vld [vmem:[#allocation2] sm:$0xff]
    %v7698 = vld [vmem:[#allocation2 + $0x8] sm:$0xff]
    %v7699 = vld [vmem:[#allocation2 + $0x18] sm:$0xff]
    %v7700 = vld [vmem:[#allocation2 + $0x20] sm:$0xff]
    %v7701 = vld [vmem:[#allocation2 + $0x30] sm:$0xff]
    %v7702 = vld [vmem:[#allocation2 + $0x38] sm:$0xff]
    %v7703 = vld [vmem:[#allocation2 + $0x48] sm:$0xff]
    %v7704 = vld [vmem:[#allocation2 + $0x50] sm:$0xff]
    %v7705 = vld [vmem:[#allocation2 + $0x60] sm:$0xff]
    %v7706 = vld [vmem:[#allocation2 + $0x68] sm:$0xff]
    %v7707 = vld [vmem:[#allocation2 + $0x78] sm:$0xff]
    %v7708 = vld [vmem:[#allocation2 + $0x80] sm:$0xff]
    %v7709 = vld [vmem:[#allocation2 + $0x90] sm:$0xff]
    %v7710 = vld [vmem:[#allocation2 + $0x98] sm:$0xff]
    %v7711 = vld [vmem:[#allocation2 + $0xa8] sm:$0xff]
    %v7712 = vld [vmem:[#allocation2 + $0xb0] sm:$0xff]
    %v7713 = vld [vmem:[#allocation2 + $0xc0] sm:$0xff]
    %v7714 = vld [vmem:[#allocation2 + $0xc8] sm:$0xff]
    %v7715 = vld [vmem:[#allocation2 + $0xd8] sm:$0xff]
    %v7716 = vld [vmem:[#allocation2 + $0xe0] sm:$0xff]
    %v7717 = vld [vmem:[#allocation2 + $0xf0] sm:$0xff]
    %v7718 = vld [vmem:[#allocation2 + $0xf8] sm:$0xff]
    %v7719 = vld [vmem:[#allocation2 + $0x108] sm:$0xff]
    %v7720 = vld [vmem:[#allocation2 + $0x110] sm:$0xff]
    %v7721 = vld [vmem:[#allocation2 + $0x120] sm:$0xff]
    %v7722 = vld [vmem:[#allocation2 + $0x128] sm:$0xff]
    %v7723 = vld [vmem:[#allocation2 + $0x138] sm:$0xff]
    %v7724 = vld [vmem:[#allocation2 + $0x140] sm:$0xff]
    %v7725 = vld [vmem:[#allocation2 + $0x150] sm:$0xff]
    %v7726 = vld [vmem:[#allocation2 + $0x158] sm:$0xff]
    %v7727 = vld [vmem:[#allocation2 + $0x168] sm:$0xff]
    %v7728 = vld [vmem:[#allocation2 + $0x170] sm:$0xff]
    %v7729 = vld [vmem:[#allocation2 + $0x1b0] sm:$0xff]
    %v7730 = vld [vmem:[#allocation2 + $0x1b8] sm:$0xff]
    %v7731 = vld [vmem:[#allocation2 + $0x1c8] sm:$0xff]
    %v7732 = vld [vmem:[#allocation2 + $0x1d0] sm:$0xff]
    %v7733 = vld [vmem:[#allocation2 + $0x1e0] sm:$0xff]
    %v7734 = vld [vmem:[#allocation2 + $0x1e8] sm:$0xff]
    %v7735 = vld [vmem:[#allocation2 + $0x1f8] sm:$0xff]
    %v7736 = vld [vmem:[#allocation2 + $0x200] sm:$0xff]
    %v7737 = vld [vmem:[#allocation2 + $0x210] sm:$0xff]
    %v7738 = vld [vmem:[#allocation2 + $0x218] sm:$0xff]
    %v7739 = vld [vmem:[#allocation2 + $0x228] sm:$0xff]
    %v7740 = vld [vmem:[#allocation2 + $0x230] sm:$0xff]
    %v7741 = vld [vmem:[#allocation2 + $0x240] sm:$0xff]
    %v7742 = vld [vmem:[#allocation2 + $0x248] sm:$0xff]
    %v7743 = vld [vmem:[#allocation2 + $0x258] sm:$0xff]
    %v7744 = vld [vmem:[#allocation2 + $0x260] sm:$0xff]
    %v7745 = vld [vmem:[#allocation2 + $0x270] sm:$0xff]
    %v7746 = vld [vmem:[#allocation2 + $0x278] sm:$0xff]
    %v7747 = vld [vmem:[#allocation2 + $0x288] sm:$0xff]
    %v7748 = vld [vmem:[#allocation2 + $0x290] sm:$0xff]
    %v7749 = vld [vmem:[#allocation2 + $0x2a0] sm:$0xff]
    %v7750 = vld [vmem:[#allocation2 + $0x2a8] sm:$0xff]
    %v7751 = vld [vmem:[#allocation2 + $0x2b8] sm:$0xff]
    %v7752 = vld [vmem:[#allocation2 + $0x2c0] sm:$0xff]
    %v7753 = vld [vmem:[#allocation2 + $0x2d0] sm:$0xff]
    %v7754 = vld [vmem:[#allocation2 + $0x2d8] sm:$0xff]
    %v7755 = vld [vmem:[#allocation2 + $0x2e8] sm:$0xff]
    %v7756 = vld [vmem:[#allocation2 + $0x2f0] sm:$0xff]
    %v7757 = vld [vmem:[#allocation2 + $0x300] sm:$0xff]
    %v7758 = vld [vmem:[#allocation2 + $0x308] sm:$0xff]
    %v7759 = vld [vmem:[#allocation2 + $0x318] sm:$0xff]
    %v7760 = vld [vmem:[#allocation2 + $0x320] sm:$0xff]
    %v7761 = vpack.c.bf16 %v7698, %v7697
    %v7762 = vpack.c.bf16 %v7700, %v7699
    %v7763 = vpack.c.bf16 %v7702, %v7701
    %v7764 = vpack.c.bf16 %v7704, %v7703
    %v7765 = vpack.c.bf16 %v7706, %v7705
    %v7766 = vpack.c.bf16 %v7708, %v7707
    %v7767 = vpack.c.bf16 %v7710, %v7709
    %v7768 = vpack.c.bf16 %v7712, %v7711
    %v7769 = vpack.c.bf16 %v7714, %v7713
    %v7770 = vpack.c.bf16 %v7716, %v7715
    %v7771 = vpack.c.bf16 %v7718, %v7717
    %v7772 = vpack.c.bf16 %v7720, %v7719
    %v7773 = vpack.c.bf16 %v7722, %v7721
    %v7774 = vpack.c.bf16 %v7724, %v7723
    %v7775 = vpack.c.bf16 %v7726, %v7725
    %v7776 = vpack.c.bf16 %v7728, %v7727
    %v7777 = vpack.c.bf16 %v7730, %v7729
    %v7778 = vpack.c.bf16 %v7732, %v7731
    %v7779 = vpack.c.bf16 %v7734, %v7733
    %v7780 = vpack.c.bf16 %v7736, %v7735
    %v7781 = vpack.c.bf16 %v7738, %v7737
    %v7782 = vpack.c.bf16 %v7740, %v7739
    %v7783 = vpack.c.bf16 %v7742, %v7741
    %v7784 = vpack.c.bf16 %v7744, %v7743
    %v7785 = vpack.c.bf16 %v7746, %v7745
    %v7786 = vpack.c.bf16 %v7748, %v7747
    %v7787 = vpack.c.bf16 %v7750, %v7749
    %v7788 = vpack.c.bf16 %v7752, %v7751
    %v7789 = vpack.c.bf16 %v7754, %v7753
    %v7790 = vpack.c.bf16 %v7756, %v7755
    %v7791 = vpack.c.bf16 %v7758, %v7757
    %v7792 = vpack.c.bf16 %v7760, %v7759
    %v7793 = vld [vmem:[#allocation2 + $0x1] sm:$0xff]
    %v7794 = vld [vmem:[#allocation2 + $0x9] sm:$0xff]
    %v7795 = vld [vmem:[#allocation2 + $0x19] sm:$0xff]
    %v7796 = vld [vmem:[#allocation2 + $0x21] sm:$0xff]
    %v7797 = vld [vmem:[#allocation2 + $0x31] sm:$0xff]
    %v7798 = vld [vmem:[#allocation2 + $0x39] sm:$0xff]
    %v7799 = vld [vmem:[#allocation2 + $0x49] sm:$0xff]
    %v7800 = vld [vmem:[#allocation2 + $0x51] sm:$0xff]
    %v7801 = vld [vmem:[#allocation2 + $0x61] sm:$0xff]
    %v7802 = vld [vmem:[#allocation2 + $0x69] sm:$0xff]
    %v7803 = vld [vmem:[#allocation2 + $0x79] sm:$0xff]
    %v7804 = vld [vmem:[#allocation2 + $0x81] sm:$0xff]
    %v7805 = vld [vmem:[#allocation2 + $0x91] sm:$0xff]
    %v7806 = vld [vmem:[#allocation2 + $0x99] sm:$0xff]
    %v7807 = vld [vmem:[#allocation2 + $0xa9] sm:$0xff]
    %v7808 = vld [vmem:[#allocation2 + $0xb1] sm:$0xff]
    %v7809 = vld [vmem:[#allocation2 + $0xc1] sm:$0xff]
    %v7810 = vld [vmem:[#allocation2 + $0xc9] sm:$0xff]
    %v7811 = vld [vmem:[#allocation2 + $0xd9] sm:$0xff]
    %v7812 = vld [vmem:[#allocation2 + $0xe1] sm:$0xff]
    %v7813 = vld [vmem:[#allocation2 + $0xf1] sm:$0xff]
    %v7814 = vld [vmem:[#allocation2 + $0xf9] sm:$0xff]
    %v7815 = vld [vmem:[#allocation2 + $0x109] sm:$0xff]
    %v7816 = vld [vmem:[#allocation2 + $0x111] sm:$0xff]
    %v7817 = vld [vmem:[#allocation2 + $0x121] sm:$0xff]
    %v7818 = vld [vmem:[#allocation2 + $0x129] sm:$0xff]
    %v7819 = vld [vmem:[#allocation2 + $0x139] sm:$0xff]
    %v7820 = vld [vmem:[#allocation2 + $0x141] sm:$0xff]
    %v7821 = vld [vmem:[#allocation2 + $0x151] sm:$0xff]
    %v7822 = vld [vmem:[#allocation2 + $0x159] sm:$0xff]
    %v7823 = vld [vmem:[#allocation2 + $0x169] sm:$0xff]
    %v7824 = vld [vmem:[#allocation2 + $0x171] sm:$0xff]
    %v7825 = vld [vmem:[#allocation2 + $0x1b1] sm:$0xff]
    %v7826 = vld [vmem:[#allocation2 + $0x1b9] sm:$0xff]
    %v7827 = vld [vmem:[#allocation2 + $0x1c9] sm:$0xff]
    %v7828 = vld [vmem:[#allocation2 + $0x1d1] sm:$0xff]
    %v7829 = vld [vmem:[#allocation2 + $0x1e1] sm:$0xff]
    %v7830 = vld [vmem:[#allocation2 + $0x1e9] sm:$0xff]
    %v7831 = vld [vmem:[#allocation2 + $0x1f9] sm:$0xff]
    %v7832 = vld [vmem:[#allocation2 + $0x201] sm:$0xff]
    %v7833 = vld [vmem:[#allocation2 + $0x211] sm:$0xff]
    %v7834 = vld [vmem:[#allocation2 + $0x219] sm:$0xff]
    %v7835 = vld [vmem:[#allocation2 + $0x229] sm:$0xff]
    %v7836 = vld [vmem:[#allocation2 + $0x231] sm:$0xff]
    %v7837 = vld [vmem:[#allocation2 + $0x241] sm:$0xff]
    %v7838 = vld [vmem:[#allocation2 + $0x249] sm:$0xff]
    %v7839 = vld [vmem:[#allocation2 + $0x259] sm:$0xff]
    %v7840 = vld [vmem:[#allocation2 + $0x261] sm:$0xff]
    %v7841 = vld [vmem:[#allocation2 + $0x271] sm:$0xff]
    %v7842 = vld [vmem:[#allocation2 + $0x279] sm:$0xff]
    %v7843 = vld [vmem:[#allocation2 + $0x289] sm:$0xff]
    %v7844 = vld [vmem:[#allocation2 + $0x291] sm:$0xff]
    %v7845 = vld [vmem:[#allocation2 + $0x2a1] sm:$0xff]
    %v7846 = vld [vmem:[#allocation2 + $0x2a9] sm:$0xff]
    %v7847 = vld [vmem:[#allocation2 + $0x2b9] sm:$0xff]
    %v7848 = vld [vmem:[#allocation2 + $0x2c1] sm:$0xff]
    %v7849 = vld [vmem:[#allocation2 + $0x2d1] sm:$0xff]
    %v7850 = vld [vmem:[#allocation2 + $0x2d9] sm:$0xff]
    %v7851 = vld [vmem:[#allocation2 + $0x2e9] sm:$0xff]
    %v7852 = vld [vmem:[#allocation2 + $0x2f1] sm:$0xff]
    %v7853 = vld [vmem:[#allocation2 + $0x301] sm:$0xff]
    %v7854 = vld [vmem:[#allocation2 + $0x309] sm:$0xff]
    %v7855 = vld [vmem:[#allocation2 + $0x319] sm:$0xff]
    %v7856 = vld [vmem:[#allocation2 + $0x321] sm:$0xff]
    %v7857 = vpack.c.bf16 %v7794, %v7793
    %v7858 = vpack.c.bf16 %v7796, %v7795
    %v7859 = vpack.c.bf16 %v7798, %v7797
    %v7860 = vpack.c.bf16 %v7800, %v7799
    %v7861 = vpack.c.bf16 %v7802, %v7801
    %v7862 = vpack.c.bf16 %v7804, %v7803
    %v7863 = vpack.c.bf16 %v7806, %v7805
    %v7864 = vpack.c.bf16 %v7808, %v7807
    %v7865 = vpack.c.bf16 %v7810, %v7809
    %v7866 = vpack.c.bf16 %v7812, %v7811
    %v7867 = vpack.c.bf16 %v7814, %v7813
    %v7868 = vpack.c.bf16 %v7816, %v7815
    %v7869 = vpack.c.bf16 %v7818, %v7817
    %v7870 = vpack.c.bf16 %v7820, %v7819
    %v7871 = vpack.c.bf16 %v7822, %v7821
    %v7872 = vpack.c.bf16 %v7824, %v7823
    %v7873 = vpack.c.bf16 %v7826, %v7825
    %v7874 = vpack.c.bf16 %v7828, %v7827
    %v7875 = vpack.c.bf16 %v7830, %v7829
    %v7876 = vpack.c.bf16 %v7832, %v7831
    %v7877 = vpack.c.bf16 %v7834, %v7833
    %v7878 = vpack.c.bf16 %v7836, %v7835
    %v7879 = vpack.c.bf16 %v7838, %v7837
    %v7880 = vpack.c.bf16 %v7840, %v7839
    %v7881 = vpack.c.bf16 %v7842, %v7841
    %v7882 = vpack.c.bf16 %v7844, %v7843
    %v7883 = vpack.c.bf16 %v7846, %v7845
    %v7884 = vpack.c.bf16 %v7848, %v7847
    %v7885 = vpack.c.bf16 %v7850, %v7849
    %v7886 = vpack.c.bf16 %v7852, %v7851
    %v7887 = vpack.c.bf16 %v7854, %v7853
    %v7888 = vpack.c.bf16 %v7856, %v7855
    %v7889 = vld [vmem:[#allocation2 + $0x2] sm:$0xff]
    %v7890 = vld [vmem:[#allocation2 + $0xa] sm:$0xff]
    %v7891 = vld [vmem:[#allocation2 + $0x1a] sm:$0xff]
    %v7892 = vld [vmem:[#allocation2 + $0x22] sm:$0xff]
    %v7893 = vld [vmem:[#allocation2 + $0x32] sm:$0xff]
    %v7894 = vld [vmem:[#allocation2 + $0x3a] sm:$0xff]
    %v7895 = vld [vmem:[#allocation2 + $0x4a] sm:$0xff]
    %v7896 = vld [vmem:[#allocation2 + $0x52] sm:$0xff]
    %v7897 = vld [vmem:[#allocation2 + $0x62] sm:$0xff]
    %v7898 = vld [vmem:[#allocation2 + $0x6a] sm:$0xff]
    %v7899 = vld [vmem:[#allocation2 + $0x7a] sm:$0xff]
    %v7900 = vld [vmem:[#allocation2 + $0x82] sm:$0xff]
    %v7901 = vld [vmem:[#allocation2 + $0x92] sm:$0xff]
    %v7902 = vld [vmem:[#allocation2 + $0x9a] sm:$0xff]
    %v7903 = vld [vmem:[#allocation2 + $0xaa] sm:$0xff]
    %v7904 = vld [vmem:[#allocation2 + $0xb2] sm:$0xff]
    %v7905 = vld [vmem:[#allocation2 + $0xc2] sm:$0xff]
    %v7906 = vld [vmem:[#allocation2 + $0xca] sm:$0xff]
    %v7907 = vld [vmem:[#allocation2 + $0xda] sm:$0xff]
    %v7908 = vld [vmem:[#allocation2 + $0xe2] sm:$0xff]
    %v7909 = vld [vmem:[#allocation2 + $0xf2] sm:$0xff]
    %v7910 = vld [vmem:[#allocation2 + $0xfa] sm:$0xff]
    %v7911 = vld [vmem:[#allocation2 + $0x10a] sm:$0xff]
    %v7912 = vld [vmem:[#allocation2 + $0x112] sm:$0xff]
    %v7913 = vld [vmem:[#allocation2 + $0x122] sm:$0xff]
    %v7914 = vld [vmem:[#allocation2 + $0x12a] sm:$0xff]
    %v7915 = vld [vmem:[#allocation2 + $0x13a] sm:$0xff]
    %v7916 = vld [vmem:[#allocation2 + $0x142] sm:$0xff]
    %v7917 = vld [vmem:[#allocation2 + $0x152] sm:$0xff]
    %v7918 = vld [vmem:[#allocation2 + $0x15a] sm:$0xff]
    %v7919 = vld [vmem:[#allocation2 + $0x16a] sm:$0xff]
    %v7920 = vld [vmem:[#allocation2 + $0x172] sm:$0xff]
    %v7921 = vld [vmem:[#allocation2 + $0x1b2] sm:$0xff]
    %v7922 = vld [vmem:[#allocation2 + $0x1ba] sm:$0xff]
    %v7923 = vld [vmem:[#allocation2 + $0x1ca] sm:$0xff]
    %v7924 = vld [vmem:[#allocation2 + $0x1d2] sm:$0xff]
    %v7925 = vld [vmem:[#allocation2 + $0x1e2] sm:$0xff]
    %v7926 = vld [vmem:[#allocation2 + $0x1ea] sm:$0xff]
    %v7927 = vld [vmem:[#allocation2 + $0x1fa] sm:$0xff]
    %v7928 = vld [vmem:[#allocation2 + $0x202] sm:$0xff]
    %v7929 = vld [vmem:[#allocation2 + $0x212] sm:$0xff]
    %v7930 = vld [vmem:[#allocation2 + $0x21a] sm:$0xff]
    %v7931 = vld [vmem:[#allocation2 + $0x22a] sm:$0xff]
    %v7932 = vld [vmem:[#allocation2 + $0x232] sm:$0xff]
    %v7933 = vld [vmem:[#allocation2 + $0x242] sm:$0xff]
    %v7934 = vld [vmem:[#allocation2 + $0x24a] sm:$0xff]
    %v7935 = vld [vmem:[#allocation2 + $0x25a] sm:$0xff]
    %v7936 = vld [vmem:[#allocation2 + $0x262] sm:$0xff]
    %v7937 = vld [vmem:[#allocation2 + $0x272] sm:$0xff]
    %v7938 = vld [vmem:[#allocation2 + $0x27a] sm:$0xff]
    %v7939 = vld [vmem:[#allocation2 + $0x28a] sm:$0xff]
    %v7940 = vld [vmem:[#allocation2 + $0x292] sm:$0xff]
    %v7941 = vld [vmem:[#allocation2 + $0x2a2] sm:$0xff]
    %v7942 = vld [vmem:[#allocation2 + $0x2aa] sm:$0xff]
    %v7943 = vld [vmem:[#allocation2 + $0x2ba] sm:$0xff]
    %v7944 = vld [vmem:[#allocation2 + $0x2c2] sm:$0xff]
    %v7945 = vld [vmem:[#allocation2 + $0x2d2] sm:$0xff]
    %v7946 = vld [vmem:[#allocation2 + $0x2da] sm:$0xff]
    %v7947 = vld [vmem:[#allocation2 + $0x2ea] sm:$0xff]
    %v7948 = vld [vmem:[#allocation2 + $0x2f2] sm:$0xff]
    %v7949 = vld [vmem:[#allocation2 + $0x302] sm:$0xff]
    %v7950 = vld [vmem:[#allocation2 + $0x30a] sm:$0xff]
    %v7951 = vld [vmem:[#allocation2 + $0x31a] sm:$0xff]
    %v7952 = vld [vmem:[#allocation2 + $0x322] sm:$0xff]
    %v7953 = vpack.c.bf16 %v7890, %v7889
    %v7954 = vpack.c.bf16 %v7892, %v7891
    %v7955 = vpack.c.bf16 %v7894, %v7893
    %v7956 = vpack.c.bf16 %v7896, %v7895
    %v7957 = vpack.c.bf16 %v7898, %v7897
    %v7958 = vpack.c.bf16 %v7900, %v7899
    %v7959 = vpack.c.bf16 %v7902, %v7901
    %v7960 = vpack.c.bf16 %v7904, %v7903
    %v7961 = vpack.c.bf16 %v7906, %v7905
    %v7962 = vpack.c.bf16 %v7908, %v7907
    %v7963 = vpack.c.bf16 %v7910, %v7909
    %v7964 = vpack.c.bf16 %v7912, %v7911
    %v7965 = vpack.c.bf16 %v7914, %v7913
    %v7966 = vpack.c.bf16 %v7916, %v7915
    %v7967 = vpack.c.bf16 %v7918, %v7917
    %v7968 = vpack.c.bf16 %v7920, %v7919
    %v7969 = vpack.c.bf16 %v7922, %v7921
    %v7970 = vpack.c.bf16 %v7924, %v7923
    %v7971 = vpack.c.bf16 %v7926, %v7925
    %v7972 = vpack.c.bf16 %v7928, %v7927
    %v7973 = vpack.c.bf16 %v7930, %v7929
    %v7974 = vpack.c.bf16 %v7932, %v7931
    %v7975 = vpack.c.bf16 %v7934, %v7933
    %v7976 = vpack.c.bf16 %v7936, %v7935
    %v7977 = vpack.c.bf16 %v7938, %v7937
    %v7978 = vpack.c.bf16 %v7940, %v7939
    %v7979 = vpack.c.bf16 %v7942, %v7941
    %v7980 = vpack.c.bf16 %v7944, %v7943
    %v7981 = vpack.c.bf16 %v7946, %v7945
    %v7982 = vpack.c.bf16 %v7948, %v7947
    %v7983 = vpack.c.bf16 %v7950, %v7949
    %v7984 = vpack.c.bf16 %v7952, %v7951
    %v7985 = vld [vmem:[%s7632] sm:$0xff]
    %v7986 = vld [vmem:[%s7632 + $0x8] sm:$0xff]
    %v7987 = vld [vmem:[%s7632 + $0x18] sm:$0xff]
    %v7988 = vld [vmem:[%s7632 + $0x20] sm:$0xff]
    %v7989 = vld [vmem:[%s7632 + $0x30] sm:$0xff]
    %v7990 = vld [vmem:[%s7632 + $0x38] sm:$0xff]
    %v7991 = vld [vmem:[%s7632 + $0x48] sm:$0xff]
    %v7992 = vld [vmem:[%s7632 + $0x50] sm:$0xff]
    %v7993 = vld [vmem:[%s7632 + $0x60] sm:$0xff]
    %v7994 = vld [vmem:[%s7632 + $0x68] sm:$0xff]
    %v7995 = vld [vmem:[%s7632 + $0x78] sm:$0xff]
    %v7996 = vld [vmem:[%s7632 + $0x80] sm:$0xff]
    %v7997 = vld [vmem:[%s7632 + $0x90] sm:$0xff]
    %v7998 = vld [vmem:[%s7632 + $0x98] sm:$0xff]
    %v7999 = vld [vmem:[%s7632 + $0xa8] sm:$0xff]
    %v8000 = vld [vmem:[%s7632 + $0xb0] sm:$0xff]
    %v8001 = vld [vmem:[%s7632 + $0xc0] sm:$0xff]
    %v8002 = vld [vmem:[%s7632 + $0xc8] sm:$0xff]
    %v8003 = vld [vmem:[%s7632 + $0xd8] sm:$0xff]
    %v8004 = vld [vmem:[%s7632 + $0xe0] sm:$0xff]
    %v8005 = vld [vmem:[%s7632 + $0xf0] sm:$0xff]
    %v8006 = vld [vmem:[%s7632 + $0xf8] sm:$0xff]
    %v8007 = vld [vmem:[%s7632 + $0x108] sm:$0xff]
    %v8008 = vld [vmem:[%s7632 + $0x110] sm:$0xff]
    %v8009 = vld [vmem:[%s7632 + $0x120] sm:$0xff]
    %v8010 = vld [vmem:[%s7632 + $0x128] sm:$0xff]
    %v8011 = vld [vmem:[%s7632 + $0x138] sm:$0xff]
    %v8012 = vld [vmem:[%s7632 + $0x140] sm:$0xff]
    %v8013 = vld [vmem:[%s7632 + $0x150] sm:$0xff]
    %v8014 = vld [vmem:[%s7632 + $0x158] sm:$0xff]
    %v8015 = vld [vmem:[%s7632 + $0x168] sm:$0xff]
    %v8016 = vld [vmem:[%s7632 + $0x170] sm:$0xff]
    %v8017 = vld [vmem:[%s7632 + $0x1b0] sm:$0xff]
    %v8018 = vld [vmem:[%s7632 + $0x1b8] sm:$0xff]
    %v8019 = vld [vmem:[%s7632 + $0x1c8] sm:$0xff]
    %v8020 = vld [vmem:[%s7632 + $0x1d0] sm:$0xff]
    %v8021 = vld [vmem:[%s7632 + $0x1e0] sm:$0xff]
    %v8022 = vld [vmem:[%s7632 + $0x1e8] sm:$0xff]
    %v8023 = vld [vmem:[%s7632 + $0x1f8] sm:$0xff]
    %v8024 = vld [vmem:[%s7632 + $0x200] sm:$0xff]
    %v8025 = vld [vmem:[%s7632 + $0x210] sm:$0xff]
    %v8026 = vld [vmem:[%s7632 + $0x218] sm:$0xff]
    %v8027 = vld [vmem:[%s7632 + $0x228] sm:$0xff]
    %v8028 = vld [vmem:[%s7632 + $0x230] sm:$0xff]
    %v8029 = vld [vmem:[%s7632 + $0x240] sm:$0xff]
    %v8030 = vld [vmem:[%s7632 + $0x248] sm:$0xff]
    %v8031 = vld [vmem:[%s7632 + $0x258] sm:$0xff]
    %v8032 = vld [vmem:[%s7632 + $0x260] sm:$0xff]
    %v8033 = vld [vmem:[%s7632 + $0x270] sm:$0xff]
    %v8034 = vld [vmem:[%s7632 + $0x278] sm:$0xff]
    %v8035 = vld [vmem:[%s7632 + $0x288] sm:$0xff]
    %v8036 = vld [vmem:[%s7632 + $0x290] sm:$0xff]
    %v8037 = vld [vmem:[%s7632 + $0x2a0] sm:$0xff]
    %v8038 = vld [vmem:[%s7632 + $0x2a8] sm:$0xff]
    %v8039 = vld [vmem:[%s7632 + $0x2b8] sm:$0xff]
    %v8040 = vld [vmem:[%s7632 + $0x2c0] sm:$0xff]
    %v8041 = vld [vmem:[%s7632 + $0x2d0] sm:$0xff]
    %v8042 = vld [vmem:[%s7632 + $0x2d8] sm:$0xff]
    %v8043 = vld [vmem:[%s7632 + $0x2e8] sm:$0xff]
    %v8044 = vld [vmem:[%s7632 + $0x2f0] sm:$0xff]
    %v8045 = vld [vmem:[%s7632 + $0x300] sm:$0xff]
    %v8046 = vld [vmem:[%s7632 + $0x308] sm:$0xff]
    %v8047 = vld [vmem:[%s7632 + $0x318] sm:$0xff]
    %v8048 = vld [vmem:[%s7632 + $0x320] sm:$0xff]
    %v8049 = vpack.c.bf16 %v7986, %v7985
    %v8050 = vpack.c.bf16 %v7988, %v7987
    %v8051 = vpack.c.bf16 %v7990, %v7989
    %v8052 = vpack.c.bf16 %v7992, %v7991
    %v8053 = vpack.c.bf16 %v7994, %v7993
    %v8054 = vpack.c.bf16 %v7996, %v7995
    %v8055 = vpack.c.bf16 %v7998, %v7997
    %v8056 = vpack.c.bf16 %v8000, %v7999
    %v8057 = vpack.c.bf16 %v8002, %v8001
    %v8058 = vpack.c.bf16 %v8004, %v8003
    %v8059 = vpack.c.bf16 %v8006, %v8005
    %v8060 = vpack.c.bf16 %v8008, %v8007
    %v8061 = vpack.c.bf16 %v8010, %v8009
    %v8062 = vpack.c.bf16 %v8012, %v8011
    %v8063 = vpack.c.bf16 %v8014, %v8013
    %v8064 = vpack.c.bf16 %v8016, %v8015
    %v8065 = vpack.c.bf16 %v8018, %v8017
    %v8066 = vpack.c.bf16 %v8020, %v8019
    %v8067 = vpack.c.bf16 %v8022, %v8021
    %v8068 = vpack.c.bf16 %v8024, %v8023
    %v8069 = vpack.c.bf16 %v8026, %v8025
    %v8070 = vpack.c.bf16 %v8028, %v8027
    %v8071 = vpack.c.bf16 %v8030, %v8029
    %v8072 = vpack.c.bf16 %v8032, %v8031
    %v8073 = vpack.c.bf16 %v8034, %v8033
    %v8074 = vpack.c.bf16 %v8036, %v8035
    %v8075 = vpack.c.bf16 %v8038, %v8037
    %v8076 = vpack.c.bf16 %v8040, %v8039
    %v8077 = vpack.c.bf16 %v8042, %v8041
    %v8078 = vpack.c.bf16 %v8044, %v8043
    %v8079 = vpack.c.bf16 %v8046, %v8045
    %v8080 = vpack.c.bf16 %v8048, %v8047
    %v8081 = vld [vmem:[%s7632 + $0x1] sm:$0xff]
    %v8082 = vld [vmem:[%s7632 + $0x9] sm:$0xff]
    %v8083 = vld [vmem:[%s7632 + $0x19] sm:$0xff]
    %v8084 = vld [vmem:[%s7632 + $0x21] sm:$0xff]
    %v8085 = vld [vmem:[%s7632 + $0x31] sm:$0xff]
    %v8086 = vld [vmem:[%s7632 + $0x39] sm:$0xff]
    %v8087 = vld [vmem:[%s7632 + $0x49] sm:$0xff]
    %v8088 = vld [vmem:[%s7632 + $0x51] sm:$0xff]
    %v8089 = vld [vmem:[%s7632 + $0x61] sm:$0xff]
    %v8090 = vld [vmem:[%s7632 + $0x69] sm:$0xff]
    %v8091 = vld [vmem:[%s7632 + $0x79] sm:$0xff]
    %v8092 = vld [vmem:[%s7632 + $0x81] sm:$0xff]
    %v8093 = vld [vmem:[%s7632 + $0x91] sm:$0xff]
    %v8094 = vld [vmem:[%s7632 + $0x99] sm:$0xff]
    %v8095 = vld [vmem:[%s7632 + $0xa9] sm:$0xff]
    %v8096 = vld [vmem:[%s7632 + $0xb1] sm:$0xff]
    %v8097 = vld [vmem:[%s7632 + $0xc1] sm:$0xff]
    %v8098 = vld [vmem:[%s7632 + $0xc9] sm:$0xff]
    %v8099 = vld [vmem:[%s7632 + $0xd9] sm:$0xff]
    %v8100 = vld [vmem:[%s7632 + $0xe1] sm:$0xff]
    %v8101 = vld [vmem:[%s7632 + $0xf1] sm:$0xff]
    %v8102 = vld [vmem:[%s7632 + $0xf9] sm:$0xff]
    %v8103 = vld [vmem:[%s7632 + $0x109] sm:$0xff]
    %v8104 = vld [vmem:[%s7632 + $0x111] sm:$0xff]
    %v8105 = vld [vmem:[%s7632 + $0x121] sm:$0xff]
    %v8106 = vld [vmem:[%s7632 + $0x129] sm:$0xff]
    %v8107 = vld [vmem:[%s7632 + $0x139] sm:$0xff]
    %v8108 = vld [vmem:[%s7632 + $0x141] sm:$0xff]
    %v8109 = vld [vmem:[%s7632 + $0x151] sm:$0xff]
    %v8110 = vld [vmem:[%s7632 + $0x159] sm:$0xff]
    %v8111 = vld [vmem:[%s7632 + $0x169] sm:$0xff]
    %v8112 = vld [vmem:[%s7632 + $0x171] sm:$0xff]
    %v8113 = vld [vmem:[%s7632 + $0x1b1] sm:$0xff]
    %v8114 = vld [vmem:[%s7632 + $0x1b9] sm:$0xff]
    %v8115 = vld [vmem:[%s7632 + $0x1c9] sm:$0xff]
    %v8116 = vld [vmem:[%s7632 + $0x1d1] sm:$0xff]
    %v8117 = vld [vmem:[%s7632 + $0x1e1] sm:$0xff]
    %v8118 = vld [vmem:[%s7632 + $0x1e9] sm:$0xff]
    %v8119 = vld [vmem:[%s7632 + $0x1f9] sm:$0xff]
    %v8120 = vld [vmem:[%s7632 + $0x201] sm:$0xff]
    %v8121 = vld [vmem:[%s7632 + $0x211] sm:$0xff]
    %v8122 = vld [vmem:[%s7632 + $0x219] sm:$0xff]
    %v8123 = vld [vmem:[%s7632 + $0x229] sm:$0xff]
    %v8124 = vld [vmem:[%s7632 + $0x231] sm:$0xff]
    %v8125 = vld [vmem:[%s7632 + $0x241] sm:$0xff]
    %v8126 = vld [vmem:[%s7632 + $0x249] sm:$0xff]
    %v8127 = vld [vmem:[%s7632 + $0x259] sm:$0xff]
    %v8128 = vld [vmem:[%s7632 + $0x261] sm:$0xff]
    %v8129 = vld [vmem:[%s7632 + $0x271] sm:$0xff]
    %v8130 = vld [vmem:[%s7632 + $0x279] sm:$0xff]
    %v8131 = vld [vmem:[%s7632 + $0x289] sm:$0xff]
    %v8132 = vld [vmem:[%s7632 + $0x291] sm:$0xff]
    %v8133 = vld [vmem:[%s7632 + $0x2a1] sm:$0xff]
    %v8134 = vld [vmem:[%s7632 + $0x2a9] sm:$0xff]
    %v8135 = vld [vmem:[%s7632 + $0x2b9] sm:$0xff]
    %v8136 = vld [vmem:[%s7632 + $0x2c1] sm:$0xff]
    %v8137 = vld [vmem:[%s7632 + $0x2d1] sm:$0xff]
    %v8138 = vld [vmem:[%s7632 + $0x2d9] sm:$0xff]
    %v8139 = vld [vmem:[%s7632 + $0x2e9] sm:$0xff]
    %v8140 = vld [vmem:[%s7632 + $0x2f1] sm:$0xff]
    %v8141 = vld [vmem:[%s7632 + $0x301] sm:$0xff]
    %v8142 = vld [vmem:[%s7632 + $0x309] sm:$0xff]
    %v8143 = vld [vmem:[%s7632 + $0x319] sm:$0xff]
    %v8144 = vld [vmem:[%s7632 + $0x321] sm:$0xff]
    %v8145 = vpack.c.bf16 %v8082, %v8081
    %v8146 = vpack.c.bf16 %v8084, %v8083
    %v8147 = vpack.c.bf16 %v8086, %v8085
    %v8148 = vpack.c.bf16 %v8088, %v8087
    %v8149 = vpack.c.bf16 %v8090, %v8089
    %v8150 = vpack.c.bf16 %v8092, %v8091
    %v8151 = vpack.c.bf16 %v8094, %v8093
    %v8152 = vpack.c.bf16 %v8096, %v8095
    %v8153 = vpack.c.bf16 %v8098, %v8097
    %v8154 = vpack.c.bf16 %v8100, %v8099
    %v8155 = vpack.c.bf16 %v8102, %v8101
    %v8156 = vpack.c.bf16 %v8104, %v8103
    %v8157 = vpack.c.bf16 %v8106, %v8105
    %v8158 = vpack.c.bf16 %v8108, %v8107
    %v8159 = vpack.c.bf16 %v8110, %v8109
    %v8160 = vpack.c.bf16 %v8112, %v8111
    %v8161 = vpack.c.bf16 %v8114, %v8113
    %v8162 = vpack.c.bf16 %v8116, %v8115
    %v8163 = vpack.c.bf16 %v8118, %v8117
    %v8164 = vpack.c.bf16 %v8120, %v8119
    %v8165 = vpack.c.bf16 %v8122, %v8121
    %v8166 = vpack.c.bf16 %v8124, %v8123
    %v8167 = vpack.c.bf16 %v8126, %v8125
    %v8168 = vpack.c.bf16 %v8128, %v8127
    %v8169 = vpack.c.bf16 %v8130, %v8129
    %v8170 = vpack.c.bf16 %v8132, %v8131
    %v8171 = vpack.c.bf16 %v8134, %v8133
    %v8172 = vpack.c.bf16 %v8136, %v8135
    %v8173 = vpack.c.bf16 %v8138, %v8137
    %v8174 = vpack.c.bf16 %v8140, %v8139
    %v8175 = vpack.c.bf16 %v8142, %v8141
    %v8176 = vpack.c.bf16 %v8144, %v8143
    %v8177 = vld [vmem:[%s7632 + $0x2] sm:$0xff]
    %v8178 = vld [vmem:[%s7632 + $0xa] sm:$0xff]
    %v8179 = vld [vmem:[%s7632 + $0x1a] sm:$0xff]
    %v8180 = vld [vmem:[%s7632 + $0x22] sm:$0xff]
    %v8181 = vld [vmem:[%s7632 + $0x32] sm:$0xff]
    %v8182 = vld [vmem:[%s7632 + $0x3a] sm:$0xff]
    %v8183 = vld [vmem:[%s7632 + $0x4a] sm:$0xff]
    %v8184 = vld [vmem:[%s7632 + $0x52] sm:$0xff]
    %v8185 = vld [vmem:[%s7632 + $0x62] sm:$0xff]
    %v8186 = vld [vmem:[%s7632 + $0x6a] sm:$0xff]
    %v8187 = vld [vmem:[%s7632 + $0x7a] sm:$0xff]
    %v8188 = vld [vmem:[%s7632 + $0x82] sm:$0xff]
    %v8189 = vld [vmem:[%s7632 + $0x92] sm:$0xff]
    %v8190 = vld [vmem:[%s7632 + $0x9a] sm:$0xff]
    %v8191 = vld [vmem:[%s7632 + $0xaa] sm:$0xff]
    %v8192 = vld [vmem:[%s7632 + $0xb2] sm:$0xff]
    %v8193 = vld [vmem:[%s7632 + $0xc2] sm:$0xff]
    %v8194 = vld [vmem:[%s7632 + $0xca] sm:$0xff]
    %v8195 = vld [vmem:[%s7632 + $0xda] sm:$0xff]
    %v8196 = vld [vmem:[%s7632 + $0xe2] sm:$0xff]
    %v8197 = vld [vmem:[%s7632 + $0xf2] sm:$0xff]
    %v8198 = vld [vmem:[%s7632 + $0xfa] sm:$0xff]
    %v8199 = vld [vmem:[%s7632 + $0x10a] sm:$0xff]
    %v8200 = vld [vmem:[%s7632 + $0x112] sm:$0xff]
    %v8201 = vld [vmem:[%s7632 + $0x122] sm:$0xff]
    %v8202 = vld [vmem:[%s7632 + $0x12a] sm:$0xff]
    %v8203 = vld [vmem:[%s7632 + $0x13a] sm:$0xff]
    %v8204 = vld [vmem:[%s7632 + $0x142] sm:$0xff]
    %v8205 = vld [vmem:[%s7632 + $0x152] sm:$0xff]
    %v8206 = vld [vmem:[%s7632 + $0x15a] sm:$0xff]
    %v8207 = vld [vmem:[%s7632 + $0x16a] sm:$0xff]
    %v8208 = vld [vmem:[%s7632 + $0x172] sm:$0xff]
    %v8209 = vld [vmem:[%s7632 + $0x1b2] sm:$0xff]
    %v8210 = vld [vmem:[%s7632 + $0x1ba] sm:$0xff]
    %v8211 = vld [vmem:[%s7632 + $0x1ca] sm:$0xff]
    %v8212 = vld [vmem:[%s7632 + $0x1d2] sm:$0xff]
    %v8213 = vld [vmem:[%s7632 + $0x1e2] sm:$0xff]
    %v8214 = vld [vmem:[%s7632 + $0x1ea] sm:$0xff]
    %v8215 = vld [vmem:[%s7632 + $0x1fa] sm:$0xff]
    %v8216 = vld [vmem:[%s7632 + $0x202] sm:$0xff]
    %v8217 = vld [vmem:[%s7632 + $0x212] sm:$0xff]
    %v8218 = vld [vmem:[%s7632 + $0x21a] sm:$0xff]
    %v8219 = vld [vmem:[%s7632 + $0x22a] sm:$0xff]
    %v8220 = vld [vmem:[%s7632 + $0x232] sm:$0xff]
    %v8221 = vld [vmem:[%s7632 + $0x242] sm:$0xff]
    %v8222 = vld [vmem:[%s7632 + $0x24a] sm:$0xff]
    %v8223 = vld [vmem:[%s7632 + $0x25a] sm:$0xff]
    %v8224 = vld [vmem:[%s7632 + $0x262] sm:$0xff]
    %v8225 = vld [vmem:[%s7632 + $0x272] sm:$0xff]
    %v8226 = vld [vmem:[%s7632 + $0x27a] sm:$0xff]
    %v8227 = vld [vmem:[%s7632 + $0x28a] sm:$0xff]
    %v8228 = vld [vmem:[%s7632 + $0x292] sm:$0xff]
    %v8229 = vld [vmem:[%s7632 + $0x2a2] sm:$0xff]
    %v8230 = vld [vmem:[%s7632 + $0x2aa] sm:$0xff]
    %v8231 = vld [vmem:[%s7632 + $0x2ba] sm:$0xff]
    %v8232 = vld [vmem:[%s7632 + $0x2c2] sm:$0xff]
    %v8233 = vld [vmem:[%s7632 + $0x2d2] sm:$0xff]
    %v8234 = vld [vmem:[%s7632 + $0x2da] sm:$0xff]
    %v8235 = vld [vmem:[%s7632 + $0x2ea] sm:$0xff]
    %v8236 = vld [vmem:[%s7632 + $0x2f2] sm:$0xff]
    %v8237 = vld [vmem:[%s7632 + $0x302] sm:$0xff]
    %v8238 = vld [vmem:[%s7632 + $0x30a] sm:$0xff]
    %v8239 = vld [vmem:[%s7632 + $0x31a] sm:$0xff]
    %v8240 = vld [vmem:[%s7632 + $0x322] sm:$0xff]
    %v8241 = vpack.c.bf16 %v8178, %v8177
    %v8242 = vpack.c.bf16 %v8180, %v8179
    %v8243 = vpack.c.bf16 %v8182, %v8181
    %v8244 = vpack.c.bf16 %v8184, %v8183
    %v8245 = vpack.c.bf16 %v8186, %v8185
    %v8246 = vpack.c.bf16 %v8188, %v8187
    %v8247 = vpack.c.bf16 %v8190, %v8189
    %v8248 = vpack.c.bf16 %v8192, %v8191
    %v8249 = vpack.c.bf16 %v8194, %v8193
    %v8250 = vpack.c.bf16 %v8196, %v8195
    %v8251 = vpack.c.bf16 %v8198, %v8197
    %v8252 = vpack.c.bf16 %v8200, %v8199
    %v8253 = vpack.c.bf16 %v8202, %v8201
    %v8254 = vpack.c.bf16 %v8204, %v8203
    %v8255 = vpack.c.bf16 %v8206, %v8205
    %v8256 = vpack.c.bf16 %v8208, %v8207
    %v8257 = vpack.c.bf16 %v8210, %v8209
    %v8258 = vpack.c.bf16 %v8212, %v8211
    %v8259 = vpack.c.bf16 %v8214, %v8213
    %v8260 = vpack.c.bf16 %v8216, %v8215
    %v8261 = vpack.c.bf16 %v8218, %v8217
    %v8262 = vpack.c.bf16 %v8220, %v8219
    %v8263 = vpack.c.bf16 %v8222, %v8221
    %v8264 = vpack.c.bf16 %v8224, %v8223
    %v8265 = vpack.c.bf16 %v8226, %v8225
    %v8266 = vpack.c.bf16 %v8228, %v8227
    %v8267 = vpack.c.bf16 %v8230, %v8229
    %v8268 = vpack.c.bf16 %v8232, %v8231
    %v8269 = vpack.c.bf16 %v8234, %v8233
    %v8270 = vpack.c.bf16 %v8236, %v8235
    %v8271 = vpack.c.bf16 %v8238, %v8237
    %v8272 = vpack.c.bf16 %v8240, %v8239
    %s8273 = scalar_lea.vmem [#allocation2], 48
    %v8274 = vld [vmem:[%s8273] sm:$0xff]
    %v8275 = vld [vmem:[%s8273 + $0x8] sm:$0xff]
    %v8276 = vld [vmem:[%s8273 + $0x18] sm:$0xff]
    %v8277 = vld [vmem:[%s8273 + $0x20] sm:$0xff]
    %v8278 = vld [vmem:[%s8273 + $0x30] sm:$0xff]
    %v8279 = vld [vmem:[%s8273 + $0x38] sm:$0xff]
    %v8280 = vld [vmem:[%s8273 + $0x48] sm:$0xff]
    %v8281 = vld [vmem:[%s8273 + $0x50] sm:$0xff]
    %v8282 = vld [vmem:[%s8273 + $0x60] sm:$0xff]
    %v8283 = vld [vmem:[%s8273 + $0x68] sm:$0xff]
    %v8284 = vld [vmem:[%s8273 + $0x78] sm:$0xff]
    %v8285 = vld [vmem:[%s8273 + $0x80] sm:$0xff]
    %v8286 = vld [vmem:[%s8273 + $0x90] sm:$0xff]
    %v8287 = vld [vmem:[%s8273 + $0x98] sm:$0xff]
    %v8288 = vld [vmem:[%s8273 + $0xa8] sm:$0xff]
    %v8289 = vld [vmem:[%s8273 + $0xb0] sm:$0xff]
    %v8290 = vld [vmem:[%s8273 + $0xc0] sm:$0xff]
    %v8291 = vld [vmem:[%s8273 + $0xc8] sm:$0xff]
    %v8292 = vld [vmem:[%s8273 + $0xd8] sm:$0xff]
    %v8293 = vld [vmem:[%s8273 + $0xe0] sm:$0xff]
    %v8294 = vld [vmem:[%s8273 + $0xf0] sm:$0xff]
    %v8295 = vld [vmem:[%s8273 + $0xf8] sm:$0xff]
    %v8296 = vld [vmem:[%s8273 + $0x108] sm:$0xff]
    %v8297 = vld [vmem:[%s8273 + $0x110] sm:$0xff]
    %v8298 = vld [vmem:[%s8273 + $0x120] sm:$0xff]
    %v8299 = vld [vmem:[%s8273 + $0x128] sm:$0xff]
    %v8300 = vld [vmem:[%s8273 + $0x138] sm:$0xff]
    %v8301 = vld [vmem:[%s8273 + $0x140] sm:$0xff]
    %v8302 = vld [vmem:[%s8273 + $0x150] sm:$0xff]
    %v8303 = vld [vmem:[%s8273 + $0x158] sm:$0xff]
    %v8304 = vld [vmem:[%s8273 + $0x168] sm:$0xff]
    %v8305 = vld [vmem:[%s8273 + $0x170] sm:$0xff]
    %v8306 = vld [vmem:[%s8273 + $0x1b0] sm:$0xff]
    %v8307 = vld [vmem:[%s8273 + $0x1b8] sm:$0xff]
    %v8308 = vld [vmem:[%s8273 + $0x1c8] sm:$0xff]
    %v8309 = vld [vmem:[%s8273 + $0x1d0] sm:$0xff]
    %v8310 = vld [vmem:[%s8273 + $0x1e0] sm:$0xff]
    %v8311 = vld [vmem:[%s8273 + $0x1e8] sm:$0xff]
    %v8312 = vld [vmem:[%s8273 + $0x1f8] sm:$0xff]
    %v8313 = vld [vmem:[%s8273 + $0x200] sm:$0xff]
    %v8314 = vld [vmem:[%s8273 + $0x210] sm:$0xff]
    %v8315 = vld [vmem:[%s8273 + $0x218] sm:$0xff]
    %v8316 = vld [vmem:[%s8273 + $0x228] sm:$0xff]
    %v8317 = vld [vmem:[%s8273 + $0x230] sm:$0xff]
    %v8318 = vld [vmem:[%s8273 + $0x240] sm:$0xff]
    %v8319 = vld [vmem:[%s8273 + $0x248] sm:$0xff]
    %v8320 = vld [vmem:[%s8273 + $0x258] sm:$0xff]
    %v8321 = vld [vmem:[%s8273 + $0x260] sm:$0xff]
    %v8322 = vld [vmem:[%s8273 + $0x270] sm:$0xff]
    %v8323 = vld [vmem:[%s8273 + $0x278] sm:$0xff]
    %v8324 = vld [vmem:[%s8273 + $0x288] sm:$0xff]
    %v8325 = vld [vmem:[%s8273 + $0x290] sm:$0xff]
    %v8326 = vld [vmem:[%s8273 + $0x2a0] sm:$0xff]
    %v8327 = vld [vmem:[%s8273 + $0x2a8] sm:$0xff]
    %v8328 = vld [vmem:[%s8273 + $0x2b8] sm:$0xff]
    %v8329 = vld [vmem:[%s8273 + $0x2c0] sm:$0xff]
    %v8330 = vld [vmem:[%s8273 + $0x2d0] sm:$0xff]
    %v8331 = vld [vmem:[%s8273 + $0x2d8] sm:$0xff]
    %v8332 = vld [vmem:[%s8273 + $0x2e8] sm:$0xff]
    %v8333 = vld [vmem:[%s8273 + $0x2f0] sm:$0xff]
    %v8334 = vld [vmem:[%s8273 + $0x300] sm:$0xff]
    %v8335 = vld [vmem:[%s8273 + $0x308] sm:$0xff]
    %v8336 = vld [vmem:[%s8273 + $0x318] sm:$0xff]
    %v8337 = vld [vmem:[%s8273 + $0x320] sm:$0xff]
    %v8338 = vpack.c.bf16 %v8275, %v8274
    %v8339 = vpack.c.bf16 %v8277, %v8276
    %v8340 = vpack.c.bf16 %v8279, %v8278
    %v8341 = vpack.c.bf16 %v8281, %v8280
    %v8342 = vpack.c.bf16 %v8283, %v8282
    %v8343 = vpack.c.bf16 %v8285, %v8284
    %v8344 = vpack.c.bf16 %v8287, %v8286
    %v8345 = vpack.c.bf16 %v8289, %v8288
    %v8346 = vpack.c.bf16 %v8291, %v8290
    %v8347 = vpack.c.bf16 %v8293, %v8292
    %v8348 = vpack.c.bf16 %v8295, %v8294
    %v8349 = vpack.c.bf16 %v8297, %v8296
    %v8350 = vpack.c.bf16 %v8299, %v8298
    %v8351 = vpack.c.bf16 %v8301, %v8300
    %v8352 = vpack.c.bf16 %v8303, %v8302
    %v8353 = vpack.c.bf16 %v8305, %v8304
    %v8354 = vpack.c.bf16 %v8307, %v8306
    %v8355 = vpack.c.bf16 %v8309, %v8308
    %v8356 = vpack.c.bf16 %v8311, %v8310
    %v8357 = vpack.c.bf16 %v8313, %v8312
    %v8358 = vpack.c.bf16 %v8315, %v8314
    %v8359 = vpack.c.bf16 %v8317, %v8316
    %v8360 = vpack.c.bf16 %v8319, %v8318
    %v8361 = vpack.c.bf16 %v8321, %v8320
    %v8362 = vpack.c.bf16 %v8323, %v8322
    %v8363 = vpack.c.bf16 %v8325, %v8324
    %v8364 = vpack.c.bf16 %v8327, %v8326
    %v8365 = vpack.c.bf16 %v8329, %v8328
    %v8366 = vpack.c.bf16 %v8331, %v8330
    %v8367 = vpack.c.bf16 %v8333, %v8332
    %v8368 = vpack.c.bf16 %v8335, %v8334
    %v8369 = vpack.c.bf16 %v8337, %v8336
    %v8370 = vld [vmem:[%s8273 + $0x1] sm:$0xff]
    %v8371 = vld [vmem:[%s8273 + $0x9] sm:$0xff]
    %v8372 = vld [vmem:[%s8273 + $0x19] sm:$0xff]
    %v8373 = vld [vmem:[%s8273 + $0x21] sm:$0xff]
    %v8374 = vld [vmem:[%s8273 + $0x31] sm:$0xff]
    %v8375 = vld [vmem:[%s8273 + $0x39] sm:$0xff]
    %v8376 = vld [vmem:[%s8273 + $0x49] sm:$0xff]
    %v8377 = vld [vmem:[%s8273 + $0x51] sm:$0xff]
    %v8378 = vld [vmem:[%s8273 + $0x61] sm:$0xff]
    %v8379 = vld [vmem:[%s8273 + $0x69] sm:$0xff]
    %v8380 = vld [vmem:[%s8273 + $0x79] sm:$0xff]
    %v8381 = vld [vmem:[%s8273 + $0x81] sm:$0xff]
    %v8382 = vld [vmem:[%s8273 + $0x91] sm:$0xff]
    %v8383 = vld [vmem:[%s8273 + $0x99] sm:$0xff]
    %v8384 = vld [vmem:[%s8273 + $0xa9] sm:$0xff]
    %v8385 = vld [vmem:[%s8273 + $0xb1] sm:$0xff]
    %v8386 = vld [vmem:[%s8273 + $0xc1] sm:$0xff]
    %v8387 = vld [vmem:[%s8273 + $0xc9] sm:$0xff]
    %v8388 = vld [vmem:[%s8273 + $0xd9] sm:$0xff]
    %v8389 = vld [vmem:[%s8273 + $0xe1] sm:$0xff]
    %v8390 = vld [vmem:[%s8273 + $0xf1] sm:$0xff]
    %v8391 = vld [vmem:[%s8273 + $0xf9] sm:$0xff]
    %v8392 = vld [vmem:[%s8273 + $0x109] sm:$0xff]
    %v8393 = vld [vmem:[%s8273 + $0x111] sm:$0xff]
    %v8394 = vld [vmem:[%s8273 + $0x121] sm:$0xff]
    %v8395 = vld [vmem:[%s8273 + $0x129] sm:$0xff]
    %v8396 = vld [vmem:[%s8273 + $0x139] sm:$0xff]
    %v8397 = vld [vmem:[%s8273 + $0x141] sm:$0xff]
    %v8398 = vld [vmem:[%s8273 + $0x151] sm:$0xff]
    %v8399 = vld [vmem:[%s8273 + $0x159] sm:$0xff]
    %v8400 = vld [vmem:[%s8273 + $0x169] sm:$0xff]
    %v8401 = vld [vmem:[%s8273 + $0x171] sm:$0xff]
    %v8402 = vld [vmem:[%s8273 + $0x1b1] sm:$0xff]
    %v8403 = vld [vmem:[%s8273 + $0x1b9] sm:$0xff]
    %v8404 = vld [vmem:[%s8273 + $0x1c9] sm:$0xff]
    %v8405 = vld [vmem:[%s8273 + $0x1d1] sm:$0xff]
    %v8406 = vld [vmem:[%s8273 + $0x1e1] sm:$0xff]
    %v8407 = vld [vmem:[%s8273 + $0x1e9] sm:$0xff]
    %v8408 = vld [vmem:[%s8273 + $0x1f9] sm:$0xff]
    %v8409 = vld [vmem:[%s8273 + $0x201] sm:$0xff]
    %v8410 = vld [vmem:[%s8273 + $0x211] sm:$0xff]
    %v8411 = vld [vmem:[%s8273 + $0x219] sm:$0xff]
    %v8412 = vld [vmem:[%s8273 + $0x229] sm:$0xff]
    %v8413 = vld [vmem:[%s8273 + $0x231] sm:$0xff]
    %v8414 = vld [vmem:[%s8273 + $0x241] sm:$0xff]
    %v8415 = vld [vmem:[%s8273 + $0x249] sm:$0xff]
    %v8416 = vld [vmem:[%s8273 + $0x259] sm:$0xff]
    %v8417 = vld [vmem:[%s8273 + $0x261] sm:$0xff]
    %v8418 = vld [vmem:[%s8273 + $0x271] sm:$0xff]
    %v8419 = vld [vmem:[%s8273 + $0x279] sm:$0xff]
    %v8420 = vld [vmem:[%s8273 + $0x289] sm:$0xff]
    %v8421 = vld [vmem:[%s8273 + $0x291] sm:$0xff]
    %v8422 = vld [vmem:[%s8273 + $0x2a1] sm:$0xff]
    %v8423 = vld [vmem:[%s8273 + $0x2a9] sm:$0xff]
    %v8424 = vld [vmem:[%s8273 + $0x2b9] sm:$0xff]
    %v8425 = vld [vmem:[%s8273 + $0x2c1] sm:$0xff]
    %v8426 = vld [vmem:[%s8273 + $0x2d1] sm:$0xff]
    %v8427 = vld [vmem:[%s8273 + $0x2d9] sm:$0xff]
    %v8428 = vld [vmem:[%s8273 + $0x2e9] sm:$0xff]
    %v8429 = vld [vmem:[%s8273 + $0x2f1] sm:$0xff]
    %v8430 = vld [vmem:[%s8273 + $0x301] sm:$0xff]
    %v8431 = vld [vmem:[%s8273 + $0x309] sm:$0xff]
    %v8432 = vld [vmem:[%s8273 + $0x319] sm:$0xff]
    %v8433 = vld [vmem:[%s8273 + $0x321] sm:$0xff]
    %v8434 = vpack.c.bf16 %v8371, %v8370
    %v8435 = vpack.c.bf16 %v8373, %v8372
    %v8436 = vpack.c.bf16 %v8375, %v8374
    %v8437 = vpack.c.bf16 %v8377, %v8376
    %v8438 = vpack.c.bf16 %v8379, %v8378
    %v8439 = vpack.c.bf16 %v8381, %v8380
    %v8440 = vpack.c.bf16 %v8383, %v8382
    %v8441 = vpack.c.bf16 %v8385, %v8384
    %v8442 = vpack.c.bf16 %v8387, %v8386
    %v8443 = vpack.c.bf16 %v8389, %v8388
    %v8444 = vpack.c.bf16 %v8391, %v8390
    %v8445 = vpack.c.bf16 %v8393, %v8392
    %v8446 = vpack.c.bf16 %v8395, %v8394
    %v8447 = vpack.c.bf16 %v8397, %v8396
    %v8448 = vpack.c.bf16 %v8399, %v8398
    %v8449 = vpack.c.bf16 %v8401, %v8400
    %v8450 = vpack.c.bf16 %v8403, %v8402
    %v8451 = vpack.c.bf16 %v8405, %v8404
    %v8452 = vpack.c.bf16 %v8407, %v8406
    %v8453 = vpack.c.bf16 %v8409, %v8408
    %v8454 = vpack.c.bf16 %v8411, %v8410
    %v8455 = vpack.c.bf16 %v8413, %v8412
    %v8456 = vpack.c.bf16 %v8415, %v8414
    %v8457 = vpack.c.bf16 %v8417, %v8416
    %v8458 = vpack.c.bf16 %v8419, %v8418
    %v8459 = vpack.c.bf16 %v8421, %v8420
    %v8460 = vpack.c.bf16 %v8423, %v8422
    %v8461 = vpack.c.bf16 %v8425, %v8424
    %v8462 = vpack.c.bf16 %v8427, %v8426
    %v8463 = vpack.c.bf16 %v8429, %v8428
    %v8464 = vpack.c.bf16 %v8431, %v8430
    %v8465 = vpack.c.bf16 %v8433, %v8432
    %v8466 = vld [vmem:[%s8273 + $0x2] sm:$0xff]
    %v8467 = vld [vmem:[%s8273 + $0xa] sm:$0xff]
    %v8468 = vld [vmem:[%s8273 + $0x1a] sm:$0xff]
    %v8469 = vld [vmem:[%s8273 + $0x22] sm:$0xff]
    %v8470 = vld [vmem:[%s8273 + $0x32] sm:$0xff]
    %v8471 = vld [vmem:[%s8273 + $0x3a] sm:$0xff]
    %v8472 = vld [vmem:[%s8273 + $0x4a] sm:$0xff]
    %v8473 = vld [vmem:[%s8273 + $0x52] sm:$0xff]
    %v8474 = vld [vmem:[%s8273 + $0x62] sm:$0xff]
    %v8475 = vld [vmem:[%s8273 + $0x6a] sm:$0xff]
    %v8476 = vld [vmem:[%s8273 + $0x7a] sm:$0xff]
    %v8477 = vld [vmem:[%s8273 + $0x82] sm:$0xff]
    %v8478 = vld [vmem:[%s8273 + $0x92] sm:$0xff]
    %v8479 = vld [vmem:[%s8273 + $0x9a] sm:$0xff]
    %v8480 = vld [vmem:[%s8273 + $0xaa] sm:$0xff]
    %v8481 = vld [vmem:[%s8273 + $0xb2] sm:$0xff]
    %v8482 = vld [vmem:[%s8273 + $0xc2] sm:$0xff]
    %v8483 = vld [vmem:[%s8273 + $0xca] sm:$0xff]
    %v8484 = vld [vmem:[%s8273 + $0xda] sm:$0xff]
    %v8485 = vld [vmem:[%s8273 + $0xe2] sm:$0xff]
    %v8486 = vld [vmem:[%s8273 + $0xf2] sm:$0xff]
    %v8487 = vld [vmem:[%s8273 + $0xfa] sm:$0xff]
    %v8488 = vld [vmem:[%s8273 + $0x10a] sm:$0xff]
    %v8489 = vld [vmem:[%s8273 + $0x112] sm:$0xff]
    %v8490 = vld [vmem:[%s8273 + $0x122] sm:$0xff]
    %v8491 = vld [vmem:[%s8273 + $0x12a] sm:$0xff]
    %v8492 = vld [vmem:[%s8273 + $0x13a] sm:$0xff]
    %v8493 = vld [vmem:[%s8273 + $0x142] sm:$0xff]
    %v8494 = vld [vmem:[%s8273 + $0x152] sm:$0xff]
    %v8495 = vld [vmem:[%s8273 + $0x15a] sm:$0xff]
    %v8496 = vld [vmem:[%s8273 + $0x16a] sm:$0xff]
    %v8497 = vld [vmem:[%s8273 + $0x172] sm:$0xff]
    %v8498 = vld [vmem:[%s8273 + $0x1b2] sm:$0xff]
    %v8499 = vld [vmem:[%s8273 + $0x1ba] sm:$0xff]
    %v8500 = vld [vmem:[%s8273 + $0x1ca] sm:$0xff]
    %v8501 = vld [vmem:[%s8273 + $0x1d2] sm:$0xff]
    %v8502 = vld [vmem:[%s8273 + $0x1e2] sm:$0xff]
    %v8503 = vld [vmem:[%s8273 + $0x1ea] sm:$0xff]
    %v8504 = vld [vmem:[%s8273 + $0x1fa] sm:$0xff]
    %v8505 = vld [vmem:[%s8273 + $0x202] sm:$0xff]
    %v8506 = vld [vmem:[%s8273 + $0x212] sm:$0xff]
    %v8507 = vld [vmem:[%s8273 + $0x21a] sm:$0xff]
    %v8508 = vld [vmem:[%s8273 + $0x22a] sm:$0xff]
    %v8509 = vld [vmem:[%s8273 + $0x232] sm:$0xff]
    %v8510 = vld [vmem:[%s8273 + $0x242] sm:$0xff]
    %v8511 = vld [vmem:[%s8273 + $0x24a] sm:$0xff]
    %v8512 = vld [vmem:[%s8273 + $0x25a] sm:$0xff]
    %v8513 = vld [vmem:[%s8273 + $0x262] sm:$0xff]
    %v8514 = vld [vmem:[%s8273 + $0x272] sm:$0xff]
    %v8515 = vld [vmem:[%s8273 + $0x27a] sm:$0xff]
    %v8516 = vld [vmem:[%s8273 + $0x28a] sm:$0xff]
    %v8517 = vld [vmem:[%s8273 + $0x292] sm:$0xff]
    %v8518 = vld [vmem:[%s8273 + $0x2a2] sm:$0xff]
    %v8519 = vld [vmem:[%s8273 + $0x2aa] sm:$0xff]
    %v8520 = vld [vmem:[%s8273 + $0x2ba] sm:$0xff]
    %v8521 = vld [vmem:[%s8273 + $0x2c2] sm:$0xff]
    %v8522 = vld [vmem:[%s8273 + $0x2d2] sm:$0xff]
    %v8523 = vld [vmem:[%s8273 + $0x2da] sm:$0xff]
    %v8524 = vld [vmem:[%s8273 + $0x2ea] sm:$0xff]
    %v8525 = vld [vmem:[%s8273 + $0x2f2] sm:$0xff]
    %v8526 = vld [vmem:[%s8273 + $0x302] sm:$0xff]
    %v8527 = vld [vmem:[%s8273 + $0x30a] sm:$0xff]
    %v8528 = vld [vmem:[%s8273 + $0x31a] sm:$0xff]
    %v8529 = vld [vmem:[%s8273 + $0x322] sm:$0xff]
    %v8530 = vpack.c.bf16 %v8467, %v8466
    %v8531 = vpack.c.bf16 %v8469, %v8468
    %v8532 = vpack.c.bf16 %v8471, %v8470
    %v8533 = vpack.c.bf16 %v8473, %v8472
    %v8534 = vpack.c.bf16 %v8475, %v8474
    %v8535 = vpack.c.bf16 %v8477, %v8476
    %v8536 = vpack.c.bf16 %v8479, %v8478
    %v8537 = vpack.c.bf16 %v8481, %v8480
    %v8538 = vpack.c.bf16 %v8483, %v8482
    %v8539 = vpack.c.bf16 %v8485, %v8484
    %v8540 = vpack.c.bf16 %v8487, %v8486
    %v8541 = vpack.c.bf16 %v8489, %v8488
    %v8542 = vpack.c.bf16 %v8491, %v8490
    %v8543 = vpack.c.bf16 %v8493, %v8492
    %v8544 = vpack.c.bf16 %v8495, %v8494
    %v8545 = vpack.c.bf16 %v8497, %v8496
    %v8546 = vpack.c.bf16 %v8499, %v8498
    %v8547 = vpack.c.bf16 %v8501, %v8500
    %v8548 = vpack.c.bf16 %v8503, %v8502
    %v8549 = vpack.c.bf16 %v8505, %v8504
    %v8550 = vpack.c.bf16 %v8507, %v8506
    %v8551 = vpack.c.bf16 %v8509, %v8508
    %v8552 = vpack.c.bf16 %v8511, %v8510
    %v8553 = vpack.c.bf16 %v8513, %v8512
    %v8554 = vpack.c.bf16 %v8515, %v8514
    %v8555 = vpack.c.bf16 %v8517, %v8516
    %v8556 = vpack.c.bf16 %v8519, %v8518
    %v8557 = vpack.c.bf16 %v8521, %v8520
    %v8558 = vpack.c.bf16 %v8523, %v8522
    %v8559 = vpack.c.bf16 %v8525, %v8524
    %v8560 = vpack.c.bf16 %v8527, %v8526
    %v8561 = vpack.c.bf16 %v8529, %v8528
    %8594 = vrot.lane.b32.xlu0 %v7857, 4
    %v8595 = vpop.permute.xlu0 %8594
    %8596 = vrot.lane.b32.xlu0 %v7858, 4
    %v8597 = vpop.permute.xlu0 %8596
    %8598 = vrot.lane.b32.xlu0 %v7859, 4
    %v8599 = vpop.permute.xlu0 %8598
    %8600 = vrot.lane.b32.xlu0 %v7860, 4
    %v8601 = vpop.permute.xlu0 %8600
    %8602 = vrot.lane.b32.xlu0 %v7861, 4
    %v8603 = vpop.permute.xlu0 %8602
    %8604 = vrot.lane.b32.xlu0 %v7862, 4
    %v8605 = vpop.permute.xlu0 %8604
    %8606 = vrot.lane.b32.xlu0 %v7863, 4
    %v8607 = vpop.permute.xlu0 %8606
    %8608 = vrot.lane.b32.xlu0 %v7864, 4
    %v8609 = vpop.permute.xlu0 %8608
    %8610 = vrot.lane.b32.xlu0 %v7865, 4
    %v8611 = vpop.permute.xlu0 %8610
    %8612 = vrot.lane.b32.xlu0 %v7866, 4
    %v8613 = vpop.permute.xlu0 %8612
    %8614 = vrot.lane.b32.xlu0 %v7867, 4
    %v8615 = vpop.permute.xlu0 %8614
    %8616 = vrot.lane.b32.xlu0 %v7868, 4
    %v8617 = vpop.permute.xlu0 %8616
    %8618 = vrot.lane.b32.xlu0 %v7869, 4
    %v8619 = vpop.permute.xlu0 %8618
    %8620 = vrot.lane.b32.xlu0 %v7870, 4
    %v8621 = vpop.permute.xlu0 %8620
    %8622 = vrot.lane.b32.xlu0 %v7871, 4
    %v8623 = vpop.permute.xlu0 %8622
    %8624 = vrot.lane.b32.xlu0 %v7872, 4
    %v8625 = vpop.permute.xlu0 %8624
    %8626 = vrot.lane.b32.xlu0 %v7873, 4
    %v8627 = vpop.permute.xlu0 %8626
    %8628 = vrot.lane.b32.xlu0 %v7874, 4
    %v8629 = vpop.permute.xlu0 %8628
    %8630 = vrot.lane.b32.xlu0 %v7875, 4
    %v8631 = vpop.permute.xlu0 %8630
    %8632 = vrot.lane.b32.xlu0 %v7876, 4
    %v8633 = vpop.permute.xlu0 %8632
    %8634 = vrot.lane.b32.xlu0 %v7877, 4
    %v8635 = vpop.permute.xlu0 %8634
    %8636 = vrot.lane.b32.xlu0 %v7878, 4
    %v8637 = vpop.permute.xlu0 %8636
    %8638 = vrot.lane.b32.xlu0 %v7879, 4
    %v8639 = vpop.permute.xlu0 %8638
    %8640 = vrot.lane.b32.xlu0 %v7880, 4
    %v8641 = vpop.permute.xlu0 %8640
    %8642 = vrot.lane.b32.xlu0 %v7881, 4
    %v8643 = vpop.permute.xlu0 %8642
    %8644 = vrot.lane.b32.xlu0 %v7882, 4
    %v8645 = vpop.permute.xlu0 %8644
    %8646 = vrot.lane.b32.xlu0 %v7883, 4
    %v8647 = vpop.permute.xlu0 %8646
    %8648 = vrot.lane.b32.xlu0 %v7884, 4
    %v8649 = vpop.permute.xlu0 %8648
    %8650 = vrot.lane.b32.xlu0 %v7885, 4
    %v8651 = vpop.permute.xlu0 %8650
    %8652 = vrot.lane.b32.xlu0 %v7886, 4
    %v8653 = vpop.permute.xlu0 %8652
    %8654 = vrot.lane.b32.xlu0 %v7887, 4
    %v8655 = vpop.permute.xlu0 %8654
    %8656 = vrot.lane.b32.xlu0 %v7888, 4
    %v8657 = vpop.permute.xlu0 %8656
    %8690 = vrot.lane.b32.xlu0 %v7953, 8
    %v8691 = vpop.permute.xlu0 %8690
    %8692 = vrot.lane.b32.xlu0 %v7954, 8
    %v8693 = vpop.permute.xlu0 %8692
    %8694 = vrot.lane.b32.xlu0 %v7955, 8
    %v8695 = vpop.permute.xlu0 %8694
    %8696 = vrot.lane.b32.xlu0 %v7956, 8
    %v8697 = vpop.permute.xlu0 %8696
    %8698 = vrot.lane.b32.xlu0 %v7957, 8
    %v8699 = vpop.permute.xlu0 %8698
    %8700 = vrot.lane.b32.xlu0 %v7958, 8
    %v8701 = vpop.permute.xlu0 %8700
    %8702 = vrot.lane.b32.xlu0 %v7959, 8
    %v8703 = vpop.permute.xlu0 %8702
    %8704 = vrot.lane.b32.xlu0 %v7960, 8
    %v8705 = vpop.permute.xlu0 %8704
    %8706 = vrot.lane.b32.xlu0 %v7961, 8
    %v8707 = vpop.permute.xlu0 %8706
    %8708 = vrot.lane.b32.xlu0 %v7962, 8
    %v8709 = vpop.permute.xlu0 %8708
    %8710 = vrot.lane.b32.xlu0 %v7963, 8
    %v8711 = vpop.permute.xlu0 %8710
    %8712 = vrot.lane.b32.xlu0 %v7964, 8
    %v8713 = vpop.permute.xlu0 %8712
    %8714 = vrot.lane.b32.xlu0 %v7965, 8
    %v8715 = vpop.permute.xlu0 %8714
    %8716 = vrot.lane.b32.xlu0 %v7966, 8
    %v8717 = vpop.permute.xlu0 %8716
    %8718 = vrot.lane.b32.xlu0 %v7967, 8
    %v8719 = vpop.permute.xlu0 %8718
    %8720 = vrot.lane.b32.xlu0 %v7968, 8
    %v8721 = vpop.permute.xlu0 %8720
    %8722 = vrot.lane.b32.xlu0 %v7969, 8
    %v8723 = vpop.permute.xlu0 %8722
    %8724 = vrot.lane.b32.xlu0 %v7970, 8
    %v8725 = vpop.permute.xlu0 %8724
    %8726 = vrot.lane.b32.xlu0 %v7971, 8
    %v8727 = vpop.permute.xlu0 %8726
    %8728 = vrot.lane.b32.xlu0 %v7972, 8
    %v8729 = vpop.permute.xlu0 %8728
    %8730 = vrot.lane.b32.xlu0 %v7973, 8
    %v8731 = vpop.permute.xlu0 %8730
    %8732 = vrot.lane.b32.xlu0 %v7974, 8
    %v8733 = vpop.permute.xlu0 %8732
    %8734 = vrot.lane.b32.xlu0 %v7975, 8
    %v8735 = vpop.permute.xlu0 %8734
    %8736 = vrot.lane.b32.xlu0 %v7976, 8
    %v8737 = vpop.permute.xlu0 %8736
    %8738 = vrot.lane.b32.xlu0 %v7977, 8
    %v8739 = vpop.permute.xlu0 %8738
    %8740 = vrot.lane.b32.xlu0 %v7978, 8
    %v8741 = vpop.permute.xlu0 %8740
    %8742 = vrot.lane.b32.xlu0 %v7979, 8
    %v8743 = vpop.permute.xlu0 %8742
    %8744 = vrot.lane.b32.xlu0 %v7980, 8
    %v8745 = vpop.permute.xlu0 %8744
    %8746 = vrot.lane.b32.xlu0 %v7981, 8
    %v8747 = vpop.permute.xlu0 %8746
    %8748 = vrot.lane.b32.xlu0 %v7982, 8
    %v8749 = vpop.permute.xlu0 %8748
    %8750 = vrot.lane.b32.xlu0 %v7983, 8
    %v8751 = vpop.permute.xlu0 %8750
    %8752 = vrot.lane.b32.xlu0 %v7984, 8
    %v8753 = vpop.permute.xlu0 %8752
    %8786 = vrot.lane.b32.xlu0 %v8049, 12
    %v8787 = vpop.permute.xlu0 %8786
    %8788 = vrot.lane.b32.xlu0 %v8050, 12
    %v8789 = vpop.permute.xlu0 %8788
    %8790 = vrot.lane.b32.xlu0 %v8051, 12
    %v8791 = vpop.permute.xlu0 %8790
    %8792 = vrot.lane.b32.xlu0 %v8052, 12
    %v8793 = vpop.permute.xlu0 %8792
    %8794 = vrot.lane.b32.xlu0 %v8053, 12
    %v8795 = vpop.permute.xlu0 %8794
    %8796 = vrot.lane.b32.xlu0 %v8054, 12
    %v8797 = vpop.permute.xlu0 %8796
    %8798 = vrot.lane.b32.xlu0 %v8055, 12
    %v8799 = vpop.permute.xlu0 %8798
    %8800 = vrot.lane.b32.xlu0 %v8056, 12
    %v8801 = vpop.permute.xlu0 %8800
    %8802 = vrot.lane.b32.xlu0 %v8057, 12
    %v8803 = vpop.permute.xlu0 %8802
    %8804 = vrot.lane.b32.xlu0 %v8058, 12
    %v8805 = vpop.permute.xlu0 %8804
    %8806 = vrot.lane.b32.xlu0 %v8059, 12
    %v8807 = vpop.permute.xlu0 %8806
    %8808 = vrot.lane.b32.xlu0 %v8060, 12
    %v8809 = vpop.permute.xlu0 %8808
    %8810 = vrot.lane.b32.xlu0 %v8061, 12
    %v8811 = vpop.permute.xlu0 %8810
    %8812 = vrot.lane.b32.xlu0 %v8062, 12
    %v8813 = vpop.permute.xlu0 %8812
    %8814 = vrot.lane.b32.xlu0 %v8063, 12
    %v8815 = vpop.permute.xlu0 %8814
    %8816 = vrot.lane.b32.xlu0 %v8064, 12
    %v8817 = vpop.permute.xlu0 %8816
    %8818 = vrot.lane.b32.xlu0 %v8065, 12
    %v8819 = vpop.permute.xlu0 %8818
    %8820 = vrot.lane.b32.xlu0 %v8066, 12
    %v8821 = vpop.permute.xlu0 %8820
    %8822 = vrot.lane.b32.xlu0 %v8067, 12
    %v8823 = vpop.permute.xlu0 %8822
    %8824 = vrot.lane.b32.xlu0 %v8068, 12
    %v8825 = vpop.permute.xlu0 %8824
    %8826 = vrot.lane.b32.xlu0 %v8069, 12
    %v8827 = vpop.permute.xlu0 %8826
    %8828 = vrot.lane.b32.xlu0 %v8070, 12
    %v8829 = vpop.permute.xlu0 %8828
    %8830 = vrot.lane.b32.xlu0 %v8071, 12
    %v8831 = vpop.permute.xlu0 %8830
    %8832 = vrot.lane.b32.xlu0 %v8072, 12
    %v8833 = vpop.permute.xlu0 %8832
    %8834 = vrot.lane.b32.xlu0 %v8073, 12
    %v8835 = vpop.permute.xlu0 %8834
    %8836 = vrot.lane.b32.xlu0 %v8074, 12
    %v8837 = vpop.permute.xlu0 %8836
    %8838 = vrot.lane.b32.xlu0 %v8075, 12
    %v8839 = vpop.permute.xlu0 %8838
    %8840 = vrot.lane.b32.xlu0 %v8076, 12
    %v8841 = vpop.permute.xlu0 %8840
    %8842 = vrot.lane.b32.xlu0 %v8077, 12
    %v8843 = vpop.permute.xlu0 %8842
    %8844 = vrot.lane.b32.xlu0 %v8078, 12
    %v8845 = vpop.permute.xlu0 %8844
    %8846 = vrot.lane.b32.xlu0 %v8079, 12
    %v8847 = vpop.permute.xlu0 %8846
    %8848 = vrot.lane.b32.xlu0 %v8080, 12
    %v8849 = vpop.permute.xlu0 %8848
    %8882 = vrot.lane.b32.xlu0 %v8145, 16
    %v8883 = vpop.permute.xlu0 %8882
    %8884 = vrot.lane.b32.xlu0 %v8146, 16
    %v8885 = vpop.permute.xlu0 %8884
    %8886 = vrot.lane.b32.xlu0 %v8147, 16
    %v8887 = vpop.permute.xlu0 %8886
    %8888 = vrot.lane.b32.xlu0 %v8148, 16
    %v8889 = vpop.permute.xlu0 %8888
    %8890 = vrot.lane.b32.xlu0 %v8149, 16
    %v8891 = vpop.permute.xlu0 %8890
    %8892 = vrot.lane.b32.xlu0 %v8150, 16
    %v8893 = vpop.permute.xlu0 %8892
    %8894 = vrot.lane.b32.xlu0 %v8151, 16
    %v8895 = vpop.permute.xlu0 %8894
    %8896 = vrot.lane.b32.xlu0 %v8152, 16
    %v8897 = vpop.permute.xlu0 %8896
    %8898 = vrot.lane.b32.xlu0 %v8153, 16
    %v8899 = vpop.permute.xlu0 %8898
    %8900 = vrot.lane.b32.xlu0 %v8154, 16
    %v8901 = vpop.permute.xlu0 %8900
    %8902 = vrot.lane.b32.xlu0 %v8155, 16
    %v8903 = vpop.permute.xlu0 %8902
    %8904 = vrot.lane.b32.xlu0 %v8156, 16
    %v8905 = vpop.permute.xlu0 %8904
    %8906 = vrot.lane.b32.xlu0 %v8157, 16
    %v8907 = vpop.permute.xlu0 %8906
    %8908 = vrot.lane.b32.xlu0 %v8158, 16
    %v8909 = vpop.permute.xlu0 %8908
    %8910 = vrot.lane.b32.xlu0 %v8159, 16
    %v8911 = vpop.permute.xlu0 %8910
    %8912 = vrot.lane.b32.xlu0 %v8160, 16
    %v8913 = vpop.permute.xlu0 %8912
    %8914 = vrot.lane.b32.xlu0 %v8161, 16
    %v8915 = vpop.permute.xlu0 %8914
    %8916 = vrot.lane.b32.xlu0 %v8162, 16
    %v8917 = vpop.permute.xlu0 %8916
    %8918 = vrot.lane.b32.xlu0 %v8163, 16
    %v8919 = vpop.permute.xlu0 %8918
    %8920 = vrot.lane.b32.xlu0 %v8164, 16
    %v8921 = vpop.permute.xlu0 %8920
    %8922 = vrot.lane.b32.xlu0 %v8165, 16
    %v8923 = vpop.permute.xlu0 %8922
    %8924 = vrot.lane.b32.xlu0 %v8166, 16
    %v8925 = vpop.permute.xlu0 %8924
    %8926 = vrot.lane.b32.xlu0 %v8167, 16
    %v8927 = vpop.permute.xlu0 %8926
    %8928 = vrot.lane.b32.xlu0 %v8168, 16
    %v8929 = vpop.permute.xlu0 %8928
    %8930 = vrot.lane.b32.xlu0 %v8169, 16
    %v8931 = vpop.permute.xlu0 %8930
    %8932 = vrot.lane.b32.xlu0 %v8170, 16
    %v8933 = vpop.permute.xlu0 %8932
    %8934 = vrot.lane.b32.xlu0 %v8171, 16
    %v8935 = vpop.permute.xlu0 %8934
    %8936 = vrot.lane.b32.xlu0 %v8172, 16
    %v8937 = vpop.permute.xlu0 %8936
    %8938 = vrot.lane.b32.xlu0 %v8173, 16
    %v8939 = vpop.permute.xlu0 %8938
    %8940 = vrot.lane.b32.xlu0 %v8174, 16
    %v8941 = vpop.permute.xlu0 %8940
    %8942 = vrot.lane.b32.xlu0 %v8175, 16
    %v8943 = vpop.permute.xlu0 %8942
    %8944 = vrot.lane.b32.xlu0 %v8176, 16
    %v8945 = vpop.permute.xlu0 %8944
    %8978 = vrot.lane.b32.xlu0 %v8241, 20
    %v8979 = vpop.permute.xlu0 %8978
    %8980 = vrot.lane.b32.xlu0 %v8242, 20
    %v8981 = vpop.permute.xlu0 %8980
    %8982 = vrot.lane.b32.xlu0 %v8243, 20
    %v8983 = vpop.permute.xlu0 %8982
    %8984 = vrot.lane.b32.xlu0 %v8244, 20
    %v8985 = vpop.permute.xlu0 %8984
    %8986 = vrot.lane.b32.xlu0 %v8245, 20
    %v8987 = vpop.permute.xlu0 %8986
    %8988 = vrot.lane.b32.xlu0 %v8246, 20
    %v8989 = vpop.permute.xlu0 %8988
    %8990 = vrot.lane.b32.xlu0 %v8247, 20
    %v8991 = vpop.permute.xlu0 %8990
    %8992 = vrot.lane.b32.xlu0 %v8248, 20
    %v8993 = vpop.permute.xlu0 %8992
    %8994 = vrot.lane.b32.xlu0 %v8249, 20
    %v8995 = vpop.permute.xlu0 %8994
    %8996 = vrot.lane.b32.xlu0 %v8250, 20
    %v8997 = vpop.permute.xlu0 %8996
    %8998 = vrot.lane.b32.xlu0 %v8251, 20
    %v8999 = vpop.permute.xlu0 %8998
    %9000 = vrot.lane.b32.xlu0 %v8252, 20
    %v9001 = vpop.permute.xlu0 %9000
    %9002 = vrot.lane.b32.xlu0 %v8253, 20
    %v9003 = vpop.permute.xlu0 %9002
    %9004 = vrot.lane.b32.xlu0 %v8254, 20
    %v9005 = vpop.permute.xlu0 %9004
    %9006 = vrot.lane.b32.xlu0 %v8255, 20
    %v9007 = vpop.permute.xlu0 %9006
    %9008 = vrot.lane.b32.xlu0 %v8256, 20
    %v9009 = vpop.permute.xlu0 %9008
    %9010 = vrot.lane.b32.xlu0 %v8257, 20
    %v9011 = vpop.permute.xlu0 %9010
    %9012 = vrot.lane.b32.xlu0 %v8258, 20
    %v9013 = vpop.permute.xlu0 %9012
    %9014 = vrot.lane.b32.xlu0 %v8259, 20
    %v9015 = vpop.permute.xlu0 %9014
    %9016 = vrot.lane.b32.xlu0 %v8260, 20
    %v9017 = vpop.permute.xlu0 %9016
    %9018 = vrot.lane.b32.xlu0 %v8261, 20
    %v9019 = vpop.permute.xlu0 %9018
    %9020 = vrot.lane.b32.xlu0 %v8262, 20
    %v9021 = vpop.permute.xlu0 %9020
    %9022 = vrot.lane.b32.xlu0 %v8263, 20
    %v9023 = vpop.permute.xlu0 %9022
    %9024 = vrot.lane.b32.xlu0 %v8264, 20
    %v9025 = vpop.permute.xlu0 %9024
    %9026 = vrot.lane.b32.xlu0 %v8265, 20
    %v9027 = vpop.permute.xlu0 %9026
    %9028 = vrot.lane.b32.xlu0 %v8266, 20
    %v9029 = vpop.permute.xlu0 %9028
    %9030 = vrot.lane.b32.xlu0 %v8267, 20
    %v9031 = vpop.permute.xlu0 %9030
    %9032 = vrot.lane.b32.xlu0 %v8268, 20
    %v9033 = vpop.permute.xlu0 %9032
    %9034 = vrot.lane.b32.xlu0 %v8269, 20
    %v9035 = vpop.permute.xlu0 %9034
    %9036 = vrot.lane.b32.xlu0 %v8270, 20
    %v9037 = vpop.permute.xlu0 %9036
    %9038 = vrot.lane.b32.xlu0 %v8271, 20
    %v9039 = vpop.permute.xlu0 %9038
    %9040 = vrot.lane.b32.xlu0 %v8272, 20
    %v9041 = vpop.permute.xlu0 %9040
    %9074 = vrot.lane.b32.xlu0 %v8338, 24
    %v9075 = vpop.permute.xlu0 %9074
    %9076 = vrot.lane.b32.xlu0 %v8339, 24
    %v9077 = vpop.permute.xlu0 %9076
    %9078 = vrot.lane.b32.xlu0 %v8340, 24
    %v9079 = vpop.permute.xlu0 %9078
    %9080 = vrot.lane.b32.xlu0 %v8341, 24
    %v9081 = vpop.permute.xlu0 %9080
    %9082 = vrot.lane.b32.xlu0 %v8342, 24
    %v9083 = vpop.permute.xlu0 %9082
    %9084 = vrot.lane.b32.xlu0 %v8343, 24
    %v9085 = vpop.permute.xlu0 %9084
    %9086 = vrot.lane.b32.xlu0 %v8344, 24
    %v9087 = vpop.permute.xlu0 %9086
    %9088 = vrot.lane.b32.xlu0 %v8345, 24
    %v9089 = vpop.permute.xlu0 %9088
    %9090 = vrot.lane.b32.xlu0 %v8346, 24
    %v9091 = vpop.permute.xlu0 %9090
    %9092 = vrot.lane.b32.xlu0 %v8347, 24
    %v9093 = vpop.permute.xlu0 %9092
    %9094 = vrot.lane.b32.xlu0 %v8348, 24
    %v9095 = vpop.permute.xlu0 %9094
    %9096 = vrot.lane.b32.xlu0 %v8349, 24
    %v9097 = vpop.permute.xlu0 %9096
    %9098 = vrot.lane.b32.xlu0 %v8350, 24
    %v9099 = vpop.permute.xlu0 %9098
    %9100 = vrot.lane.b32.xlu0 %v8351, 24
    %v9101 = vpop.permute.xlu0 %9100
    %9102 = vrot.lane.b32.xlu0 %v8352, 24
    %v9103 = vpop.permute.xlu0 %9102
    %9104 = vrot.lane.b32.xlu0 %v8353, 24
    %v9105 = vpop.permute.xlu0 %9104
    %9106 = vrot.lane.b32.xlu0 %v8354, 24
    %v9107 = vpop.permute.xlu0 %9106
    %9108 = vrot.lane.b32.xlu0 %v8355, 24
    %v9109 = vpop.permute.xlu0 %9108
    %9110 = vrot.lane.b32.xlu0 %v8356, 24
    %v9111 = vpop.permute.xlu0 %9110
    %9112 = vrot.lane.b32.xlu0 %v8357, 24
    %v9113 = vpop.permute.xlu0 %9112
    %9114 = vrot.lane.b32.xlu0 %v8358, 24
    %v9115 = vpop.permute.xlu0 %9114
    %9116 = vrot.lane.b32.xlu0 %v8359, 24
    %v9117 = vpop.permute.xlu0 %9116
    %9118 = vrot.lane.b32.xlu0 %v8360, 24
    %v9119 = vpop.permute.xlu0 %9118
    %9120 = vrot.lane.b32.xlu0 %v8361, 24
    %v9121 = vpop.permute.xlu0 %9120
    %9122 = vrot.lane.b32.xlu0 %v8362, 24
    %v9123 = vpop.permute.xlu0 %9122
    %9124 = vrot.lane.b32.xlu0 %v8363, 24
    %v9125 = vpop.permute.xlu0 %9124
    %9126 = vrot.lane.b32.xlu0 %v8364, 24
    %v9127 = vpop.permute.xlu0 %9126
    %9128 = vrot.lane.b32.xlu0 %v8365, 24
    %v9129 = vpop.permute.xlu0 %9128
    %9130 = vrot.lane.b32.xlu0 %v8366, 24
    %v9131 = vpop.permute.xlu0 %9130
    %9132 = vrot.lane.b32.xlu0 %v8367, 24
    %v9133 = vpop.permute.xlu0 %9132
    %9134 = vrot.lane.b32.xlu0 %v8368, 24
    %v9135 = vpop.permute.xlu0 %9134
    %9136 = vrot.lane.b32.xlu0 %v8369, 24
    %v9137 = vpop.permute.xlu0 %9136
    %9170 = vrot.lane.b32.xlu0 %v8434, 28
    %v9171 = vpop.permute.xlu0 %9170
    %9172 = vrot.lane.b32.xlu0 %v8435, 28
    %v9173 = vpop.permute.xlu0 %9172
    %9174 = vrot.lane.b32.xlu0 %v8436, 28
    %v9175 = vpop.permute.xlu0 %9174
    %9176 = vrot.lane.b32.xlu0 %v8437, 28
    %v9177 = vpop.permute.xlu0 %9176
    %9178 = vrot.lane.b32.xlu0 %v8438, 28
    %v9179 = vpop.permute.xlu0 %9178
    %9180 = vrot.lane.b32.xlu0 %v8439, 28
    %v9181 = vpop.permute.xlu0 %9180
    %9182 = vrot.lane.b32.xlu0 %v8440, 28
    %v9183 = vpop.permute.xlu0 %9182
    %9184 = vrot.lane.b32.xlu0 %v8441, 28
    %v9185 = vpop.permute.xlu0 %9184
    %9186 = vrot.lane.b32.xlu0 %v8442, 28
    %v9187 = vpop.permute.xlu0 %9186
    %9188 = vrot.lane.b32.xlu0 %v8443, 28
    %v9189 = vpop.permute.xlu0 %9188
    %9190 = vrot.lane.b32.xlu0 %v8444, 28
    %v9191 = vpop.permute.xlu0 %9190
    %9192 = vrot.lane.b32.xlu0 %v8445, 28
    %v9193 = vpop.permute.xlu0 %9192
    %9194 = vrot.lane.b32.xlu0 %v8446, 28
    %v9195 = vpop.permute.xlu0 %9194
    %9196 = vrot.lane.b32.xlu0 %v8447, 28
    %v9197 = vpop.permute.xlu0 %9196
    %9198 = vrot.lane.b32.xlu0 %v8448, 28
    %v9199 = vpop.permute.xlu0 %9198
    %9200 = vrot.lane.b32.xlu0 %v8449, 28
    %v9201 = vpop.permute.xlu0 %9200
    %9202 = vrot.lane.b32.xlu0 %v8450, 28
    %v9203 = vpop.permute.xlu0 %9202
    %9204 = vrot.lane.b32.xlu0 %v8451, 28
    %v9205 = vpop.permute.xlu0 %9204
    %9206 = vrot.lane.b32.xlu0 %v8452, 28
    %v9207 = vpop.permute.xlu0 %9206
    %9208 = vrot.lane.b32.xlu0 %v8453, 28
    %v9209 = vpop.permute.xlu0 %9208
    %9210 = vrot.lane.b32.xlu0 %v8454, 28
    %v9211 = vpop.permute.xlu0 %9210
    %9212 = vrot.lane.b32.xlu0 %v8455, 28
    %v9213 = vpop.permute.xlu0 %9212
    %9214 = vrot.lane.b32.xlu0 %v8456, 28
    %v9215 = vpop.permute.xlu0 %9214
    %9216 = vrot.lane.b32.xlu0 %v8457, 28
    %v9217 = vpop.permute.xlu0 %9216
    %9218 = vrot.lane.b32.xlu0 %v8458, 28
    %v9219 = vpop.permute.xlu0 %9218
    %9220 = vrot.lane.b32.xlu0 %v8459, 28
    %v9221 = vpop.permute.xlu0 %9220
    %9222 = vrot.lane.b32.xlu0 %v8460, 28
    %v9223 = vpop.permute.xlu0 %9222
    %9224 = vrot.lane.b32.xlu0 %v8461, 28
    %v9225 = vpop.permute.xlu0 %9224
    %9226 = vrot.lane.b32.xlu0 %v8462, 28
    %v9227 = vpop.permute.xlu0 %9226
    %9228 = vrot.lane.b32.xlu0 %v8463, 28
    %v9229 = vpop.permute.xlu0 %9228
    %9230 = vrot.lane.b32.xlu0 %v8464, 28
    %v9231 = vpop.permute.xlu0 %9230
    %9232 = vrot.lane.b32.xlu0 %v8465, 28
    %v9233 = vpop.permute.xlu0 %9232
    %9266 = vrot.lane.b32.xlu0 %v8530, 32
    %v9267 = vpop.permute.xlu0 %9266
    %9268 = vrot.lane.b32.xlu0 %v8531, 32
    %v9269 = vpop.permute.xlu0 %9268
    %9270 = vrot.lane.b32.xlu0 %v8532, 32
    %v9271 = vpop.permute.xlu0 %9270
    %9272 = vrot.lane.b32.xlu0 %v8533, 32
    %v9273 = vpop.permute.xlu0 %9272
    %9274 = vrot.lane.b32.xlu0 %v8534, 32
    %v9275 = vpop.permute.xlu0 %9274
    %9276 = vrot.lane.b32.xlu0 %v8535, 32
    %v9277 = vpop.permute.xlu0 %9276
    %9278 = vrot.lane.b32.xlu0 %v8536, 32
    %v9279 = vpop.permute.xlu0 %9278
    %9280 = vrot.lane.b32.xlu0 %v8537, 32
    %v9281 = vpop.permute.xlu0 %9280
    %9282 = vrot.lane.b32.xlu0 %v8538, 32
    %v9283 = vpop.permute.xlu0 %9282
    %9284 = vrot.lane.b32.xlu0 %v8539, 32
    %v9285 = vpop.permute.xlu0 %9284
    %9286 = vrot.lane.b32.xlu0 %v8540, 32
    %v9287 = vpop.permute.xlu0 %9286
    %9288 = vrot.lane.b32.xlu0 %v8541, 32
    %v9289 = vpop.permute.xlu0 %9288
    %9290 = vrot.lane.b32.xlu0 %v8542, 32
    %v9291 = vpop.permute.xlu0 %9290
    %9292 = vrot.lane.b32.xlu0 %v8543, 32
    %v9293 = vpop.permute.xlu0 %9292
    %9294 = vrot.lane.b32.xlu0 %v8544, 32
    %v9295 = vpop.permute.xlu0 %9294
    %9296 = vrot.lane.b32.xlu0 %v8545, 32
    %v9297 = vpop.permute.xlu0 %9296
    %9298 = vrot.lane.b32.xlu0 %v8546, 32
    %v9299 = vpop.permute.xlu0 %9298
    %9300 = vrot.lane.b32.xlu0 %v8547, 32
    %v9301 = vpop.permute.xlu0 %9300
    %9302 = vrot.lane.b32.xlu0 %v8548, 32
    %v9303 = vpop.permute.xlu0 %9302
    %9304 = vrot.lane.b32.xlu0 %v8549, 32
    %v9305 = vpop.permute.xlu0 %9304
    %9306 = vrot.lane.b32.xlu0 %v8550, 32
    %v9307 = vpop.permute.xlu0 %9306
    %9308 = vrot.lane.b32.xlu0 %v8551, 32
    %v9309 = vpop.permute.xlu0 %9308
    %9310 = vrot.lane.b32.xlu0 %v8552, 32
    %v9311 = vpop.permute.xlu0 %9310
    %9312 = vrot.lane.b32.xlu0 %v8553, 32
    %v9313 = vpop.permute.xlu0 %9312
    %9314 = vrot.lane.b32.xlu0 %v8554, 32
    %v9315 = vpop.permute.xlu0 %9314
    %9316 = vrot.lane.b32.xlu0 %v8555, 32
    %v9317 = vpop.permute.xlu0 %9316
    %9318 = vrot.lane.b32.xlu0 %v8556, 32
    %v9319 = vpop.permute.xlu0 %9318
    %9320 = vrot.lane.b32.xlu0 %v8557, 32
    %v9321 = vpop.permute.xlu0 %9320
    %9322 = vrot.lane.b32.xlu0 %v8558, 32
    %v9323 = vpop.permute.xlu0 %9322
    %9324 = vrot.lane.b32.xlu0 %v8559, 32
    %v9325 = vpop.permute.xlu0 %9324
    %9326 = vrot.lane.b32.xlu0 %v8560, 32
    %v9327 = vpop.permute.xlu0 %9326
    %9328 = vrot.lane.b32.xlu0 %v8561, 32
    %v9329 = vpop.permute.xlu0 %9328
    %v9332 = vsel %vm5165, %v7761, %v8595
    %v9335 = vsel %vm5165, %v7762, %v8597
    %v9338 = vsel %vm5165, %v7763, %v8599
    %v9341 = vsel %vm5165, %v7764, %v8601
    %v9344 = vsel %vm5165, %v7765, %v8603
    %v9347 = vsel %vm5165, %v7766, %v8605
    %v9350 = vsel %vm5165, %v7767, %v8607
    %v9353 = vsel %vm5165, %v7768, %v8609
    %v9356 = vsel %vm5165, %v7769, %v8611
    %v9359 = vsel %vm5165, %v7770, %v8613
    %v9362 = vsel %vm5165, %v7771, %v8615
    %v9365 = vsel %vm5165, %v7772, %v8617
    %v9368 = vsel %vm5165, %v7773, %v8619
    %v9371 = vsel %vm5165, %v7774, %v8621
    %v9374 = vsel %vm5165, %v7775, %v8623
    %v9377 = vsel %vm5165, %v7776, %v8625
    %v9380 = vsel %vm5165, %v7777, %v8627
    %v9383 = vsel %vm5165, %v7778, %v8629
    %v9386 = vsel %vm5165, %v7779, %v8631
    %v9389 = vsel %vm5165, %v7780, %v8633
    %v9392 = vsel %vm5165, %v7781, %v8635
    %v9395 = vsel %vm5165, %v7782, %v8637
    %v9398 = vsel %vm5165, %v7783, %v8639
    %v9401 = vsel %vm5165, %v7784, %v8641
    %v9404 = vsel %vm5165, %v7785, %v8643
    %v9407 = vsel %vm5165, %v7786, %v8645
    %v9410 = vsel %vm5165, %v7787, %v8647
    %v9413 = vsel %vm5165, %v7788, %v8649
    %v9416 = vsel %vm5165, %v7789, %v8651
    %v9419 = vsel %vm5165, %v7790, %v8653
    %v9422 = vsel %vm5165, %v7791, %v8655
    %v9425 = vsel %vm5165, %v7792, %v8657
    %v9427 = vsel %vm5262, %v9332, %v8691
    %v9429 = vsel %vm5262, %v9335, %v8693
    %v9431 = vsel %vm5262, %v9338, %v8695
    %v9433 = vsel %vm5262, %v9341, %v8697
    %v9435 = vsel %vm5262, %v9344, %v8699
    %v9437 = vsel %vm5262, %v9347, %v8701
    %v9439 = vsel %vm5262, %v9350, %v8703
    %v9441 = vsel %vm5262, %v9353, %v8705
    %v9443 = vsel %vm5262, %v9356, %v8707
    %v9445 = vsel %vm5262, %v9359, %v8709
    %v9447 = vsel %vm5262, %v9362, %v8711
    %v9449 = vsel %vm5262, %v9365, %v8713
    %v9451 = vsel %vm5262, %v9368, %v8715
    %v9453 = vsel %vm5262, %v9371, %v8717
    %v9455 = vsel %vm5262, %v9374, %v8719
    %v9457 = vsel %vm5262, %v9377, %v8721
    %v9459 = vsel %vm5262, %v9380, %v8723
    %v9461 = vsel %vm5262, %v9383, %v8725
    %v9463 = vsel %vm5262, %v9386, %v8727
    %v9465 = vsel %vm5262, %v9389, %v8729
    %v9467 = vsel %vm5262, %v9392, %v8731
    %v9469 = vsel %vm5262, %v9395, %v8733
    %v9471 = vsel %vm5262, %v9398, %v8735
    %v9473 = vsel %vm5262, %v9401, %v8737
    %v9475 = vsel %vm5262, %v9404, %v8739
    %v9477 = vsel %vm5262, %v9407, %v8741
    %v9479 = vsel %vm5262, %v9410, %v8743
    %v9481 = vsel %vm5262, %v9413, %v8745
    %v9483 = vsel %vm5262, %v9416, %v8747
    %v9485 = vsel %vm5262, %v9419, %v8749
    %v9487 = vsel %vm5262, %v9422, %v8751
    %v9489 = vsel %vm5262, %v9425, %v8753
    %v9491 = vsel %vm5327, %v9427, %v8787
    %v9493 = vsel %vm5327, %v9429, %v8789
    %v9495 = vsel %vm5327, %v9431, %v8791
    %v9497 = vsel %vm5327, %v9433, %v8793
    %v9499 = vsel %vm5327, %v9435, %v8795
    %v9501 = vsel %vm5327, %v9437, %v8797
    %v9503 = vsel %vm5327, %v9439, %v8799
    %v9505 = vsel %vm5327, %v9441, %v8801
    %v9507 = vsel %vm5327, %v9443, %v8803
    %v9509 = vsel %vm5327, %v9445, %v8805
    %v9511 = vsel %vm5327, %v9447, %v8807
    %v9513 = vsel %vm5327, %v9449, %v8809
    %v9515 = vsel %vm5327, %v9451, %v8811
    %v9517 = vsel %vm5327, %v9453, %v8813
    %v9519 = vsel %vm5327, %v9455, %v8815
    %v9521 = vsel %vm5327, %v9457, %v8817
    %v9523 = vsel %vm5327, %v9459, %v8819
    %v9525 = vsel %vm5327, %v9461, %v8821
    %v9527 = vsel %vm5327, %v9463, %v8823
    %v9529 = vsel %vm5327, %v9465, %v8825
    %v9531 = vsel %vm5327, %v9467, %v8827
    %v9533 = vsel %vm5327, %v9469, %v8829
    %v9535 = vsel %vm5327, %v9471, %v8831
    %v9537 = vsel %vm5327, %v9473, %v8833
    %v9539 = vsel %vm5327, %v9475, %v8835
    %v9541 = vsel %vm5327, %v9477, %v8837
    %v9543 = vsel %vm5327, %v9479, %v8839
    %v9545 = vsel %vm5327, %v9481, %v8841
    %v9547 = vsel %vm5327, %v9483, %v8843
    %v9549 = vsel %vm5327, %v9485, %v8845
    %v9551 = vsel %vm5327, %v9487, %v8847
    %v9553 = vsel %vm5327, %v9489, %v8849
    %v9555 = vsel %vm5392, %v9491, %v8883
    %v9557 = vsel %vm5392, %v9493, %v8885
    %v9559 = vsel %vm5392, %v9495, %v8887
    %v9561 = vsel %vm5392, %v9497, %v8889
    %v9563 = vsel %vm5392, %v9499, %v8891
    %v9565 = vsel %vm5392, %v9501, %v8893
    %v9567 = vsel %vm5392, %v9503, %v8895
    %v9569 = vsel %vm5392, %v9505, %v8897
    %v9571 = vsel %vm5392, %v9507, %v8899
    %v9573 = vsel %vm5392, %v9509, %v8901
    %v9575 = vsel %vm5392, %v9511, %v8903
    %v9577 = vsel %vm5392, %v9513, %v8905
    %v9579 = vsel %vm5392, %v9515, %v8907
    %v9581 = vsel %vm5392, %v9517, %v8909
    %v9583 = vsel %vm5392, %v9519, %v8911
    %v9585 = vsel %vm5392, %v9521, %v8913
    %v9587 = vsel %vm5392, %v9523, %v8915
    %v9589 = vsel %vm5392, %v9525, %v8917
    %v9591 = vsel %vm5392, %v9527, %v8919
    %v9593 = vsel %vm5392, %v9529, %v8921
    %v9595 = vsel %vm5392, %v9531, %v8923
    %v9597 = vsel %vm5392, %v9533, %v8925
    %v9599 = vsel %vm5392, %v9535, %v8927
    %v9601 = vsel %vm5392, %v9537, %v8929
    %v9603 = vsel %vm5392, %v9539, %v8931
    %v9605 = vsel %vm5392, %v9541, %v8933
    %v9607 = vsel %vm5392, %v9543, %v8935
    %v9609 = vsel %vm5392, %v9545, %v8937
    %v9611 = vsel %vm5392, %v9547, %v8939
    %v9613 = vsel %vm5392, %v9549, %v8941
    %v9615 = vsel %vm5392, %v9551, %v8943
    %v9617 = vsel %vm5392, %v9553, %v8945
    %v9619 = vsel %vm5457, %v9555, %v8979
    %v9621 = vsel %vm5457, %v9557, %v8981
    %v9623 = vsel %vm5457, %v9559, %v8983
    %v9625 = vsel %vm5457, %v9561, %v8985
    %v9627 = vsel %vm5457, %v9563, %v8987
    %v9629 = vsel %vm5457, %v9565, %v8989
    %v9631 = vsel %vm5457, %v9567, %v8991
    %v9633 = vsel %vm5457, %v9569, %v8993
    %v9635 = vsel %vm5457, %v9571, %v8995
    %v9637 = vsel %vm5457, %v9573, %v8997
    %v9639 = vsel %vm5457, %v9575, %v8999
    %v9641 = vsel %vm5457, %v9577, %v9001
    %v9643 = vsel %vm5457, %v9579, %v9003
    %v9645 = vsel %vm5457, %v9581, %v9005
    %v9647 = vsel %vm5457, %v9583, %v9007
    %v9649 = vsel %vm5457, %v9585, %v9009
    %v9651 = vsel %vm5457, %v9587, %v9011
    %v9653 = vsel %vm5457, %v9589, %v9013
    %v9655 = vsel %vm5457, %v9591, %v9015
    %v9657 = vsel %vm5457, %v9593, %v9017
    %v9659 = vsel %vm5457, %v9595, %v9019
    %v9661 = vsel %vm5457, %v9597, %v9021
    %v9663 = vsel %vm5457, %v9599, %v9023
    %v9665 = vsel %vm5457, %v9601, %v9025
    %v9667 = vsel %vm5457, %v9603, %v9027
    %v9669 = vsel %vm5457, %v9605, %v9029
    %v9671 = vsel %vm5457, %v9607, %v9031
    %v9673 = vsel %vm5457, %v9609, %v9033
    %v9675 = vsel %vm5457, %v9611, %v9035
    %v9677 = vsel %vm5457, %v9613, %v9037
    %v9679 = vsel %vm5457, %v9615, %v9039
    %v9681 = vsel %vm5457, %v9617, %v9041
    %v9683 = vsel %vm5522, %v9619, %v9075
    %v9685 = vsel %vm5522, %v9621, %v9077
    %v9687 = vsel %vm5522, %v9623, %v9079
    %v9689 = vsel %vm5522, %v9625, %v9081
    %v9691 = vsel %vm5522, %v9627, %v9083
    %v9693 = vsel %vm5522, %v9629, %v9085
    %v9695 = vsel %vm5522, %v9631, %v9087
    %v9697 = vsel %vm5522, %v9633, %v9089
    %v9699 = vsel %vm5522, %v9635, %v9091
    %v9701 = vsel %vm5522, %v9637, %v9093
    %v9703 = vsel %vm5522, %v9639, %v9095
    %v9705 = vsel %vm5522, %v9641, %v9097
    %v9707 = vsel %vm5522, %v9643, %v9099
    %v9709 = vsel %vm5522, %v9645, %v9101
    %v9711 = vsel %vm5522, %v9647, %v9103
    %v9713 = vsel %vm5522, %v9649, %v9105
    %v9715 = vsel %vm5522, %v9651, %v9107
    %v9717 = vsel %vm5522, %v9653, %v9109
    %v9719 = vsel %vm5522, %v9655, %v9111
    %v9721 = vsel %vm5522, %v9657, %v9113
    %v9723 = vsel %vm5522, %v9659, %v9115
    %v9725 = vsel %vm5522, %v9661, %v9117
    %v9727 = vsel %vm5522, %v9663, %v9119
    %v9729 = vsel %vm5522, %v9665, %v9121
    %v9731 = vsel %vm5522, %v9667, %v9123
    %v9733 = vsel %vm5522, %v9669, %v9125
    %v9735 = vsel %vm5522, %v9671, %v9127
    %v9737 = vsel %vm5522, %v9673, %v9129
    %v9739 = vsel %vm5522, %v9675, %v9131
    %v9741 = vsel %vm5522, %v9677, %v9133
    %v9743 = vsel %vm5522, %v9679, %v9135
    %v9745 = vsel %vm5522, %v9681, %v9137
    %v9747 = vsel %vm5587, %v9683, %v9171
    %v9749 = vsel %vm5587, %v9685, %v9173
    %v9751 = vsel %vm5587, %v9687, %v9175
    %v9753 = vsel %vm5587, %v9689, %v9177
    %v9755 = vsel %vm5587, %v9691, %v9179
    %v9757 = vsel %vm5587, %v9693, %v9181
    %v9759 = vsel %vm5587, %v9695, %v9183
    %v9761 = vsel %vm5587, %v9697, %v9185
    %v9763 = vsel %vm5587, %v9699, %v9187
    %v9765 = vsel %vm5587, %v9701, %v9189
    %v9767 = vsel %vm5587, %v9703, %v9191
    %v9769 = vsel %vm5587, %v9705, %v9193
    %v9771 = vsel %vm5587, %v9707, %v9195
    %v9773 = vsel %vm5587, %v9709, %v9197
    %v9775 = vsel %vm5587, %v9711, %v9199
    %v9777 = vsel %vm5587, %v9713, %v9201
    %v9779 = vsel %vm5587, %v9715, %v9203
    %v9781 = vsel %vm5587, %v9717, %v9205
    %v9783 = vsel %vm5587, %v9719, %v9207
    %v9785 = vsel %vm5587, %v9721, %v9209
    %v9787 = vsel %vm5587, %v9723, %v9211
    %v9789 = vsel %vm5587, %v9725, %v9213
    %v9791 = vsel %vm5587, %v9727, %v9215
    %v9793 = vsel %vm5587, %v9729, %v9217
    %v9795 = vsel %vm5587, %v9731, %v9219
    %v9797 = vsel %vm5587, %v9733, %v9221
    %v9799 = vsel %vm5587, %v9735, %v9223
    %v9801 = vsel %vm5587, %v9737, %v9225
    %v9803 = vsel %vm5587, %v9739, %v9227
    %v9805 = vsel %vm5587, %v9741, %v9229
    %v9807 = vsel %vm5587, %v9743, %v9231
    %v9809 = vsel %vm5587, %v9745, %v9233
    %v9811 = vsel %vm5652, %v9747, %v9267
    %v9813 = vsel %vm5652, %v9749, %v9269
    %v9815 = vsel %vm5652, %v9751, %v9271
    %v9817 = vsel %vm5652, %v9753, %v9273
    %v9819 = vsel %vm5652, %v9755, %v9275
    %v9821 = vsel %vm5652, %v9757, %v9277
    %v9823 = vsel %vm5652, %v9759, %v9279
    %v9825 = vsel %vm5652, %v9761, %v9281
    %v9827 = vsel %vm5652, %v9763, %v9283
    %v9829 = vsel %vm5652, %v9765, %v9285
    %v9831 = vsel %vm5652, %v9767, %v9287
    %v9833 = vsel %vm5652, %v9769, %v9289
    %v9835 = vsel %vm5652, %v9771, %v9291
    %v9837 = vsel %vm5652, %v9773, %v9293
    %v9839 = vsel %vm5652, %v9775, %v9295
    %v9841 = vsel %vm5652, %v9777, %v9297
    %v9843 = vsel %vm5652, %v9779, %v9299
    %v9845 = vsel %vm5652, %v9781, %v9301
    %v9847 = vsel %vm5652, %v9783, %v9303
    %v9849 = vsel %vm5652, %v9785, %v9305
    %v9851 = vsel %vm5652, %v9787, %v9307
    %v9853 = vsel %vm5652, %v9789, %v9309
    %v9855 = vsel %vm5652, %v9791, %v9311
    %v9857 = vsel %vm5652, %v9793, %v9313
    %v9859 = vsel %vm5652, %v9795, %v9315
    %v9861 = vsel %vm5652, %v9797, %v9317
    %v9863 = vsel %vm5652, %v9799, %v9319
    %v9865 = vsel %vm5652, %v9801, %v9321
    %v9867 = vsel %vm5652, %v9803, %v9323
    %v9869 = vsel %vm5652, %v9805, %v9325
    %v9871 = vsel %vm5652, %v9807, %v9327
    %v9873 = vsel %vm5652, %v9809, %v9329
    %v9874 = vsel %vm5717, %v9811, 0
    %v9876 = vsel %vm5717, %v9813, 0
    %v9878 = vsel %vm5717, %v9815, 0
    %v9880 = vsel %vm5717, %v9817, 0
    %v9882 = vsel %vm5717, %v9819, 0
    %v9884 = vsel %vm5717, %v9821, 0
    %v9886 = vsel %vm5717, %v9823, 0
    %v9888 = vsel %vm5717, %v9825, 0
    %v9890 = vsel %vm5717, %v9827, 0
    %v9892 = vsel %vm5717, %v9829, 0
    %v9894 = vsel %vm5717, %v9831, 0
    %v9896 = vsel %vm5717, %v9833, 0
    %v9898 = vsel %vm5717, %v9835, 0
    %v9900 = vsel %vm5717, %v9837, 0
    %v9902 = vsel %vm5717, %v9839, 0
    %v9904 = vsel %vm5717, %v9841, 0
    %v9906 = vsel %vm5717, %v9843, 0
    %v9908 = vsel %vm5717, %v9845, 0
    %v9910 = vsel %vm5717, %v9847, 0
    %v9912 = vsel %vm5717, %v9849, 0
    %v9914 = vsel %vm5717, %v9851, 0
    %v9916 = vsel %vm5717, %v9853, 0
    %v9918 = vsel %vm5717, %v9855, 0
    %v9920 = vsel %vm5717, %v9857, 0
    %v9922 = vsel %vm5717, %v9859, 0
    %v9924 = vsel %vm5717, %v9861, 0
    %v9926 = vsel %vm5717, %v9863, 0
    %v9928 = vsel %vm5717, %v9865, 0
    %v9930 = vsel %vm5717, %v9867, 0
    %v9932 = vsel %vm5717, %v9869, 0
    %v9934 = vsel %vm5717, %v9871, 0
    %v9936 = vsel %vm5717, %v9873, 0
    %v9938 = vld [vmem:[%s2] sm:$0xf]
    %v9939 = vld [vmem:[%s2 + $0x4] sm:$0xf]
    %v9940 = vld [vmem:[%s2 + $0x8] sm:$0xf]
    %v9941 = vld [vmem:[%s2 + $0xc] sm:$0xf]
    %v9942 = vld [vmem:[%s2 + $0x10] sm:$0xf]
    %v9943 = vld [vmem:[%s2 + $0x14] sm:$0xf]
    %v9944 = vld [vmem:[%s2 + $0x18] sm:$0xf]
    %v9945 = vld [vmem:[%s2 + $0x1c] sm:$0xf]
    %v9946 = vld [vmem:[%s2 + $0x20] sm:$0xf]
    %v9947 = vld [vmem:[%s2 + $0x24] sm:$0xf]
    %v9948 = vld [vmem:[%s2 + $0x28] sm:$0xf]
    %v9949 = vld [vmem:[%s2 + $0x2c] sm:$0xf]
    %v9950 = vld [vmem:[%s2 + $0x30] sm:$0xf]
    %v9951 = vld [vmem:[%s2 + $0x34] sm:$0xf]
    %v9952 = vld [vmem:[%s2 + $0x38] sm:$0xf]
    %v9953 = vld [vmem:[%s2 + $0x3c] sm:$0xf]
    %v9970 = vunpack.c.l.b16 %v9938
    %v9971 = vunpack.c.l.b16 %v9939
    %v9972 = vunpack.c.l.b16 %v9940
    %v9973 = vunpack.c.l.b16 %v9941
    %v9974 = vunpack.c.l.b16 %v9942
    %v9975 = vunpack.c.l.b16 %v9943
    %v9976 = vunpack.c.l.b16 %v9944
    %v9977 = vunpack.c.l.b16 %v9945
    %v9978 = vunpack.c.l.b16 %v9946
    %v9979 = vunpack.c.l.b16 %v9947
    %v9980 = vunpack.c.l.b16 %v9948
    %v9981 = vunpack.c.l.b16 %v9949
    %v9982 = vunpack.c.l.b16 %v9950
    %v9983 = vunpack.c.l.b16 %v9951
    %v9984 = vunpack.c.l.b16 %v9952
    %v9985 = vunpack.c.l.b16 %v9953
    %v9986 = vpack.c.b16 %v9971, %v9970
    %v9987 = vpack.c.b16 %v9973, %v9972
    %v9988 = vpack.c.b16 %v9975, %v9974
    %v9989 = vpack.c.b16 %v9977, %v9976
    %v9990 = vpack.c.b16 %v9979, %v9978
    %v9991 = vpack.c.b16 %v9981, %v9980
    %v9992 = vpack.c.b16 %v9983, %v9982
    %v9993 = vpack.c.b16 %v9985, %v9984
    %10002 = vmatprep.subr.bf16.mxu0 0
    %10003 = vmatpush1.bf16.msra.mxu0 %v9986
    %10004 = vmatprep.subr.bf16.mxu0 0
    %10005 = vmatpush1.bf16.msra.mxu0 %v9987
    %10006 = vmatprep.subr.bf16.mxu0 0
    %10007 = vmatpush1.bf16.msra.mxu0 %v9988
    %10008 = vmatprep.subr.bf16.mxu0 0
    %10009 = vmatpush1.bf16.msra.mxu0 %v9989
    %10010 = vmatprep.subr.bf16.mxu0 0
    %10011 = vmatpush1.bf16.msra.mxu0 %v9990
    %10012 = vmatprep.subr.bf16.mxu0 0
    %10013 = vmatpush1.bf16.msra.mxu0 %v9991
    %10014 = vmatprep.subr.bf16.mxu0 0
    %10015 = vmatpush1.bf16.msra.mxu0 %v9992
    %10016 = vmatprep.subr.bf16.mxu0 0
    %10017 = vmatpush1.bf16.msra.mxu0 %v9993
    %10018 = vmatprep.subr.bf16.mxu0 0
    %10019 = vmatpush1.bf16.msra.mxu0 0
    %10020 = vmatprep.subr.bf16.mxu0 0
    %10021 = vmatpush1.bf16.msra.mxu0 0
    %10022 = vmatprep.subr.bf16.mxu0 0
    %10023 = vmatpush1.bf16.msra.mxu0 0
    %10024 = vmatprep.subr.bf16.mxu0 0
    %10025 = vmatpush1.bf16.msra.mxu0 0
    %10026 = vmatprep.subr.bf16.mxu0 0
    %10027 = vmatpush1.bf16.msra.mxu0 0
    %10028 = vmatprep.subr.bf16.mxu0 0
    %10029 = vmatpush1.bf16.msra.mxu0 0
    %10030 = vmatprep.subr.bf16.mxu0 0
    %10031 = vmatpush1.bf16.msra.mxu0 0
    %10032 = vmatprep.subr.bf16.mxu0 0
    %10033 = vmatpush1.bf16.msra.mxu0 0
    %10034 = vmatprep.mubr.bf16.mxu0 0
    %10035 = vmatmul.mubr.bf16.gmra.mrb[0].mxu0 %v9874
    %v10036 = vpop.f32.mrb[0].mxu0
    %v10037 = vadd.f32 0.0, %v10036
    %v10038 = vpop.f32.mrb[0].mxu0
    %v10039 = vpop.f32.mrb[0].mxu0
    %v10040 = vadd.f32 0.0, %v10039
    %v10041 = vpop.f32.mrb[0].mxu0
    %10042 = vmatprep.mubr.bf16.mxu0 0
    %10043 = vmatmul.mubr.bf16.gmra.mrb[0].mxu0 %v9876
    %v10044 = vpop.f32.mrb[0].mxu0
    %v10045 = vadd.f32 0.0, %v10044
    %v10046 = vpop.f32.mrb[0].mxu0
    %v10047 = vpop.f32.mrb[0].mxu0
    %v10048 = vadd.f32 0.0, %v10047
    %v10049 = vpop.f32.mrb[0].mxu0
    %10050 = vmatprep.mubr.bf16.mxu0 0
    %10051 = vmatmul.mubr.bf16.gmra.mrb[0].mxu0 %v9878
    %v10052 = vpop.f32.mrb[0].mxu0
    %v10053 = vadd.f32 0.0, %v10052
    %v10054 = vpop.f32.mrb[0].mxu0
    %v10055 = vpop.f32.mrb[0].mxu0
    %v10056 = vadd.f32 0.0, %v10055
    %v10057 = vpop.f32.mrb[0].mxu0
    %10058 = vmatprep.mubr.bf16.mxu0 0
    %10059 = vmatmul.mubr.bf16.gmra.mrb[0].mxu0 %v9880
    %v10060 = vpop.f32.mrb[0].mxu0
    %v10061 = vadd.f32 0.0, %v10060
    %v10062 = vpop.f32.mrb[0].mxu0
    %v10063 = vpop.f32.mrb[0].mxu0
    %v10064 = vadd.f32 0.0, %v10063
    %v10065 = vpop.f32.mrb[0].mxu0
    %10066 = vmatprep.mubr.bf16.mxu0 0
    %10067 = vmatmul.mubr.bf16.gmra.mrb[0].mxu0 %v9882
    %v10068 = vpop.f32.mrb[0].mxu0
    %v10069 = vadd.f32 0.0, %v10068
    %v10070 = vpop.f32.mrb[0].mxu0
    %v10071 = vpop.f32.mrb[0].mxu0
    %v10072 = vadd.f32 0.0, %v10071
    %v10073 = vpop.f32.mrb[0].mxu0
    %10074 = vmatprep.mubr.bf16.mxu0 0
    %10075 = vmatmul.mubr.bf16.gmra.mrb[0].mxu0 %v9884
    %v10076 = vpop.f32.mrb[0].mxu0
    %v10077 = vadd.f32 0.0, %v10076
    %v10078 = vpop.f32.mrb[0].mxu0
    %v10079 = vpop.f32.mrb[0].mxu0
    %v10080 = vadd.f32 0.0, %v10079
    %v10081 = vpop.f32.mrb[0].mxu0
    %10082 = vmatprep.mubr.bf16.mxu0 0
    %10083 = vmatmul.mubr.bf16.gmra.mrb[0].mxu0 %v9886
    %v10084 = vpop.f32.mrb[0].mxu0
    %v10085 = vadd.f32 0.0, %v10084
    %v10086 = vpop.f32.mrb[0].mxu0
    %v10087 = vpop.f32.mrb[0].mxu0
    %v10088 = vadd.f32 0.0, %v10087
    %v10089 = vpop.f32.mrb[0].mxu0
    %10090 = vmatprep.mubr.bf16.mxu0 0
    %10091 = vmatmul.mubr.bf16.gmra.mrb[0].mxu0 %v9888
    %v10092 = vpop.f32.mrb[0].mxu0
    %v10093 = vadd.f32 0.0, %v10092
    %v10094 = vpop.f32.mrb[0].mxu0
    %v10095 = vpop.f32.mrb[0].mxu0
    %v10096 = vadd.f32 0.0, %v10095
    %v10097 = vpop.f32.mrb[0].mxu0
    %10098 = vmatprep.mubr.bf16.mxu0 0
    %10099 = vmatmul.mubr.bf16.gmra.mrb[0].mxu0 %v9890
    %v10100 = vpop.f32.mrb[0].mxu0
    %v10101 = vadd.f32 0.0, %v10100
    %v10102 = vpop.f32.mrb[0].mxu0
    %v10103 = vpop.f32.mrb[0].mxu0
    %v10104 = vadd.f32 0.0, %v10103
    %v10105 = vpop.f32.mrb[0].mxu0
    %10106 = vmatprep.mubr.bf16.mxu0 0
    %10107 = vmatmul.mubr.bf16.gmra.mrb[0].mxu0 %v9892
    %v10108 = vpop.f32.mrb[0].mxu0
    %v10109 = vadd.f32 0.0, %v10108
    %v10110 = vpop.f32.mrb[0].mxu0
    %v10111 = vpop.f32.mrb[0].mxu0
    %v10112 = vadd.f32 0.0, %v10111
    %v10113 = vpop.f32.mrb[0].mxu0
    %10114 = vmatprep.mubr.bf16.mxu0 0
    %10115 = vmatmul.mubr.bf16.gmra.mrb[0].mxu0 %v9894
    %v10116 = vpop.f32.mrb[0].mxu0
    %v10117 = vadd.f32 0.0, %v10116
    %v10118 = vpop.f32.mrb[0].mxu0
    %v10119 = vpop.f32.mrb[0].mxu0
    %v10120 = vadd.f32 0.0, %v10119
    %v10121 = vpop.f32.mrb[0].mxu0
    %10122 = vmatprep.mubr.bf16.mxu0 0
    %10123 = vmatmul.mubr.bf16.gmra.mrb[0].mxu0 %v9896
    %v10124 = vpop.f32.mrb[0].mxu0
    %v10125 = vadd.f32 0.0, %v10124
    %v10126 = vpop.f32.mrb[0].mxu0
    %v10127 = vpop.f32.mrb[0].mxu0
    %v10128 = vadd.f32 0.0, %v10127
    %v10129 = vpop.f32.mrb[0].mxu0
    %10130 = vmatprep.mubr.bf16.mxu0 0
    %10131 = vmatmul.mubr.bf16.gmra.mrb[0].mxu0 %v9898
    %v10132 = vpop.f32.mrb[0].mxu0
    %v10133 = vadd.f32 0.0, %v10132
    %v10134 = vpop.f32.mrb[0].mxu0
    %v10135 = vpop.f32.mrb[0].mxu0
    %v10136 = vadd.f32 0.0, %v10135
    %v10137 = vpop.f32.mrb[0].mxu0
    %10138 = vmatprep.mubr.bf16.mxu0 0
    %10139 = vmatmul.mubr.bf16.gmra.mrb[0].mxu0 %v9900
    %v10140 = vpop.f32.mrb[0].mxu0
    %v10141 = vadd.f32 0.0, %v10140
    %v10142 = vpop.f32.mrb[0].mxu0
    %v10143 = vpop.f32.mrb[0].mxu0
    %v10144 = vadd.f32 0.0, %v10143
    %v10145 = vpop.f32.mrb[0].mxu0
    %10146 = vmatprep.mubr.bf16.mxu0 0
    %10147 = vmatmul.mubr.bf16.gmra.mrb[0].mxu0 %v9902
    %v10148 = vpop.f32.mrb[0].mxu0
    %v10149 = vadd.f32 0.0, %v10148
    %v10150 = vpop.f32.mrb[0].mxu0
    %v10151 = vpop.f32.mrb[0].mxu0
    %v10152 = vadd.f32 0.0, %v10151
    %v10153 = vpop.f32.mrb[0].mxu0
    %10154 = vmatprep.mubr.bf16.mxu0 0
    %10155 = vmatmul.mubr.bf16.gmra.mrb[0].mxu0 %v9904
    %v10156 = vpop.f32.mrb[0].mxu0
    %v10157 = vadd.f32 0.0, %v10156
    %v10158 = vpop.f32.mrb[0].mxu0
    %v10159 = vpop.f32.mrb[0].mxu0
    %v10160 = vadd.f32 0.0, %v10159
    %v10161 = vpop.f32.mrb[0].mxu0
    %10162 = vmatprep.mubr.bf16.mxu0 0
    %10163 = vmatmul.mubr.bf16.gmra.mrb[0].mxu0 %v9906
    %v10164 = vpop.f32.mrb[0].mxu0
    %v10165 = vadd.f32 0.0, %v10164
    %v10166 = vpop.f32.mrb[0].mxu0
    %v10167 = vpop.f32.mrb[0].mxu0
    %v10168 = vadd.f32 0.0, %v10167
    %v10169 = vpop.f32.mrb[0].mxu0
    %10170 = vmatprep.mubr.bf16.mxu0 0
    %10171 = vmatmul.mubr.bf16.gmra.mrb[0].mxu0 %v9908
    %v10172 = vpop.f32.mrb[0].mxu0
    %v10173 = vadd.f32 0.0, %v10172
    %v10174 = vpop.f32.mrb[0].mxu0
    %v10175 = vpop.f32.mrb[0].mxu0
    %v10176 = vadd.f32 0.0, %v10175
    %v10177 = vpop.f32.mrb[0].mxu0
    %10178 = vmatprep.mubr.bf16.mxu0 0
    %10179 = vmatmul.mubr.bf16.gmra.mrb[0].mxu0 %v9910
    %v10180 = vpop.f32.mrb[0].mxu0
    %v10181 = vadd.f32 0.0, %v10180
    %v10182 = vpop.f32.mrb[0].mxu0
    %v10183 = vpop.f32.mrb[0].mxu0
    %v10184 = vadd.f32 0.0, %v10183
    %v10185 = vpop.f32.mrb[0].mxu0
    %10186 = vmatprep.mubr.bf16.mxu0 0
    %10187 = vmatmul.mubr.bf16.gmra.mrb[0].mxu0 %v9912
    %v10188 = vpop.f32.mrb[0].mxu0
    %v10189 = vadd.f32 0.0, %v10188
    %v10190 = vpop.f32.mrb[0].mxu0
    %v10191 = vpop.f32.mrb[0].mxu0
    %v10192 = vadd.f32 0.0, %v10191
    %v10193 = vpop.f32.mrb[0].mxu0
    %10194 = vmatprep.mubr.bf16.mxu0 0
    %10195 = vmatmul.mubr.bf16.gmra.mrb[0].mxu0 %v9914
    %v10196 = vpop.f32.mrb[0].mxu0
    %v10197 = vadd.f32 0.0, %v10196
    %v10198 = vpop.f32.mrb[0].mxu0
    %v10199 = vpop.f32.mrb[0].mxu0
    %v10200 = vadd.f32 0.0, %v10199
    %v10201 = vpop.f32.mrb[0].mxu0
    %10202 = vmatprep.mubr.bf16.mxu0 0
    %10203 = vmatmul.mubr.bf16.gmra.mrb[0].mxu0 %v9916
    %v10204 = vpop.f32.mrb[0].mxu0
    %v10205 = vadd.f32 0.0, %v10204
    %v10206 = vpop.f32.mrb[0].mxu0
    %v10207 = vpop.f32.mrb[0].mxu0
    %v10208 = vadd.f32 0.0, %v10207
    %v10209 = vpop.f32.mrb[0].mxu0
    %10210 = vmatprep.mubr.bf16.mxu0 0
    %10211 = vmatmul.mubr.bf16.gmra.mrb[0].mxu0 %v9918
    %v10212 = vpop.f32.mrb[0].mxu0
    %v10213 = vadd.f32 0.0, %v10212
    %v10214 = vpop.f32.mrb[0].mxu0
    %v10215 = vpop.f32.mrb[0].mxu0
    %v10216 = vadd.f32 0.0, %v10215
    %v10217 = vpop.f32.mrb[0].mxu0
    %10218 = vmatprep.mubr.bf16.mxu0 0
    %10219 = vmatmul.mubr.bf16.gmra.mrb[0].mxu0 %v9920
    %v10220 = vpop.f32.mrb[0].mxu0
    %v10221 = vadd.f32 0.0, %v10220
    %v10222 = vpop.f32.mrb[0].mxu0
    %v10223 = vpop.f32.mrb[0].mxu0
    %v10224 = vadd.f32 0.0, %v10223
    %v10225 = vpop.f32.mrb[0].mxu0
    %10226 = vmatprep.mubr.bf16.mxu0 0
    %10227 = vmatmul.mubr.bf16.gmra.mrb[0].mxu0 %v9922
    %v10228 = vpop.f32.mrb[0].mxu0
    %v10229 = vadd.f32 0.0, %v10228
    %v10230 = vpop.f32.mrb[0].mxu0
    %v10231 = vpop.f32.mrb[0].mxu0
    %v10232 = vadd.f32 0.0, %v10231
    %v10233 = vpop.f32.mrb[0].mxu0
    %10234 = vmatprep.mubr.bf16.mxu0 0
    %10235 = vmatmul.mubr.bf16.gmra.mrb[0].mxu0 %v9924
    %v10236 = vpop.f32.mrb[0].mxu0
    %v10237 = vadd.f32 0.0, %v10236
    %v10238 = vpop.f32.mrb[0].mxu0
    %v10239 = vpop.f32.mrb[0].mxu0
    %v10240 = vadd.f32 0.0, %v10239
    %v10241 = vpop.f32.mrb[0].mxu0
    %10242 = vmatprep.mubr.bf16.mxu0 0
    %10243 = vmatmul.mubr.bf16.gmra.mrb[0].mxu0 %v9926
    %v10244 = vpop.f32.mrb[0].mxu0
    %v10245 = vadd.f32 0.0, %v10244
    %v10246 = vpop.f32.mrb[0].mxu0
    %v10247 = vpop.f32.mrb[0].mxu0
    %v10248 = vadd.f32 0.0, %v10247
    %v10249 = vpop.f32.mrb[0].mxu0
    %10250 = vmatprep.mubr.bf16.mxu0 0
    %10251 = vmatmul.mubr.bf16.gmra.mrb[0].mxu0 %v9928
    %v10252 = vpop.f32.mrb[0].mxu0
    %v10253 = vadd.f32 0.0, %v10252
    %v10254 = vpop.f32.mrb[0].mxu0
    %v10255 = vpop.f32.mrb[0].mxu0
    %v10256 = vadd.f32 0.0, %v10255
    %v10257 = vpop.f32.mrb[0].mxu0
    %10258 = vmatprep.mubr.bf16.mxu0 0
    %10259 = vmatmul.mubr.bf16.gmra.mrb[0].mxu0 %v9930
    %v10260 = vpop.f32.mrb[0].mxu0
    %v10261 = vadd.f32 0.0, %v10260
    %v10262 = vpop.f32.mrb[0].mxu0
    %v10263 = vpop.f32.mrb[0].mxu0
    %v10264 = vadd.f32 0.0, %v10263
    %v10265 = vpop.f32.mrb[0].mxu0
    %10266 = vmatprep.mubr.bf16.mxu0 0
    %10267 = vmatmul.mubr.bf16.gmra.mrb[0].mxu0 %v9932
    %v10268 = vpop.f32.mrb[0].mxu0
    %v10269 = vadd.f32 0.0, %v10268
    %v10270 = vpop.f32.mrb[0].mxu0
    %v10271 = vpop.f32.mrb[0].mxu0
    %v10272 = vadd.f32 0.0, %v10271
    %v10273 = vpop.f32.mrb[0].mxu0
    %10274 = vmatprep.mubr.bf16.mxu0 0
    %10275 = vmatmul.mubr.bf16.gmra.mrb[0].mxu0 %v9934
    %v10276 = vpop.f32.mrb[0].mxu0
    %v10277 = vadd.f32 0.0, %v10276
    %v10278 = vpop.f32.mrb[0].mxu0
    %v10279 = vpop.f32.mrb[0].mxu0
    %v10280 = vadd.f32 0.0, %v10279
    %v10281 = vpop.f32.mrb[0].mxu0
    %10282 = vmatprep.mubr.bf16.mxu0 0
    %10283 = vmatmul.mubr.bf16.gmra.mrb[0].mxu0 %v9936
    %v10284 = vpop.f32.mrb[0].mxu0
    %v10285 = vadd.f32 0.0, %v10284
    %v10286 = vpop.f32.mrb[0].mxu0
    %v10287 = vpop.f32.mrb[0].mxu0
    %v10288 = vadd.f32 0.0, %v10287
    %v10289 = vpop.f32.mrb[0].mxu0
    %10290 = vdwg.mxu0
    %v10291 = vld [vmem:[%s6] sm:$0x1]
    %v10292 = vld [vmem:[%s7] sm:$0x1]
    %10293 = vmatprep.subr.mxu0 0.0
    %10294 = vmatpush1.msra.mxu0 %v10037
    %10295 = vmatprep.subr.mxu0 0.0
    %10296 = vmatpush1.msra.mxu0 %v10040
    %10297 = vmatprep.subr.mxu0 0.0
    %10298 = vmatpush1.msra.mxu0 %v10045
    %10299 = vmatprep.subr.mxu0 0.0
    %10300 = vmatpush1.msra.mxu0 %v10048
    %10301 = vmatprep.subr.mxu0 0.0
    %10302 = vmatpush1.msra.mxu0 %v10053
    %10303 = vmatprep.subr.mxu0 0.0
    %10304 = vmatpush1.msra.mxu0 %v10056
    %10305 = vmatprep.subr.mxu0 0.0
    %10306 = vmatpush1.msra.mxu0 %v10061
    %10307 = vmatprep.subr.mxu0 0.0
    %10308 = vmatpush1.msra.mxu0 %v10064
    %10309 = vmatprep.subr.mxu0 0.0
    %10310 = vmatpush1.msra.mxu0 %v10069
    %10311 = vmatprep.subr.mxu0 0.0
    %10312 = vmatpush1.msra.mxu0 %v10072
    %10313 = vmatprep.subr.mxu0 0.0
    %10314 = vmatpush1.msra.mxu0 %v10077
    %10315 = vmatprep.subr.mxu0 0.0
    %10316 = vmatpush1.msra.mxu0 %v10080
    %10317 = vmatprep.subr.mxu0 0.0
    %10318 = vmatpush1.msra.mxu0 %v10085
    %10319 = vmatprep.subr.mxu0 0.0
    %10320 = vmatpush1.msra.mxu0 %v10088
    %10321 = vmatprep.subr.mxu0 0.0
    %10322 = vmatpush1.msra.mxu0 %v10093
    %10323 = vmatprep.subr.mxu0 0.0
    %10324 = vmatpush1.msra.mxu0 %v10096
    %10325 = vmatprep.subr.mxu0 0.0
    %10326 = vmatpush1.msra.mxu0 %v10101
    %10327 = vmatprep.subr.mxu0 0.0
    %10328 = vmatpush1.msra.mxu0 %v10104
    %10329 = vmatprep.subr.mxu0 0.0
    %10330 = vmatpush1.msra.mxu0 %v10109
    %10331 = vmatprep.subr.mxu0 0.0
    %10332 = vmatpush1.msra.mxu0 %v10112
    %10333 = vmatprep.subr.mxu0 0.0
    %10334 = vmatpush1.msra.mxu0 %v10117
    %10335 = vmatprep.subr.mxu0 0.0
    %10336 = vmatpush1.msra.mxu0 %v10120
    %10337 = vmatprep.subr.mxu0 0.0
    %10338 = vmatpush1.msra.mxu0 %v10125
    %10339 = vmatprep.subr.mxu0 0.0
    %10340 = vmatpush1.msra.mxu0 %v10128
    %10341 = vmatprep.subr.mxu0 0.0
    %10342 = vmatpush1.msra.mxu0 %v10133
    %10343 = vmatprep.subr.mxu0 0.0
    %10344 = vmatpush1.msra.mxu0 %v10136
    %10345 = vmatprep.subr.mxu0 0.0
    %10346 = vmatpush1.msra.mxu0 %v10141
    %10347 = vmatprep.subr.mxu0 0.0
    %10348 = vmatpush1.msra.mxu0 %v10144
    %10349 = vmatprep.subr.mxu0 0.0
    %10350 = vmatpush1.msra.mxu0 %v10149
    %10351 = vmatprep.subr.mxu0 0.0
    %10352 = vmatpush1.msra.mxu0 %v10152
    %10353 = vmatprep.subr.mxu0 0.0
    %10354 = vmatpush1.msra.mxu0 %v10157
    %10355 = vmatprep.subr.mxu0 0.0
    %10356 = vmatpush1.msra.mxu0 %v10160
    %10357 = vmatprep.mubr.f32.mxu0 1.0
    %10358 = vmatmul.mubr.f32.gmra.mrb[0].mxu0 1.0
    %v10359 = vpop.f32.mrb[0].mxu0
    %v10360 = vadd.f32 0.0, %v10359
    %v10361 = vpop.f32.mrb[0].mxu0
    %10362 = vdwg.mxu0
    %10363 = vmatprep.subr.mxu0 0.0
    %10364 = vmatpush1.msra.mxu0 %v10165
    %10365 = vmatprep.subr.mxu0 0.0
    %10366 = vmatpush1.msra.mxu0 %v10168
    %10367 = vmatprep.subr.mxu0 0.0
    %10368 = vmatpush1.msra.mxu0 %v10173
    %10369 = vmatprep.subr.mxu0 0.0
    %10370 = vmatpush1.msra.mxu0 %v10176
    %10371 = vmatprep.subr.mxu0 0.0
    %10372 = vmatpush1.msra.mxu0 %v10181
    %10373 = vmatprep.subr.mxu0 0.0
    %10374 = vmatpush1.msra.mxu0 %v10184
    %10375 = vmatprep.subr.mxu0 0.0
    %10376 = vmatpush1.msra.mxu0 %v10189
    %10377 = vmatprep.subr.mxu0 0.0
    %10378 = vmatpush1.msra.mxu0 %v10192
    %10379 = vmatprep.subr.mxu0 0.0
    %10380 = vmatpush1.msra.mxu0 %v10197
    %10381 = vmatprep.subr.mxu0 0.0
    %10382 = vmatpush1.msra.mxu0 %v10200
    %10383 = vmatprep.subr.mxu0 0.0
    %10384 = vmatpush1.msra.mxu0 %v10205
    %10385 = vmatprep.subr.mxu0 0.0
    %10386 = vmatpush1.msra.mxu0 %v10208
    %10387 = vmatprep.subr.mxu0 0.0
    %10388 = vmatpush1.msra.mxu0 %v10213
    %10389 = vmatprep.subr.mxu0 0.0
    %10390 = vmatpush1.msra.mxu0 %v10216
    %10391 = vmatprep.subr.mxu0 0.0
    %10392 = vmatpush1.msra.mxu0 %v10221
    %10393 = vmatprep.subr.mxu0 0.0
    %10394 = vmatpush1.msra.mxu0 %v10224
    %10395 = vmatprep.subr.mxu0 0.0
    %10396 = vmatpush1.msra.mxu0 %v10229
    %10397 = vmatprep.subr.mxu0 0.0
    %10398 = vmatpush1.msra.mxu0 %v10232
    %10399 = vmatprep.subr.mxu0 0.0
    %10400 = vmatpush1.msra.mxu0 %v10237
    %10401 = vmatprep.subr.mxu0 0.0
    %10402 = vmatpush1.msra.mxu0 %v10240
    %10403 = vmatprep.subr.mxu0 0.0
    %10404 = vmatpush1.msra.mxu0 %v10245
    %10405 = vmatprep.subr.mxu0 0.0
    %10406 = vmatpush1.msra.mxu0 %v10248
    %10407 = vmatprep.subr.mxu0 0.0
    %10408 = vmatpush1.msra.mxu0 %v10253
    %10409 = vmatprep.subr.mxu0 0.0
    %10410 = vmatpush1.msra.mxu0 %v10256
    %10411 = vmatprep.subr.mxu0 0.0
    %10412 = vmatpush1.msra.mxu0 %v10261
    %10413 = vmatprep.subr.mxu0 0.0
    %10414 = vmatpush1.msra.mxu0 %v10264
    %10415 = vmatprep.subr.mxu0 0.0
    %10416 = vmatpush1.msra.mxu0 %v10269
    %10417 = vmatprep.subr.mxu0 0.0
    %10418 = vmatpush1.msra.mxu0 %v10272
    %10419 = vmatprep.subr.mxu0 0.0
    %10420 = vmatpush1.msra.mxu0 %v10277
    %10421 = vmatprep.subr.mxu0 0.0
    %10422 = vmatpush1.msra.mxu0 %v10280
    %10423 = vmatprep.subr.mxu0 0.0
    %10424 = vmatpush1.msra.mxu0 %v10285
    %10425 = vmatprep.subr.mxu0 0.0
    %10426 = vmatpush1.msra.mxu0 %v10288
    %10427 = vmatprep.mubr.f32.mxu0 1.0
    %10428 = vmatmul.mubr.f32.gmra.mrb[0].mxu0 1.0
    %v10429 = vpop.f32.mrb[0].mxu0
    %v10430 = vadd.f32 %v10360, %v10429
    %v10431 = vpop.f32.mrb[0].mxu0
    %10432 = vdwg.mxu0
    %v10433 = vmul.f32 %v10037, %v10037
    %v10434 = vmul.f32 %v10040, %v10040
    %v10435 = vmul.f32 %v10045, %v10045
    %v10436 = vmul.f32 %v10048, %v10048
    %v10437 = vmul.f32 %v10053, %v10053
    %v10438 = vmul.f32 %v10056, %v10056
    %v10439 = vmul.f32 %v10061, %v10061
    %v10440 = vmul.f32 %v10064, %v10064
    %v10441 = vmul.f32 %v10069, %v10069
    %v10442 = vmul.f32 %v10072, %v10072
    %v10443 = vmul.f32 %v10077, %v10077
    %v10444 = vmul.f32 %v10080, %v10080
    %v10445 = vmul.f32 %v10085, %v10085
    %v10446 = vmul.f32 %v10088, %v10088
    %v10447 = vmul.f32 %v10093, %v10093
    %v10448 = vmul.f32 %v10096, %v10096
    %v10449 = vmul.f32 %v10101, %v10101
    %v10450 = vmul.f32 %v10104, %v10104
    %v10451 = vmul.f32 %v10109, %v10109
    %v10452 = vmul.f32 %v10112, %v10112
    %v10453 = vmul.f32 %v10117, %v10117
    %v10454 = vmul.f32 %v10120, %v10120
    %v10455 = vmul.f32 %v10125, %v10125
    %v10456 = vmul.f32 %v10128, %v10128
    %v10457 = vmul.f32 %v10133, %v10133
    %v10458 = vmul.f32 %v10136, %v10136
    %v10459 = vmul.f32 %v10141, %v10141
    %v10460 = vmul.f32 %v10144, %v10144
    %v10461 = vmul.f32 %v10149, %v10149
    %v10462 = vmul.f32 %v10152, %v10152
    %v10463 = vmul.f32 %v10157, %v10157
    %v10464 = vmul.f32 %v10160, %v10160
    %v10465 = vmul.f32 %v10165, %v10165
    %v10466 = vmul.f32 %v10168, %v10168
    %v10467 = vmul.f32 %v10173, %v10173
    %v10468 = vmul.f32 %v10176, %v10176
    %v10469 = vmul.f32 %v10181, %v10181
    %v10470 = vmul.f32 %v10184, %v10184
    %v10471 = vmul.f32 %v10189, %v10189
    %v10472 = vmul.f32 %v10192, %v10192
    %v10473 = vmul.f32 %v10197, %v10197
    %v10474 = vmul.f32 %v10200, %v10200
    %v10475 = vmul.f32 %v10205, %v10205
    %v10476 = vmul.f32 %v10208, %v10208
    %v10477 = vmul.f32 %v10213, %v10213
    %v10478 = vmul.f32 %v10216, %v10216
    %v10479 = vmul.f32 %v10221, %v10221
    %v10480 = vmul.f32 %v10224, %v10224
    %v10481 = vmul.f32 %v10229, %v10229
    %v10482 = vmul.f32 %v10232, %v10232
    %v10483 = vmul.f32 %v10237, %v10237
    %v10484 = vmul.f32 %v10240, %v10240
    %v10485 = vmul.f32 %v10245, %v10245
    %v10486 = vmul.f32 %v10248, %v10248
    %v10487 = vmul.f32 %v10253, %v10253
    %v10488 = vmul.f32 %v10256, %v10256
    %v10489 = vmul.f32 %v10261, %v10261
    %v10490 = vmul.f32 %v10264, %v10264
    %v10491 = vmul.f32 %v10269, %v10269
    %v10492 = vmul.f32 %v10272, %v10272
    %v10493 = vmul.f32 %v10277, %v10277
    %v10494 = vmul.f32 %v10280, %v10280
    %v10495 = vmul.f32 %v10285, %v10285
    %v10496 = vmul.f32 %v10288, %v10288
    %10497 = vmatprep.subr.mxu0 0.0
    %10498 = vmatpush1.msra.mxu0 %v10433
    %10499 = vmatprep.subr.mxu0 0.0
    %10500 = vmatpush1.msra.mxu0 %v10434
    %10501 = vmatprep.subr.mxu0 0.0
    %10502 = vmatpush1.msra.mxu0 %v10435
    %10503 = vmatprep.subr.mxu0 0.0
    %10504 = vmatpush1.msra.mxu0 %v10436
    %10505 = vmatprep.subr.mxu0 0.0
    %10506 = vmatpush1.msra.mxu0 %v10437
    %10507 = vmatprep.subr.mxu0 0.0
    %10508 = vmatpush1.msra.mxu0 %v10438
    %10509 = vmatprep.subr.mxu0 0.0
    %10510 = vmatpush1.msra.mxu0 %v10439
    %10511 = vmatprep.subr.mxu0 0.0
    %10512 = vmatpush1.msra.mxu0 %v10440
    %10513 = vmatprep.subr.mxu0 0.0
    %10514 = vmatpush1.msra.mxu0 %v10441
    %10515 = vmatprep.subr.mxu0 0.0
    %10516 = vmatpush1.msra.mxu0 %v10442
    %10517 = vmatprep.subr.mxu0 0.0
    %10518 = vmatpush1.msra.mxu0 %v10443
    %10519 = vmatprep.subr.mxu0 0.0
    %10520 = vmatpush1.msra.mxu0 %v10444
    %10521 = vmatprep.subr.mxu0 0.0
    %10522 = vmatpush1.msra.mxu0 %v10445
    %10523 = vmatprep.subr.mxu0 0.0
    %10524 = vmatpush1.msra.mxu0 %v10446
    %10525 = vmatprep.subr.mxu0 0.0
    %10526 = vmatpush1.msra.mxu0 %v10447
    %10527 = vmatprep.subr.mxu0 0.0
    %10528 = vmatpush1.msra.mxu0 %v10448
    %10529 = vmatprep.subr.mxu0 0.0
    %10530 = vmatpush1.msra.mxu0 %v10449
    %10531 = vmatprep.subr.mxu0 0.0
    %10532 = vmatpush1.msra.mxu0 %v10450
    %10533 = vmatprep.subr.mxu0 0.0
    %10534 = vmatpush1.msra.mxu0 %v10451
    %10535 = vmatprep.subr.mxu0 0.0
    %10536 = vmatpush1.msra.mxu0 %v10452
    %10537 = vmatprep.subr.mxu0 0.0
    %10538 = vmatpush1.msra.mxu0 %v10453
    %10539 = vmatprep.subr.mxu0 0.0
    %10540 = vmatpush1.msra.mxu0 %v10454
    %10541 = vmatprep.subr.mxu0 0.0
    %10542 = vmatpush1.msra.mxu0 %v10455
    %10543 = vmatprep.subr.mxu0 0.0
    %10544 = vmatpush1.msra.mxu0 %v10456
    %10545 = vmatprep.subr.mxu0 0.0
    %10546 = vmatpush1.msra.mxu0 %v10457
    %10547 = vmatprep.subr.mxu0 0.0
    %10548 = vmatpush1.msra.mxu0 %v10458
    %10549 = vmatprep.subr.mxu0 0.0
    %10550 = vmatpush1.msra.mxu0 %v10459
    %10551 = vmatprep.subr.mxu0 0.0
    %10552 = vmatpush1.msra.mxu0 %v10460
    %10553 = vmatprep.subr.mxu0 0.0
    %10554 = vmatpush1.msra.mxu0 %v10461
    %10555 = vmatprep.subr.mxu0 0.0
    %10556 = vmatpush1.msra.mxu0 %v10462
    %10557 = vmatprep.subr.mxu0 0.0
    %10558 = vmatpush1.msra.mxu0 %v10463
    %10559 = vmatprep.subr.mxu0 0.0
    %10560 = vmatpush1.msra.mxu0 %v10464
    %10561 = vmatprep.mubr.f32.mxu0 1.0
    %10562 = vmatmul.mubr.f32.gmra.mrb[0].mxu0 1.0
    %v10563 = vpop.f32.mrb[0].mxu0
    %v10564 = vadd.f32 0.0, %v10563
    %v10565 = vpop.f32.mrb[0].mxu0
    %10566 = vdwg.mxu0
    %10567 = vmatprep.subr.mxu0 0.0
    %10568 = vmatpush1.msra.mxu0 %v10465
    %10569 = vmatprep.subr.mxu0 0.0
    %10570 = vmatpush1.msra.mxu0 %v10466
    %10571 = vmatprep.subr.mxu0 0.0
    %10572 = vmatpush1.msra.mxu0 %v10467
    %10573 = vmatprep.subr.mxu0 0.0
    %10574 = vmatpush1.msra.mxu0 %v10468
    %10575 = vmatprep.subr.mxu0 0.0
    %10576 = vmatpush1.msra.mxu0 %v10469
    %10577 = vmatprep.subr.mxu0 0.0
    %10578 = vmatpush1.msra.mxu0 %v10470
    %10579 = vmatprep.subr.mxu0 0.0
    %10580 = vmatpush1.msra.mxu0 %v10471
    %10581 = vmatprep.subr.mxu0 0.0
    %10582 = vmatpush1.msra.mxu0 %v10472
    %10583 = vmatprep.subr.mxu0 0.0
    %10584 = vmatpush1.msra.mxu0 %v10473
    %10585 = vmatprep.subr.mxu0 0.0
    %10586 = vmatpush1.msra.mxu0 %v10474
    %10587 = vmatprep.subr.mxu0 0.0
    %10588 = vmatpush1.msra.mxu0 %v10475
    %10589 = vmatprep.subr.mxu0 0.0
    %10590 = vmatpush1.msra.mxu0 %v10476
    %10591 = vmatprep.subr.mxu0 0.0
    %10592 = vmatpush1.msra.mxu0 %v10477
    %10593 = vmatprep.subr.mxu0 0.0
    %10594 = vmatpush1.msra.mxu0 %v10478
    %10595 = vmatprep.subr.mxu0 0.0
    %10596 = vmatpush1.msra.mxu0 %v10479
    %10597 = vmatprep.subr.mxu0 0.0
    %10598 = vmatpush1.msra.mxu0 %v10480
    %10599 = vmatprep.subr.mxu0 0.0
    %10600 = vmatpush1.msra.mxu0 %v10481
    %10601 = vmatprep.subr.mxu0 0.0
    %10602 = vmatpush1.msra.mxu0 %v10482
    %10603 = vmatprep.subr.mxu0 0.0
    %10604 = vmatpush1.msra.mxu0 %v10483
    %10605 = vmatprep.subr.mxu0 0.0
    %10606 = vmatpush1.msra.mxu0 %v10484
    %10607 = vmatprep.subr.mxu0 0.0
    %10608 = vmatpush1.msra.mxu0 %v10485
    %10609 = vmatprep.subr.mxu0 0.0
    %10610 = vmatpush1.msra.mxu0 %v10486
    %10611 = vmatprep.subr.mxu0 0.0
    %10612 = vmatpush1.msra.mxu0 %v10487
    %10613 = vmatprep.subr.mxu0 0.0
    %10614 = vmatpush1.msra.mxu0 %v10488
    %10615 = vmatprep.subr.mxu0 0.0
    %10616 = vmatpush1.msra.mxu0 %v10489
    %10617 = vmatprep.subr.mxu0 0.0
    %10618 = vmatpush1.msra.mxu0 %v10490
    %10619 = vmatprep.subr.mxu0 0.0
    %10620 = vmatpush1.msra.mxu0 %v10491
    %10621 = vmatprep.subr.mxu0 0.0
    %10622 = vmatpush1.msra.mxu0 %v10492
    %10623 = vmatprep.subr.mxu0 0.0
    %10624 = vmatpush1.msra.mxu0 %v10493
    %10625 = vmatprep.subr.mxu0 0.0
    %10626 = vmatpush1.msra.mxu0 %v10494
    %10627 = vmatprep.subr.mxu0 0.0
    %10628 = vmatpush1.msra.mxu0 %v10495
    %10629 = vmatprep.subr.mxu0 0.0
    %10630 = vmatpush1.msra.mxu0 %v10496
    %10631 = vmatprep.mubr.f32.mxu0 1.0
    %10632 = vmatmul.mubr.f32.gmra.mrb[0].mxu0 1.0
    %v10633 = vpop.f32.mrb[0].mxu0
    %v10634 = vadd.f32 %v10564, %v10633
    %v10635 = vpop.f32.mrb[0].mxu0
    %10636 = vdwg.mxu0
    %v10637 = vmul.f32 %v10430, 0.001953125
    %v10638 = vmul.f32 %v10634, 0.001953125
    %v10639 = vmul.f32 %v10637, %v10637
    %v10640 = vsub.f32 %v10638, %v10639
    %v10641 = vmax.f32 %v10640, 0.0
    %v10642 = vadd.f32 %v10641, 1e-05
    %v10643 = vrsqrt.pop %v10642
    %v10644 = vmul.f32 %v10291, %v10643
    %v10645 = vmul.f32 %v10637, %v10644
    %v10646 = vsub.f32 %v10292, %v10645
    %v10648 = vlaneseq
    %v10649 = vshrl.u32 %v10648, 7
    %v10650 = vsub.s32 0, %v10649
    %v10651 = vrot.slane %v10644, %v10650
    %v10653 = vmul.f32 %v10037, %v10651
    %v10654 = vmul.f32 %v10040, %v10651
    %v10655 = vmul.f32 %v10045, %v10651
    %v10656 = vmul.f32 %v10048, %v10651
    %v10657 = vmul.f32 %v10053, %v10651
    %v10658 = vmul.f32 %v10056, %v10651
    %v10659 = vmul.f32 %v10061, %v10651
    %v10660 = vmul.f32 %v10064, %v10651
    %v10661 = vmul.f32 %v10069, %v10651
    %v10662 = vmul.f32 %v10072, %v10651
    %v10663 = vmul.f32 %v10077, %v10651
    %v10664 = vmul.f32 %v10080, %v10651
    %v10665 = vmul.f32 %v10085, %v10651
    %v10666 = vmul.f32 %v10088, %v10651
    %v10667 = vmul.f32 %v10093, %v10651
    %v10668 = vmul.f32 %v10096, %v10651
    %v10669 = vmul.f32 %v10101, %v10651
    %v10670 = vmul.f32 %v10104, %v10651
    %v10671 = vmul.f32 %v10109, %v10651
    %v10672 = vmul.f32 %v10112, %v10651
    %v10673 = vmul.f32 %v10117, %v10651
    %v10674 = vmul.f32 %v10120, %v10651
    %v10675 = vmul.f32 %v10125, %v10651
    %v10676 = vmul.f32 %v10128, %v10651
    %v10677 = vmul.f32 %v10133, %v10651
    %v10678 = vmul.f32 %v10136, %v10651
    %v10679 = vmul.f32 %v10141, %v10651
    %v10680 = vmul.f32 %v10144, %v10651
    %v10681 = vmul.f32 %v10149, %v10651
    %v10682 = vmul.f32 %v10152, %v10651
    %v10683 = vmul.f32 %v10157, %v10651
    %v10684 = vmul.f32 %v10160, %v10651
    %v10685 = vmul.f32 %v10165, %v10651
    %v10686 = vmul.f32 %v10168, %v10651
    %v10687 = vmul.f32 %v10173, %v10651
    %v10688 = vmul.f32 %v10176, %v10651
    %v10689 = vmul.f32 %v10181, %v10651
    %v10690 = vmul.f32 %v10184, %v10651
    %v10691 = vmul.f32 %v10189, %v10651
    %v10692 = vmul.f32 %v10192, %v10651
    %v10693 = vmul.f32 %v10197, %v10651
    %v10694 = vmul.f32 %v10200, %v10651
    %v10695 = vmul.f32 %v10205, %v10651
    %v10696 = vmul.f32 %v10208, %v10651
    %v10697 = vmul.f32 %v10213, %v10651
    %v10698 = vmul.f32 %v10216, %v10651
    %v10699 = vmul.f32 %v10221, %v10651
    %v10700 = vmul.f32 %v10224, %v10651
    %v10701 = vmul.f32 %v10229, %v10651
    %v10702 = vmul.f32 %v10232, %v10651
    %v10703 = vmul.f32 %v10237, %v10651
    %v10704 = vmul.f32 %v10240, %v10651
    %v10705 = vmul.f32 %v10245, %v10651
    %v10706 = vmul.f32 %v10248, %v10651
    %v10707 = vmul.f32 %v10253, %v10651
    %v10708 = vmul.f32 %v10256, %v10651
    %v10709 = vmul.f32 %v10261, %v10651
    %v10710 = vmul.f32 %v10264, %v10651
    %v10711 = vmul.f32 %v10269, %v10651
    %v10712 = vmul.f32 %v10272, %v10651
    %v10713 = vmul.f32 %v10277, %v10651
    %v10714 = vmul.f32 %v10280, %v10651
    %v10715 = vmul.f32 %v10285, %v10651
    %v10716 = vmul.f32 %v10288, %v10651
    %v10718 = vlaneseq
    %v10719 = vshrl.u32 %v10718, 7
    %v10720 = vsub.s32 0, %v10719
    %v10721 = vrot.slane %v10646, %v10720
    %v10723 = vadd.f32 %v10653, %v10721
    %v10724 = vadd.f32 %v10654, %v10721
    %v10725 = vadd.f32 %v10655, %v10721
    %v10726 = vadd.f32 %v10656, %v10721
    %v10727 = vadd.f32 %v10657, %v10721
    %v10728 = vadd.f32 %v10658, %v10721
    %v10729 = vadd.f32 %v10659, %v10721
    %v10730 = vadd.f32 %v10660, %v10721
    %v10731 = vadd.f32 %v10661, %v10721
    %v10732 = vadd.f32 %v10662, %v10721
    %v10733 = vadd.f32 %v10663, %v10721
    %v10734 = vadd.f32 %v10664, %v10721
    %v10735 = vadd.f32 %v10665, %v10721
    %v10736 = vadd.f32 %v10666, %v10721
    %v10737 = vadd.f32 %v10667, %v10721
    %v10738 = vadd.f32 %v10668, %v10721
    %v10739 = vadd.f32 %v10669, %v10721
    %v10740 = vadd.f32 %v10670, %v10721
    %v10741 = vadd.f32 %v10671, %v10721
    %v10742 = vadd.f32 %v10672, %v10721
    %v10743 = vadd.f32 %v10673, %v10721
    %v10744 = vadd.f32 %v10674, %v10721
    %v10745 = vadd.f32 %v10675, %v10721
    %v10746 = vadd.f32 %v10676, %v10721
    %v10747 = vadd.f32 %v10677, %v10721
    %v10748 = vadd.f32 %v10678, %v10721
    %v10749 = vadd.f32 %v10679, %v10721
    %v10750 = vadd.f32 %v10680, %v10721
    %v10751 = vadd.f32 %v10681, %v10721
    %v10752 = vadd.f32 %v10682, %v10721
    %v10753 = vadd.f32 %v10683, %v10721
    %v10754 = vadd.f32 %v10684, %v10721
    %v10755 = vadd.f32 %v10685, %v10721
    %v10756 = vadd.f32 %v10686, %v10721
    %v10757 = vadd.f32 %v10687, %v10721
    %v10758 = vadd.f32 %v10688, %v10721
    %v10759 = vadd.f32 %v10689, %v10721
    %v10760 = vadd.f32 %v10690, %v10721
    %v10761 = vadd.f32 %v10691, %v10721
    %v10762 = vadd.f32 %v10692, %v10721
    %v10763 = vadd.f32 %v10693, %v10721
    %v10764 = vadd.f32 %v10694, %v10721
    %v10765 = vadd.f32 %v10695, %v10721
    %v10766 = vadd.f32 %v10696, %v10721
    %v10767 = vadd.f32 %v10697, %v10721
    %v10768 = vadd.f32 %v10698, %v10721
    %v10769 = vadd.f32 %v10699, %v10721
    %v10770 = vadd.f32 %v10700, %v10721
    %v10771 = vadd.f32 %v10701, %v10721
    %v10772 = vadd.f32 %v10702, %v10721
    %v10773 = vadd.f32 %v10703, %v10721
    %v10774 = vadd.f32 %v10704, %v10721
    %v10775 = vadd.f32 %v10705, %v10721
    %v10776 = vadd.f32 %v10706, %v10721
    %v10777 = vadd.f32 %v10707, %v10721
    %v10778 = vadd.f32 %v10708, %v10721
    %v10779 = vadd.f32 %v10709, %v10721
    %v10780 = vadd.f32 %v10710, %v10721
    %v10781 = vadd.f32 %v10711, %v10721
    %v10782 = vadd.f32 %v10712, %v10721
    %v10783 = vadd.f32 %v10713, %v10721
    %v10784 = vadd.f32 %v10714, %v10721
    %v10785 = vadd.f32 %v10715, %v10721
    %v10786 = vadd.f32 %v10716, %v10721
    %v10787 = vadd.f32 %v10723, %v7481
    %v10788 = vadd.f32 %v10724, %v7482
    %v10789 = vadd.f32 %v10725, %v7483
    %v10790 = vadd.f32 %v10726, %v7484
    %v10791 = vadd.f32 %v10727, %v7485
    %v10792 = vadd.f32 %v10728, %v7486
    %v10793 = vadd.f32 %v10729, %v7487
    %v10794 = vadd.f32 %v10730, %v7488
    %v10795 = vadd.f32 %v10731, %v7489
    %v10796 = vadd.f32 %v10732, %v7490
    %v10797 = vadd.f32 %v10733, %v7491
    %v10798 = vadd.f32 %v10734, %v7492
    %v10799 = vadd.f32 %v10735, %v7493
    %v10800 = vadd.f32 %v10736, %v7494
    %v10801 = vadd.f32 %v10737, %v7495
    %v10802 = vadd.f32 %v10738, %v7496
    %v10803 = vadd.f32 %v10739, %v7497
    %v10804 = vadd.f32 %v10740, %v7498
    %v10805 = vadd.f32 %v10741, %v7499
    %v10806 = vadd.f32 %v10742, %v7500
    %v10807 = vadd.f32 %v10743, %v7501
    %v10808 = vadd.f32 %v10744, %v7502
    %v10809 = vadd.f32 %v10745, %v7503
    %v10810 = vadd.f32 %v10746, %v7504
    %v10811 = vadd.f32 %v10747, %v7505
    %v10812 = vadd.f32 %v10748, %v7506
    %v10813 = vadd.f32 %v10749, %v7507
    %v10814 = vadd.f32 %v10750, %v7508
    %v10815 = vadd.f32 %v10751, %v7509
    %v10816 = vadd.f32 %v10752, %v7510
    %v10817 = vadd.f32 %v10753, %v7511
    %v10818 = vadd.f32 %v10754, %v7512
    %v10819 = vadd.f32 %v10755, %v7513
    %v10820 = vadd.f32 %v10756, %v7514
    %v10821 = vadd.f32 %v10757, %v7515
    %v10822 = vadd.f32 %v10758, %v7516
    %v10823 = vadd.f32 %v10759, %v7517
    %v10824 = vadd.f32 %v10760, %v7518
    %v10825 = vadd.f32 %v10761, %v7519
    %v10826 = vadd.f32 %v10762, %v7520
    %v10827 = vadd.f32 %v10763, %v7521
    %v10828 = vadd.f32 %v10764, %v7522
    %v10829 = vadd.f32 %v10765, %v7523
    %v10830 = vadd.f32 %v10766, %v7524
    %v10831 = vadd.f32 %v10767, %v7525
    %v10832 = vadd.f32 %v10768, %v7526
    %v10833 = vadd.f32 %v10769, %v7527
    %v10834 = vadd.f32 %v10770, %v7528
    %v10835 = vadd.f32 %v10771, %v7529
    %v10836 = vadd.f32 %v10772, %v7530
    %v10837 = vadd.f32 %v10773, %v7531
    %v10838 = vadd.f32 %v10774, %v7532
    %v10839 = vadd.f32 %v10775, %v7533
    %v10840 = vadd.f32 %v10776, %v7534
    %v10841 = vadd.f32 %v10777, %v7535
    %v10842 = vadd.f32 %v10778, %v7536
    %v10843 = vadd.f32 %v10779, %v7537
    %v10844 = vadd.f32 %v10780, %v7538
    %v10845 = vadd.f32 %v10781, %v7539
    %v10846 = vadd.f32 %v10782, %v7540
    %v10847 = vadd.f32 %v10783, %v7541
    %v10848 = vadd.f32 %v10784, %v7542
    %v10849 = vadd.f32 %v10785, %v7543
    %v10850 = vadd.f32 %v10786, %v7544
    %v10851 = vmax.f32 %v10787, 0.0
    %v10852 = vmax.f32 %v10788, 0.0
    %v10853 = vmax.f32 %v10789, 0.0
    %v10854 = vmax.f32 %v10790, 0.0
    %v10855 = vmax.f32 %v10791, 0.0
    %v10856 = vmax.f32 %v10792, 0.0
    %v10857 = vmax.f32 %v10793, 0.0
    %v10858 = vmax.f32 %v10794, 0.0
    %v10859 = vmax.f32 %v10795, 0.0
    %v10860 = vmax.f32 %v10796, 0.0
    %v10861 = vmax.f32 %v10797, 0.0
    %v10862 = vmax.f32 %v10798, 0.0
    %v10863 = vmax.f32 %v10799, 0.0
    %v10864 = vmax.f32 %v10800, 0.0
    %v10865 = vmax.f32 %v10801, 0.0
    %v10866 = vmax.f32 %v10802, 0.0
    %v10867 = vmax.f32 %v10803, 0.0
    %v10868 = vmax.f32 %v10804, 0.0
    %v10869 = vmax.f32 %v10805, 0.0
    %v10870 = vmax.f32 %v10806, 0.0
    %v10871 = vmax.f32 %v10807, 0.0
    %v10872 = vmax.f32 %v10808, 0.0
    %v10873 = vmax.f32 %v10809, 0.0
    %v10874 = vmax.f32 %v10810, 0.0
    %v10875 = vmax.f32 %v10811, 0.0
    %v10876 = vmax.f32 %v10812, 0.0
    %v10877 = vmax.f32 %v10813, 0.0
    %v10878 = vmax.f32 %v10814, 0.0
    %v10879 = vmax.f32 %v10815, 0.0
    %v10880 = vmax.f32 %v10816, 0.0
    %v10881 = vmax.f32 %v10817, 0.0
    %v10882 = vmax.f32 %v10818, 0.0
    %v10883 = vmax.f32 %v10819, 0.0
    %v10884 = vmax.f32 %v10820, 0.0
    %v10885 = vmax.f32 %v10821, 0.0
    %v10886 = vmax.f32 %v10822, 0.0
    %v10887 = vmax.f32 %v10823, 0.0
    %v10888 = vmax.f32 %v10824, 0.0
    %v10889 = vmax.f32 %v10825, 0.0
    %v10890 = vmax.f32 %v10826, 0.0
    %v10891 = vmax.f32 %v10827, 0.0
    %v10892 = vmax.f32 %v10828, 0.0
    %v10893 = vmax.f32 %v10829, 0.0
    %v10894 = vmax.f32 %v10830, 0.0
    %v10895 = vmax.f32 %v10831, 0.0
    %v10896 = vmax.f32 %v10832, 0.0
    %v10897 = vmax.f32 %v10833, 0.0
    %v10898 = vmax.f32 %v10834, 0.0
    %v10899 = vmax.f32 %v10835, 0.0
    %v10900 = vmax.f32 %v10836, 0.0
    %v10901 = vmax.f32 %v10837, 0.0
    %v10902 = vmax.f32 %v10838, 0.0
    %v10903 = vmax.f32 %v10839, 0.0
    %v10904 = vmax.f32 %v10840, 0.0
    %v10905 = vmax.f32 %v10841, 0.0
    %v10906 = vmax.f32 %v10842, 0.0
    %v10907 = vmax.f32 %v10843, 0.0
    %v10908 = vmax.f32 %v10844, 0.0
    %v10909 = vmax.f32 %v10845, 0.0
    %v10910 = vmax.f32 %v10846, 0.0
    %v10911 = vmax.f32 %v10847, 0.0
    %v10912 = vmax.f32 %v10848, 0.0
    %v10913 = vmax.f32 %v10849, 0.0
    %v10914 = vmax.f32 %v10850, 0.0
    %10915 = vst [vmem:[#allocation3] sm:$0xff] %v10851
    %10916 = vst [vmem:[#allocation3 + $0x8] sm:$0xff] %v10852
    %10917 = vst [vmem:[#allocation3 + $0x10] sm:$0xff] %v10853
    %10918 = vst [vmem:[#allocation3 + $0x18] sm:$0xff] %v10854
    %10919 = vst [vmem:[#allocation3 + $0x20] sm:$0xff] %v10855
    %10920 = vst [vmem:[#allocation3 + $0x28] sm:$0xff] %v10856
    %10921 = vst [vmem:[#allocation3 + $0x30] sm:$0xff] %v10857
    %10922 = vst [vmem:[#allocation3 + $0x38] sm:$0xff] %v10858
    %10923 = vst [vmem:[#allocation3 + $0x40] sm:$0xff] %v10859
    %10924 = vst [vmem:[#allocation3 + $0x48] sm:$0xff] %v10860
    %10925 = vst [vmem:[#allocation3 + $0x50] sm:$0xff] %v10861
    %10926 = vst [vmem:[#allocation3 + $0x58] sm:$0xff] %v10862
    %10927 = vst [vmem:[#allocation3 + $0x60] sm:$0xff] %v10863
    %10928 = vst [vmem:[#allocation3 + $0x68] sm:$0xff] %v10864
    %10929 = vst [vmem:[#allocation3 + $0x70] sm:$0xff] %v10865
    %10930 = vst [vmem:[#allocation3 + $0x78] sm:$0xff] %v10866
    %10931 = vst [vmem:[#allocation3 + $0x80] sm:$0xff] %v10867
    %10932 = vst [vmem:[#allocation3 + $0x88] sm:$0xff] %v10868
    %10933 = vst [vmem:[#allocation3 + $0x90] sm:$0xff] %v10869
    %10934 = vst [vmem:[#allocation3 + $0x98] sm:$0xff] %v10870
    %10935 = vst [vmem:[#allocation3 + $0xa0] sm:$0xff] %v10871
    %10936 = vst [vmem:[#allocation3 + $0xa8] sm:$0xff] %v10872
    %10937 = vst [vmem:[#allocation3 + $0xb0] sm:$0xff] %v10873
    %10938 = vst [vmem:[#allocation3 + $0xb8] sm:$0xff] %v10874
    %10939 = vst [vmem:[#allocation3 + $0xc0] sm:$0xff] %v10875
    %10940 = vst [vmem:[#allocation3 + $0xc8] sm:$0xff] %v10876
    %10941 = vst [vmem:[#allocation3 + $0xd0] sm:$0xff] %v10877
    %10942 = vst [vmem:[#allocation3 + $0xd8] sm:$0xff] %v10878
    %10943 = vst [vmem:[#allocation3 + $0xe0] sm:$0xff] %v10879
    %10944 = vst [vmem:[#allocation3 + $0xe8] sm:$0xff] %v10880
    %10945 = vst [vmem:[#allocation3 + $0xf0] sm:$0xff] %v10881
    %10946 = vst [vmem:[#allocation3 + $0xf8] sm:$0xff] %v10882
    %10947 = vst [vmem:[#allocation3 + $0x100] sm:$0xff] %v10883
    %10948 = vst [vmem:[#allocation3 + $0x108] sm:$0xff] %v10884
    %10949 = vst [vmem:[#allocation3 + $0x110] sm:$0xff] %v10885
    %10950 = vst [vmem:[#allocation3 + $0x118] sm:$0xff] %v10886
    %10951 = vst [vmem:[#allocation3 + $0x120] sm:$0xff] %v10887
    %10952 = vst [vmem:[#allocation3 + $0x128] sm:$0xff] %v10888
    %10953 = vst [vmem:[#allocation3 + $0x130] sm:$0xff] %v10889
    %10954 = vst [vmem:[#allocation3 + $0x138] sm:$0xff] %v10890
    %10955 = vst [vmem:[#allocation3 + $0x140] sm:$0xff] %v10891
    %10956 = vst [vmem:[#allocation3 + $0x148] sm:$0xff] %v10892
    %10957 = vst [vmem:[#allocation3 + $0x150] sm:$0xff] %v10893
    %10958 = vst [vmem:[#allocation3 + $0x158] sm:$0xff] %v10894
    %10959 = vst [vmem:[#allocation3 + $0x160] sm:$0xff] %v10895
    %10960 = vst [vmem:[#allocation3 + $0x168] sm:$0xff] %v10896
    %10961 = vst [vmem:[#allocation3 + $0x170] sm:$0xff] %v10897
    %10962 = vst [vmem:[#allocation3 + $0x178] sm:$0xff] %v10898
    %10963 = vst [vmem:[#allocation3 + $0x180] sm:$0xff] %v10899
    %10964 = vst [vmem:[#allocation3 + $0x188] sm:$0xff] %v10900
    %10965 = vst [vmem:[#allocation3 + $0x190] sm:$0xff] %v10901
    %10966 = vst [vmem:[#allocation3 + $0x198] sm:$0xff] %v10902
    %10967 = vst [vmem:[#allocation3 + $0x1a0] sm:$0xff] %v10903
    %10968 = vst [vmem:[#allocation3 + $0x1a8] sm:$0xff] %v10904
    %10969 = vst [vmem:[#allocation3 + $0x1b0] sm:$0xff] %v10905
    %10970 = vst [vmem:[#allocation3 + $0x1b8] sm:$0xff] %v10906
    %10971 = vst [vmem:[#allocation3 + $0x1c0] sm:$0xff] %v10907
    %10972 = vst [vmem:[#allocation3 + $0x1c8] sm:$0xff] %v10908
    %10973 = vst [vmem:[#allocation3 + $0x1d0] sm:$0xff] %v10909
    %10974 = vst [vmem:[#allocation3 + $0x1d8] sm:$0xff] %v10910
    %10975 = vst [vmem:[#allocation3 + $0x1e0] sm:$0xff] %v10911
    %10976 = vst [vmem:[#allocation3 + $0x1e8] sm:$0xff] %v10912
    %10977 = vst [vmem:[#allocation3 + $0x1f0] sm:$0xff] %v10913
    %10978 = vst [vmem:[#allocation3 + $0x1f8] sm:$0xff] %v10914
    // Predicated region
    $region42: #{basic_block_forward.1} parent=1 // pred_check
      _
    $region43: #{basic_block_forward.1} parent=1 // pred_check_branch
      %10980 = sbr.rel (0) target = $region45
    $region44: #{basic_block_forward.1} parent=1 // pred_region
      %s10982 = ssub.s32 8192, 8192
      %10983 = vsyncadd [#allocation4], %s10982
      %s10984 = sshll.u32 [#allocation3], 4
      %s10985 = int_to_ptr.vmem [resolvable:$true] %s10984
      %10990 = dma.vmem_to_hbm [thread:$0]  %s10985, 8192, %s10, [#allocation4], 128, 128, 8
    $region45: #{basic_block_forward.1} parent=1 // pred_fallthru
      _
    // Predicated region
    $region46: #{basic_block_forward.1} parent=1 // pred_check
      _
    $region47: #{basic_block_forward.1} parent=1 // pred_check_branch
      %10992 = sbr.rel (0) target = $region49
    $region48: #{basic_block_forward.1} parent=1 // pred_region
      %10993 = dma.done [#allocation4], 8192
    $region49: #{basic_block_forward.1} parent=1 // pred_fallthru
      _
    %10994 = vsyncpa [#allocation4], 1

</llo_original>
